<compile_context>
chip_gen: v5e
topology: v5e:2x2
jax: 0.10.0
libtpu: 0.0.40
codegen_flags: <defaults>
</compile_context>

<pallas_src>
import functools
import math

import jax
import jax.numpy as jnp
from jax import lax
from jax.experimental import pallas as pl
from jax.experimental.pallas import tpu as pltpu


# ---------------------------------------------------------------------------
# Pallas kernel 1: generic conv (multi-dilated 3x3 or 1x1) with VMEM-resident
# padded input, in-kernel tap loop, f32 accumulator and fused channel concat.
# ---------------------------------------------------------------------------
def _conv_kernel(x_ref, w_ref, b_ref, o_ref, acc_ref, *,
                 offsets, th, w_out, cin, cout, pad, concat):
    i = pl.program_id(1)
    row0 = i * th

    acc_ref[...] = jnp.zeros_like(acc_ref)
    for t, (dr, dc) in enumerate(offsets):            # static unrolled tap loop
        patch = x_ref[0, pl.ds(row0 + dr, th), pl.ds(dc, w_out), :]  # (th,W,cin)
        if w_out % 16:                                 # keep reshape layout-safe
            patch = patch.astype(jnp.float32)
        acc_ref[...] += jnp.dot(patch.reshape(th * w_out, cin), w_ref[t],
                                preferred_element_type=jnp.float32)

    res = (acc_ref[...] + b_ref[...]).reshape(th, w_out, cout).astype(o_ref.dtype)
    if concat:                                         # fused torch.concat((x, out))
        x_pass = x_ref[0, pl.ds(row0 + pad, th), pl.ds(pad, w_out), :]
        res = jnp.concatenate([x_pass, res], axis=-1)
    o_ref[0] = res


def _lanes(c):
    return ((c + 127) // 128) * 128


def _pick_th(h, w, cin, cout, call):
    """Largest row tile whose (lane-padded) working set stays ~<=8MB."""
    per_px = 4 * _lanes(call) + 8 * _lanes(cout) + 2 * _lanes(cin)
    th = h
    while th % 2 == 0 and th * w * per_px > 8 * 1024 * 1024:
        th //= 2
    return th


@functools.partial(jax.jit, static_argnames=("offsets", "pad", "concat"))
def conv_block(x, w_taps, bias, *, offsets, pad, concat):
    """x: (B,H,W,Cin) bf16.  w_taps: (T,Cin,Cout) bf16.  bias: (Cout,) f32.
    Computes sum over taps of shifted-x @ w_tap (+bias); optionally fuses the
    D3Net channel concat so the output is (B,H,W,Cin+Cout)."""
    B, H, W, Cin = x.shape
    T, _, Cout = w_taps.shape
    Call = Cin + Cout if concat else Cout
    if pad:
        x = jnp.pad(x, ((0, 0), (pad, pad), (pad, pad), (0, 0)))
    Hp, Wp = H + 2 * pad, W + 2 * pad

    th = _pick_th(H, W, Cin, Cout, Call)
    n_h = H // th
    kern = functools.partial(_conv_kernel, offsets=offsets, th=th, w_out=W,
                             cin=Cin, cout=Cout, pad=pad, concat=concat)
    return pl.pallas_call(
        kern,
        out_shape=jax.ShapeDtypeStruct((B, H, W, Call), jnp.bfloat16),
        grid_spec=pltpu.PrefetchScalarGridSpec(
            num_scalar_prefetch=0,
            grid=(B, n_h),
            in_specs=[
                pl.BlockSpec((1, Hp, Wp, Cin), lambda b, i: (b, 0, 0, 0)),
                pl.BlockSpec((T, Cin, Cout), lambda b, i: (0, 0, 0)),
                pl.BlockSpec((1, Cout), lambda b, i: (0, 0)),
            ],
            out_specs=pl.BlockSpec((1, th, W, Call), lambda b, i: (b, i, 0, 0)),
            scratch_shapes=[pltpu.VMEM((th * W, Cout), jnp.float32)],
        ),
        compiler_params=pltpu.CompilerParams(
            dimension_semantics=("parallel", "parallel"),
            vmem_limit_bytes=48 * 1024 * 1024),
    )(x, w_taps, bias.reshape(1, Cout).astype(jnp.float32))


# ---------------------------------------------------------------------------
# Pallas kernel 2: 2x2 average pool (selection done in-kernel; input view
# (B,H,W/2,2C) is a free metadata reshape, no XLA strided copies).
# ---------------------------------------------------------------------------
def _pool_kernel(x_ref, o_ref):
    v = x_ref[0].astype(jnp.float32)            # (H, Wo, 2C)
    c = v.shape[-1] // 2
    s = v[:, :, :c] + v[:, :, c:]               # horizontal pair-sum
    s = s.reshape(s.shape[0] // 2, 2, s.shape[1], c)
    o_ref[0] = ((s[:, 0] + s[:, 1]) * 0.25).astype(o_ref.dtype)


@jax.jit
def avgpool2(x):
    B, H, W, C = x.shape
    Ho, Wo = H // 2, W // 2
    xr = x.reshape(B, H, Wo, 2 * C)             # free (contiguous) reshape
    return pl.pallas_call(
        _pool_kernel,
        out_shape=jax.ShapeDtypeStruct((B, Ho, Wo, C), x.dtype),
        grid_spec=pltpu.PrefetchScalarGridSpec(
            num_scalar_prefetch=0,
            grid=(B,),
            in_specs=[pl.BlockSpec((1, H, Wo, 2 * C), lambda b: (b, 0, 0, 0))],
            out_specs=pl.BlockSpec((1, Ho, Wo, C), lambda b: (b, 0, 0, 0)),
        ),
        compiler_params=pltpu.CompilerParams(
            dimension_semantics=("parallel",),
            vmem_limit_bytes=48 * 1024 * 1024),
    )(xr)


# ---------------------------------------------------------------------------
# Pallas kernel 3: dense (x @ w + b) for the GRU input projection and the
# final Linear (single VMEM-resident block, MXU dot, f32 accumulation).
# ---------------------------------------------------------------------------
def _dense_kernel(x_ref, w_ref, b_ref, o_ref):
    o_ref[...] = jnp.dot(x_ref[...], w_ref[...],
                         preferred_element_type=jnp.float32) + b_ref[...]


@jax.jit
def dense(x, w, b):
    M = x.shape[0]
    C = w.shape[1]
    return pl.pallas_call(
        _dense_kernel,
        out_shape=jax.ShapeDtypeStruct((M, C), jnp.float32),
    )(x, w, b.reshape(1, C).astype(jnp.float32))


# ---------------------------------------------------------------------------
# Pallas kernel 4: GRU recurrence (PyTorch gate order r,z,n; h0 = 0).
# xr/xz already include b_ih+b_hr / b_ih+b_hz; xn includes b_in only.
# One fused (B,160)@(160,480) bf16 dot per step; 162 steps, unrolled x3.
# ---------------------------------------------------------------------------
def _gru_kernel(xr_ref, xz_ref, xn_ref, whh_ref, bhn_ref, o_ref):
    S, B, H = xr_ref.shape

    def step(t, h):
        hh = jnp.dot(h.astype(whh_ref.dtype), whh_ref[...],
                     preferred_element_type=jnp.float32)       # (B, 3H)
        r = jax.nn.sigmoid(xr_ref[t] + hh[:, :H])
        z = jax.nn.sigmoid(xz_ref[t] + hh[:, H:2 * H])
        n = jnp.tanh(xn_ref[t] + r * (hh[:, 2 * H:] + bhn_ref[...]))
        h_new = (1.0 - z) * n + z * h
        o_ref[t] = h_new
        return h_new

    def step3(j, h):                           # manual unroll by 3 (162 = 54*3)
        for k in range(3):
            h = step(j * 3 + k, h)
        return h

    lax.fori_loop(0, S // 3, step3, jnp.zeros((B, H), jnp.float32))


@jax.jit
def gru(xproj, whh, bhn):
    S, B, H3 = xproj.shape
    H = H3 // 3
    xr = xproj[..., :H]
    xz = xproj[..., H:2 * H]
    xn = xproj[..., 2 * H:]
    return pl.pallas_call(
        _gru_kernel,
        out_shape=jax.ShapeDtypeStruct((S, B, H), jnp.float32),
    )(xr, xz, xn, whh, bhn)


# ---------------------------------------------------------------------------
# Parameter construction (deterministic, PyTorch-default-style uniform init)
# ---------------------------------------------------------------------------
def _uniform(key, shape, bound):
    return jax.random.uniform(key, shape, jnp.float32, -bound, bound)


def init_conv(key, cin, cout, k):
    kw, kb = jax.random.split(key)
    bound = 1.0 / math.sqrt(cin * k * k)
    return {"w": _uniform(kw, (k, k, cin, cout), bound),
            "b": _uniform(kb, (cout,), bound)}


def init_multidilated(key, cin, cout, k, dfs):
    convs = []
    for j, d in enumerate(dfs):
        c = init_conv(jax.random.fold_in(key, j), cin, cout - cin, k)
        c["d"] = d
        convs.append(c)
    return convs


def init_d2(key, cin, k, growth, bneck, dfs):
    p = {"bottleneck": None, "layers": []}
    if cin > bneck:
        p["bottleneck"] = init_conv(jax.random.fold_in(key, 1000), cin, bneck, 1)
        cin = bneck
    for i in range(len(dfs)):
        p["layers"].append(
            init_multidilated(jax.random.fold_in(key, i), cin, cin + growth, k,
                              dfs[:i + 1]))
        cin += growth
    return p


def init_d3(key, cin, M, L, k, B=None):
    if B is None:
        B = 4 * k
    blocks = []
    for m in range(M):
        blocks.append(init_d2(jax.random.fold_in(key, m), cin, 3, k, B,
                              [2 ** i for i in range(L)]))
        if cin > B:
            cin = B + k * L
        else:
            cin += k * L
    return blocks


def init_network(key):
    keys = jax.random.split(key, 16)
    p = {}
    p["d3_1"] = init_d3(keys[0], 7, 4, 4, 16, 2)    # out channels 66
    p["conv1"] = init_conv(keys[1], 66, 33, 1)
    p["d3_2"] = init_d3(keys[2], 33, 4, 4, 24, 2)   # out channels 98
    p["conv2"] = init_conv(keys[3], 98, 49, 1)
    p["d3_3"] = init_d3(keys[4], 49, 4, 4, 32, 2)   # out channels 130
    p["conv3"] = init_conv(keys[5], 130, 65, 1)
    p["d3_4"] = init_d3(keys[6], 65, 4, 4, 40, 2)   # out channels 162
    hb = 1.0 / math.sqrt(160)
    p["gru"] = {"w_ih": _uniform(keys[7], (480, 60), hb),
                "w_hh": _uniform(keys[8], (480, 160), hb),
                "b_ih": _uniform(keys[9], (480,), hb),
                "b_hh": _uniform(keys[10], (480,), hb)}
    lb = 1.0 / math.sqrt(160 * 162)
    p["linear"] = {"w": _uniform(keys[11], (117, 160 * 162), lb),
                   "b": _uniform(keys[12], (117,), lb)}
    return p


# ---------------------------------------------------------------------------
# One-time weight preparation: stack conv taps (T,Cin,Cout), cast to bf16,
# sum multi-dilation biases, fold GRU b_hr/b_hz into the input projection.
# ---------------------------------------------------------------------------
def prep_conv1x1(c):
    cin, cout = c["w"].shape[2], c["w"].shape[3]
    return {"w": jnp.reshape(c["w"], (1, cin, cout)).astype(jnp.bfloat16),
            "b": c["b"].astype(jnp.float32),
            "offsets": ((0, 0),), "pad": 0, "concat": False}


def prep_multidilated(convs):
    P = max(c["d"] for c in convs)          # single pad for the max dilation
    offs, wts = [], []
    bias = None
    for c in convs:
        d = c["d"]
        for kh in range(3):
            for kw in range(3):
                offs.append((P + (kh - 1) * d, P + (kw - 1) * d))
                wts.append(c["w"][kh, kw])
        bias = c["b"] if bias is None else bias + c["b"]
    return {"w": jnp.stack(wts, 0).astype(jnp.bfloat16),
            "b": bias.astype(jnp.float32),
            "offsets": tuple(offs), "pad": P, "concat": True}


def prep_d2(b):
    return {"bottleneck": (prep_conv1x1(b["bottleneck"])
                           if b["bottleneck"] is not None else None),
            "layers": [prep_multidilated(l) for l in b["layers"]]}


def prepare_params(p):
    q = {}
    for name in ("d3_1", "d3_2", "d3_3", "d3_4"):
        q[name] = [prep_d2(b) for b in p[name]]
    for name in ("conv1", "conv2", "conv3"):
        q[name] = prep_conv1x1(p[name])
    H = 160
    b_hh = p["gru"]["b_hh"]
    q["gru"] = {
        "w_ih_t": jnp.transpose(p["gru"]["w_ih"]).astype(jnp.bfloat16),   # (60,480)
        "bias_x": p["gru"]["b_ih"] + jnp.concatenate(
            [b_hh[:H], b_hh[H:2 * H], jnp.zeros((H,), jnp.float32)]),
        "w_hh_t": jnp.transpose(p["gru"]["w_hh"]).astype(jnp.bfloat16),   # (160,480)
        "b_hn": b_hh[2 * H:].reshape(1, H).astype(jnp.float32),
    }
    q["linear"] = {"w_t": jnp.transpose(p["linear"]["w"]).astype(jnp.bfloat16),
                   "b": p["linear"]["b"].astype(jnp.float32)}
    return q


# ---------------------------------------------------------------------------
# Full network forward
# ---------------------------------------------------------------------------
def run_conv(cfg, x):
    return conv_block(x, cfg["w"], cfg["b"], offsets=cfg["offsets"],
                      pad=cfg["pad"], concat=cfg["concat"])


def d2_fwd(q, x):
    if q["bottleneck"] is not None:
        x = run_conv(q["bottleneck"], x)
    for layer in q["layers"]:
        x = run_conv(layer, x)
    return x


def d3_fwd(q, x):
    for blk in q:
        x = d2_fwd(blk, x)
    return x


def network_forward(q, x_nchw):
    x = jnp.transpose(x_nchw, (0, 2, 3, 1)).astype(jnp.bfloat16)   # NCHW -> NHWC

    x = d3_fwd(q["d3_1"], x)
    x = run_conv(q["conv1"], x)
    x = avgpool2(x)
    x = d3_fwd(q["d3_2"], x)
    x = run_conv(q["conv2"], x)
    x = avgpool2(x)
    x = d3_fwd(q["d3_3"], x)
    x = run_conv(q["conv3"], x)
    x = avgpool2(x)
    x = d3_fwd(q["d3_4"], x)
    x = avgpool2(x)

    # nn.Flatten(start_dim=-2, end_dim=-1) on NCHW -> (B, C=162, H*W=60)
    B, H, W, C = x.shape
    seq = jnp.transpose(x, (0, 3, 1, 2)).reshape(B, C, H * W)      # (B,162,60)
    S, F = C, H * W

    # GRU(60, 160): input projection for all timesteps (b_hr/b_hz pre-folded)
    xproj = dense(seq.reshape(B * S, F).astype(jnp.bfloat16),
                  q["gru"]["w_ih_t"], q["gru"]["bias_x"])           # (B*S,480) f32
    xproj = xproj.reshape(B, S, 480).transpose(1, 0, 2)             # (S,B,480)
    gout = gru(xproj, q["gru"]["w_hh_t"], q["gru"]["b_hn"])         # (S,B,160)

    # class_layer: Linear(160*162, 117) on A.reshape(B, S*160)
    flat = jnp.transpose(gout, (1, 0, 2)).reshape(B, S * 160)
    logits = dense(flat.astype(jnp.bfloat16),
                   q["linear"]["w_t"], q["linear"]["b"])            # (B,117) f32
    return logits.reshape(B, 3, 3, 13)


# ---------------------------------------------------------------------------
if __name__ == "__main__":
    key = jax.random.PRNGKey(0)
    pkey, xkey = jax.random.split(key)
    params = init_network(pkey)
    prepped = prepare_params(params)

    # Input NCHW (batch=2, C=7, H=80, W=192).  The architecture forces
    # (H/16)*(W/16) == 60 (GRU input size) and 162 output channels (seq len),
    # so 80x192 is a minimal consistent spatial size.
    x = jax.random.normal(xkey, (2, 7, 80, 192), jnp.float32)

    out = network_forward(prepped, x)
    out = jax.block_until_ready(out)
    assert out.shape == (2, 3, 3, 13) and out.dtype == jnp.float32
    print("KERNEL_OK")
</pallas_src>

<mosaic_0001>
module attributes {stable_mosaic.version = 11 : i64} {
  func.func @_conv_kernel(%arg0: i32, %arg1: i32, %arg2: memref<1x80x192x7xbf16, #tpu.memory_space<vmem>>, %arg3: memref<1x7x2xbf16, #tpu.memory_space<vmem>>, %arg4: memref<1x2xf32, #tpu.memory_space<vmem>>, %arg5: memref<1x20x192x2xbf16, #tpu.memory_space<vmem>>, %arg6: memref<3840x2xf32, #tpu.memory_space<vmem>>) attributes {dimension_semantics = [#tpu.dimension_semantics<parallel>, #tpu.dimension_semantics<parallel>], iteration_bounds = array<i64: 2, 4>, scalar_prefetch = 0 : i64, scratch_operands = 1 : i64, tpu.core_type = #tpu.core_type<tc>, window_params = [{transform_indices = @transform_0, window_bounds = array<i64: 1, 80, 192, 7>}, {pipeline_mode = #tpu.pipeline_mode<synchronous>, transform_indices = @transform_1, window_bounds = array<i64: 1, 7, 2>}, {pipeline_mode = #tpu.pipeline_mode<synchronous>, transform_indices = @transform_2, window_bounds = array<i64: 1, 2>}, {transform_indices = @transform_3, window_bounds = array<i64: 1, 20, 192, 2>}]} {
    %c20_i32 = arith.constant 20 : i32
    %0 = arith.muli %arg1, %c20_i32 : i32
    %cst = arith.constant 0.000000e+00 : f32
    %1 = vector.broadcast %cst : f32 to vector<3840x2xf32>
    %c0 = arith.constant 0 : index
    %c0_0 = arith.constant 0 : index
    %2 = vector.load %arg6[%c0, %c0_0] : memref<3840x2xf32, #tpu.memory_space<vmem>>, vector<3840x2xf32>
    tpu.vector_store %arg6[%c0, %c0_0], %1 {strides = array<i32>} : memref<3840x2xf32, #tpu.memory_space<vmem>>, vector<3840x2xf32>,
    %c0_i32 = arith.constant 0 : i32
    %3 = arith.addi %0, %c0_i32 : i32
    %c0_1 = arith.constant 0 : index
    %4 = arith.index_cast %3 : i32 to index
    %c0_2 = arith.constant 0 : index
    %c0_3 = arith.constant 0 : index
    %5 = vector.load %arg2[%c0_1, %4, %c0_2, %c0_3] : memref<1x80x192x7xbf16, #tpu.memory_space<vmem>>, vector<1x20x192x7xbf16>
    %6 = vector.shape_cast %5 : vector<1x20x192x7xbf16> to vector<20x192x7xbf16>
    %c0_4 = arith.constant 0 : index
    %c0_5 = arith.constant 0 : index
    %7 = vector.load %arg6[%c0_4, %c0_5] : memref<3840x2xf32, #tpu.memory_space<vmem>>, vector<3840x2xf32>
    %8 = vector.shape_cast %6 : vector<20x192x7xbf16> to vector<3840x7xbf16>
    %c0_6 = arith.constant 0 : index
    %c0_7 = arith.constant 0 : index
    %c0_8 = arith.constant 0 : index
    %9 = vector.load %arg3[%c0_6, %c0_7, %c0_8] : memref<1x7x2xbf16, #tpu.memory_space<vmem>>, vector<1x7x2xbf16>
    %10 = vector.shape_cast %9 : vector<1x7x2xbf16> to vector<7x2xbf16>
    %cst_9 = arith.constant dense<0.000000e+00> : vector<3840x2xf32>
    %11 = tpu.matmul %8, %10, %cst_9 {dimension_numbers = #tpu.dot_dimension_numbers<[1], [0], [0], [1], [0, 0, 1, 1], [], []>} : vector<3840x7xbf16>, vector<7x2xbf16>, vector<3840x2xf32> -> vector<3840x2xf32>
    %12 = arith.addf %7, %11 : vector<3840x2xf32>
    %c0_10 = arith.constant 0 : index
    %c0_11 = arith.constant 0 : index
    %13 = vector.load %arg6[%c0_10, %c0_11] : memref<3840x2xf32, #tpu.memory_space<vmem>>, vector<3840x2xf32>
    tpu.vector_store %arg6[%c0_10, %c0_11], %12 {strides = array<i32>} : memref<3840x2xf32, #tpu.memory_space<vmem>>, vector<3840x2xf32>,
    %c0_12 = arith.constant 0 : index
    %c0_13 = arith.constant 0 : index
    %14 = vector.load %arg6[%c0_12, %c0_13] : memref<3840x2xf32, #tpu.memory_space<vmem>>, vector<3840x2xf32>
    %c0_14 = arith.constant 0 : index
    %c0_15 = arith.constant 0 : index
    %15 = vector.load %arg4[%c0_14, %c0_15] : memref<1x2xf32, #tpu.memory_space<vmem>>, vector<1x2xf32>
    %16 = vector.broadcast %15 : vector<1x2xf32> to vector<3840x2xf32>
    %17 = arith.addf %14, %16 : vector<3840x2xf32>
    %18 = vector.shape_cast %17 : vector<3840x2xf32> to vector<20x192x2xf32>
    %19 = arith.truncf %18 : vector<20x192x2xf32> to vector<20x192x2xbf16>
    %c0_16 = arith.constant 0 : index
    %c0_17 = arith.constant 0 : index
    %c0_18 = arith.constant 0 : index
    %c0_19 = arith.constant 0 : index
    %20 = vector.load %arg5[%c0_16, %c0_17, %c0_18, %c0_19] : memref<1x20x192x2xbf16, #tpu.memory_space<vmem>>, vector<1x20x192x2xbf16>
    %21 = vector.shape_cast %20 : vector<1x20x192x2xbf16> to vector<20x192x2xbf16>
    %22 = vector.shape_cast %19 : vector<20x192x2xbf16> to vector<1x20x192x2xbf16>
    tpu.vector_store %arg5[%c0_16, %c0_17, %c0_18, %c0_19], %22 {strides = array<i32>} : memref<1x20x192x2xbf16, #tpu.memory_space<vmem>>, vector<1x20x192x2xbf16>,
    return
  }
  func.func @transform_0(%arg0: i32, %arg1: i32) -> (i32, i32, i32, i32) {
    %c0_i32 = arith.constant 0 : i32
    %c0_i32_0 = arith.constant 0 : i32
    %c0_i32_1 = arith.constant 0 : i32
    %c0_i32_2 = arith.constant 0 : i32
    return %arg0, %c0_i32, %c0_i32_0, %c0_i32_1 : i32, i32, i32, i32
  }
  func.func @transform_1(%arg0: i32, %arg1: i32) -> (i32, i32, i32) {
    %c0_i32 = arith.constant 0 : i32
    %c0_i32_0 = arith.constant 0 : i32
    %c0_i32_1 = arith.constant 0 : i32
    %c0_i32_2 = arith.constant 0 : i32
    return %c0_i32, %c0_i32_0, %c0_i32_1 : i32, i32, i32
  }
  func.func @transform_2(%arg0: i32, %arg1: i32) -> (i32, i32) {
    %c0_i32 = arith.constant 0 : i32
    %c0_i32_0 = arith.constant 0 : i32
    %c0_i32_1 = arith.constant 0 : i32
    return %c0_i32, %c0_i32_0 : i32, i32
  }
  func.func @transform_3(%arg0: i32, %arg1: i32) -> (i32, i32, i32, i32) {
    %c0_i32 = arith.constant 0 : i32
    %c0_i32_0 = arith.constant 0 : i32
    %c0_i32_1 = arith.constant 0 : i32
    return %arg0, %arg1, %c0_i32, %c0_i32_0 : i32, i32, i32, i32
  }
}

</mosaic_0001>

<llo_original>
// kernel: conv_block.1
$region0: #{conv_block.1}
  #allocation0 [shape = 'u32[]', space=smem, size = 0x4, offset = 0x4, fixed_abs, tag = 'smem constant byte address 0x4 - core index']
  #allocation1 [shape = 'u32[72,128]{1,0:T(1,128)}', space=vmem, size = 0x9000, scoped, tag = 'internal scratch']
  #allocation2 [shape = 'f32[3840,2]{1,0:T(8,128)}', space=vmem, size = 0x1e0000, scoped, tag = 'scratch operand']
  %s0 = inlined_call_operand.vmem [shape: bf16[2,80,192,7], index: 0, kind: input, shape index: {}]
  %s1 = inlined_call_operand.vmem [shape: bf16[1,7,2], index: 1, kind: input, shape index: {}]
  %s2 = inlined_call_operand.vmem [shape: f32[1,2], index: 2, kind: input, shape index: {}]
  %s3 = inlined_call_operand.vmem [shape: bf16[2,80,192,2], index: 3, kind: output, shape index: {}]
  %s4 = sld [smem:[#allocation0]]
  $region45: #{conv_block.1} parent=0
    _
  %s6 = ssub.s32 1, %s4
  %s7 = scalar_select 0, %s6, %s4
  loop: start=0, step=1, limit=10
  $region2: #{conv_block.1} parent=0 // loop_pre_header
    _
  $region3: #{conv_block.1} parent=0 // loop_header
    %s9 = sphi 0, %s13
    %p10 = scmp.ge.s32.totalorder %s9, 10
    %s16 = sphi 0, %s28
    %s17 = sphi 0, %s24
    %s18 = sphi 0, %s16
    %s19 = sphi 0, %s17
    %s20 = sphi 0, %s18
    %s21 = sphi 0, %s19
    %s31 = sphi 0, %s33
    %s34 = sphi 0, %s31
    %s35 = sphi 0, %s34
    %s51 = sphi 0, %s35
    %s55 = sphi 0, %s55
    %s57 = sphi 0, %s55
    %s58 = sphi 0, %s57
    %s72 = sphi 0, %s58
    %s76 = sphi 0, %s76
    %s78 = sphi 0, %s76
    %s79 = sphi 0, %s78
    %s93 = sphi 0, %s79
    %s101 = sphi 0, %s103
    %s104 = sphi 0, %s101
    %s105 = sphi 0, %s104
    %s121 = sphi 0, %s105
  $region4: #{conv_block.1} parent=0 // loop_header_branch
    %12 = sbr.rel (%p10) target = $region8
  $region5: #{conv_block.1} parent=0 // loop_body
    %s14 = ssub.s32 %s9, 1
    %s15 = ssub.s32 %s9, 2
    %s22 = sadd.s32 1, %s17
    %p23 = scmp.ge.s32.totalorder %s22, 4
    %s24 = scalar_select %p23, 0, %s22
    %s25 = sadd.s32 1, %s16
    %s26 = scalar_select %p23, %s25, %s16
    %p27 = scmp.ge.s32.totalorder %s26, 2
    %s28 = scalar_select %p27, 0, %s26
    %s29 = ssub.s32 %s16, %s28
    %p30 = scmp.eq.s32.totalorder %s29, 0
    %s32 = sadd.s32 %s31, 1
    %s33 = scalar_select %p30, %s31, %s32
    %p36 = pneg %p30
    %p37 = scmp.eq.s32.totalorder %s9, 7
    %p38 = por %p36, %p37
    %p39 = scmp.ne.s32.totalorder %s31, %s34
    %p40 = scmp.eq.s32.totalorder %s9, 0
    %p41 = por %p39, %p40
    %p42 = scmp.ne.s32.totalorder %s31, %s34
    %p43 = scmp.eq.s32.totalorder %s14, 7
    %p44 = por %p42, %p43
    %p45 = scmp.ne.s32.totalorder %s34, %s35
    %p46 = scmp.eq.s32.totalorder %s14, 0
    %p47 = por %p45, %p46
    %p48 = scmp.ne.s32.totalorder %s34, %s35
    %p49 = scmp.eq.s32.totalorder %s15, 7
    %p50 = por %p48, %p49
    %p52 = scmp.ne.s32.totalorder %s35, %s51
    %p53 = scmp.eq.s32.totalorder %s15, 0
    %p54 = por %p52, %p53
    %s56 = sadd.s32 %s55, 1
    %p59 = scmp.eq.s32.totalorder %s9, 7
    %p60 = scmp.ne.s32.totalorder %s55, %s57
    %p61 = scmp.eq.s32.totalorder %s9, 0
    %p62 = por %p60, %p61
    %p63 = scmp.ne.s32.totalorder %s55, %s57
    %p64 = scmp.eq.s32.totalorder %s14, 7
    %p65 = por %p63, %p64
    %p66 = scmp.ne.s32.totalorder %s57, %s58
    %p67 = scmp.eq.s32.totalorder %s14, 0
    %p68 = por %p66, %p67
    %p69 = scmp.ne.s32.totalorder %s57, %s58
    %p70 = scmp.eq.s32.totalorder %s15, 7
    %p71 = por %p69, %p70
    %p73 = scmp.ne.s32.totalorder %s58, %s72
    %p74 = scmp.eq.s32.totalorder %s15, 0
    %p75 = por %p73, %p74
    %s77 = sadd.s32 %s76, 1
    %p80 = scmp.eq.s32.totalorder %s9, 7
    %p81 = scmp.ne.s32.totalorder %s76, %s78
    %p82 = scmp.eq.s32.totalorder %s9, 0
    %p83 = por %p81, %p82
    %p84 = scmp.ne.s32.totalorder %s76, %s78
    %p85 = scmp.eq.s32.totalorder %s14, 7
    %p86 = por %p84, %p85
    %p87 = scmp.ne.s32.totalorder %s78, %s79
    %p88 = scmp.eq.s32.totalorder %s14, 0
    %p89 = por %p87, %p88
    %p90 = scmp.ne.s32.totalorder %s78, %s79
    %p91 = scmp.eq.s32.totalorder %s15, 7
    %p92 = por %p90, %p91
    %p94 = scmp.ne.s32.totalorder %s79, %s93
    %p95 = scmp.eq.s32.totalorder %s15, 0
    %p96 = por %p94, %p95
    %s97 = ssub.s32 %s16, %s28
    %s98 = ssub.s32 %s17, %s24
    %s99 = sor.u32 %s97, %s98
    %p100 = scmp.eq.s32.totalorder %s99, 0
    %s102 = sadd.s32 %s101, 1
    %s103 = scalar_select %p100, %s101, %s102
    %p106 = pneg %p100
    %p107 = scmp.eq.s32.totalorder %s9, 7
    %p108 = por %p106, %p107
    %p109 = scmp.ne.s32.totalorder %s101, %s104
    %p110 = scmp.eq.s32.totalorder %s9, 0
    %p111 = por %p109, %p110
    %p112 = scmp.ne.s32.totalorder %s101, %s104
    %p113 = scmp.eq.s32.totalorder %s14, 7
    %p114 = por %p112, %p113
    %p115 = scmp.ne.s32.totalorder %s104, %s105
    %p116 = scmp.eq.s32.totalorder %s14, 0
    %p117 = por %p115, %p116
    %p118 = scmp.ne.s32.totalorder %s104, %s105
    %p119 = scmp.eq.s32.totalorder %s15, 7
    %p120 = por %p118, %p119
    %p122 = scmp.ne.s32.totalorder %s105, %s121
    %p123 = scmp.eq.s32.totalorder %s15, 0
    %p124 = por %p122, %p123
    %p125 = scmp.le.s32.totalorder 1, %s9
    %p126 = scmp.lt.s32.totalorder %s9, 9
    %p127 = pnand %p125, %p126
    %p128 = pneg %p127
    // Predicated region
    $region9: #{conv_block.1} parent=5 // pred_check
      _
    $region10: #{conv_block.1} parent=5 // pred_check_branch
      %130 = sbr.rel (%p127) target = $region12
    $region11: #{conv_block.1} parent=5 // pred_region
      %s131 = ssub.s32 %s9, 1
      // Predicated region
      $region13: #{conv_block.1} parent=11 // pred_check
        %p132 = pneg %p68
      $region14: #{conv_block.1} parent=11 // pred_check_branch
        %134 = sbr.rel (%p132) target = $region16
      $region15: #{conv_block.1} parent=11 // pred_region
        _
      $region16: #{conv_block.1} parent=11 // pred_fallthru
        _
      // Predicated region
      $region17: #{conv_block.1} parent=11 // pred_check
        %p135 = pneg %p89
      $region18: #{conv_block.1} parent=11 // pred_check_branch
        %137 = sbr.rel (%p135) target = $region20
      $region19: #{conv_block.1} parent=11 // pred_region
        _
      $region20: #{conv_block.1} parent=11 // pred_fallthru
        _
    $region12: #{conv_block.1} parent=5 // pred_fallthru
      _
    %p138 = scmp.lt.s32.totalorder %s9, 8
    // Predicated region
    $region21: #{conv_block.1} parent=5 // pred_check
      %p139 = pneg %p138
    $region22: #{conv_block.1} parent=5 // pred_check_branch
      %141 = sbr.rel (%p139) target = $region24
    $region23: #{conv_block.1} parent=5 // pred_region
      // Predicated region
      $region25: #{conv_block.1} parent=23 // pred_check
        %p142 = pneg %p41
      $region26: #{conv_block.1} parent=23 // pred_check_branch
        %144 = sbr.rel (%p142) target = $region28
      $region27: #{conv_block.1} parent=23 // pred_region
        %p145 = scmp.lt.s32.totalorder %s16, 1
        %s146 = scalar_select %p145, %s16, 1
        %s147 = smul.addr %s146, 1920
        %s148 = smul.addr %s147, 4
        %s149 = scalar_lea.vmem %s0, %s148
      $region28: #{conv_block.1} parent=23 // pred_fallthru
        _
    $region24: #{conv_block.1} parent=5 // pred_fallthru
      _
    %p150 = scmp.le.s32.totalorder 1, %s9
    %p151 = scmp.lt.s32.totalorder %s9, 9
    %p152 = pnand %p150, %p151
    %p153 = pneg %p152
    // Predicated region
    $region29: #{conv_block.1} parent=5 // pred_check
      _
    $region30: #{conv_block.1} parent=5 // pred_check_branch
      %155 = sbr.rel (%p152) target = $region32
    $region31: #{conv_block.1} parent=5 // pred_region
      %s156 = ssub.s32 %s9, 1
      %p157 = scmp.lt.s32.totalorder %s18, 1
      %s158 = scalar_select %p157, %s18, 1
      %s159 = smul.addr %s158, 1920
      %s160 = smul.addr %s159, 4
      %s161 = scalar_lea.vmem %s0, %s160
      %p162 = pneg %p47
      %p163 = pneg %p44
      %p164 = pneg %p68
      %p165 = pneg %p65
      %p166 = pneg %p89
      %p167 = pneg %p86
      %p168 = pneg %p117
      %p169 = pneg %p114
      %s170 = smul.u32 20, %s19
      %p171 = scmp.lt.s32.totalorder %s18, 1
      %s172 = scalar_select %p171, %s18, 1
      %p173 = scmp.lt.s32.totalorder %s170, 79
      %s174 = scalar_select %p173, %s170, 79
      %s175 = smul.addr %s174, 24
      %s176 = smul.addr %s172, 1920
      %s177 = sadd.s32 %s175, %s176
      %s178 = smul.addr %s177, 4
      %s179 = scalar_lea.vmem %s3, %s178
      %p180 = scmp.lt.s32.totalorder %s18, 1
      %s181 = scalar_select %p180, %s18, 1
      %s182 = smul.addr %s181, 1920
      %s183 = smul.addr %s182, 4
      %s184 = scalar_lea.vmem %s0, %s183
      %s185 = smul.u32 20, %s19
      %p186 = scmp.lt.s32.totalorder %s18, 1
      %s187 = scalar_select %p186, %s18, 1
      %p188 = scmp.lt.s32.totalorder %s185, 79
      %s189 = scalar_select %p188, %s185, 79
      %s190 = smul.addr %s189, 24
      %s191 = smul.addr %s187, 1920
      %s192 = sadd.s32 %s190, %s191
      %s193 = smul.addr %s192, 4
      %s194 = scalar_lea.vmem %s3, %s193
      %s195 = smul.u32 20, %s19
      %s197 = smul.u32 %s19, 20
      %vm198 = vcmask 15360
      %199 = vst.msk [vmem:[#allocation2] sm:$0xff] %vm198, 0.0
      %200 = vst.msk [vmem:[#allocation2 + $0x8] sm:$0xff] %vm198, 0.0
      %201 = vst.msk [vmem:[#allocation2 + $0x10] sm:$0xff] %vm198, 0.0
      %202 = vst.msk [vmem:[#allocation2 + $0x18] sm:$0xff] %vm198, 0.0
      %203 = vst.msk [vmem:[#allocation2 + $0x20] sm:$0xff] %vm198, 0.0
      %204 = vst.msk [vmem:[#allocation2 + $0x28] sm:$0xff] %vm198, 0.0
      %205 = vst.msk [vmem:[#allocation2 + $0x30] sm:$0xff] %vm198, 0.0
      %206 = vst.msk [vmem:[#allocation2 + $0x38] sm:$0xff] %vm198, 0.0
      %207 = vst.msk [vmem:[#allocation2 + $0x40] sm:$0xff] %vm198, 0.0
      %208 = vst.msk [vmem:[#allocation2 + $0x48] sm:$0xff] %vm198, 0.0
      %209 = vst.msk [vmem:[#allocation2 + $0x50] sm:$0xff] %vm198, 0.0
      %210 = vst.msk [vmem:[#allocation2 + $0x58] sm:$0xff] %vm198, 0.0
      %211 = vst.msk [vmem:[#allocation2 + $0x60] sm:$0xff] %vm198, 0.0
      %212 = vst.msk [vmem:[#allocation2 + $0x68] sm:$0xff] %vm198, 0.0
      %213 = vst.msk [vmem:[#allocation2 + $0x70] sm:$0xff] %vm198, 0.0
      %214 = vst.msk [vmem:[#allocation2 + $0x78] sm:$0xff] %vm198, 0.0
      %215 = vst.msk [vmem:[#allocation2 + $0x80] sm:$0xff] %vm198, 0.0
      %216 = vst.msk [vmem:[#allocation2 + $0x88] sm:$0xff] %vm198, 0.0
      %217 = vst.msk [vmem:[#allocation2 + $0x90] sm:$0xff] %vm198, 0.0
      %218 = vst.msk [vmem:[#allocation2 + $0x98] sm:$0xff] %vm198, 0.0
      %219 = vst.msk [vmem:[#allocation2 + $0xa0] sm:$0xff] %vm198, 0.0
      %220 = vst.msk [vmem:[#allocation2 + $0xa8] sm:$0xff] %vm198, 0.0
      %221 = vst.msk [vmem:[#allocation2 + $0xb0] sm:$0xff] %vm198, 0.0
      %222 = vst.msk [vmem:[#allocation2 + $0xb8] sm:$0xff] %vm198, 0.0
      %223 = vst.msk [vmem:[#allocation2 + $0xc0] sm:$0xff] %vm198, 0.0
      %224 = vst.msk [vmem:[#allocation2 + $0xc8] sm:$0xff] %vm198, 0.0
      %225 = vst.msk [vmem:[#allocation2 + $0xd0] sm:$0xff] %vm198, 0.0
      %226 = vst.msk [vmem:[#allocation2 + $0xd8] sm:$0xff] %vm198, 0.0
      %227 = vst.msk [vmem:[#allocation2 + $0xe0] sm:$0xff] %vm198, 0.0
      %228 = vst.msk [vmem:[#allocation2 + $0xe8] sm:$0xff] %vm198, 0.0
      %229 = vst.msk [vmem:[#allocation2 + $0xf0] sm:$0xff] %vm198, 0.0
      %230 = vst.msk [vmem:[#allocation2 + $0xf8] sm:$0xff] %vm198, 0.0
      %231 = vst.msk [vmem:[#allocation2 + $0x100] sm:$0xff] %vm198, 0.0
      %232 = vst.msk [vmem:[#allocation2 + $0x108] sm:$0xff] %vm198, 0.0
      %233 = vst.msk [vmem:[#allocation2 + $0x110] sm:$0xff] %vm198, 0.0
      %234 = vst.msk [vmem:[#allocation2 + $0x118] sm:$0xff] %vm198, 0.0
      %235 = vst.msk [vmem:[#allocation2 + $0x120] sm:$0xff] %vm198, 0.0
      %236 = vst.msk [vmem:[#allocation2 + $0x128] sm:$0xff] %vm198, 0.0
      %237 = vst.msk [vmem:[#allocation2 + $0x130] sm:$0xff] %vm198, 0.0
      %238 = vst.msk [vmem:[#allocation2 + $0x138] sm:$0xff] %vm198, 0.0
      %239 = vst.msk [vmem:[#allocation2 + $0x140] sm:$0xff] %vm198, 0.0
      %240 = vst.msk [vmem:[#allocation2 + $0x148] sm:$0xff] %vm198, 0.0
      %241 = vst.msk [vmem:[#allocation2 + $0x150] sm:$0xff] %vm198, 0.0
      %242 = vst.msk [vmem:[#allocation2 + $0x158] sm:$0xff] %vm198, 0.0
      %243 = vst.msk [vmem:[#allocation2 + $0x160] sm:$0xff] %vm198, 0.0
      %244 = vst.msk [vmem:[#allocation2 + $0x168] sm:$0xff] %vm198, 0.0
      %245 = vst.msk [vmem:[#allocation2 + $0x170] sm:$0xff] %vm198, 0.0
      %246 = vst.msk [vmem:[#allocation2 + $0x178] sm:$0xff] %vm198, 0.0
      %247 = vst.msk [vmem:[#allocation2 + $0x180] sm:$0xff] %vm198, 0.0
      %248 = vst.msk [vmem:[#allocation2 + $0x188] sm:$0xff] %vm198, 0.0
      %249 = vst.msk [vmem:[#allocation2 + $0x190] sm:$0xff] %vm198, 0.0
      %250 = vst.msk [vmem:[#allocation2 + $0x198] sm:$0xff] %vm198, 0.0
      %251 = vst.msk [vmem:[#allocation2 + $0x1a0] sm:$0xff] %vm198, 0.0
      %252 = vst.msk [vmem:[#allocation2 + $0x1a8] sm:$0xff] %vm198, 0.0
      %253 = vst.msk [vmem:[#allocation2 + $0x1b0] sm:$0xff] %vm198, 0.0
      %254 = vst.msk [vmem:[#allocation2 + $0x1b8] sm:$0xff] %vm198, 0.0
      %255 = vst.msk [vmem:[#allocation2 + $0x1c0] sm:$0xff] %vm198, 0.0
      %256 = vst.msk [vmem:[#allocation2 + $0x1c8] sm:$0xff] %vm198, 0.0
      %257 = vst.msk [vmem:[#allocation2 + $0x1d0] sm:$0xff] %vm198, 0.0
      %258 = vst.msk [vmem:[#allocation2 + $0x1d8] sm:$0xff] %vm198, 0.0
      %259 = vst.msk [vmem:[#allocation2 + $0x1e0] sm:$0xff] %vm198, 0.0
      %260 = vst.msk [vmem:[#allocation2 + $0x1e8] sm:$0xff] %vm198, 0.0
      %261 = vst.msk [vmem:[#allocation2 + $0x1f0] sm:$0xff] %vm198, 0.0
      %262 = vst.msk [vmem:[#allocation2 + $0x1f8] sm:$0xff] %vm198, 0.0
      %263 = vst.msk [vmem:[#allocation2 + $0x200] sm:$0xff] %vm198, 0.0
      %264 = vst.msk [vmem:[#allocation2 + $0x208] sm:$0xff] %vm198, 0.0
      %265 = vst.msk [vmem:[#allocation2 + $0x210] sm:$0xff] %vm198, 0.0
      %266 = vst.msk [vmem:[#allocation2 + $0x218] sm:$0xff] %vm198, 0.0
      %267 = vst.msk [vmem:[#allocation2 + $0x220] sm:$0xff] %vm198, 0.0
      %268 = vst.msk [vmem:[#allocation2 + $0x228] sm:$0xff] %vm198, 0.0
      %269 = vst.msk [vmem:[#allocation2 + $0x230] sm:$0xff] %vm198, 0.0
      %270 = vst.msk [vmem:[#allocation2 + $0x238] sm:$0xff] %vm198, 0.0
      %271 = vst.msk [vmem:[#allocation2 + $0x240] sm:$0xff] %vm198, 0.0
      %272 = vst.msk [vmem:[#allocation2 + $0x248] sm:$0xff] %vm198, 0.0
      %273 = vst.msk [vmem:[#allocation2 + $0x250] sm:$0xff] %vm198, 0.0
      %274 = vst.msk [vmem:[#allocation2 + $0x258] sm:$0xff] %vm198, 0.0
      %275 = vst.msk [vmem:[#allocation2 + $0x260] sm:$0xff] %vm198, 0.0
      %276 = vst.msk [vmem:[#allocation2 + $0x268] sm:$0xff] %vm198, 0.0
      %277 = vst.msk [vmem:[#allocation2 + $0x270] sm:$0xff] %vm198, 0.0
      %278 = vst.msk [vmem:[#allocation2 + $0x278] sm:$0xff] %vm198, 0.0
      %279 = vst.msk [vmem:[#allocation2 + $0x280] sm:$0xff] %vm198, 0.0
      %280 = vst.msk [vmem:[#allocation2 + $0x288] sm:$0xff] %vm198, 0.0
      %281 = vst.msk [vmem:[#allocation2 + $0x290] sm:$0xff] %vm198, 0.0
      %282 = vst.msk [vmem:[#allocation2 + $0x298] sm:$0xff] %vm198, 0.0
      %283 = vst.msk [vmem:[#allocation2 + $0x2a0] sm:$0xff] %vm198, 0.0
      %284 = vst.msk [vmem:[#allocation2 + $0x2a8] sm:$0xff] %vm198, 0.0
      %285 = vst.msk [vmem:[#allocation2 + $0x2b0] sm:$0xff] %vm198, 0.0
      %286 = vst.msk [vmem:[#allocation2 + $0x2b8] sm:$0xff] %vm198, 0.0
      %287 = vst.msk [vmem:[#allocation2 + $0x2c0] sm:$0xff] %vm198, 0.0
      %288 = vst.msk [vmem:[#allocation2 + $0x2c8] sm:$0xff] %vm198, 0.0
      %289 = vst.msk [vmem:[#allocation2 + $0x2d0] sm:$0xff] %vm198, 0.0
      %290 = vst.msk [vmem:[#allocation2 + $0x2d8] sm:$0xff] %vm198, 0.0
      %291 = vst.msk [vmem:[#allocation2 + $0x2e0] sm:$0xff] %vm198, 0.0
      %292 = vst.msk [vmem:[#allocation2 + $0x2e8] sm:$0xff] %vm198, 0.0
      %293 = vst.msk [vmem:[#allocation2 + $0x2f0] sm:$0xff] %vm198, 0.0
      %294 = vst.msk [vmem:[#allocation2 + $0x2f8] sm:$0xff] %vm198, 0.0
      %295 = vst.msk [vmem:[#allocation2 + $0x300] sm:$0xff] %vm198, 0.0
      %296 = vst.msk [vmem:[#allocation2 + $0x308] sm:$0xff] %vm198, 0.0
      %297 = vst.msk [vmem:[#allocation2 + $0x310] sm:$0xff] %vm198, 0.0
      %298 = vst.msk [vmem:[#allocation2 + $0x318] sm:$0xff] %vm198, 0.0
      %299 = vst.msk [vmem:[#allocation2 + $0x320] sm:$0xff] %vm198, 0.0
      %300 = vst.msk [vmem:[#allocation2 + $0x328] sm:$0xff] %vm198, 0.0
      %301 = vst.msk [vmem:[#allocation2 + $0x330] sm:$0xff] %vm198, 0.0
      %302 = vst.msk [vmem:[#allocation2 + $0x338] sm:$0xff] %vm198, 0.0
      %303 = vst.msk [vmem:[#allocation2 + $0x340] sm:$0xff] %vm198, 0.0
      %304 = vst.msk [vmem:[#allocation2 + $0x348] sm:$0xff] %vm198, 0.0
      %305 = vst.msk [vmem:[#allocation2 + $0x350] sm:$0xff] %vm198, 0.0
      %306 = vst.msk [vmem:[#allocation2 + $0x358] sm:$0xff] %vm198, 0.0
      %307 = vst.msk [vmem:[#allocation2 + $0x360] sm:$0xff] %vm198, 0.0
      %308 = vst.msk [vmem:[#allocation2 + $0x368] sm:$0xff] %vm198, 0.0
      %309 = vst.msk [vmem:[#allocation2 + $0x370] sm:$0xff] %vm198, 0.0
      %310 = vst.msk [vmem:[#allocation2 + $0x378] sm:$0xff] %vm198, 0.0
      %311 = vst.msk [vmem:[#allocation2 + $0x380] sm:$0xff] %vm198, 0.0
      %312 = vst.msk [vmem:[#allocation2 + $0x388] sm:$0xff] %vm198, 0.0
      %313 = vst.msk [vmem:[#allocation2 + $0x390] sm:$0xff] %vm198, 0.0
      %314 = vst.msk [vmem:[#allocation2 + $0x398] sm:$0xff] %vm198, 0.0
      %315 = vst.msk [vmem:[#allocation2 + $0x3a0] sm:$0xff] %vm198, 0.0
      %316 = vst.msk [vmem:[#allocation2 + $0x3a8] sm:$0xff] %vm198, 0.0
      %317 = vst.msk [vmem:[#allocation2 + $0x3b0] sm:$0xff] %vm198, 0.0
      %318 = vst.msk [vmem:[#allocation2 + $0x3b8] sm:$0xff] %vm198, 0.0
      %319 = vst.msk [vmem:[#allocation2 + $0x3c0] sm:$0xff] %vm198, 0.0
      %320 = vst.msk [vmem:[#allocation2 + $0x3c8] sm:$0xff] %vm198, 0.0
      %321 = vst.msk [vmem:[#allocation2 + $0x3d0] sm:$0xff] %vm198, 0.0
      %322 = vst.msk [vmem:[#allocation2 + $0x3d8] sm:$0xff] %vm198, 0.0
      %323 = vst.msk [vmem:[#allocation2 + $0x3e0] sm:$0xff] %vm198, 0.0
      %324 = vst.msk [vmem:[#allocation2 + $0x3e8] sm:$0xff] %vm198, 0.0
      %325 = vst.msk [vmem:[#allocation2 + $0x3f0] sm:$0xff] %vm198, 0.0
      %326 = vst.msk [vmem:[#allocation2 + $0x3f8] sm:$0xff] %vm198, 0.0
      %327 = vst.msk [vmem:[#allocation2 + $0x400] sm:$0xff] %vm198, 0.0
      %328 = vst.msk [vmem:[#allocation2 + $0x408] sm:$0xff] %vm198, 0.0
      %329 = vst.msk [vmem:[#allocation2 + $0x410] sm:$0xff] %vm198, 0.0
      %330 = vst.msk [vmem:[#allocation2 + $0x418] sm:$0xff] %vm198, 0.0
      %331 = vst.msk [vmem:[#allocation2 + $0x420] sm:$0xff] %vm198, 0.0
      %332 = vst.msk [vmem:[#allocation2 + $0x428] sm:$0xff] %vm198, 0.0
      %333 = vst.msk [vmem:[#allocation2 + $0x430] sm:$0xff] %vm198, 0.0
      %334 = vst.msk [vmem:[#allocation2 + $0x438] sm:$0xff] %vm198, 0.0
      %335 = vst.msk [vmem:[#allocation2 + $0x440] sm:$0xff] %vm198, 0.0
      %336 = vst.msk [vmem:[#allocation2 + $0x448] sm:$0xff] %vm198, 0.0
      %337 = vst.msk [vmem:[#allocation2 + $0x450] sm:$0xff] %vm198, 0.0
      %338 = vst.msk [vmem:[#allocation2 + $0x458] sm:$0xff] %vm198, 0.0
      %339 = vst.msk [vmem:[#allocation2 + $0x460] sm:$0xff] %vm198, 0.0
      %340 = vst.msk [vmem:[#allocation2 + $0x468] sm:$0xff] %vm198, 0.0
      %341 = vst.msk [vmem:[#allocation2 + $0x470] sm:$0xff] %vm198, 0.0
      %342 = vst.msk [vmem:[#allocation2 + $0x478] sm:$0xff] %vm198, 0.0
      %343 = vst.msk [vmem:[#allocation2 + $0x480] sm:$0xff] %vm198, 0.0
      %344 = vst.msk [vmem:[#allocation2 + $0x488] sm:$0xff] %vm198, 0.0
      %345 = vst.msk [vmem:[#allocation2 + $0x490] sm:$0xff] %vm198, 0.0
      %346 = vst.msk [vmem:[#allocation2 + $0x498] sm:$0xff] %vm198, 0.0
      %347 = vst.msk [vmem:[#allocation2 + $0x4a0] sm:$0xff] %vm198, 0.0
      %348 = vst.msk [vmem:[#allocation2 + $0x4a8] sm:$0xff] %vm198, 0.0
      %349 = vst.msk [vmem:[#allocation2 + $0x4b0] sm:$0xff] %vm198, 0.0
      %350 = vst.msk [vmem:[#allocation2 + $0x4b8] sm:$0xff] %vm198, 0.0
      %351 = vst.msk [vmem:[#allocation2 + $0x4c0] sm:$0xff] %vm198, 0.0
      %352 = vst.msk [vmem:[#allocation2 + $0x4c8] sm:$0xff] %vm198, 0.0
      %353 = vst.msk [vmem:[#allocation2 + $0x4d0] sm:$0xff] %vm198, 0.0
      %354 = vst.msk [vmem:[#allocation2 + $0x4d8] sm:$0xff] %vm198, 0.0
      %355 = vst.msk [vmem:[#allocation2 + $0x4e0] sm:$0xff] %vm198, 0.0
      %356 = vst.msk [vmem:[#allocation2 + $0x4e8] sm:$0xff] %vm198, 0.0
      %357 = vst.msk [vmem:[#allocation2 + $0x4f0] sm:$0xff] %vm198, 0.0
      %358 = vst.msk [vmem:[#allocation2 + $0x4f8] sm:$0xff] %vm198, 0.0
      %359 = vst.msk [vmem:[#allocation2 + $0x500] sm:$0xff] %vm198, 0.0
      %360 = vst.msk [vmem:[#allocation2 + $0x508] sm:$0xff] %vm198, 0.0
      %361 = vst.msk [vmem:[#allocation2 + $0x510] sm:$0xff] %vm198, 0.0
      %362 = vst.msk [vmem:[#allocation2 + $0x518] sm:$0xff] %vm198, 0.0
      %363 = vst.msk [vmem:[#allocation2 + $0x520] sm:$0xff] %vm198, 0.0
      %364 = vst.msk [vmem:[#allocation2 + $0x528] sm:$0xff] %vm198, 0.0
      %365 = vst.msk [vmem:[#allocation2 + $0x530] sm:$0xff] %vm198, 0.0
      %366 = vst.msk [vmem:[#allocation2 + $0x538] sm:$0xff] %vm198, 0.0
      %367 = vst.msk [vmem:[#allocation2 + $0x540] sm:$0xff] %vm198, 0.0
      %368 = vst.msk [vmem:[#allocation2 + $0x548] sm:$0xff] %vm198, 0.0
      %369 = vst.msk [vmem:[#allocation2 + $0x550] sm:$0xff] %vm198, 0.0
      %370 = vst.msk [vmem:[#allocation2 + $0x558] sm:$0xff] %vm198, 0.0
      %371 = vst.msk [vmem:[#allocation2 + $0x560] sm:$0xff] %vm198, 0.0
      %372 = vst.msk [vmem:[#allocation2 + $0x568] sm:$0xff] %vm198, 0.0
      %373 = vst.msk [vmem:[#allocation2 + $0x570] sm:$0xff] %vm198, 0.0
      %374 = vst.msk [vmem:[#allocation2 + $0x578] sm:$0xff] %vm198, 0.0
      %375 = vst.msk [vmem:[#allocation2 + $0x580] sm:$0xff] %vm198, 0.0
      %376 = vst.msk [vmem:[#allocation2 + $0x588] sm:$0xff] %vm198, 0.0
      %377 = vst.msk [vmem:[#allocation2 + $0x590] sm:$0xff] %vm198, 0.0
      %378 = vst.msk [vmem:[#allocation2 + $0x598] sm:$0xff] %vm198, 0.0
      %379 = vst.msk [vmem:[#allocation2 + $0x5a0] sm:$0xff] %vm198, 0.0
      %380 = vst.msk [vmem:[#allocation2 + $0x5a8] sm:$0xff] %vm198, 0.0
      %381 = vst.msk [vmem:[#allocation2 + $0x5b0] sm:$0xff] %vm198, 0.0
      %382 = vst.msk [vmem:[#allocation2 + $0x5b8] sm:$0xff] %vm198, 0.0
      %383 = vst.msk [vmem:[#allocation2 + $0x5c0] sm:$0xff] %vm198, 0.0
      %384 = vst.msk [vmem:[#allocation2 + $0x5c8] sm:$0xff] %vm198, 0.0
      %385 = vst.msk [vmem:[#allocation2 + $0x5d0] sm:$0xff] %vm198, 0.0
      %386 = vst.msk [vmem:[#allocation2 + $0x5d8] sm:$0xff] %vm198, 0.0
      %387 = vst.msk [vmem:[#allocation2 + $0x5e0] sm:$0xff] %vm198, 0.0
      %388 = vst.msk [vmem:[#allocation2 + $0x5e8] sm:$0xff] %vm198, 0.0
      %389 = vst.msk [vmem:[#allocation2 + $0x5f0] sm:$0xff] %vm198, 0.0
      %390 = vst.msk [vmem:[#allocation2 + $0x5f8] sm:$0xff] %vm198, 0.0
      %391 = vst.msk [vmem:[#allocation2 + $0x600] sm:$0xff] %vm198, 0.0
      %392 = vst.msk [vmem:[#allocation2 + $0x608] sm:$0xff] %vm198, 0.0
      %393 = vst.msk [vmem:[#allocation2 + $0x610] sm:$0xff] %vm198, 0.0
      %394 = vst.msk [vmem:[#allocation2 + $0x618] sm:$0xff] %vm198, 0.0
      %395 = vst.msk [vmem:[#allocation2 + $0x620] sm:$0xff] %vm198, 0.0
      %396 = vst.msk [vmem:[#allocation2 + $0x628] sm:$0xff] %vm198, 0.0
      %397 = vst.msk [vmem:[#allocation2 + $0x630] sm:$0xff] %vm198, 0.0
      %398 = vst.msk [vmem:[#allocation2 + $0x638] sm:$0xff] %vm198, 0.0
      %399 = vst.msk [vmem:[#allocation2 + $0x640] sm:$0xff] %vm198, 0.0
      %400 = vst.msk [vmem:[#allocation2 + $0x648] sm:$0xff] %vm198, 0.0
      %401 = vst.msk [vmem:[#allocation2 + $0x650] sm:$0xff] %vm198, 0.0
      %402 = vst.msk [vmem:[#allocation2 + $0x658] sm:$0xff] %vm198, 0.0
      %403 = vst.msk [vmem:[#allocation2 + $0x660] sm:$0xff] %vm198, 0.0
      %404 = vst.msk [vmem:[#allocation2 + $0x668] sm:$0xff] %vm198, 0.0
      %405 = vst.msk [vmem:[#allocation2 + $0x670] sm:$0xff] %vm198, 0.0
      %406 = vst.msk [vmem:[#allocation2 + $0x678] sm:$0xff] %vm198, 0.0
      %407 = vst.msk [vmem:[#allocation2 + $0x680] sm:$0xff] %vm198, 0.0
      %408 = vst.msk [vmem:[#allocation2 + $0x688] sm:$0xff] %vm198, 0.0
      %409 = vst.msk [vmem:[#allocation2 + $0x690] sm:$0xff] %vm198, 0.0
      %410 = vst.msk [vmem:[#allocation2 + $0x698] sm:$0xff] %vm198, 0.0
      %411 = vst.msk [vmem:[#allocation2 + $0x6a0] sm:$0xff] %vm198, 0.0
      %412 = vst.msk [vmem:[#allocation2 + $0x6a8] sm:$0xff] %vm198, 0.0
      %413 = vst.msk [vmem:[#allocation2 + $0x6b0] sm:$0xff] %vm198, 0.0
      %414 = vst.msk [vmem:[#allocation2 + $0x6b8] sm:$0xff] %vm198, 0.0
      %415 = vst.msk [vmem:[#allocation2 + $0x6c0] sm:$0xff] %vm198, 0.0
      %416 = vst.msk [vmem:[#allocation2 + $0x6c8] sm:$0xff] %vm198, 0.0
      %417 = vst.msk [vmem:[#allocation2 + $0x6d0] sm:$0xff] %vm198, 0.0
      %418 = vst.msk [vmem:[#allocation2 + $0x6d8] sm:$0xff] %vm198, 0.0
      %419 = vst.msk [vmem:[#allocation2 + $0x6e0] sm:$0xff] %vm198, 0.0
      %420 = vst.msk [vmem:[#allocation2 + $0x6e8] sm:$0xff] %vm198, 0.0
      %421 = vst.msk [vmem:[#allocation2 + $0x6f0] sm:$0xff] %vm198, 0.0
      %422 = vst.msk [vmem:[#allocation2 + $0x6f8] sm:$0xff] %vm198, 0.0
      %423 = vst.msk [vmem:[#allocation2 + $0x700] sm:$0xff] %vm198, 0.0
      %424 = vst.msk [vmem:[#allocation2 + $0x708] sm:$0xff] %vm198, 0.0
      %425 = vst.msk [vmem:[#allocation2 + $0x710] sm:$0xff] %vm198, 0.0
      %426 = vst.msk [vmem:[#allocation2 + $0x718] sm:$0xff] %vm198, 0.0
      %427 = vst.msk [vmem:[#allocation2 + $0x720] sm:$0xff] %vm198, 0.0
      %428 = vst.msk [vmem:[#allocation2 + $0x728] sm:$0xff] %vm198, 0.0
      %429 = vst.msk [vmem:[#allocation2 + $0x730] sm:$0xff] %vm198, 0.0
      %430 = vst.msk [vmem:[#allocation2 + $0x738] sm:$0xff] %vm198, 0.0
      %431 = vst.msk [vmem:[#allocation2 + $0x740] sm:$0xff] %vm198, 0.0
      %432 = vst.msk [vmem:[#allocation2 + $0x748] sm:$0xff] %vm198, 0.0
      %433 = vst.msk [vmem:[#allocation2 + $0x750] sm:$0xff] %vm198, 0.0
      %434 = vst.msk [vmem:[#allocation2 + $0x758] sm:$0xff] %vm198, 0.0
      %435 = vst.msk [vmem:[#allocation2 + $0x760] sm:$0xff] %vm198, 0.0
      %436 = vst.msk [vmem:[#allocation2 + $0x768] sm:$0xff] %vm198, 0.0
      %437 = vst.msk [vmem:[#allocation2 + $0x770] sm:$0xff] %vm198, 0.0
      %438 = vst.msk [vmem:[#allocation2 + $0x778] sm:$0xff] %vm198, 0.0
      %439 = vst.msk [vmem:[#allocation2 + $0x780] sm:$0xff] %vm198, 0.0
      %440 = vst.msk [vmem:[#allocation2 + $0x788] sm:$0xff] %vm198, 0.0
      %441 = vst.msk [vmem:[#allocation2 + $0x790] sm:$0xff] %vm198, 0.0
      %442 = vst.msk [vmem:[#allocation2 + $0x798] sm:$0xff] %vm198, 0.0
      %443 = vst.msk [vmem:[#allocation2 + $0x7a0] sm:$0xff] %vm198, 0.0
      %444 = vst.msk [vmem:[#allocation2 + $0x7a8] sm:$0xff] %vm198, 0.0
      %445 = vst.msk [vmem:[#allocation2 + $0x7b0] sm:$0xff] %vm198, 0.0
      %446 = vst.msk [vmem:[#allocation2 + $0x7b8] sm:$0xff] %vm198, 0.0
      %447 = vst.msk [vmem:[#allocation2 + $0x7c0] sm:$0xff] %vm198, 0.0
      %448 = vst.msk [vmem:[#allocation2 + $0x7c8] sm:$0xff] %vm198, 0.0
      %449 = vst.msk [vmem:[#allocation2 + $0x7d0] sm:$0xff] %vm198, 0.0
      %450 = vst.msk [vmem:[#allocation2 + $0x7d8] sm:$0xff] %vm198, 0.0
      %451 = vst.msk [vmem:[#allocation2 + $0x7e0] sm:$0xff] %vm198, 0.0
      %452 = vst.msk [vmem:[#allocation2 + $0x7e8] sm:$0xff] %vm198, 0.0
      %453 = vst.msk [vmem:[#allocation2 + $0x7f0] sm:$0xff] %vm198, 0.0
      %454 = vst.msk [vmem:[#allocation2 + $0x7f8] sm:$0xff] %vm198, 0.0
      %455 = vst.msk [vmem:[#allocation2 + $0x800] sm:$0xff] %vm198, 0.0
      %456 = vst.msk [vmem:[#allocation2 + $0x808] sm:$0xff] %vm198, 0.0
      %457 = vst.msk [vmem:[#allocation2 + $0x810] sm:$0xff] %vm198, 0.0
      %458 = vst.msk [vmem:[#allocation2 + $0x818] sm:$0xff] %vm198, 0.0
      %459 = vst.msk [vmem:[#allocation2 + $0x820] sm:$0xff] %vm198, 0.0
      %460 = vst.msk [vmem:[#allocation2 + $0x828] sm:$0xff] %vm198, 0.0
      %461 = vst.msk [vmem:[#allocation2 + $0x830] sm:$0xff] %vm198, 0.0
      %462 = vst.msk [vmem:[#allocation2 + $0x838] sm:$0xff] %vm198, 0.0
      %463 = vst.msk [vmem:[#allocation2 + $0x840] sm:$0xff] %vm198, 0.0
      %464 = vst.msk [vmem:[#allocation2 + $0x848] sm:$0xff] %vm198, 0.0
      %465 = vst.msk [vmem:[#allocation2 + $0x850] sm:$0xff] %vm198, 0.0
      %466 = vst.msk [vmem:[#allocation2 + $0x858] sm:$0xff] %vm198, 0.0
      %467 = vst.msk [vmem:[#allocation2 + $0x860] sm:$0xff] %vm198, 0.0
      %468 = vst.msk [vmem:[#allocation2 + $0x868] sm:$0xff] %vm198, 0.0
      %469 = vst.msk [vmem:[#allocation2 + $0x870] sm:$0xff] %vm198, 0.0
      %470 = vst.msk [vmem:[#allocation2 + $0x878] sm:$0xff] %vm198, 0.0
      %471 = vst.msk [vmem:[#allocation2 + $0x880] sm:$0xff] %vm198, 0.0
      %472 = vst.msk [vmem:[#allocation2 + $0x888] sm:$0xff] %vm198, 0.0
      %473 = vst.msk [vmem:[#allocation2 + $0x890] sm:$0xff] %vm198, 0.0
      %474 = vst.msk [vmem:[#allocation2 + $0x898] sm:$0xff] %vm198, 0.0
      %475 = vst.msk [vmem:[#allocation2 + $0x8a0] sm:$0xff] %vm198, 0.0
      %476 = vst.msk [vmem:[#allocation2 + $0x8a8] sm:$0xff] %vm198, 0.0
      %477 = vst.msk [vmem:[#allocation2 + $0x8b0] sm:$0xff] %vm198, 0.0
      %478 = vst.msk [vmem:[#allocation2 + $0x8b8] sm:$0xff] %vm198, 0.0
      %479 = vst.msk [vmem:[#allocation2 + $0x8c0] sm:$0xff] %vm198, 0.0
      %480 = vst.msk [vmem:[#allocation2 + $0x8c8] sm:$0xff] %vm198, 0.0
      %481 = vst.msk [vmem:[#allocation2 + $0x8d0] sm:$0xff] %vm198, 0.0
      %482 = vst.msk [vmem:[#allocation2 + $0x8d8] sm:$0xff] %vm198, 0.0
      %483 = vst.msk [vmem:[#allocation2 + $0x8e0] sm:$0xff] %vm198, 0.0
      %484 = vst.msk [vmem:[#allocation2 + $0x8e8] sm:$0xff] %vm198, 0.0
      %485 = vst.msk [vmem:[#allocation2 + $0x8f0] sm:$0xff] %vm198, 0.0
      %486 = vst.msk [vmem:[#allocation2 + $0x8f8] sm:$0xff] %vm198, 0.0
      %487 = vst.msk [vmem:[#allocation2 + $0x900] sm:$0xff] %vm198, 0.0
      %488 = vst.msk [vmem:[#allocation2 + $0x908] sm:$0xff] %vm198, 0.0
      %489 = vst.msk [vmem:[#allocation2 + $0x910] sm:$0xff] %vm198, 0.0
      %490 = vst.msk [vmem:[#allocation2 + $0x918] sm:$0xff] %vm198, 0.0
      %491 = vst.msk [vmem:[#allocation2 + $0x920] sm:$0xff] %vm198, 0.0
      %492 = vst.msk [vmem:[#allocation2 + $0x928] sm:$0xff] %vm198, 0.0
      %493 = vst.msk [vmem:[#allocation2 + $0x930] sm:$0xff] %vm198, 0.0
      %494 = vst.msk [vmem:[#allocation2 + $0x938] sm:$0xff] %vm198, 0.0
      %495 = vst.msk [vmem:[#allocation2 + $0x940] sm:$0xff] %vm198, 0.0
      %496 = vst.msk [vmem:[#allocation2 + $0x948] sm:$0xff] %vm198, 0.0
      %497 = vst.msk [vmem:[#allocation2 + $0x950] sm:$0xff] %vm198, 0.0
      %498 = vst.msk [vmem:[#allocation2 + $0x958] sm:$0xff] %vm198, 0.0
      %499 = vst.msk [vmem:[#allocation2 + $0x960] sm:$0xff] %vm198, 0.0
      %500 = vst.msk [vmem:[#allocation2 + $0x968] sm:$0xff] %vm198, 0.0
      %501 = vst.msk [vmem:[#allocation2 + $0x970] sm:$0xff] %vm198, 0.0
      %502 = vst.msk [vmem:[#allocation2 + $0x978] sm:$0xff] %vm198, 0.0
      %503 = vst.msk [vmem:[#allocation2 + $0x980] sm:$0xff] %vm198, 0.0
      %504 = vst.msk [vmem:[#allocation2 + $0x988] sm:$0xff] %vm198, 0.0
      %505 = vst.msk [vmem:[#allocation2 + $0x990] sm:$0xff] %vm198, 0.0
      %506 = vst.msk [vmem:[#allocation2 + $0x998] sm:$0xff] %vm198, 0.0
      %507 = vst.msk [vmem:[#allocation2 + $0x9a0] sm:$0xff] %vm198, 0.0
      %508 = vst.msk [vmem:[#allocation2 + $0x9a8] sm:$0xff] %vm198, 0.0
      %509 = vst.msk [vmem:[#allocation2 + $0x9b0] sm:$0xff] %vm198, 0.0
      %510 = vst.msk [vmem:[#allocation2 + $0x9b8] sm:$0xff] %vm198, 0.0
      %511 = vst.msk [vmem:[#allocation2 + $0x9c0] sm:$0xff] %vm198, 0.0
      %512 = vst.msk [vmem:[#allocation2 + $0x9c8] sm:$0xff] %vm198, 0.0
      %513 = vst.msk [vmem:[#allocation2 + $0x9d0] sm:$0xff] %vm198, 0.0
      %514 = vst.msk [vmem:[#allocation2 + $0x9d8] sm:$0xff] %vm198, 0.0
      %515 = vst.msk [vmem:[#allocation2 + $0x9e0] sm:$0xff] %vm198, 0.0
      %516 = vst.msk [vmem:[#allocation2 + $0x9e8] sm:$0xff] %vm198, 0.0
      %517 = vst.msk [vmem:[#allocation2 + $0x9f0] sm:$0xff] %vm198, 0.0
      %518 = vst.msk [vmem:[#allocation2 + $0x9f8] sm:$0xff] %vm198, 0.0
      %519 = vst.msk [vmem:[#allocation2 + $0xa00] sm:$0xff] %vm198, 0.0
      %520 = vst.msk [vmem:[#allocation2 + $0xa08] sm:$0xff] %vm198, 0.0
      %521 = vst.msk [vmem:[#allocation2 + $0xa10] sm:$0xff] %vm198, 0.0
      %522 = vst.msk [vmem:[#allocation2 + $0xa18] sm:$0xff] %vm198, 0.0
      %523 = vst.msk [vmem:[#allocation2 + $0xa20] sm:$0xff] %vm198, 0.0
      %524 = vst.msk [vmem:[#allocation2 + $0xa28] sm:$0xff] %vm198, 0.0
      %525 = vst.msk [vmem:[#allocation2 + $0xa30] sm:$0xff] %vm198, 0.0
      %526 = vst.msk [vmem:[#allocation2 + $0xa38] sm:$0xff] %vm198, 0.0
      %527 = vst.msk [vmem:[#allocation2 + $0xa40] sm:$0xff] %vm198, 0.0
      %528 = vst.msk [vmem:[#allocation2 + $0xa48] sm:$0xff] %vm198, 0.0
      %529 = vst.msk [vmem:[#allocation2 + $0xa50] sm:$0xff] %vm198, 0.0
      %530 = vst.msk [vmem:[#allocation2 + $0xa58] sm:$0xff] %vm198, 0.0
      %531 = vst.msk [vmem:[#allocation2 + $0xa60] sm:$0xff] %vm198, 0.0
      %532 = vst.msk [vmem:[#allocation2 + $0xa68] sm:$0xff] %vm198, 0.0
      %533 = vst.msk [vmem:[#allocation2 + $0xa70] sm:$0xff] %vm198, 0.0
      %534 = vst.msk [vmem:[#allocation2 + $0xa78] sm:$0xff] %vm198, 0.0
      %535 = vst.msk [vmem:[#allocation2 + $0xa80] sm:$0xff] %vm198, 0.0
      %536 = vst.msk [vmem:[#allocation2 + $0xa88] sm:$0xff] %vm198, 0.0
      %537 = vst.msk [vmem:[#allocation2 + $0xa90] sm:$0xff] %vm198, 0.0
      %538 = vst.msk [vmem:[#allocation2 + $0xa98] sm:$0xff] %vm198, 0.0
      %539 = vst.msk [vmem:[#allocation2 + $0xaa0] sm:$0xff] %vm198, 0.0
      %540 = vst.msk [vmem:[#allocation2 + $0xaa8] sm:$0xff] %vm198, 0.0
      %541 = vst.msk [vmem:[#allocation2 + $0xab0] sm:$0xff] %vm198, 0.0
      %542 = vst.msk [vmem:[#allocation2 + $0xab8] sm:$0xff] %vm198, 0.0
      %543 = vst.msk [vmem:[#allocation2 + $0xac0] sm:$0xff] %vm198, 0.0
      %544 = vst.msk [vmem:[#allocation2 + $0xac8] sm:$0xff] %vm198, 0.0
      %545 = vst.msk [vmem:[#allocation2 + $0xad0] sm:$0xff] %vm198, 0.0
      %546 = vst.msk [vmem:[#allocation2 + $0xad8] sm:$0xff] %vm198, 0.0
      %547 = vst.msk [vmem:[#allocation2 + $0xae0] sm:$0xff] %vm198, 0.0
      %548 = vst.msk [vmem:[#allocation2 + $0xae8] sm:$0xff] %vm198, 0.0
      %549 = vst.msk [vmem:[#allocation2 + $0xaf0] sm:$0xff] %vm198, 0.0
      %550 = vst.msk [vmem:[#allocation2 + $0xaf8] sm:$0xff] %vm198, 0.0
      %551 = vst.msk [vmem:[#allocation2 + $0xb00] sm:$0xff] %vm198, 0.0
      %552 = vst.msk [vmem:[#allocation2 + $0xb08] sm:$0xff] %vm198, 0.0
      %553 = vst.msk [vmem:[#allocation2 + $0xb10] sm:$0xff] %vm198, 0.0
      %554 = vst.msk [vmem:[#allocation2 + $0xb18] sm:$0xff] %vm198, 0.0
      %555 = vst.msk [vmem:[#allocation2 + $0xb20] sm:$0xff] %vm198, 0.0
      %556 = vst.msk [vmem:[#allocation2 + $0xb28] sm:$0xff] %vm198, 0.0
      %557 = vst.msk [vmem:[#allocation2 + $0xb30] sm:$0xff] %vm198, 0.0
      %558 = vst.msk [vmem:[#allocation2 + $0xb38] sm:$0xff] %vm198, 0.0
      %559 = vst.msk [vmem:[#allocation2 + $0xb40] sm:$0xff] %vm198, 0.0
      %560 = vst.msk [vmem:[#allocation2 + $0xb48] sm:$0xff] %vm198, 0.0
      %561 = vst.msk [vmem:[#allocation2 + $0xb50] sm:$0xff] %vm198, 0.0
      %562 = vst.msk [vmem:[#allocation2 + $0xb58] sm:$0xff] %vm198, 0.0
      %563 = vst.msk [vmem:[#allocation2 + $0xb60] sm:$0xff] %vm198, 0.0
      %564 = vst.msk [vmem:[#allocation2 + $0xb68] sm:$0xff] %vm198, 0.0
      %565 = vst.msk [vmem:[#allocation2 + $0xb70] sm:$0xff] %vm198, 0.0
      %566 = vst.msk [vmem:[#allocation2 + $0xb78] sm:$0xff] %vm198, 0.0
      %567 = vst.msk [vmem:[#allocation2 + $0xb80] sm:$0xff] %vm198, 0.0
      %568 = vst.msk [vmem:[#allocation2 + $0xb88] sm:$0xff] %vm198, 0.0
      %569 = vst.msk [vmem:[#allocation2 + $0xb90] sm:$0xff] %vm198, 0.0
      %570 = vst.msk [vmem:[#allocation2 + $0xb98] sm:$0xff] %vm198, 0.0
      %571 = vst.msk [vmem:[#allocation2 + $0xba0] sm:$0xff] %vm198, 0.0
      %572 = vst.msk [vmem:[#allocation2 + $0xba8] sm:$0xff] %vm198, 0.0
      %573 = vst.msk [vmem:[#allocation2 + $0xbb0] sm:$0xff] %vm198, 0.0
      %574 = vst.msk [vmem:[#allocation2 + $0xbb8] sm:$0xff] %vm198, 0.0
      %575 = vst.msk [vmem:[#allocation2 + $0xbc0] sm:$0xff] %vm198, 0.0
      %576 = vst.msk [vmem:[#allocation2 + $0xbc8] sm:$0xff] %vm198, 0.0
      %577 = vst.msk [vmem:[#allocation2 + $0xbd0] sm:$0xff] %vm198, 0.0
      %578 = vst.msk [vmem:[#allocation2 + $0xbd8] sm:$0xff] %vm198, 0.0
      %579 = vst.msk [vmem:[#allocation2 + $0xbe0] sm:$0xff] %vm198, 0.0
      %580 = vst.msk [vmem:[#allocation2 + $0xbe8] sm:$0xff] %vm198, 0.0
      %581 = vst.msk [vmem:[#allocation2 + $0xbf0] sm:$0xff] %vm198, 0.0
      %582 = vst.msk [vmem:[#allocation2 + $0xbf8] sm:$0xff] %vm198, 0.0
      %583 = vst.msk [vmem:[#allocation2 + $0xc00] sm:$0xff] %vm198, 0.0
      %584 = vst.msk [vmem:[#allocation2 + $0xc08] sm:$0xff] %vm198, 0.0
      %585 = vst.msk [vmem:[#allocation2 + $0xc10] sm:$0xff] %vm198, 0.0
      %586 = vst.msk [vmem:[#allocation2 + $0xc18] sm:$0xff] %vm198, 0.0
      %587 = vst.msk [vmem:[#allocation2 + $0xc20] sm:$0xff] %vm198, 0.0
      %588 = vst.msk [vmem:[#allocation2 + $0xc28] sm:$0xff] %vm198, 0.0
      %589 = vst.msk [vmem:[#allocation2 + $0xc30] sm:$0xff] %vm198, 0.0
      %590 = vst.msk [vmem:[#allocation2 + $0xc38] sm:$0xff] %vm198, 0.0
      %591 = vst.msk [vmem:[#allocation2 + $0xc40] sm:$0xff] %vm198, 0.0
      %592 = vst.msk [vmem:[#allocation2 + $0xc48] sm:$0xff] %vm198, 0.0
      %593 = vst.msk [vmem:[#allocation2 + $0xc50] sm:$0xff] %vm198, 0.0
      %594 = vst.msk [vmem:[#allocation2 + $0xc58] sm:$0xff] %vm198, 0.0
      %595 = vst.msk [vmem:[#allocation2 + $0xc60] sm:$0xff] %vm198, 0.0
      %596 = vst.msk [vmem:[#allocation2 + $0xc68] sm:$0xff] %vm198, 0.0
      %597 = vst.msk [vmem:[#allocation2 + $0xc70] sm:$0xff] %vm198, 0.0
      %598 = vst.msk [vmem:[#allocation2 + $0xc78] sm:$0xff] %vm198, 0.0
      %599 = vst.msk [vmem:[#allocation2 + $0xc80] sm:$0xff] %vm198, 0.0
      %600 = vst.msk [vmem:[#allocation2 + $0xc88] sm:$0xff] %vm198, 0.0
      %601 = vst.msk [vmem:[#allocation2 + $0xc90] sm:$0xff] %vm198, 0.0
      %602 = vst.msk [vmem:[#allocation2 + $0xc98] sm:$0xff] %vm198, 0.0
      %603 = vst.msk [vmem:[#allocation2 + $0xca0] sm:$0xff] %vm198, 0.0
      %604 = vst.msk [vmem:[#allocation2 + $0xca8] sm:$0xff] %vm198, 0.0
      %605 = vst.msk [vmem:[#allocation2 + $0xcb0] sm:$0xff] %vm198, 0.0
      %606 = vst.msk [vmem:[#allocation2 + $0xcb8] sm:$0xff] %vm198, 0.0
      %607 = vst.msk [vmem:[#allocation2 + $0xcc0] sm:$0xff] %vm198, 0.0
      %608 = vst.msk [vmem:[#allocation2 + $0xcc8] sm:$0xff] %vm198, 0.0
      %609 = vst.msk [vmem:[#allocation2 + $0xcd0] sm:$0xff] %vm198, 0.0
      %610 = vst.msk [vmem:[#allocation2 + $0xcd8] sm:$0xff] %vm198, 0.0
      %611 = vst.msk [vmem:[#allocation2 + $0xce0] sm:$0xff] %vm198, 0.0
      %612 = vst.msk [vmem:[#allocation2 + $0xce8] sm:$0xff] %vm198, 0.0
      %613 = vst.msk [vmem:[#allocation2 + $0xcf0] sm:$0xff] %vm198, 0.0
      %614 = vst.msk [vmem:[#allocation2 + $0xcf8] sm:$0xff] %vm198, 0.0
      %615 = vst.msk [vmem:[#allocation2 + $0xd00] sm:$0xff] %vm198, 0.0
      %616 = vst.msk [vmem:[#allocation2 + $0xd08] sm:$0xff] %vm198, 0.0
      %617 = vst.msk [vmem:[#allocation2 + $0xd10] sm:$0xff] %vm198, 0.0
      %618 = vst.msk [vmem:[#allocation2 + $0xd18] sm:$0xff] %vm198, 0.0
      %619 = vst.msk [vmem:[#allocation2 + $0xd20] sm:$0xff] %vm198, 0.0
      %620 = vst.msk [vmem:[#allocation2 + $0xd28] sm:$0xff] %vm198, 0.0
      %621 = vst.msk [vmem:[#allocation2 + $0xd30] sm:$0xff] %vm198, 0.0
      %622 = vst.msk [vmem:[#allocation2 + $0xd38] sm:$0xff] %vm198, 0.0
      %623 = vst.msk [vmem:[#allocation2 + $0xd40] sm:$0xff] %vm198, 0.0
      %624 = vst.msk [vmem:[#allocation2 + $0xd48] sm:$0xff] %vm198, 0.0
      %625 = vst.msk [vmem:[#allocation2 + $0xd50] sm:$0xff] %vm198, 0.0
      %626 = vst.msk [vmem:[#allocation2 + $0xd58] sm:$0xff] %vm198, 0.0
      %627 = vst.msk [vmem:[#allocation2 + $0xd60] sm:$0xff] %vm198, 0.0
      %628 = vst.msk [vmem:[#allocation2 + $0xd68] sm:$0xff] %vm198, 0.0
      %629 = vst.msk [vmem:[#allocation2 + $0xd70] sm:$0xff] %vm198, 0.0
      %630 = vst.msk [vmem:[#allocation2 + $0xd78] sm:$0xff] %vm198, 0.0
      %631 = vst.msk [vmem:[#allocation2 + $0xd80] sm:$0xff] %vm198, 0.0
      %632 = vst.msk [vmem:[#allocation2 + $0xd88] sm:$0xff] %vm198, 0.0
      %633 = vst.msk [vmem:[#allocation2 + $0xd90] sm:$0xff] %vm198, 0.0
      %634 = vst.msk [vmem:[#allocation2 + $0xd98] sm:$0xff] %vm198, 0.0
      %635 = vst.msk [vmem:[#allocation2 + $0xda0] sm:$0xff] %vm198, 0.0
      %636 = vst.msk [vmem:[#allocation2 + $0xda8] sm:$0xff] %vm198, 0.0
      %637 = vst.msk [vmem:[#allocation2 + $0xdb0] sm:$0xff] %vm198, 0.0
      %638 = vst.msk [vmem:[#allocation2 + $0xdb8] sm:$0xff] %vm198, 0.0
      %639 = vst.msk [vmem:[#allocation2 + $0xdc0] sm:$0xff] %vm198, 0.0
      %640 = vst.msk [vmem:[#allocation2 + $0xdc8] sm:$0xff] %vm198, 0.0
      %641 = vst.msk [vmem:[#allocation2 + $0xdd0] sm:$0xff] %vm198, 0.0
      %642 = vst.msk [vmem:[#allocation2 + $0xdd8] sm:$0xff] %vm198, 0.0
      %643 = vst.msk [vmem:[#allocation2 + $0xde0] sm:$0xff] %vm198, 0.0
      %644 = vst.msk [vmem:[#allocation2 + $0xde8] sm:$0xff] %vm198, 0.0
      %645 = vst.msk [vmem:[#allocation2 + $0xdf0] sm:$0xff] %vm198, 0.0
      %646 = vst.msk [vmem:[#allocation2 + $0xdf8] sm:$0xff] %vm198, 0.0
      %647 = vst.msk [vmem:[#allocation2 + $0xe00] sm:$0xff] %vm198, 0.0
      %648 = vst.msk [vmem:[#allocation2 + $0xe08] sm:$0xff] %vm198, 0.0
      %649 = vst.msk [vmem:[#allocation2 + $0xe10] sm:$0xff] %vm198, 0.0
      %650 = vst.msk [vmem:[#allocation2 + $0xe18] sm:$0xff] %vm198, 0.0
      %651 = vst.msk [vmem:[#allocation2 + $0xe20] sm:$0xff] %vm198, 0.0
      %652 = vst.msk [vmem:[#allocation2 + $0xe28] sm:$0xff] %vm198, 0.0
      %653 = vst.msk [vmem:[#allocation2 + $0xe30] sm:$0xff] %vm198, 0.0
      %654 = vst.msk [vmem:[#allocation2 + $0xe38] sm:$0xff] %vm198, 0.0
      %655 = vst.msk [vmem:[#allocation2 + $0xe40] sm:$0xff] %vm198, 0.0
      %656 = vst.msk [vmem:[#allocation2 + $0xe48] sm:$0xff] %vm198, 0.0
      %657 = vst.msk [vmem:[#allocation2 + $0xe50] sm:$0xff] %vm198, 0.0
      %658 = vst.msk [vmem:[#allocation2 + $0xe58] sm:$0xff] %vm198, 0.0
      %659 = vst.msk [vmem:[#allocation2 + $0xe60] sm:$0xff] %vm198, 0.0
      %660 = vst.msk [vmem:[#allocation2 + $0xe68] sm:$0xff] %vm198, 0.0
      %661 = vst.msk [vmem:[#allocation2 + $0xe70] sm:$0xff] %vm198, 0.0
      %662 = vst.msk [vmem:[#allocation2 + $0xe78] sm:$0xff] %vm198, 0.0
      %663 = vst.msk [vmem:[#allocation2 + $0xe80] sm:$0xff] %vm198, 0.0
      %664 = vst.msk [vmem:[#allocation2 + $0xe88] sm:$0xff] %vm198, 0.0
      %665 = vst.msk [vmem:[#allocation2 + $0xe90] sm:$0xff] %vm198, 0.0
      %666 = vst.msk [vmem:[#allocation2 + $0xe98] sm:$0xff] %vm198, 0.0
      %667 = vst.msk [vmem:[#allocation2 + $0xea0] sm:$0xff] %vm198, 0.0
      %668 = vst.msk [vmem:[#allocation2 + $0xea8] sm:$0xff] %vm198, 0.0
      %669 = vst.msk [vmem:[#allocation2 + $0xeb0] sm:$0xff] %vm198, 0.0
      %670 = vst.msk [vmem:[#allocation2 + $0xeb8] sm:$0xff] %vm198, 0.0
      %671 = vst.msk [vmem:[#allocation2 + $0xec0] sm:$0xff] %vm198, 0.0
      %672 = vst.msk [vmem:[#allocation2 + $0xec8] sm:$0xff] %vm198, 0.0
      %673 = vst.msk [vmem:[#allocation2 + $0xed0] sm:$0xff] %vm198, 0.0
      %674 = vst.msk [vmem:[#allocation2 + $0xed8] sm:$0xff] %vm198, 0.0
      %675 = vst.msk [vmem:[#allocation2 + $0xee0] sm:$0xff] %vm198, 0.0
      %676 = vst.msk [vmem:[#allocation2 + $0xee8] sm:$0xff] %vm198, 0.0
      %677 = vst.msk [vmem:[#allocation2 + $0xef0] sm:$0xff] %vm198, 0.0
      %678 = vst.msk [vmem:[#allocation2 + $0xef8] sm:$0xff] %vm198, 0.0
      %s679 = smul.u32 %s197, 24
      %s680 = smul.addr %s679, 4
      %s681 = scalar_lea.vmem %s184, %s680
      %v682 = vld [vmem:[%s681] sm:$0xf]
      %v683 = vld [vmem:[%s681 + $0x4] sm:$0xf]
      %v684 = vld [vmem:[%s681 + $0x8] sm:$0xf]
      %v685 = vld [vmem:[%s681 + $0xc] sm:$0xf]
      %v686 = vld [vmem:[%s681 + $0x10] sm:$0xf]
      %v687 = vld [vmem:[%s681 + $0x14] sm:$0xf]
      %v688 = vld [vmem:[%s681 + $0x18] sm:$0xf]
      %v689 = vld [vmem:[%s681 + $0x1c] sm:$0xf]
      %v690 = vld [vmem:[%s681 + $0x20] sm:$0xf]
      %v691 = vld [vmem:[%s681 + $0x24] sm:$0xf]
      %v692 = vld [vmem:[%s681 + $0x28] sm:$0xf]
      %v693 = vld [vmem:[%s681 + $0x2c] sm:$0xf]
      %v694 = vld [vmem:[%s681 + $0x30] sm:$0xf]
      %v695 = vld [vmem:[%s681 + $0x34] sm:$0xf]
      %v696 = vld [vmem:[%s681 + $0x38] sm:$0xf]
      %v697 = vld [vmem:[%s681 + $0x3c] sm:$0xf]
      %v698 = vld [vmem:[%s681 + $0x40] sm:$0xf]
      %v699 = vld [vmem:[%s681 + $0x44] sm:$0xf]
      %v700 = vld [vmem:[%s681 + $0x48] sm:$0xf]
      %v701 = vld [vmem:[%s681 + $0x4c] sm:$0xf]
      %v702 = vld [vmem:[%s681 + $0x50] sm:$0xf]
      %v703 = vld [vmem:[%s681 + $0x54] sm:$0xf]
      %v704 = vld [vmem:[%s681 + $0x58] sm:$0xf]
      %v705 = vld [vmem:[%s681 + $0x5c] sm:$0xf]
      %v706 = vld [vmem:[%s681 + $0x60] sm:$0xf]
      %v707 = vld [vmem:[%s681 + $0x64] sm:$0xf]
      %v708 = vld [vmem:[%s681 + $0x68] sm:$0xf]
      %v709 = vld [vmem:[%s681 + $0x6c] sm:$0xf]
      %v710 = vld [vmem:[%s681 + $0x70] sm:$0xf]
      %v711 = vld [vmem:[%s681 + $0x74] sm:$0xf]
      %v712 = vld [vmem:[%s681 + $0x78] sm:$0xf]
      %v713 = vld [vmem:[%s681 + $0x7c] sm:$0xf]
      %v714 = vld [vmem:[%s681 + $0x80] sm:$0xf]
      %v715 = vld [vmem:[%s681 + $0x84] sm:$0xf]
      %v716 = vld [vmem:[%s681 + $0x88] sm:$0xf]
      %v717 = vld [vmem:[%s681 + $0x8c] sm:$0xf]
      %v718 = vld [vmem:[%s681 + $0x90] sm:$0xf]
      %v719 = vld [vmem:[%s681 + $0x94] sm:$0xf]
      %v720 = vld [vmem:[%s681 + $0x98] sm:$0xf]
      %v721 = vld [vmem:[%s681 + $0x9c] sm:$0xf]
      %v722 = vld [vmem:[%s681 + $0xa0] sm:$0xf]
      %v723 = vld [vmem:[%s681 + $0xa4] sm:$0xf]
      %v724 = vld [vmem:[%s681 + $0xa8] sm:$0xf]
      %v725 = vld [vmem:[%s681 + $0xac] sm:$0xf]
      %v726 = vld [vmem:[%s681 + $0xb0] sm:$0xf]
      %v727 = vld [vmem:[%s681 + $0xb4] sm:$0xf]
      %v728 = vld [vmem:[%s681 + $0xb8] sm:$0xf]
      %v729 = vld [vmem:[%s681 + $0xbc] sm:$0xf]
      %v730 = vld [vmem:[%s681 + $0xc0] sm:$0xf]
      %v731 = vld [vmem:[%s681 + $0xc4] sm:$0xf]
      %v732 = vld [vmem:[%s681 + $0xc8] sm:$0xf]
      %v733 = vld [vmem:[%s681 + $0xcc] sm:$0xf]
      %v734 = vld [vmem:[%s681 + $0xd0] sm:$0xf]
      %v735 = vld [vmem:[%s681 + $0xd4] sm:$0xf]
      %v736 = vld [vmem:[%s681 + $0xd8] sm:$0xf]
      %v737 = vld [vmem:[%s681 + $0xdc] sm:$0xf]
      %v738 = vld [vmem:[%s681 + $0xe0] sm:$0xf]
      %v739 = vld [vmem:[%s681 + $0xe4] sm:$0xf]
      %v740 = vld [vmem:[%s681 + $0xe8] sm:$0xf]
      %v741 = vld [vmem:[%s681 + $0xec] sm:$0xf]
      %v742 = vld [vmem:[%s681 + $0xf0] sm:$0xf]
      %v743 = vld [vmem:[%s681 + $0xf4] sm:$0xf]
      %v744 = vld [vmem:[%s681 + $0xf8] sm:$0xf]
      %v745 = vld [vmem:[%s681 + $0xfc] sm:$0xf]
      %v746 = vld [vmem:[%s681 + $0x100] sm:$0xf]
      %v747 = vld [vmem:[%s681 + $0x104] sm:$0xf]
      %v748 = vld [vmem:[%s681 + $0x108] sm:$0xf]
      %v749 = vld [vmem:[%s681 + $0x10c] sm:$0xf]
      %v750 = vld [vmem:[%s681 + $0x110] sm:$0xf]
      %v751 = vld [vmem:[%s681 + $0x114] sm:$0xf]
      %v752 = vld [vmem:[%s681 + $0x118] sm:$0xf]
      %v753 = vld [vmem:[%s681 + $0x11c] sm:$0xf]
      %v754 = vld [vmem:[%s681 + $0x120] sm:$0xf]
      %v755 = vld [vmem:[%s681 + $0x124] sm:$0xf]
      %v756 = vld [vmem:[%s681 + $0x128] sm:$0xf]
      %v757 = vld [vmem:[%s681 + $0x12c] sm:$0xf]
      %v758 = vld [vmem:[%s681 + $0x130] sm:$0xf]
      %v759 = vld [vmem:[%s681 + $0x134] sm:$0xf]
      %v760 = vld [vmem:[%s681 + $0x138] sm:$0xf]
      %v761 = vld [vmem:[%s681 + $0x13c] sm:$0xf]
      %v762 = vld [vmem:[%s681 + $0x140] sm:$0xf]
      %v763 = vld [vmem:[%s681 + $0x144] sm:$0xf]
      %v764 = vld [vmem:[%s681 + $0x148] sm:$0xf]
      %v765 = vld [vmem:[%s681 + $0x14c] sm:$0xf]
      %v766 = vld [vmem:[%s681 + $0x150] sm:$0xf]
      %v767 = vld [vmem:[%s681 + $0x154] sm:$0xf]
      %v768 = vld [vmem:[%s681 + $0x158] sm:$0xf]
      %v769 = vld [vmem:[%s681 + $0x15c] sm:$0xf]
      %v770 = vld [vmem:[%s681 + $0x160] sm:$0xf]
      %v771 = vld [vmem:[%s681 + $0x164] sm:$0xf]
      %v772 = vld [vmem:[%s681 + $0x168] sm:$0xf]
      %v773 = vld [vmem:[%s681 + $0x16c] sm:$0xf]
      %v774 = vld [vmem:[%s681 + $0x170] sm:$0xf]
      %v775 = vld [vmem:[%s681 + $0x174] sm:$0xf]
      %v776 = vld [vmem:[%s681 + $0x178] sm:$0xf]
      %v777 = vld [vmem:[%s681 + $0x17c] sm:$0xf]
      %v778 = vld [vmem:[%s681 + $0x180] sm:$0xf]
      %v779 = vld [vmem:[%s681 + $0x184] sm:$0xf]
      %v780 = vld [vmem:[%s681 + $0x188] sm:$0xf]
      %v781 = vld [vmem:[%s681 + $0x18c] sm:$0xf]
      %v782 = vld [vmem:[%s681 + $0x190] sm:$0xf]
      %v783 = vld [vmem:[%s681 + $0x194] sm:$0xf]
      %v784 = vld [vmem:[%s681 + $0x198] sm:$0xf]
      %v785 = vld [vmem:[%s681 + $0x19c] sm:$0xf]
      %v786 = vld [vmem:[%s681 + $0x1a0] sm:$0xf]
      %v787 = vld [vmem:[%s681 + $0x1a4] sm:$0xf]
      %v788 = vld [vmem:[%s681 + $0x1a8] sm:$0xf]
      %v789 = vld [vmem:[%s681 + $0x1ac] sm:$0xf]
      %v790 = vld [vmem:[%s681 + $0x1b0] sm:$0xf]
      %v791 = vld [vmem:[%s681 + $0x1b4] sm:$0xf]
      %v792 = vld [vmem:[%s681 + $0x1b8] sm:$0xf]
      %v793 = vld [vmem:[%s681 + $0x1bc] sm:$0xf]
      %v794 = vld [vmem:[%s681 + $0x1c0] sm:$0xf]
      %v795 = vld [vmem:[%s681 + $0x1c4] sm:$0xf]
      %v796 = vld [vmem:[%s681 + $0x1c8] sm:$0xf]
      %v797 = vld [vmem:[%s681 + $0x1cc] sm:$0xf]
      %v798 = vld [vmem:[%s681 + $0x1d0] sm:$0xf]
      %v799 = vld [vmem:[%s681 + $0x1d4] sm:$0xf]
      %v800 = vld [vmem:[%s681 + $0x1d8] sm:$0xf]
      %v801 = vld [vmem:[%s681 + $0x1dc] sm:$0xf]
      %v802 = vld [vmem:[%s681 + $0x1e0] sm:$0xf]
      %v803 = vld [vmem:[%s681 + $0x1e4] sm:$0xf]
      %v804 = vld [vmem:[%s681 + $0x1e8] sm:$0xf]
      %v805 = vld [vmem:[%s681 + $0x1ec] sm:$0xf]
      %v806 = vld [vmem:[%s681 + $0x1f0] sm:$0xf]
      %v807 = vld [vmem:[%s681 + $0x1f4] sm:$0xf]
      %v808 = vld [vmem:[%s681 + $0x1f8] sm:$0xf]
      %v809 = vld [vmem:[%s681 + $0x1fc] sm:$0xf]
      %v810 = vld [vmem:[%s681 + $0x200] sm:$0xf]
      %v811 = vld [vmem:[%s681 + $0x204] sm:$0xf]
      %v812 = vld [vmem:[%s681 + $0x208] sm:$0xf]
      %v813 = vld [vmem:[%s681 + $0x20c] sm:$0xf]
      %v814 = vld [vmem:[%s681 + $0x210] sm:$0xf]
      %v815 = vld [vmem:[%s681 + $0x214] sm:$0xf]
      %v816 = vld [vmem:[%s681 + $0x218] sm:$0xf]
      %v817 = vld [vmem:[%s681 + $0x21c] sm:$0xf]
      %v818 = vld [vmem:[%s681 + $0x220] sm:$0xf]
      %v819 = vld [vmem:[%s681 + $0x224] sm:$0xf]
      %v820 = vld [vmem:[%s681 + $0x228] sm:$0xf]
      %v821 = vld [vmem:[%s681 + $0x22c] sm:$0xf]
      %v822 = vld [vmem:[%s681 + $0x230] sm:$0xf]
      %v823 = vld [vmem:[%s681 + $0x234] sm:$0xf]
      %v824 = vld [vmem:[%s681 + $0x238] sm:$0xf]
      %v825 = vld [vmem:[%s681 + $0x23c] sm:$0xf]
      %v826 = vld [vmem:[%s681 + $0x240] sm:$0xf]
      %v827 = vld [vmem:[%s681 + $0x244] sm:$0xf]
      %v828 = vld [vmem:[%s681 + $0x248] sm:$0xf]
      %v829 = vld [vmem:[%s681 + $0x24c] sm:$0xf]
      %v830 = vld [vmem:[%s681 + $0x250] sm:$0xf]
      %v831 = vld [vmem:[%s681 + $0x254] sm:$0xf]
      %v832 = vld [vmem:[%s681 + $0x258] sm:$0xf]
      %v833 = vld [vmem:[%s681 + $0x25c] sm:$0xf]
      %v834 = vld [vmem:[%s681 + $0x260] sm:$0xf]
      %v835 = vld [vmem:[%s681 + $0x264] sm:$0xf]
      %v836 = vld [vmem:[%s681 + $0x268] sm:$0xf]
      %v837 = vld [vmem:[%s681 + $0x26c] sm:$0xf]
      %v838 = vld [vmem:[%s681 + $0x270] sm:$0xf]
      %v839 = vld [vmem:[%s681 + $0x274] sm:$0xf]
      %v840 = vld [vmem:[%s681 + $0x278] sm:$0xf]
      %v841 = vld [vmem:[%s681 + $0x27c] sm:$0xf]
      %v842 = vld [vmem:[%s681 + $0x280] sm:$0xf]
      %v843 = vld [vmem:[%s681 + $0x284] sm:$0xf]
      %v844 = vld [vmem:[%s681 + $0x288] sm:$0xf]
      %v845 = vld [vmem:[%s681 + $0x28c] sm:$0xf]
      %v846 = vld [vmem:[%s681 + $0x290] sm:$0xf]
      %v847 = vld [vmem:[%s681 + $0x294] sm:$0xf]
      %v848 = vld [vmem:[%s681 + $0x298] sm:$0xf]
      %v849 = vld [vmem:[%s681 + $0x29c] sm:$0xf]
      %v850 = vld [vmem:[%s681 + $0x2a0] sm:$0xf]
      %v851 = vld [vmem:[%s681 + $0x2a4] sm:$0xf]
      %v852 = vld [vmem:[%s681 + $0x2a8] sm:$0xf]
      %v853 = vld [vmem:[%s681 + $0x2ac] sm:$0xf]
      %v854 = vld [vmem:[%s681 + $0x2b0] sm:$0xf]
      %v855 = vld [vmem:[%s681 + $0x2b4] sm:$0xf]
      %v856 = vld [vmem:[%s681 + $0x2b8] sm:$0xf]
      %v857 = vld [vmem:[%s681 + $0x2bc] sm:$0xf]
      %v858 = vld [vmem:[%s681 + $0x2c0] sm:$0xf]
      %v859 = vld [vmem:[%s681 + $0x2c4] sm:$0xf]
      %v860 = vld [vmem:[%s681 + $0x2c8] sm:$0xf]
      %v861 = vld [vmem:[%s681 + $0x2cc] sm:$0xf]
      %v862 = vld [vmem:[%s681 + $0x2d0] sm:$0xf]
      %v863 = vld [vmem:[%s681 + $0x2d4] sm:$0xf]
      %v864 = vld [vmem:[%s681 + $0x2d8] sm:$0xf]
      %v865 = vld [vmem:[%s681 + $0x2dc] sm:$0xf]
      %v866 = vld [vmem:[%s681 + $0x2e0] sm:$0xf]
      %v867 = vld [vmem:[%s681 + $0x2e4] sm:$0xf]
      %v868 = vld [vmem:[%s681 + $0x2e8] sm:$0xf]
      %v869 = vld [vmem:[%s681 + $0x2ec] sm:$0xf]
      %v870 = vld [vmem:[%s681 + $0x2f0] sm:$0xf]
      %v871 = vld [vmem:[%s681 + $0x2f4] sm:$0xf]
      %v872 = vld [vmem:[%s681 + $0x2f8] sm:$0xf]
      %v873 = vld [vmem:[%s681 + $0x2fc] sm:$0xf]
      %v874 = vld [vmem:[%s681 + $0x300] sm:$0xf]
      %v875 = vld [vmem:[%s681 + $0x304] sm:$0xf]
      %v876 = vld [vmem:[%s681 + $0x308] sm:$0xf]
      %v877 = vld [vmem:[%s681 + $0x30c] sm:$0xf]
      %v878 = vld [vmem:[%s681 + $0x310] sm:$0xf]
      %v879 = vld [vmem:[%s681 + $0x314] sm:$0xf]
      %v880 = vld [vmem:[%s681 + $0x318] sm:$0xf]
      %v881 = vld [vmem:[%s681 + $0x31c] sm:$0xf]
      %v882 = vld [vmem:[%s681 + $0x320] sm:$0xf]
      %v883 = vld [vmem:[%s681 + $0x324] sm:$0xf]
      %v884 = vld [vmem:[%s681 + $0x328] sm:$0xf]
      %v885 = vld [vmem:[%s681 + $0x32c] sm:$0xf]
      %v886 = vld [vmem:[%s681 + $0x330] sm:$0xf]
      %v887 = vld [vmem:[%s681 + $0x334] sm:$0xf]
      %v888 = vld [vmem:[%s681 + $0x338] sm:$0xf]
      %v889 = vld [vmem:[%s681 + $0x33c] sm:$0xf]
      %v890 = vld [vmem:[%s681 + $0x340] sm:$0xf]
      %v891 = vld [vmem:[%s681 + $0x344] sm:$0xf]
      %v892 = vld [vmem:[%s681 + $0x348] sm:$0xf]
      %v893 = vld [vmem:[%s681 + $0x34c] sm:$0xf]
      %v894 = vld [vmem:[%s681 + $0x350] sm:$0xf]
      %v895 = vld [vmem:[%s681 + $0x354] sm:$0xf]
      %v896 = vld [vmem:[%s681 + $0x358] sm:$0xf]
      %v897 = vld [vmem:[%s681 + $0x35c] sm:$0xf]
      %v898 = vld [vmem:[%s681 + $0x360] sm:$0xf]
      %v899 = vld [vmem:[%s681 + $0x364] sm:$0xf]
      %v900 = vld [vmem:[%s681 + $0x368] sm:$0xf]
      %v901 = vld [vmem:[%s681 + $0x36c] sm:$0xf]
      %v902 = vld [vmem:[%s681 + $0x370] sm:$0xf]
      %v903 = vld [vmem:[%s681 + $0x374] sm:$0xf]
      %v904 = vld [vmem:[%s681 + $0x378] sm:$0xf]
      %v905 = vld [vmem:[%s681 + $0x37c] sm:$0xf]
      %v906 = vld [vmem:[%s681 + $0x380] sm:$0xf]
      %v907 = vld [vmem:[%s681 + $0x384] sm:$0xf]
      %v908 = vld [vmem:[%s681 + $0x388] sm:$0xf]
      %v909 = vld [vmem:[%s681 + $0x38c] sm:$0xf]
      %v910 = vld [vmem:[%s681 + $0x390] sm:$0xf]
      %v911 = vld [vmem:[%s681 + $0x394] sm:$0xf]
      %v912 = vld [vmem:[%s681 + $0x398] sm:$0xf]
      %v913 = vld [vmem:[%s681 + $0x39c] sm:$0xf]
      %v914 = vld [vmem:[%s681 + $0x3a0] sm:$0xf]
      %v915 = vld [vmem:[%s681 + $0x3a4] sm:$0xf]
      %v916 = vld [vmem:[%s681 + $0x3a8] sm:$0xf]
      %v917 = vld [vmem:[%s681 + $0x3ac] sm:$0xf]
      %v918 = vld [vmem:[%s681 + $0x3b0] sm:$0xf]
      %v919 = vld [vmem:[%s681 + $0x3b4] sm:$0xf]
      %v920 = vld [vmem:[%s681 + $0x3b8] sm:$0xf]
      %v921 = vld [vmem:[%s681 + $0x3bc] sm:$0xf]
      %v922 = vld [vmem:[%s681 + $0x3c0] sm:$0xf]
      %v923 = vld [vmem:[%s681 + $0x3c4] sm:$0xf]
      %v924 = vld [vmem:[%s681 + $0x3c8] sm:$0xf]
      %v925 = vld [vmem:[%s681 + $0x3cc] sm:$0xf]
      %v926 = vld [vmem:[%s681 + $0x3d0] sm:$0xf]
      %v927 = vld [vmem:[%s681 + $0x3d4] sm:$0xf]
      %v928 = vld [vmem:[%s681 + $0x3d8] sm:$0xf]
      %v929 = vld [vmem:[%s681 + $0x3dc] sm:$0xf]
      %v930 = vld [vmem:[%s681 + $0x3e0] sm:$0xf]
      %v931 = vld [vmem:[%s681 + $0x3e4] sm:$0xf]
      %v932 = vld [vmem:[%s681 + $0x3e8] sm:$0xf]
      %v933 = vld [vmem:[%s681 + $0x3ec] sm:$0xf]
      %v934 = vld [vmem:[%s681 + $0x3f0] sm:$0xf]
      %v935 = vld [vmem:[%s681 + $0x3f4] sm:$0xf]
      %v936 = vld [vmem:[%s681 + $0x3f8] sm:$0xf]
      %v937 = vld [vmem:[%s681 + $0x3fc] sm:$0xf]
      %v938 = vld [vmem:[%s681 + $0x400] sm:$0xf]
      %v939 = vld [vmem:[%s681 + $0x404] sm:$0xf]
      %v940 = vld [vmem:[%s681 + $0x408] sm:$0xf]
      %v941 = vld [vmem:[%s681 + $0x40c] sm:$0xf]
      %v942 = vld [vmem:[%s681 + $0x410] sm:$0xf]
      %v943 = vld [vmem:[%s681 + $0x414] sm:$0xf]
      %v944 = vld [vmem:[%s681 + $0x418] sm:$0xf]
      %v945 = vld [vmem:[%s681 + $0x41c] sm:$0xf]
      %v946 = vld [vmem:[%s681 + $0x420] sm:$0xf]
      %v947 = vld [vmem:[%s681 + $0x424] sm:$0xf]
      %v948 = vld [vmem:[%s681 + $0x428] sm:$0xf]
      %v949 = vld [vmem:[%s681 + $0x42c] sm:$0xf]
      %v950 = vld [vmem:[%s681 + $0x430] sm:$0xf]
      %v951 = vld [vmem:[%s681 + $0x434] sm:$0xf]
      %v952 = vld [vmem:[%s681 + $0x438] sm:$0xf]
      %v953 = vld [vmem:[%s681 + $0x43c] sm:$0xf]
      %v954 = vld [vmem:[%s681 + $0x440] sm:$0xf]
      %v955 = vld [vmem:[%s681 + $0x444] sm:$0xf]
      %v956 = vld [vmem:[%s681 + $0x448] sm:$0xf]
      %v957 = vld [vmem:[%s681 + $0x44c] sm:$0xf]
      %v958 = vld [vmem:[%s681 + $0x450] sm:$0xf]
      %v959 = vld [vmem:[%s681 + $0x454] sm:$0xf]
      %v960 = vld [vmem:[%s681 + $0x458] sm:$0xf]
      %v961 = vld [vmem:[%s681 + $0x45c] sm:$0xf]
      %v962 = vld [vmem:[%s681 + $0x460] sm:$0xf]
      %v963 = vld [vmem:[%s681 + $0x464] sm:$0xf]
      %v964 = vld [vmem:[%s681 + $0x468] sm:$0xf]
      %v965 = vld [vmem:[%s681 + $0x46c] sm:$0xf]
      %v966 = vld [vmem:[%s681 + $0x470] sm:$0xf]
      %v967 = vld [vmem:[%s681 + $0x474] sm:$0xf]
      %v968 = vld [vmem:[%s681 + $0x478] sm:$0xf]
      %v969 = vld [vmem:[%s681 + $0x47c] sm:$0xf]
      %v970 = vld [vmem:[%s681 + $0x480] sm:$0xf]
      %v971 = vld [vmem:[%s681 + $0x484] sm:$0xf]
      %v972 = vld [vmem:[%s681 + $0x488] sm:$0xf]
      %v973 = vld [vmem:[%s681 + $0x48c] sm:$0xf]
      %v974 = vld [vmem:[%s681 + $0x490] sm:$0xf]
      %v975 = vld [vmem:[%s681 + $0x494] sm:$0xf]
      %v976 = vld [vmem:[%s681 + $0x498] sm:$0xf]
      %v977 = vld [vmem:[%s681 + $0x49c] sm:$0xf]
      %v978 = vld [vmem:[%s681 + $0x4a0] sm:$0xf]
      %v979 = vld [vmem:[%s681 + $0x4a4] sm:$0xf]
      %v980 = vld [vmem:[%s681 + $0x4a8] sm:$0xf]
      %v981 = vld [vmem:[%s681 + $0x4ac] sm:$0xf]
      %v982 = vld [vmem:[%s681 + $0x4b0] sm:$0xf]
      %v983 = vld [vmem:[%s681 + $0x4b4] sm:$0xf]
      %v984 = vld [vmem:[%s681 + $0x4b8] sm:$0xf]
      %v985 = vld [vmem:[%s681 + $0x4bc] sm:$0xf]
      %v986 = vld [vmem:[%s681 + $0x4c0] sm:$0xf]
      %v987 = vld [vmem:[%s681 + $0x4c4] sm:$0xf]
      %v988 = vld [vmem:[%s681 + $0x4c8] sm:$0xf]
      %v989 = vld [vmem:[%s681 + $0x4cc] sm:$0xf]
      %v990 = vld [vmem:[%s681 + $0x4d0] sm:$0xf]
      %v991 = vld [vmem:[%s681 + $0x4d4] sm:$0xf]
      %v992 = vld [vmem:[%s681 + $0x4d8] sm:$0xf]
      %v993 = vld [vmem:[%s681 + $0x4dc] sm:$0xf]
      %v994 = vld [vmem:[%s681 + $0x4e0] sm:$0xf]
      %v995 = vld [vmem:[%s681 + $0x4e4] sm:$0xf]
      %v996 = vld [vmem:[%s681 + $0x4e8] sm:$0xf]
      %v997 = vld [vmem:[%s681 + $0x4ec] sm:$0xf]
      %v998 = vld [vmem:[%s681 + $0x4f0] sm:$0xf]
      %v999 = vld [vmem:[%s681 + $0x4f4] sm:$0xf]
      %v1000 = vld [vmem:[%s681 + $0x4f8] sm:$0xf]
      %v1001 = vld [vmem:[%s681 + $0x4fc] sm:$0xf]
      %v1002 = vld [vmem:[%s681 + $0x500] sm:$0xf]
      %v1003 = vld [vmem:[%s681 + $0x504] sm:$0xf]
      %v1004 = vld [vmem:[%s681 + $0x508] sm:$0xf]
      %v1005 = vld [vmem:[%s681 + $0x50c] sm:$0xf]
      %v1006 = vld [vmem:[%s681 + $0x510] sm:$0xf]
      %v1007 = vld [vmem:[%s681 + $0x514] sm:$0xf]
      %v1008 = vld [vmem:[%s681 + $0x518] sm:$0xf]
      %v1009 = vld [vmem:[%s681 + $0x51c] sm:$0xf]
      %v1010 = vld [vmem:[%s681 + $0x520] sm:$0xf]
      %v1011 = vld [vmem:[%s681 + $0x524] sm:$0xf]
      %v1012 = vld [vmem:[%s681 + $0x528] sm:$0xf]
      %v1013 = vld [vmem:[%s681 + $0x52c] sm:$0xf]
      %v1014 = vld [vmem:[%s681 + $0x530] sm:$0xf]
      %v1015 = vld [vmem:[%s681 + $0x534] sm:$0xf]
      %v1016 = vld [vmem:[%s681 + $0x538] sm:$0xf]
      %v1017 = vld [vmem:[%s681 + $0x53c] sm:$0xf]
      %v1018 = vld [vmem:[%s681 + $0x540] sm:$0xf]
      %v1019 = vld [vmem:[%s681 + $0x544] sm:$0xf]
      %v1020 = vld [vmem:[%s681 + $0x548] sm:$0xf]
      %v1021 = vld [vmem:[%s681 + $0x54c] sm:$0xf]
      %v1022 = vld [vmem:[%s681 + $0x550] sm:$0xf]
      %v1023 = vld [vmem:[%s681 + $0x554] sm:$0xf]
      %v1024 = vld [vmem:[%s681 + $0x558] sm:$0xf]
      %v1025 = vld [vmem:[%s681 + $0x55c] sm:$0xf]
      %v1026 = vld [vmem:[%s681 + $0x560] sm:$0xf]
      %v1027 = vld [vmem:[%s681 + $0x564] sm:$0xf]
      %v1028 = vld [vmem:[%s681 + $0x568] sm:$0xf]
      %v1029 = vld [vmem:[%s681 + $0x56c] sm:$0xf]
      %v1030 = vld [vmem:[%s681 + $0x570] sm:$0xf]
      %v1031 = vld [vmem:[%s681 + $0x574] sm:$0xf]
      %v1032 = vld [vmem:[%s681 + $0x578] sm:$0xf]
      %v1033 = vld [vmem:[%s681 + $0x57c] sm:$0xf]
      %v1034 = vld [vmem:[%s681 + $0x580] sm:$0xf]
      %v1035 = vld [vmem:[%s681 + $0x584] sm:$0xf]
      %v1036 = vld [vmem:[%s681 + $0x588] sm:$0xf]
      %v1037 = vld [vmem:[%s681 + $0x58c] sm:$0xf]
      %v1038 = vld [vmem:[%s681 + $0x590] sm:$0xf]
      %v1039 = vld [vmem:[%s681 + $0x594] sm:$0xf]
      %v1040 = vld [vmem:[%s681 + $0x598] sm:$0xf]
      %v1041 = vld [vmem:[%s681 + $0x59c] sm:$0xf]
      %v1042 = vld [vmem:[%s681 + $0x5a0] sm:$0xf]
      %v1043 = vld [vmem:[%s681 + $0x5a4] sm:$0xf]
      %v1044 = vld [vmem:[%s681 + $0x5a8] sm:$0xf]
      %v1045 = vld [vmem:[%s681 + $0x5ac] sm:$0xf]
      %v1046 = vld [vmem:[%s681 + $0x5b0] sm:$0xf]
      %v1047 = vld [vmem:[%s681 + $0x5b4] sm:$0xf]
      %v1048 = vld [vmem:[%s681 + $0x5b8] sm:$0xf]
      %v1049 = vld [vmem:[%s681 + $0x5bc] sm:$0xf]
      %v1050 = vld [vmem:[%s681 + $0x5c0] sm:$0xf]
      %v1051 = vld [vmem:[%s681 + $0x5c4] sm:$0xf]
      %v1052 = vld [vmem:[%s681 + $0x5c8] sm:$0xf]
      %v1053 = vld [vmem:[%s681 + $0x5cc] sm:$0xf]
      %v1054 = vld [vmem:[%s681 + $0x5d0] sm:$0xf]
      %v1055 = vld [vmem:[%s681 + $0x5d4] sm:$0xf]
      %v1056 = vld [vmem:[%s681 + $0x5d8] sm:$0xf]
      %v1057 = vld [vmem:[%s681 + $0x5dc] sm:$0xf]
      %v1058 = vld [vmem:[%s681 + $0x5e0] sm:$0xf]
      %v1059 = vld [vmem:[%s681 + $0x5e4] sm:$0xf]
      %v1060 = vld [vmem:[%s681 + $0x5e8] sm:$0xf]
      %v1061 = vld [vmem:[%s681 + $0x5ec] sm:$0xf]
      %v1062 = vld [vmem:[%s681 + $0x5f0] sm:$0xf]
      %v1063 = vld [vmem:[%s681 + $0x5f4] sm:$0xf]
      %v1064 = vld [vmem:[%s681 + $0x5f8] sm:$0xf]
      %v1065 = vld [vmem:[%s681 + $0x5fc] sm:$0xf]
      %v1066 = vld [vmem:[%s681 + $0x600] sm:$0xf]
      %v1067 = vld [vmem:[%s681 + $0x604] sm:$0xf]
      %v1068 = vld [vmem:[%s681 + $0x608] sm:$0xf]
      %v1069 = vld [vmem:[%s681 + $0x60c] sm:$0xf]
      %v1070 = vld [vmem:[%s681 + $0x610] sm:$0xf]
      %v1071 = vld [vmem:[%s681 + $0x614] sm:$0xf]
      %v1072 = vld [vmem:[%s681 + $0x618] sm:$0xf]
      %v1073 = vld [vmem:[%s681 + $0x61c] sm:$0xf]
      %v1074 = vld [vmem:[%s681 + $0x620] sm:$0xf]
      %v1075 = vld [vmem:[%s681 + $0x624] sm:$0xf]
      %v1076 = vld [vmem:[%s681 + $0x628] sm:$0xf]
      %v1077 = vld [vmem:[%s681 + $0x62c] sm:$0xf]
      %v1078 = vld [vmem:[%s681 + $0x630] sm:$0xf]
      %v1079 = vld [vmem:[%s681 + $0x634] sm:$0xf]
      %v1080 = vld [vmem:[%s681 + $0x638] sm:$0xf]
      %v1081 = vld [vmem:[%s681 + $0x63c] sm:$0xf]
      %v1082 = vld [vmem:[%s681 + $0x640] sm:$0xf]
      %v1083 = vld [vmem:[%s681 + $0x644] sm:$0xf]
      %v1084 = vld [vmem:[%s681 + $0x648] sm:$0xf]
      %v1085 = vld [vmem:[%s681 + $0x64c] sm:$0xf]
      %v1086 = vld [vmem:[%s681 + $0x650] sm:$0xf]
      %v1087 = vld [vmem:[%s681 + $0x654] sm:$0xf]
      %v1088 = vld [vmem:[%s681 + $0x658] sm:$0xf]
      %v1089 = vld [vmem:[%s681 + $0x65c] sm:$0xf]
      %v1090 = vld [vmem:[%s681 + $0x660] sm:$0xf]
      %v1091 = vld [vmem:[%s681 + $0x664] sm:$0xf]
      %v1092 = vld [vmem:[%s681 + $0x668] sm:$0xf]
      %v1093 = vld [vmem:[%s681 + $0x66c] sm:$0xf]
      %v1094 = vld [vmem:[%s681 + $0x670] sm:$0xf]
      %v1095 = vld [vmem:[%s681 + $0x674] sm:$0xf]
      %v1096 = vld [vmem:[%s681 + $0x678] sm:$0xf]
      %v1097 = vld [vmem:[%s681 + $0x67c] sm:$0xf]
      %v1098 = vld [vmem:[%s681 + $0x680] sm:$0xf]
      %v1099 = vld [vmem:[%s681 + $0x684] sm:$0xf]
      %v1100 = vld [vmem:[%s681 + $0x688] sm:$0xf]
      %v1101 = vld [vmem:[%s681 + $0x68c] sm:$0xf]
      %v1102 = vld [vmem:[%s681 + $0x690] sm:$0xf]
      %v1103 = vld [vmem:[%s681 + $0x694] sm:$0xf]
      %v1104 = vld [vmem:[%s681 + $0x698] sm:$0xf]
      %v1105 = vld [vmem:[%s681 + $0x69c] sm:$0xf]
      %v1106 = vld [vmem:[%s681 + $0x6a0] sm:$0xf]
      %v1107 = vld [vmem:[%s681 + $0x6a4] sm:$0xf]
      %v1108 = vld [vmem:[%s681 + $0x6a8] sm:$0xf]
      %v1109 = vld [vmem:[%s681 + $0x6ac] sm:$0xf]
      %v1110 = vld [vmem:[%s681 + $0x6b0] sm:$0xf]
      %v1111 = vld [vmem:[%s681 + $0x6b4] sm:$0xf]
      %v1112 = vld [vmem:[%s681 + $0x6b8] sm:$0xf]
      %v1113 = vld [vmem:[%s681 + $0x6bc] sm:$0xf]
      %v1114 = vld [vmem:[%s681 + $0x6c0] sm:$0xf]
      %v1115 = vld [vmem:[%s681 + $0x6c4] sm:$0xf]
      %v1116 = vld [vmem:[%s681 + $0x6c8] sm:$0xf]
      %v1117 = vld [vmem:[%s681 + $0x6cc] sm:$0xf]
      %v1118 = vld [vmem:[%s681 + $0x6d0] sm:$0xf]
      %v1119 = vld [vmem:[%s681 + $0x6d4] sm:$0xf]
      %v1120 = vld [vmem:[%s681 + $0x6d8] sm:$0xf]
      %v1121 = vld [vmem:[%s681 + $0x6dc] sm:$0xf]
      %v1122 = vld [vmem:[%s681 + $0x6e0] sm:$0xf]
      %v1123 = vld [vmem:[%s681 + $0x6e4] sm:$0xf]
      %v1124 = vld [vmem:[%s681 + $0x6e8] sm:$0xf]
      %v1125 = vld [vmem:[%s681 + $0x6ec] sm:$0xf]
      %v1126 = vld [vmem:[%s681 + $0x6f0] sm:$0xf]
      %v1127 = vld [vmem:[%s681 + $0x6f4] sm:$0xf]
      %v1128 = vld [vmem:[%s681 + $0x6f8] sm:$0xf]
      %v1129 = vld [vmem:[%s681 + $0x6fc] sm:$0xf]
      %v1130 = vld [vmem:[%s681 + $0x700] sm:$0xf]
      %v1131 = vld [vmem:[%s681 + $0x704] sm:$0xf]
      %v1132 = vld [vmem:[%s681 + $0x708] sm:$0xf]
      %v1133 = vld [vmem:[%s681 + $0x70c] sm:$0xf]
      %v1134 = vld [vmem:[%s681 + $0x710] sm:$0xf]
      %v1135 = vld [vmem:[%s681 + $0x714] sm:$0xf]
      %v1136 = vld [vmem:[%s681 + $0x718] sm:$0xf]
      %v1137 = vld [vmem:[%s681 + $0x71c] sm:$0xf]
      %v1138 = vld [vmem:[%s681 + $0x720] sm:$0xf]
      %v1139 = vld [vmem:[%s681 + $0x724] sm:$0xf]
      %v1140 = vld [vmem:[%s681 + $0x728] sm:$0xf]
      %v1141 = vld [vmem:[%s681 + $0x72c] sm:$0xf]
      %v1142 = vld [vmem:[%s681 + $0x730] sm:$0xf]
      %v1143 = vld [vmem:[%s681 + $0x734] sm:$0xf]
      %v1144 = vld [vmem:[%s681 + $0x738] sm:$0xf]
      %v1145 = vld [vmem:[%s681 + $0x73c] sm:$0xf]
      %v1146 = vld [vmem:[%s681 + $0x740] sm:$0xf]
      %v1147 = vld [vmem:[%s681 + $0x744] sm:$0xf]
      %v1148 = vld [vmem:[%s681 + $0x748] sm:$0xf]
      %v1149 = vld [vmem:[%s681 + $0x74c] sm:$0xf]
      %v1150 = vld [vmem:[%s681 + $0x750] sm:$0xf]
      %v1151 = vld [vmem:[%s681 + $0x754] sm:$0xf]
      %v1152 = vld [vmem:[%s681 + $0x758] sm:$0xf]
      %v1153 = vld [vmem:[%s681 + $0x75c] sm:$0xf]
      %v1154 = vld [vmem:[%s681 + $0x760] sm:$0xf]
      %v1155 = vld [vmem:[%s681 + $0x764] sm:$0xf]
      %v1156 = vld [vmem:[%s681 + $0x768] sm:$0xf]
      %v1157 = vld [vmem:[%s681 + $0x76c] sm:$0xf]
      %v1158 = vld [vmem:[%s681 + $0x770] sm:$0xf]
      %v1159 = vld [vmem:[%s681 + $0x774] sm:$0xf]
      %v1160 = vld [vmem:[%s681 + $0x778] sm:$0xf]
      %v1161 = vld [vmem:[%s681 + $0x77c] sm:$0xf]
      %v1162 = vld [vmem:[#allocation2] sm:$0xff]
      %v1163 = vld [vmem:[#allocation2 + $0x8] sm:$0xff]
      %v1164 = vld [vmem:[#allocation2 + $0x10] sm:$0xff]
      %v1165 = vld [vmem:[#allocation2 + $0x18] sm:$0xff]
      %v1166 = vld [vmem:[#allocation2 + $0x20] sm:$0xff]
      %v1167 = vld [vmem:[#allocation2 + $0x28] sm:$0xff]
      %v1168 = vld [vmem:[#allocation2 + $0x30] sm:$0xff]
      %v1169 = vld [vmem:[#allocation2 + $0x38] sm:$0xff]
      %v1170 = vld [vmem:[#allocation2 + $0x40] sm:$0xff]
      %v1171 = vld [vmem:[#allocation2 + $0x48] sm:$0xff]
      %v1172 = vld [vmem:[#allocation2 + $0x50] sm:$0xff]
      %v1173 = vld [vmem:[#allocation2 + $0x58] sm:$0xff]
      %v1174 = vld [vmem:[#allocation2 + $0x60] sm:$0xff]
      %v1175 = vld [vmem:[#allocation2 + $0x68] sm:$0xff]
      %v1176 = vld [vmem:[#allocation2 + $0x70] sm:$0xff]
      %v1177 = vld [vmem:[#allocation2 + $0x78] sm:$0xff]
      %v1178 = vld [vmem:[#allocation2 + $0x80] sm:$0xff]
      %v1179 = vld [vmem:[#allocation2 + $0x88] sm:$0xff]
      %v1180 = vld [vmem:[#allocation2 + $0x90] sm:$0xff]
      %v1181 = vld [vmem:[#allocation2 + $0x98] sm:$0xff]
      %v1182 = vld [vmem:[#allocation2 + $0xa0] sm:$0xff]
      %v1183 = vld [vmem:[#allocation2 + $0xa8] sm:$0xff]
      %v1184 = vld [vmem:[#allocation2 + $0xb0] sm:$0xff]
      %v1185 = vld [vmem:[#allocation2 + $0xb8] sm:$0xff]
      %v1186 = vld [vmem:[#allocation2 + $0xc0] sm:$0xff]
      %v1187 = vld [vmem:[#allocation2 + $0xc8] sm:$0xff]
      %v1188 = vld [vmem:[#allocation2 + $0xd0] sm:$0xff]
      %v1189 = vld [vmem:[#allocation2 + $0xd8] sm:$0xff]
      %v1190 = vld [vmem:[#allocation2 + $0xe0] sm:$0xff]
      %v1191 = vld [vmem:[#allocation2 + $0xe8] sm:$0xff]
      %v1192 = vld [vmem:[#allocation2 + $0xf0] sm:$0xff]
      %v1193 = vld [vmem:[#allocation2 + $0xf8] sm:$0xff]
      %v1194 = vld [vmem:[#allocation2 + $0x100] sm:$0xff]
      %v1195 = vld [vmem:[#allocation2 + $0x108] sm:$0xff]
      %v1196 = vld [vmem:[#allocation2 + $0x110] sm:$0xff]
      %v1197 = vld [vmem:[#allocation2 + $0x118] sm:$0xff]
      %v1198 = vld [vmem:[#allocation2 + $0x120] sm:$0xff]
      %v1199 = vld [vmem:[#allocation2 + $0x128] sm:$0xff]
      %v1200 = vld [vmem:[#allocation2 + $0x130] sm:$0xff]
      %v1201 = vld [vmem:[#allocation2 + $0x138] sm:$0xff]
      %v1202 = vld [vmem:[#allocation2 + $0x140] sm:$0xff]
      %v1203 = vld [vmem:[#allocation2 + $0x148] sm:$0xff]
      %v1204 = vld [vmem:[#allocation2 + $0x150] sm:$0xff]
      %v1205 = vld [vmem:[#allocation2 + $0x158] sm:$0xff]
      %v1206 = vld [vmem:[#allocation2 + $0x160] sm:$0xff]
      %v1207 = vld [vmem:[#allocation2 + $0x168] sm:$0xff]
      %v1208 = vld [vmem:[#allocation2 + $0x170] sm:$0xff]
      %v1209 = vld [vmem:[#allocation2 + $0x178] sm:$0xff]
      %v1210 = vld [vmem:[#allocation2 + $0x180] sm:$0xff]
      %v1211 = vld [vmem:[#allocation2 + $0x188] sm:$0xff]
      %v1212 = vld [vmem:[#allocation2 + $0x190] sm:$0xff]
      %v1213 = vld [vmem:[#allocation2 + $0x198] sm:$0xff]
      %v1214 = vld [vmem:[#allocation2 + $0x1a0] sm:$0xff]
      %v1215 = vld [vmem:[#allocation2 + $0x1a8] sm:$0xff]
      %v1216 = vld [vmem:[#allocation2 + $0x1b0] sm:$0xff]
      %v1217 = vld [vmem:[#allocation2 + $0x1b8] sm:$0xff]
      %v1218 = vld [vmem:[#allocation2 + $0x1c0] sm:$0xff]
      %v1219 = vld [vmem:[#allocation2 + $0x1c8] sm:$0xff]
      %v1220 = vld [vmem:[#allocation2 + $0x1d0] sm:$0xff]
      %v1221 = vld [vmem:[#allocation2 + $0x1d8] sm:$0xff]
      %v1222 = vld [vmem:[#allocation2 + $0x1e0] sm:$0xff]
      %v1223 = vld [vmem:[#allocation2 + $0x1e8] sm:$0xff]
      %v1224 = vld [vmem:[#allocation2 + $0x1f0] sm:$0xff]
      %v1225 = vld [vmem:[#allocation2 + $0x1f8] sm:$0xff]
      %v1226 = vld [vmem:[#allocation2 + $0x200] sm:$0xff]
      %v1227 = vld [vmem:[#allocation2 + $0x208] sm:$0xff]
      %v1228 = vld [vmem:[#allocation2 + $0x210] sm:$0xff]
      %v1229 = vld [vmem:[#allocation2 + $0x218] sm:$0xff]
      %v1230 = vld [vmem:[#allocation2 + $0x220] sm:$0xff]
      %v1231 = vld [vmem:[#allocation2 + $0x228] sm:$0xff]
      %v1232 = vld [vmem:[#allocation2 + $0x230] sm:$0xff]
      %v1233 = vld [vmem:[#allocation2 + $0x238] sm:$0xff]
      %v1234 = vld [vmem:[#allocation2 + $0x240] sm:$0xff]
      %v1235 = vld [vmem:[#allocation2 + $0x248] sm:$0xff]
      %v1236 = vld [vmem:[#allocation2 + $0x250] sm:$0xff]
      %v1237 = vld [vmem:[#allocation2 + $0x258] sm:$0xff]
      %v1238 = vld [vmem:[#allocation2 + $0x260] sm:$0xff]
      %v1239 = vld [vmem:[#allocation2 + $0x268] sm:$0xff]
      %v1240 = vld [vmem:[#allocation2 + $0x270] sm:$0xff]
      %v1241 = vld [vmem:[#allocation2 + $0x278] sm:$0xff]
      %v1242 = vld [vmem:[#allocation2 + $0x280] sm:$0xff]
      %v1243 = vld [vmem:[#allocation2 + $0x288] sm:$0xff]
      %v1244 = vld [vmem:[#allocation2 + $0x290] sm:$0xff]
      %v1245 = vld [vmem:[#allocation2 + $0x298] sm:$0xff]
      %v1246 = vld [vmem:[#allocation2 + $0x2a0] sm:$0xff]
      %v1247 = vld [vmem:[#allocation2 + $0x2a8] sm:$0xff]
      %v1248 = vld [vmem:[#allocation2 + $0x2b0] sm:$0xff]
      %v1249 = vld [vmem:[#allocation2 + $0x2b8] sm:$0xff]
      %v1250 = vld [vmem:[#allocation2 + $0x2c0] sm:$0xff]
      %v1251 = vld [vmem:[#allocation2 + $0x2c8] sm:$0xff]
      %v1252 = vld [vmem:[#allocation2 + $0x2d0] sm:$0xff]
      %v1253 = vld [vmem:[#allocation2 + $0x2d8] sm:$0xff]
      %v1254 = vld [vmem:[#allocation2 + $0x2e0] sm:$0xff]
      %v1255 = vld [vmem:[#allocation2 + $0x2e8] sm:$0xff]
      %v1256 = vld [vmem:[#allocation2 + $0x2f0] sm:$0xff]
      %v1257 = vld [vmem:[#allocation2 + $0x2f8] sm:$0xff]
      %v1258 = vld [vmem:[#allocation2 + $0x300] sm:$0xff]
      %v1259 = vld [vmem:[#allocation2 + $0x308] sm:$0xff]
      %v1260 = vld [vmem:[#allocation2 + $0x310] sm:$0xff]
      %v1261 = vld [vmem:[#allocation2 + $0x318] sm:$0xff]
      %v1262 = vld [vmem:[#allocation2 + $0x320] sm:$0xff]
      %v1263 = vld [vmem:[#allocation2 + $0x328] sm:$0xff]
      %v1264 = vld [vmem:[#allocation2 + $0x330] sm:$0xff]
      %v1265 = vld [vmem:[#allocation2 + $0x338] sm:$0xff]
      %v1266 = vld [vmem:[#allocation2 + $0x340] sm:$0xff]
      %v1267 = vld [vmem:[#allocation2 + $0x348] sm:$0xff]
      %v1268 = vld [vmem:[#allocation2 + $0x350] sm:$0xff]
      %v1269 = vld [vmem:[#allocation2 + $0x358] sm:$0xff]
      %v1270 = vld [vmem:[#allocation2 + $0x360] sm:$0xff]
      %v1271 = vld [vmem:[#allocation2 + $0x368] sm:$0xff]
      %v1272 = vld [vmem:[#allocation2 + $0x370] sm:$0xff]
      %v1273 = vld [vmem:[#allocation2 + $0x378] sm:$0xff]
      %v1274 = vld [vmem:[#allocation2 + $0x380] sm:$0xff]
      %v1275 = vld [vmem:[#allocation2 + $0x388] sm:$0xff]
      %v1276 = vld [vmem:[#allocation2 + $0x390] sm:$0xff]
      %v1277 = vld [vmem:[#allocation2 + $0x398] sm:$0xff]
      %v1278 = vld [vmem:[#allocation2 + $0x3a0] sm:$0xff]
      %v1279 = vld [vmem:[#allocation2 + $0x3a8] sm:$0xff]
      %v1280 = vld [vmem:[#allocation2 + $0x3b0] sm:$0xff]
      %v1281 = vld [vmem:[#allocation2 + $0x3b8] sm:$0xff]
      %v1282 = vld [vmem:[#allocation2 + $0x3c0] sm:$0xff]
      %v1283 = vld [vmem:[#allocation2 + $0x3c8] sm:$0xff]
      %v1284 = vld [vmem:[#allocation2 + $0x3d0] sm:$0xff]
      %v1285 = vld [vmem:[#allocation2 + $0x3d8] sm:$0xff]
      %v1286 = vld [vmem:[#allocation2 + $0x3e0] sm:$0xff]
      %v1287 = vld [vmem:[#allocation2 + $0x3e8] sm:$0xff]
      %v1288 = vld [vmem:[#allocation2 + $0x3f0] sm:$0xff]
      %v1289 = vld [vmem:[#allocation2 + $0x3f8] sm:$0xff]
      %v1290 = vld [vmem:[#allocation2 + $0x400] sm:$0xff]
      %v1291 = vld [vmem:[#allocation2 + $0x408] sm:$0xff]
      %v1292 = vld [vmem:[#allocation2 + $0x410] sm:$0xff]
      %v1293 = vld [vmem:[#allocation2 + $0x418] sm:$0xff]
      %v1294 = vld [vmem:[#allocation2 + $0x420] sm:$0xff]
      %v1295 = vld [vmem:[#allocation2 + $0x428] sm:$0xff]
      %v1296 = vld [vmem:[#allocation2 + $0x430] sm:$0xff]
      %v1297 = vld [vmem:[#allocation2 + $0x438] sm:$0xff]
      %v1298 = vld [vmem:[#allocation2 + $0x440] sm:$0xff]
      %v1299 = vld [vmem:[#allocation2 + $0x448] sm:$0xff]
      %v1300 = vld [vmem:[#allocation2 + $0x450] sm:$0xff]
      %v1301 = vld [vmem:[#allocation2 + $0x458] sm:$0xff]
      %v1302 = vld [vmem:[#allocation2 + $0x460] sm:$0xff]
      %v1303 = vld [vmem:[#allocation2 + $0x468] sm:$0xff]
      %v1304 = vld [vmem:[#allocation2 + $0x470] sm:$0xff]
      %v1305 = vld [vmem:[#allocation2 + $0x478] sm:$0xff]
      %v1306 = vld [vmem:[#allocation2 + $0x480] sm:$0xff]
      %v1307 = vld [vmem:[#allocation2 + $0x488] sm:$0xff]
      %v1308 = vld [vmem:[#allocation2 + $0x490] sm:$0xff]
      %v1309 = vld [vmem:[#allocation2 + $0x498] sm:$0xff]
      %v1310 = vld [vmem:[#allocation2 + $0x4a0] sm:$0xff]
      %v1311 = vld [vmem:[#allocation2 + $0x4a8] sm:$0xff]
      %v1312 = vld [vmem:[#allocation2 + $0x4b0] sm:$0xff]
      %v1313 = vld [vmem:[#allocation2 + $0x4b8] sm:$0xff]
      %v1314 = vld [vmem:[#allocation2 + $0x4c0] sm:$0xff]
      %v1315 = vld [vmem:[#allocation2 + $0x4c8] sm:$0xff]
      %v1316 = vld [vmem:[#allocation2 + $0x4d0] sm:$0xff]
      %v1317 = vld [vmem:[#allocation2 + $0x4d8] sm:$0xff]
      %v1318 = vld [vmem:[#allocation2 + $0x4e0] sm:$0xff]
      %v1319 = vld [vmem:[#allocation2 + $0x4e8] sm:$0xff]
      %v1320 = vld [vmem:[#allocation2 + $0x4f0] sm:$0xff]
      %v1321 = vld [vmem:[#allocation2 + $0x4f8] sm:$0xff]
      %v1322 = vld [vmem:[#allocation2 + $0x500] sm:$0xff]
      %v1323 = vld [vmem:[#allocation2 + $0x508] sm:$0xff]
      %v1324 = vld [vmem:[#allocation2 + $0x510] sm:$0xff]
      %v1325 = vld [vmem:[#allocation2 + $0x518] sm:$0xff]
      %v1326 = vld [vmem:[#allocation2 + $0x520] sm:$0xff]
      %v1327 = vld [vmem:[#allocation2 + $0x528] sm:$0xff]
      %v1328 = vld [vmem:[#allocation2 + $0x530] sm:$0xff]
      %v1329 = vld [vmem:[#allocation2 + $0x538] sm:$0xff]
      %v1330 = vld [vmem:[#allocation2 + $0x540] sm:$0xff]
      %v1331 = vld [vmem:[#allocation2 + $0x548] sm:$0xff]
      %v1332 = vld [vmem:[#allocation2 + $0x550] sm:$0xff]
      %v1333 = vld [vmem:[#allocation2 + $0x558] sm:$0xff]
      %v1334 = vld [vmem:[#allocation2 + $0x560] sm:$0xff]
      %v1335 = vld [vmem:[#allocation2 + $0x568] sm:$0xff]
      %v1336 = vld [vmem:[#allocation2 + $0x570] sm:$0xff]
      %v1337 = vld [vmem:[#allocation2 + $0x578] sm:$0xff]
      %v1338 = vld [vmem:[#allocation2 + $0x580] sm:$0xff]
      %v1339 = vld [vmem:[#allocation2 + $0x588] sm:$0xff]
      %v1340 = vld [vmem:[#allocation2 + $0x590] sm:$0xff]
      %v1341 = vld [vmem:[#allocation2 + $0x598] sm:$0xff]
      %v1342 = vld [vmem:[#allocation2 + $0x5a0] sm:$0xff]
      %v1343 = vld [vmem:[#allocation2 + $0x5a8] sm:$0xff]
      %v1344 = vld [vmem:[#allocation2 + $0x5b0] sm:$0xff]
      %v1345 = vld [vmem:[#allocation2 + $0x5b8] sm:$0xff]
      %v1346 = vld [vmem:[#allocation2 + $0x5c0] sm:$0xff]
      %v1347 = vld [vmem:[#allocation2 + $0x5c8] sm:$0xff]
      %v1348 = vld [vmem:[#allocation2 + $0x5d0] sm:$0xff]
      %v1349 = vld [vmem:[#allocation2 + $0x5d8] sm:$0xff]
      %v1350 = vld [vmem:[#allocation2 + $0x5e0] sm:$0xff]
      %v1351 = vld [vmem:[#allocation2 + $0x5e8] sm:$0xff]
      %v1352 = vld [vmem:[#allocation2 + $0x5f0] sm:$0xff]
      %v1353 = vld [vmem:[#allocation2 + $0x5f8] sm:$0xff]
      %v1354 = vld [vmem:[#allocation2 + $0x600] sm:$0xff]
      %v1355 = vld [vmem:[#allocation2 + $0x608] sm:$0xff]
      %v1356 = vld [vmem:[#allocation2 + $0x610] sm:$0xff]
      %v1357 = vld [vmem:[#allocation2 + $0x618] sm:$0xff]
      %v1358 = vld [vmem:[#allocation2 + $0x620] sm:$0xff]
      %v1359 = vld [vmem:[#allocation2 + $0x628] sm:$0xff]
      %v1360 = vld [vmem:[#allocation2 + $0x630] sm:$0xff]
      %v1361 = vld [vmem:[#allocation2 + $0x638] sm:$0xff]
      %v1362 = vld [vmem:[#allocation2 + $0x640] sm:$0xff]
      %v1363 = vld [vmem:[#allocation2 + $0x648] sm:$0xff]
      %v1364 = vld [vmem:[#allocation2 + $0x650] sm:$0xff]
      %v1365 = vld [vmem:[#allocation2 + $0x658] sm:$0xff]
      %v1366 = vld [vmem:[#allocation2 + $0x660] sm:$0xff]
      %v1367 = vld [vmem:[#allocation2 + $0x668] sm:$0xff]
      %v1368 = vld [vmem:[#allocation2 + $0x670] sm:$0xff]
      %v1369 = vld [vmem:[#allocation2 + $0x678] sm:$0xff]
      %v1370 = vld [vmem:[#allocation2 + $0x680] sm:$0xff]
      %v1371 = vld [vmem:[#allocation2 + $0x688] sm:$0xff]
      %v1372 = vld [vmem:[#allocation2 + $0x690] sm:$0xff]
      %v1373 = vld [vmem:[#allocation2 + $0x698] sm:$0xff]
      %v1374 = vld [vmem:[#allocation2 + $0x6a0] sm:$0xff]
      %v1375 = vld [vmem:[#allocation2 + $0x6a8] sm:$0xff]
      %v1376 = vld [vmem:[#allocation2 + $0x6b0] sm:$0xff]
      %v1377 = vld [vmem:[#allocation2 + $0x6b8] sm:$0xff]
      %v1378 = vld [vmem:[#allocation2 + $0x6c0] sm:$0xff]
      %v1379 = vld [vmem:[#allocation2 + $0x6c8] sm:$0xff]
      %v1380 = vld [vmem:[#allocation2 + $0x6d0] sm:$0xff]
      %v1381 = vld [vmem:[#allocation2 + $0x6d8] sm:$0xff]
      %v1382 = vld [vmem:[#allocation2 + $0x6e0] sm:$0xff]
      %v1383 = vld [vmem:[#allocation2 + $0x6e8] sm:$0xff]
      %v1384 = vld [vmem:[#allocation2 + $0x6f0] sm:$0xff]
      %v1385 = vld [vmem:[#allocation2 + $0x6f8] sm:$0xff]
      %v1386 = vld [vmem:[#allocation2 + $0x700] sm:$0xff]
      %v1387 = vld [vmem:[#allocation2 + $0x708] sm:$0xff]
      %v1388 = vld [vmem:[#allocation2 + $0x710] sm:$0xff]
      %v1389 = vld [vmem:[#allocation2 + $0x718] sm:$0xff]
      %v1390 = vld [vmem:[#allocation2 + $0x720] sm:$0xff]
      %v1391 = vld [vmem:[#allocation2 + $0x728] sm:$0xff]
      %v1392 = vld [vmem:[#allocation2 + $0x730] sm:$0xff]
      %v1393 = vld [vmem:[#allocation2 + $0x738] sm:$0xff]
      %v1394 = vld [vmem:[#allocation2 + $0x740] sm:$0xff]
      %v1395 = vld [vmem:[#allocation2 + $0x748] sm:$0xff]
      %v1396 = vld [vmem:[#allocation2 + $0x750] sm:$0xff]
      %v1397 = vld [vmem:[#allocation2 + $0x758] sm:$0xff]
      %v1398 = vld [vmem:[#allocation2 + $0x760] sm:$0xff]
      %v1399 = vld [vmem:[#allocation2 + $0x768] sm:$0xff]
      %v1400 = vld [vmem:[#allocation2 + $0x770] sm:$0xff]
      %v1401 = vld [vmem:[#allocation2 + $0x778] sm:$0xff]
      %v1402 = vld [vmem:[#allocation2 + $0x780] sm:$0xff]
      %v1403 = vld [vmem:[#allocation2 + $0x788] sm:$0xff]
      %v1404 = vld [vmem:[#allocation2 + $0x790] sm:$0xff]
      %v1405 = vld [vmem:[#allocation2 + $0x798] sm:$0xff]
      %v1406 = vld [vmem:[#allocation2 + $0x7a0] sm:$0xff]
      %v1407 = vld [vmem:[#allocation2 + $0x7a8] sm:$0xff]
      %v1408 = vld [vmem:[#allocation2 + $0x7b0] sm:$0xff]
      %v1409 = vld [vmem:[#allocation2 + $0x7b8] sm:$0xff]
      %v1410 = vld [vmem:[#allocation2 + $0x7c0] sm:$0xff]
      %v1411 = vld [vmem:[#allocation2 + $0x7c8] sm:$0xff]
      %v1412 = vld [vmem:[#allocation2 + $0x7d0] sm:$0xff]
      %v1413 = vld [vmem:[#allocation2 + $0x7d8] sm:$0xff]
      %v1414 = vld [vmem:[#allocation2 + $0x7e0] sm:$0xff]
      %v1415 = vld [vmem:[#allocation2 + $0x7e8] sm:$0xff]
      %v1416 = vld [vmem:[#allocation2 + $0x7f0] sm:$0xff]
      %v1417 = vld [vmem:[#allocation2 + $0x7f8] sm:$0xff]
      %v1418 = vld [vmem:[#allocation2 + $0x800] sm:$0xff]
      %v1419 = vld [vmem:[#allocation2 + $0x808] sm:$0xff]
      %v1420 = vld [vmem:[#allocation2 + $0x810] sm:$0xff]
      %v1421 = vld [vmem:[#allocation2 + $0x818] sm:$0xff]
      %v1422 = vld [vmem:[#allocation2 + $0x820] sm:$0xff]
      %v1423 = vld [vmem:[#allocation2 + $0x828] sm:$0xff]
      %v1424 = vld [vmem:[#allocation2 + $0x830] sm:$0xff]
      %v1425 = vld [vmem:[#allocation2 + $0x838] sm:$0xff]
      %v1426 = vld [vmem:[#allocation2 + $0x840] sm:$0xff]
      %v1427 = vld [vmem:[#allocation2 + $0x848] sm:$0xff]
      %v1428 = vld [vmem:[#allocation2 + $0x850] sm:$0xff]
      %v1429 = vld [vmem:[#allocation2 + $0x858] sm:$0xff]
      %v1430 = vld [vmem:[#allocation2 + $0x860] sm:$0xff]
      %v1431 = vld [vmem:[#allocation2 + $0x868] sm:$0xff]
      %v1432 = vld [vmem:[#allocation2 + $0x870] sm:$0xff]
      %v1433 = vld [vmem:[#allocation2 + $0x878] sm:$0xff]
      %v1434 = vld [vmem:[#allocation2 + $0x880] sm:$0xff]
      %v1435 = vld [vmem:[#allocation2 + $0x888] sm:$0xff]
      %v1436 = vld [vmem:[#allocation2 + $0x890] sm:$0xff]
      %v1437 = vld [vmem:[#allocation2 + $0x898] sm:$0xff]
      %v1438 = vld [vmem:[#allocation2 + $0x8a0] sm:$0xff]
      %v1439 = vld [vmem:[#allocation2 + $0x8a8] sm:$0xff]
      %v1440 = vld [vmem:[#allocation2 + $0x8b0] sm:$0xff]
      %v1441 = vld [vmem:[#allocation2 + $0x8b8] sm:$0xff]
      %v1442 = vld [vmem:[#allocation2 + $0x8c0] sm:$0xff]
      %v1443 = vld [vmem:[#allocation2 + $0x8c8] sm:$0xff]
      %v1444 = vld [vmem:[#allocation2 + $0x8d0] sm:$0xff]
      %v1445 = vld [vmem:[#allocation2 + $0x8d8] sm:$0xff]
      %v1446 = vld [vmem:[#allocation2 + $0x8e0] sm:$0xff]
      %v1447 = vld [vmem:[#allocation2 + $0x8e8] sm:$0xff]
      %v1448 = vld [vmem:[#allocation2 + $0x8f0] sm:$0xff]
      %v1449 = vld [vmem:[#allocation2 + $0x8f8] sm:$0xff]
      %v1450 = vld [vmem:[#allocation2 + $0x900] sm:$0xff]
      %v1451 = vld [vmem:[#allocation2 + $0x908] sm:$0xff]
      %v1452 = vld [vmem:[#allocation2 + $0x910] sm:$0xff]
      %v1453 = vld [vmem:[#allocation2 + $0x918] sm:$0xff]
      %v1454 = vld [vmem:[#allocation2 + $0x920] sm:$0xff]
      %v1455 = vld [vmem:[#allocation2 + $0x928] sm:$0xff]
      %v1456 = vld [vmem:[#allocation2 + $0x930] sm:$0xff]
      %v1457 = vld [vmem:[#allocation2 + $0x938] sm:$0xff]
      %v1458 = vld [vmem:[#allocation2 + $0x940] sm:$0xff]
      %v1459 = vld [vmem:[#allocation2 + $0x948] sm:$0xff]
      %v1460 = vld [vmem:[#allocation2 + $0x950] sm:$0xff]
      %v1461 = vld [vmem:[#allocation2 + $0x958] sm:$0xff]
      %v1462 = vld [vmem:[#allocation2 + $0x960] sm:$0xff]
      %v1463 = vld [vmem:[#allocation2 + $0x968] sm:$0xff]
      %v1464 = vld [vmem:[#allocation2 + $0x970] sm:$0xff]
      %v1465 = vld [vmem:[#allocation2 + $0x978] sm:$0xff]
      %v1466 = vld [vmem:[#allocation2 + $0x980] sm:$0xff]
      %v1467 = vld [vmem:[#allocation2 + $0x988] sm:$0xff]
      %v1468 = vld [vmem:[#allocation2 + $0x990] sm:$0xff]
      %v1469 = vld [vmem:[#allocation2 + $0x998] sm:$0xff]
      %v1470 = vld [vmem:[#allocation2 + $0x9a0] sm:$0xff]
      %v1471 = vld [vmem:[#allocation2 + $0x9a8] sm:$0xff]
      %v1472 = vld [vmem:[#allocation2 + $0x9b0] sm:$0xff]
      %v1473 = vld [vmem:[#allocation2 + $0x9b8] sm:$0xff]
      %v1474 = vld [vmem:[#allocation2 + $0x9c0] sm:$0xff]
      %v1475 = vld [vmem:[#allocation2 + $0x9c8] sm:$0xff]
      %v1476 = vld [vmem:[#allocation2 + $0x9d0] sm:$0xff]
      %v1477 = vld [vmem:[#allocation2 + $0x9d8] sm:$0xff]
      %v1478 = vld [vmem:[#allocation2 + $0x9e0] sm:$0xff]
      %v1479 = vld [vmem:[#allocation2 + $0x9e8] sm:$0xff]
      %v1480 = vld [vmem:[#allocation2 + $0x9f0] sm:$0xff]
      %v1481 = vld [vmem:[#allocation2 + $0x9f8] sm:$0xff]
      %v1482 = vld [vmem:[#allocation2 + $0xa00] sm:$0xff]
      %v1483 = vld [vmem:[#allocation2 + $0xa08] sm:$0xff]
      %v1484 = vld [vmem:[#allocation2 + $0xa10] sm:$0xff]
      %v1485 = vld [vmem:[#allocation2 + $0xa18] sm:$0xff]
      %v1486 = vld [vmem:[#allocation2 + $0xa20] sm:$0xff]
      %v1487 = vld [vmem:[#allocation2 + $0xa28] sm:$0xff]
      %v1488 = vld [vmem:[#allocation2 + $0xa30] sm:$0xff]
      %v1489 = vld [vmem:[#allocation2 + $0xa38] sm:$0xff]
      %v1490 = vld [vmem:[#allocation2 + $0xa40] sm:$0xff]
      %v1491 = vld [vmem:[#allocation2 + $0xa48] sm:$0xff]
      %v1492 = vld [vmem:[#allocation2 + $0xa50] sm:$0xff]
      %v1493 = vld [vmem:[#allocation2 + $0xa58] sm:$0xff]
      %v1494 = vld [vmem:[#allocation2 + $0xa60] sm:$0xff]
      %v1495 = vld [vmem:[#allocation2 + $0xa68] sm:$0xff]
      %v1496 = vld [vmem:[#allocation2 + $0xa70] sm:$0xff]
      %v1497 = vld [vmem:[#allocation2 + $0xa78] sm:$0xff]
      %v1498 = vld [vmem:[#allocation2 + $0xa80] sm:$0xff]
      %v1499 = vld [vmem:[#allocation2 + $0xa88] sm:$0xff]
      %v1500 = vld [vmem:[#allocation2 + $0xa90] sm:$0xff]
      %v1501 = vld [vmem:[#allocation2 + $0xa98] sm:$0xff]
      %v1502 = vld [vmem:[#allocation2 + $0xaa0] sm:$0xff]
      %v1503 = vld [vmem:[#allocation2 + $0xaa8] sm:$0xff]
      %v1504 = vld [vmem:[#allocation2 + $0xab0] sm:$0xff]
      %v1505 = vld [vmem:[#allocation2 + $0xab8] sm:$0xff]
      %v1506 = vld [vmem:[#allocation2 + $0xac0] sm:$0xff]
      %v1507 = vld [vmem:[#allocation2 + $0xac8] sm:$0xff]
      %v1508 = vld [vmem:[#allocation2 + $0xad0] sm:$0xff]
      %v1509 = vld [vmem:[#allocation2 + $0xad8] sm:$0xff]
      %v1510 = vld [vmem:[#allocation2 + $0xae0] sm:$0xff]
      %v1511 = vld [vmem:[#allocation2 + $0xae8] sm:$0xff]
      %v1512 = vld [vmem:[#allocation2 + $0xaf0] sm:$0xff]
      %v1513 = vld [vmem:[#allocation2 + $0xaf8] sm:$0xff]
      %v1514 = vld [vmem:[#allocation2 + $0xb00] sm:$0xff]
      %v1515 = vld [vmem:[#allocation2 + $0xb08] sm:$0xff]
      %v1516 = vld [vmem:[#allocation2 + $0xb10] sm:$0xff]
      %v1517 = vld [vmem:[#allocation2 + $0xb18] sm:$0xff]
      %v1518 = vld [vmem:[#allocation2 + $0xb20] sm:$0xff]
      %v1519 = vld [vmem:[#allocation2 + $0xb28] sm:$0xff]
      %v1520 = vld [vmem:[#allocation2 + $0xb30] sm:$0xff]
      %v1521 = vld [vmem:[#allocation2 + $0xb38] sm:$0xff]
      %v1522 = vld [vmem:[#allocation2 + $0xb40] sm:$0xff]
      %v1523 = vld [vmem:[#allocation2 + $0xb48] sm:$0xff]
      %v1524 = vld [vmem:[#allocation2 + $0xb50] sm:$0xff]
      %v1525 = vld [vmem:[#allocation2 + $0xb58] sm:$0xff]
      %v1526 = vld [vmem:[#allocation2 + $0xb60] sm:$0xff]
      %v1527 = vld [vmem:[#allocation2 + $0xb68] sm:$0xff]
      %v1528 = vld [vmem:[#allocation2 + $0xb70] sm:$0xff]
      %v1529 = vld [vmem:[#allocation2 + $0xb78] sm:$0xff]
      %v1530 = vld [vmem:[#allocation2 + $0xb80] sm:$0xff]
      %v1531 = vld [vmem:[#allocation2 + $0xb88] sm:$0xff]
      %v1532 = vld [vmem:[#allocation2 + $0xb90] sm:$0xff]
      %v1533 = vld [vmem:[#allocation2 + $0xb98] sm:$0xff]
      %v1534 = vld [vmem:[#allocation2 + $0xba0] sm:$0xff]
      %v1535 = vld [vmem:[#allocation2 + $0xba8] sm:$0xff]
      %v1536 = vld [vmem:[#allocation2 + $0xbb0] sm:$0xff]
      %v1537 = vld [vmem:[#allocation2 + $0xbb8] sm:$0xff]
      %v1538 = vld [vmem:[#allocation2 + $0xbc0] sm:$0xff]
      %v1539 = vld [vmem:[#allocation2 + $0xbc8] sm:$0xff]
      %v1540 = vld [vmem:[#allocation2 + $0xbd0] sm:$0xff]
      %v1541 = vld [vmem:[#allocation2 + $0xbd8] sm:$0xff]
      %v1542 = vld [vmem:[#allocation2 + $0xbe0] sm:$0xff]
      %v1543 = vld [vmem:[#allocation2 + $0xbe8] sm:$0xff]
      %v1544 = vld [vmem:[#allocation2 + $0xbf0] sm:$0xff]
      %v1545 = vld [vmem:[#allocation2 + $0xbf8] sm:$0xff]
      %v1546 = vld [vmem:[#allocation2 + $0xc00] sm:$0xff]
      %v1547 = vld [vmem:[#allocation2 + $0xc08] sm:$0xff]
      %v1548 = vld [vmem:[#allocation2 + $0xc10] sm:$0xff]
      %v1549 = vld [vmem:[#allocation2 + $0xc18] sm:$0xff]
      %v1550 = vld [vmem:[#allocation2 + $0xc20] sm:$0xff]
      %v1551 = vld [vmem:[#allocation2 + $0xc28] sm:$0xff]
      %v1552 = vld [vmem:[#allocation2 + $0xc30] sm:$0xff]
      %v1553 = vld [vmem:[#allocation2 + $0xc38] sm:$0xff]
      %v1554 = vld [vmem:[#allocation2 + $0xc40] sm:$0xff]
      %v1555 = vld [vmem:[#allocation2 + $0xc48] sm:$0xff]
      %v1556 = vld [vmem:[#allocation2 + $0xc50] sm:$0xff]
      %v1557 = vld [vmem:[#allocation2 + $0xc58] sm:$0xff]
      %v1558 = vld [vmem:[#allocation2 + $0xc60] sm:$0xff]
      %v1559 = vld [vmem:[#allocation2 + $0xc68] sm:$0xff]
      %v1560 = vld [vmem:[#allocation2 + $0xc70] sm:$0xff]
      %v1561 = vld [vmem:[#allocation2 + $0xc78] sm:$0xff]
      %v1562 = vld [vmem:[#allocation2 + $0xc80] sm:$0xff]
      %v1563 = vld [vmem:[#allocation2 + $0xc88] sm:$0xff]
      %v1564 = vld [vmem:[#allocation2 + $0xc90] sm:$0xff]
      %v1565 = vld [vmem:[#allocation2 + $0xc98] sm:$0xff]
      %v1566 = vld [vmem:[#allocation2 + $0xca0] sm:$0xff]
      %v1567 = vld [vmem:[#allocation2 + $0xca8] sm:$0xff]
      %v1568 = vld [vmem:[#allocation2 + $0xcb0] sm:$0xff]
      %v1569 = vld [vmem:[#allocation2 + $0xcb8] sm:$0xff]
      %v1570 = vld [vmem:[#allocation2 + $0xcc0] sm:$0xff]
      %v1571 = vld [vmem:[#allocation2 + $0xcc8] sm:$0xff]
      %v1572 = vld [vmem:[#allocation2 + $0xcd0] sm:$0xff]
      %v1573 = vld [vmem:[#allocation2 + $0xcd8] sm:$0xff]
      %v1574 = vld [vmem:[#allocation2 + $0xce0] sm:$0xff]
      %v1575 = vld [vmem:[#allocation2 + $0xce8] sm:$0xff]
      %v1576 = vld [vmem:[#allocation2 + $0xcf0] sm:$0xff]
      %v1577 = vld [vmem:[#allocation2 + $0xcf8] sm:$0xff]
      %v1578 = vld [vmem:[#allocation2 + $0xd00] sm:$0xff]
      %v1579 = vld [vmem:[#allocation2 + $0xd08] sm:$0xff]
      %v1580 = vld [vmem:[#allocation2 + $0xd10] sm:$0xff]
      %v1581 = vld [vmem:[#allocation2 + $0xd18] sm:$0xff]
      %v1582 = vld [vmem:[#allocation2 + $0xd20] sm:$0xff]
      %v1583 = vld [vmem:[#allocation2 + $0xd28] sm:$0xff]
      %v1584 = vld [vmem:[#allocation2 + $0xd30] sm:$0xff]
      %v1585 = vld [vmem:[#allocation2 + $0xd38] sm:$0xff]
      %v1586 = vld [vmem:[#allocation2 + $0xd40] sm:$0xff]
      %v1587 = vld [vmem:[#allocation2 + $0xd48] sm:$0xff]
      %v1588 = vld [vmem:[#allocation2 + $0xd50] sm:$0xff]
      %v1589 = vld [vmem:[#allocation2 + $0xd58] sm:$0xff]
      %v1590 = vld [vmem:[#allocation2 + $0xd60] sm:$0xff]
      %v1591 = vld [vmem:[#allocation2 + $0xd68] sm:$0xff]
      %v1592 = vld [vmem:[#allocation2 + $0xd70] sm:$0xff]
      %v1593 = vld [vmem:[#allocation2 + $0xd78] sm:$0xff]
      %v1594 = vld [vmem:[#allocation2 + $0xd80] sm:$0xff]
      %v1595 = vld [vmem:[#allocation2 + $0xd88] sm:$0xff]
      %v1596 = vld [vmem:[#allocation2 + $0xd90] sm:$0xff]
      %v1597 = vld [vmem:[#allocation2 + $0xd98] sm:$0xff]
      %v1598 = vld [vmem:[#allocation2 + $0xda0] sm:$0xff]
      %v1599 = vld [vmem:[#allocation2 + $0xda8] sm:$0xff]
      %v1600 = vld [vmem:[#allocation2 + $0xdb0] sm:$0xff]
      %v1601 = vld [vmem:[#allocation2 + $0xdb8] sm:$0xff]
      %v1602 = vld [vmem:[#allocation2 + $0xdc0] sm:$0xff]
      %v1603 = vld [vmem:[#allocation2 + $0xdc8] sm:$0xff]
      %v1604 = vld [vmem:[#allocation2 + $0xdd0] sm:$0xff]
      %v1605 = vld [vmem:[#allocation2 + $0xdd8] sm:$0xff]
      %v1606 = vld [vmem:[#allocation2 + $0xde0] sm:$0xff]
      %v1607 = vld [vmem:[#allocation2 + $0xde8] sm:$0xff]
      %v1608 = vld [vmem:[#allocation2 + $0xdf0] sm:$0xff]
      %v1609 = vld [vmem:[#allocation2 + $0xdf8] sm:$0xff]
      %v1610 = vld [vmem:[#allocation2 + $0xe00] sm:$0xff]
      %v1611 = vld [vmem:[#allocation2 + $0xe08] sm:$0xff]
      %v1612 = vld [vmem:[#allocation2 + $0xe10] sm:$0xff]
      %v1613 = vld [vmem:[#allocation2 + $0xe18] sm:$0xff]
      %v1614 = vld [vmem:[#allocation2 + $0xe20] sm:$0xff]
      %v1615 = vld [vmem:[#allocation2 + $0xe28] sm:$0xff]
      %v1616 = vld [vmem:[#allocation2 + $0xe30] sm:$0xff]
      %v1617 = vld [vmem:[#allocation2 + $0xe38] sm:$0xff]
      %v1618 = vld [vmem:[#allocation2 + $0xe40] sm:$0xff]
      %v1619 = vld [vmem:[#allocation2 + $0xe48] sm:$0xff]
      %v1620 = vld [vmem:[#allocation2 + $0xe50] sm:$0xff]
      %v1621 = vld [vmem:[#allocation2 + $0xe58] sm:$0xff]
      %v1622 = vld [vmem:[#allocation2 + $0xe60] sm:$0xff]
      %v1623 = vld [vmem:[#allocation2 + $0xe68] sm:$0xff]
      %v1624 = vld [vmem:[#allocation2 + $0xe70] sm:$0xff]
      %v1625 = vld [vmem:[#allocation2 + $0xe78] sm:$0xff]
      %v1626 = vld [vmem:[#allocation2 + $0xe80] sm:$0xff]
      %v1627 = vld [vmem:[#allocation2 + $0xe88] sm:$0xff]
      %v1628 = vld [vmem:[#allocation2 + $0xe90] sm:$0xff]
      %v1629 = vld [vmem:[#allocation2 + $0xe98] sm:$0xff]
      %v1630 = vld [vmem:[#allocation2 + $0xea0] sm:$0xff]
      %v1631 = vld [vmem:[#allocation2 + $0xea8] sm:$0xff]
      %v1632 = vld [vmem:[#allocation2 + $0xeb0] sm:$0xff]
      %v1633 = vld [vmem:[#allocation2 + $0xeb8] sm:$0xff]
      %v1634 = vld [vmem:[#allocation2 + $0xec0] sm:$0xff]
      %v1635 = vld [vmem:[#allocation2 + $0xec8] sm:$0xff]
      %v1636 = vld [vmem:[#allocation2 + $0xed0] sm:$0xff]
      %v1637 = vld [vmem:[#allocation2 + $0xed8] sm:$0xff]
      %v1638 = vld [vmem:[#allocation2 + $0xee0] sm:$0xff]
      %v1639 = vld [vmem:[#allocation2 + $0xee8] sm:$0xff]
      %v1640 = vld [vmem:[#allocation2 + $0xef0] sm:$0xff]
      %v1641 = vld [vmem:[#allocation2 + $0xef8] sm:$0xff]
      %v1642 = vld [vmem:[%s1] sm:$0xf]
      %v2123 = vunpack.c.l.b16 %v682
      %v2124 = vunpack.c.l.b16 %v683
      %v2125 = vunpack.c.l.b16 %v684
      %v2126 = vunpack.c.l.b16 %v685
      %v2127 = vunpack.c.l.b16 %v686
      %v2128 = vunpack.c.l.b16 %v687
      %v2129 = vunpack.c.l.b16 %v688
      %v2130 = vunpack.c.l.b16 %v689
      %v2131 = vunpack.c.l.b16 %v690
      %v2132 = vunpack.c.l.b16 %v691
      %v2133 = vunpack.c.l.b16 %v692
      %v2134 = vunpack.c.l.b16 %v693
      %v2135 = vunpack.c.l.b16 %v694
      %v2136 = vunpack.c.l.b16 %v695
      %v2137 = vunpack.c.l.b16 %v696
      %v2138 = vunpack.c.l.b16 %v697
      %v2139 = vunpack.c.l.b16 %v698
      %v2140 = vunpack.c.l.b16 %v699
      %v2141 = vunpack.c.l.b16 %v700
      %v2142 = vunpack.c.l.b16 %v701
      %v2143 = vunpack.c.l.b16 %v702
      %v2144 = vunpack.c.l.b16 %v703
      %v2145 = vunpack.c.l.b16 %v704
      %v2146 = vunpack.c.l.b16 %v705
      %v2147 = vunpack.c.l.b16 %v706
      %v2148 = vunpack.c.l.b16 %v707
      %v2149 = vunpack.c.l.b16 %v708
      %v2150 = vunpack.c.l.b16 %v709
      %v2151 = vunpack.c.l.b16 %v710
      %v2152 = vunpack.c.l.b16 %v711
      %v2153 = vunpack.c.l.b16 %v712
      %v2154 = vunpack.c.l.b16 %v713
      %v2155 = vunpack.c.l.b16 %v714
      %v2156 = vunpack.c.l.b16 %v715
      %v2157 = vunpack.c.l.b16 %v716
      %v2158 = vunpack.c.l.b16 %v717
      %v2159 = vunpack.c.l.b16 %v718
      %v2160 = vunpack.c.l.b16 %v719
      %v2161 = vunpack.c.l.b16 %v720
      %v2162 = vunpack.c.l.b16 %v721
      %v2163 = vunpack.c.l.b16 %v722
      %v2164 = vunpack.c.l.b16 %v723
      %v2165 = vunpack.c.l.b16 %v724
      %v2166 = vunpack.c.l.b16 %v725
      %v2167 = vunpack.c.l.b16 %v726
      %v2168 = vunpack.c.l.b16 %v727
      %v2169 = vunpack.c.l.b16 %v728
      %v2170 = vunpack.c.l.b16 %v729
      %v2171 = vunpack.c.l.b16 %v730
      %v2172 = vunpack.c.l.b16 %v731
      %v2173 = vunpack.c.l.b16 %v732
      %v2174 = vunpack.c.l.b16 %v733
      %v2175 = vunpack.c.l.b16 %v734
      %v2176 = vunpack.c.l.b16 %v735
      %v2177 = vunpack.c.l.b16 %v736
      %v2178 = vunpack.c.l.b16 %v737
      %v2179 = vunpack.c.l.b16 %v738
      %v2180 = vunpack.c.l.b16 %v739
      %v2181 = vunpack.c.l.b16 %v740
      %v2182 = vunpack.c.l.b16 %v741
      %v2183 = vunpack.c.l.b16 %v742
      %v2184 = vunpack.c.l.b16 %v743
      %v2185 = vunpack.c.l.b16 %v744
      %v2186 = vunpack.c.l.b16 %v745
      %v2187 = vunpack.c.l.b16 %v746
      %v2188 = vunpack.c.l.b16 %v747
      %v2189 = vunpack.c.l.b16 %v748
      %v2190 = vunpack.c.l.b16 %v749
      %v2191 = vunpack.c.l.b16 %v750
      %v2192 = vunpack.c.l.b16 %v751
      %v2193 = vunpack.c.l.b16 %v752
      %v2194 = vunpack.c.l.b16 %v753
      %v2195 = vunpack.c.l.b16 %v754
      %v2196 = vunpack.c.l.b16 %v755
      %v2197 = vunpack.c.l.b16 %v756
      %v2198 = vunpack.c.l.b16 %v757
      %v2199 = vunpack.c.l.b16 %v758
      %v2200 = vunpack.c.l.b16 %v759
      %v2201 = vunpack.c.l.b16 %v760
      %v2202 = vunpack.c.l.b16 %v761
      %v2203 = vunpack.c.l.b16 %v762
      %v2204 = vunpack.c.l.b16 %v763
      %v2205 = vunpack.c.l.b16 %v764
      %v2206 = vunpack.c.l.b16 %v765
      %v2207 = vunpack.c.l.b16 %v766
      %v2208 = vunpack.c.l.b16 %v767
      %v2209 = vunpack.c.l.b16 %v768
      %v2210 = vunpack.c.l.b16 %v769
      %v2211 = vunpack.c.l.b16 %v770
      %v2212 = vunpack.c.l.b16 %v771
      %v2213 = vunpack.c.l.b16 %v772
      %v2214 = vunpack.c.l.b16 %v773
      %v2215 = vunpack.c.l.b16 %v774
      %v2216 = vunpack.c.l.b16 %v775
      %v2217 = vunpack.c.l.b16 %v776
      %v2218 = vunpack.c.l.b16 %v777
      %v2219 = vunpack.c.l.b16 %v778
      %v2220 = vunpack.c.l.b16 %v779
      %v2221 = vunpack.c.l.b16 %v780
      %v2222 = vunpack.c.l.b16 %v781
      %v2223 = vunpack.c.l.b16 %v782
      %v2224 = vunpack.c.l.b16 %v783
      %v2225 = vunpack.c.l.b16 %v784
      %v2226 = vunpack.c.l.b16 %v785
      %v2227 = vunpack.c.l.b16 %v786
      %v2228 = vunpack.c.l.b16 %v787
      %v2229 = vunpack.c.l.b16 %v788
      %v2230 = vunpack.c.l.b16 %v789
      %v2231 = vunpack.c.l.b16 %v790
      %v2232 = vunpack.c.l.b16 %v791
      %v2233 = vunpack.c.l.b16 %v792
      %v2234 = vunpack.c.l.b16 %v793
      %v2235 = vunpack.c.l.b16 %v794
      %v2236 = vunpack.c.l.b16 %v795
      %v2237 = vunpack.c.l.b16 %v796
      %v2238 = vunpack.c.l.b16 %v797
      %v2239 = vunpack.c.l.b16 %v798
      %v2240 = vunpack.c.l.b16 %v799
      %v2241 = vunpack.c.l.b16 %v800
      %v2242 = vunpack.c.l.b16 %v801
      %v2243 = vunpack.c.l.b16 %v802
      %v2244 = vunpack.c.l.b16 %v803
      %v2245 = vunpack.c.l.b16 %v804
      %v2246 = vunpack.c.l.b16 %v805
      %v2247 = vunpack.c.l.b16 %v806
      %v2248 = vunpack.c.l.b16 %v807
      %v2249 = vunpack.c.l.b16 %v808
      %v2250 = vunpack.c.l.b16 %v809
      %v2251 = vunpack.c.l.b16 %v810
      %v2252 = vunpack.c.l.b16 %v811
      %v2253 = vunpack.c.l.b16 %v812
      %v2254 = vunpack.c.l.b16 %v813
      %v2255 = vunpack.c.l.b16 %v814
      %v2256 = vunpack.c.l.b16 %v815
      %v2257 = vunpack.c.l.b16 %v816
      %v2258 = vunpack.c.l.b16 %v817
      %v2259 = vunpack.c.l.b16 %v818
      %v2260 = vunpack.c.l.b16 %v819
      %v2261 = vunpack.c.l.b16 %v820
      %v2262 = vunpack.c.l.b16 %v821
      %v2263 = vunpack.c.l.b16 %v822
      %v2264 = vunpack.c.l.b16 %v823
      %v2265 = vunpack.c.l.b16 %v824
      %v2266 = vunpack.c.l.b16 %v825
      %v2267 = vunpack.c.l.b16 %v826
      %v2268 = vunpack.c.l.b16 %v827
      %v2269 = vunpack.c.l.b16 %v828
      %v2270 = vunpack.c.l.b16 %v829
      %v2271 = vunpack.c.l.b16 %v830
      %v2272 = vunpack.c.l.b16 %v831
      %v2273 = vunpack.c.l.b16 %v832
      %v2274 = vunpack.c.l.b16 %v833
      %v2275 = vunpack.c.l.b16 %v834
      %v2276 = vunpack.c.l.b16 %v835
      %v2277 = vunpack.c.l.b16 %v836
      %v2278 = vunpack.c.l.b16 %v837
      %v2279 = vunpack.c.l.b16 %v838
      %v2280 = vunpack.c.l.b16 %v839
      %v2281 = vunpack.c.l.b16 %v840
      %v2282 = vunpack.c.l.b16 %v841
      %v2283 = vunpack.c.l.b16 %v842
      %v2284 = vunpack.c.l.b16 %v843
      %v2285 = vunpack.c.l.b16 %v844
      %v2286 = vunpack.c.l.b16 %v845
      %v2287 = vunpack.c.l.b16 %v846
      %v2288 = vunpack.c.l.b16 %v847
      %v2289 = vunpack.c.l.b16 %v848
      %v2290 = vunpack.c.l.b16 %v849
      %v2291 = vunpack.c.l.b16 %v850
      %v2292 = vunpack.c.l.b16 %v851
      %v2293 = vunpack.c.l.b16 %v852
      %v2294 = vunpack.c.l.b16 %v853
      %v2295 = vunpack.c.l.b16 %v854
      %v2296 = vunpack.c.l.b16 %v855
      %v2297 = vunpack.c.l.b16 %v856
      %v2298 = vunpack.c.l.b16 %v857
      %v2299 = vunpack.c.l.b16 %v858
      %v2300 = vunpack.c.l.b16 %v859
      %v2301 = vunpack.c.l.b16 %v860
      %v2302 = vunpack.c.l.b16 %v861
      %v2303 = vunpack.c.l.b16 %v862
      %v2304 = vunpack.c.l.b16 %v863
      %v2305 = vunpack.c.l.b16 %v864
      %v2306 = vunpack.c.l.b16 %v865
      %v2307 = vunpack.c.l.b16 %v866
      %v2308 = vunpack.c.l.b16 %v867
      %v2309 = vunpack.c.l.b16 %v868
      %v2310 = vunpack.c.l.b16 %v869
      %v2311 = vunpack.c.l.b16 %v870
      %v2312 = vunpack.c.l.b16 %v871
      %v2313 = vunpack.c.l.b16 %v872
      %v2314 = vunpack.c.l.b16 %v873
      %v2315 = vunpack.c.l.b16 %v874
      %v2316 = vunpack.c.l.b16 %v875
      %v2317 = vunpack.c.l.b16 %v876
      %v2318 = vunpack.c.l.b16 %v877
      %v2319 = vunpack.c.l.b16 %v878
      %v2320 = vunpack.c.l.b16 %v879
      %v2321 = vunpack.c.l.b16 %v880
      %v2322 = vunpack.c.l.b16 %v881
      %v2323 = vunpack.c.l.b16 %v882
      %v2324 = vunpack.c.l.b16 %v883
      %v2325 = vunpack.c.l.b16 %v884
      %v2326 = vunpack.c.l.b16 %v885
      %v2327 = vunpack.c.l.b16 %v886
      %v2328 = vunpack.c.l.b16 %v887
      %v2329 = vunpack.c.l.b16 %v888
      %v2330 = vunpack.c.l.b16 %v889
      %v2331 = vunpack.c.l.b16 %v890
      %v2332 = vunpack.c.l.b16 %v891
      %v2333 = vunpack.c.l.b16 %v892
      %v2334 = vunpack.c.l.b16 %v893
      %v2335 = vunpack.c.l.b16 %v894
      %v2336 = vunpack.c.l.b16 %v895
      %v2337 = vunpack.c.l.b16 %v896
      %v2338 = vunpack.c.l.b16 %v897
      %v2339 = vunpack.c.l.b16 %v898
      %v2340 = vunpack.c.l.b16 %v899
      %v2341 = vunpack.c.l.b16 %v900
      %v2342 = vunpack.c.l.b16 %v901
      %v2343 = vunpack.c.l.b16 %v902
      %v2344 = vunpack.c.l.b16 %v903
      %v2345 = vunpack.c.l.b16 %v904
      %v2346 = vunpack.c.l.b16 %v905
      %v2347 = vunpack.c.l.b16 %v906
      %v2348 = vunpack.c.l.b16 %v907
      %v2349 = vunpack.c.l.b16 %v908
      %v2350 = vunpack.c.l.b16 %v909
      %v2351 = vunpack.c.l.b16 %v910
      %v2352 = vunpack.c.l.b16 %v911
      %v2353 = vunpack.c.l.b16 %v912
      %v2354 = vunpack.c.l.b16 %v913
      %v2355 = vunpack.c.l.b16 %v914
      %v2356 = vunpack.c.l.b16 %v915
      %v2357 = vunpack.c.l.b16 %v916
      %v2358 = vunpack.c.l.b16 %v917
      %v2359 = vunpack.c.l.b16 %v918
      %v2360 = vunpack.c.l.b16 %v919
      %v2361 = vunpack.c.l.b16 %v920
      %v2362 = vunpack.c.l.b16 %v921
      %v2363 = vunpack.c.l.b16 %v922
      %v2364 = vunpack.c.l.b16 %v923
      %v2365 = vunpack.c.l.b16 %v924
      %v2366 = vunpack.c.l.b16 %v925
      %v2367 = vunpack.c.l.b16 %v926
      %v2368 = vunpack.c.l.b16 %v927
      %v2369 = vunpack.c.l.b16 %v928
      %v2370 = vunpack.c.l.b16 %v929
      %v2371 = vunpack.c.l.b16 %v930
      %v2372 = vunpack.c.l.b16 %v931
      %v2373 = vunpack.c.l.b16 %v932
      %v2374 = vunpack.c.l.b16 %v933
      %v2375 = vunpack.c.l.b16 %v934
      %v2376 = vunpack.c.l.b16 %v935
      %v2377 = vunpack.c.l.b16 %v936
      %v2378 = vunpack.c.l.b16 %v937
      %v2379 = vunpack.c.l.b16 %v938
      %v2380 = vunpack.c.l.b16 %v939
      %v2381 = vunpack.c.l.b16 %v940
      %v2382 = vunpack.c.l.b16 %v941
      %v2383 = vunpack.c.l.b16 %v942
      %v2384 = vunpack.c.l.b16 %v943
      %v2385 = vunpack.c.l.b16 %v944
      %v2386 = vunpack.c.l.b16 %v945
      %v2387 = vunpack.c.l.b16 %v946
      %v2388 = vunpack.c.l.b16 %v947
      %v2389 = vunpack.c.l.b16 %v948
      %v2390 = vunpack.c.l.b16 %v949
      %v2391 = vunpack.c.l.b16 %v950
      %v2392 = vunpack.c.l.b16 %v951
      %v2393 = vunpack.c.l.b16 %v952
      %v2394 = vunpack.c.l.b16 %v953
      %v2395 = vunpack.c.l.b16 %v954
      %v2396 = vunpack.c.l.b16 %v955
      %v2397 = vunpack.c.l.b16 %v956
      %v2398 = vunpack.c.l.b16 %v957
      %v2399 = vunpack.c.l.b16 %v958
      %v2400 = vunpack.c.l.b16 %v959
      %v2401 = vunpack.c.l.b16 %v960
      %v2402 = vunpack.c.l.b16 %v961
      %v2403 = vunpack.c.l.b16 %v962
      %v2404 = vunpack.c.l.b16 %v963
      %v2405 = vunpack.c.l.b16 %v964
      %v2406 = vunpack.c.l.b16 %v965
      %v2407 = vunpack.c.l.b16 %v966
      %v2408 = vunpack.c.l.b16 %v967
      %v2409 = vunpack.c.l.b16 %v968
      %v2410 = vunpack.c.l.b16 %v969
      %v2411 = vunpack.c.l.b16 %v970
      %v2412 = vunpack.c.l.b16 %v971
      %v2413 = vunpack.c.l.b16 %v972
      %v2414 = vunpack.c.l.b16 %v973
      %v2415 = vunpack.c.l.b16 %v974
      %v2416 = vunpack.c.l.b16 %v975
      %v2417 = vunpack.c.l.b16 %v976
      %v2418 = vunpack.c.l.b16 %v977
      %v2419 = vunpack.c.l.b16 %v978
      %v2420 = vunpack.c.l.b16 %v979
      %v2421 = vunpack.c.l.b16 %v980
      %v2422 = vunpack.c.l.b16 %v981
      %v2423 = vunpack.c.l.b16 %v982
      %v2424 = vunpack.c.l.b16 %v983
      %v2425 = vunpack.c.l.b16 %v984
      %v2426 = vunpack.c.l.b16 %v985
      %v2427 = vunpack.c.l.b16 %v986
      %v2428 = vunpack.c.l.b16 %v987
      %v2429 = vunpack.c.l.b16 %v988
      %v2430 = vunpack.c.l.b16 %v989
      %v2431 = vunpack.c.l.b16 %v990
      %v2432 = vunpack.c.l.b16 %v991
      %v2433 = vunpack.c.l.b16 %v992
      %v2434 = vunpack.c.l.b16 %v993
      %v2435 = vunpack.c.l.b16 %v994
      %v2436 = vunpack.c.l.b16 %v995
      %v2437 = vunpack.c.l.b16 %v996
      %v2438 = vunpack.c.l.b16 %v997
      %v2439 = vunpack.c.l.b16 %v998
      %v2440 = vunpack.c.l.b16 %v999
      %v2441 = vunpack.c.l.b16 %v1000
      %v2442 = vunpack.c.l.b16 %v1001
      %v2443 = vunpack.c.l.b16 %v1002
      %v2444 = vunpack.c.l.b16 %v1003
      %v2445 = vunpack.c.l.b16 %v1004
      %v2446 = vunpack.c.l.b16 %v1005
      %v2447 = vunpack.c.l.b16 %v1006
      %v2448 = vunpack.c.l.b16 %v1007
      %v2449 = vunpack.c.l.b16 %v1008
      %v2450 = vunpack.c.l.b16 %v1009
      %v2451 = vunpack.c.l.b16 %v1010
      %v2452 = vunpack.c.l.b16 %v1011
      %v2453 = vunpack.c.l.b16 %v1012
      %v2454 = vunpack.c.l.b16 %v1013
      %v2455 = vunpack.c.l.b16 %v1014
      %v2456 = vunpack.c.l.b16 %v1015
      %v2457 = vunpack.c.l.b16 %v1016
      %v2458 = vunpack.c.l.b16 %v1017
      %v2459 = vunpack.c.l.b16 %v1018
      %v2460 = vunpack.c.l.b16 %v1019
      %v2461 = vunpack.c.l.b16 %v1020
      %v2462 = vunpack.c.l.b16 %v1021
      %v2463 = vunpack.c.l.b16 %v1022
      %v2464 = vunpack.c.l.b16 %v1023
      %v2465 = vunpack.c.l.b16 %v1024
      %v2466 = vunpack.c.l.b16 %v1025
      %v2467 = vunpack.c.l.b16 %v1026
      %v2468 = vunpack.c.l.b16 %v1027
      %v2469 = vunpack.c.l.b16 %v1028
      %v2470 = vunpack.c.l.b16 %v1029
      %v2471 = vunpack.c.l.b16 %v1030
      %v2472 = vunpack.c.l.b16 %v1031
      %v2473 = vunpack.c.l.b16 %v1032
      %v2474 = vunpack.c.l.b16 %v1033
      %v2475 = vunpack.c.l.b16 %v1034
      %v2476 = vunpack.c.l.b16 %v1035
      %v2477 = vunpack.c.l.b16 %v1036
      %v2478 = vunpack.c.l.b16 %v1037
      %v2479 = vunpack.c.l.b16 %v1038
      %v2480 = vunpack.c.l.b16 %v1039
      %v2481 = vunpack.c.l.b16 %v1040
      %v2482 = vunpack.c.l.b16 %v1041
      %v2483 = vunpack.c.l.b16 %v1042
      %v2484 = vunpack.c.l.b16 %v1043
      %v2485 = vunpack.c.l.b16 %v1044
      %v2486 = vunpack.c.l.b16 %v1045
      %v2487 = vunpack.c.l.b16 %v1046
      %v2488 = vunpack.c.l.b16 %v1047
      %v2489 = vunpack.c.l.b16 %v1048
      %v2490 = vunpack.c.l.b16 %v1049
      %v2491 = vunpack.c.l.b16 %v1050
      %v2492 = vunpack.c.l.b16 %v1051
      %v2493 = vunpack.c.l.b16 %v1052
      %v2494 = vunpack.c.l.b16 %v1053
      %v2495 = vunpack.c.l.b16 %v1054
      %v2496 = vunpack.c.l.b16 %v1055
      %v2497 = vunpack.c.l.b16 %v1056
      %v2498 = vunpack.c.l.b16 %v1057
      %v2499 = vunpack.c.l.b16 %v1058
      %v2500 = vunpack.c.l.b16 %v1059
      %v2501 = vunpack.c.l.b16 %v1060
      %v2502 = vunpack.c.l.b16 %v1061
      %v2503 = vunpack.c.l.b16 %v1062
      %v2504 = vunpack.c.l.b16 %v1063
      %v2505 = vunpack.c.l.b16 %v1064
      %v2506 = vunpack.c.l.b16 %v1065
      %v2507 = vunpack.c.l.b16 %v1066
      %v2508 = vunpack.c.l.b16 %v1067
      %v2509 = vunpack.c.l.b16 %v1068
      %v2510 = vunpack.c.l.b16 %v1069
      %v2511 = vunpack.c.l.b16 %v1070
      %v2512 = vunpack.c.l.b16 %v1071
      %v2513 = vunpack.c.l.b16 %v1072
      %v2514 = vunpack.c.l.b16 %v1073
      %v2515 = vunpack.c.l.b16 %v1074
      %v2516 = vunpack.c.l.b16 %v1075
      %v2517 = vunpack.c.l.b16 %v1076
      %v2518 = vunpack.c.l.b16 %v1077
      %v2519 = vunpack.c.l.b16 %v1078
      %v2520 = vunpack.c.l.b16 %v1079
      %v2521 = vunpack.c.l.b16 %v1080
      %v2522 = vunpack.c.l.b16 %v1081
      %v2523 = vunpack.c.l.b16 %v1082
      %v2524 = vunpack.c.l.b16 %v1083
      %v2525 = vunpack.c.l.b16 %v1084
      %v2526 = vunpack.c.l.b16 %v1085
      %v2527 = vunpack.c.l.b16 %v1086
      %v2528 = vunpack.c.l.b16 %v1087
      %v2529 = vunpack.c.l.b16 %v1088
      %v2530 = vunpack.c.l.b16 %v1089
      %v2531 = vunpack.c.l.b16 %v1090
      %v2532 = vunpack.c.l.b16 %v1091
      %v2533 = vunpack.c.l.b16 %v1092
      %v2534 = vunpack.c.l.b16 %v1093
      %v2535 = vunpack.c.l.b16 %v1094
      %v2536 = vunpack.c.l.b16 %v1095
      %v2537 = vunpack.c.l.b16 %v1096
      %v2538 = vunpack.c.l.b16 %v1097
      %v2539 = vunpack.c.l.b16 %v1098
      %v2540 = vunpack.c.l.b16 %v1099
      %v2541 = vunpack.c.l.b16 %v1100
      %v2542 = vunpack.c.l.b16 %v1101
      %v2543 = vunpack.c.l.b16 %v1102
      %v2544 = vunpack.c.l.b16 %v1103
      %v2545 = vunpack.c.l.b16 %v1104
      %v2546 = vunpack.c.l.b16 %v1105
      %v2547 = vunpack.c.l.b16 %v1106
      %v2548 = vunpack.c.l.b16 %v1107
      %v2549 = vunpack.c.l.b16 %v1108
      %v2550 = vunpack.c.l.b16 %v1109
      %v2551 = vunpack.c.l.b16 %v1110
      %v2552 = vunpack.c.l.b16 %v1111
      %v2553 = vunpack.c.l.b16 %v1112
      %v2554 = vunpack.c.l.b16 %v1113
      %v2555 = vunpack.c.l.b16 %v1114
      %v2556 = vunpack.c.l.b16 %v1115
      %v2557 = vunpack.c.l.b16 %v1116
      %v2558 = vunpack.c.l.b16 %v1117
      %v2559 = vunpack.c.l.b16 %v1118
      %v2560 = vunpack.c.l.b16 %v1119
      %v2561 = vunpack.c.l.b16 %v1120
      %v2562 = vunpack.c.l.b16 %v1121
      %v2563 = vunpack.c.l.b16 %v1122
      %v2564 = vunpack.c.l.b16 %v1123
      %v2565 = vunpack.c.l.b16 %v1124
      %v2566 = vunpack.c.l.b16 %v1125
      %v2567 = vunpack.c.l.b16 %v1126
      %v2568 = vunpack.c.l.b16 %v1127
      %v2569 = vunpack.c.l.b16 %v1128
      %v2570 = vunpack.c.l.b16 %v1129
      %v2571 = vunpack.c.l.b16 %v1130
      %v2572 = vunpack.c.l.b16 %v1131
      %v2573 = vunpack.c.l.b16 %v1132
      %v2574 = vunpack.c.l.b16 %v1133
      %v2575 = vunpack.c.l.b16 %v1134
      %v2576 = vunpack.c.l.b16 %v1135
      %v2577 = vunpack.c.l.b16 %v1136
      %v2578 = vunpack.c.l.b16 %v1137
      %v2579 = vunpack.c.l.b16 %v1138
      %v2580 = vunpack.c.l.b16 %v1139
      %v2581 = vunpack.c.l.b16 %v1140
      %v2582 = vunpack.c.l.b16 %v1141
      %v2583 = vunpack.c.l.b16 %v1142
      %v2584 = vunpack.c.l.b16 %v1143
      %v2585 = vunpack.c.l.b16 %v1144
      %v2586 = vunpack.c.l.b16 %v1145
      %v2587 = vunpack.c.l.b16 %v1146
      %v2588 = vunpack.c.l.b16 %v1147
      %v2589 = vunpack.c.l.b16 %v1148
      %v2590 = vunpack.c.l.b16 %v1149
      %v2591 = vunpack.c.l.b16 %v1150
      %v2592 = vunpack.c.l.b16 %v1151
      %v2593 = vunpack.c.l.b16 %v1152
      %v2594 = vunpack.c.l.b16 %v1153
      %v2595 = vunpack.c.l.b16 %v1154
      %v2596 = vunpack.c.l.b16 %v1155
      %v2597 = vunpack.c.l.b16 %v1156
      %v2598 = vunpack.c.l.b16 %v1157
      %v2599 = vunpack.c.l.b16 %v1158
      %v2600 = vunpack.c.l.b16 %v1159
      %v2601 = vunpack.c.l.b16 %v1160
      %v2602 = vunpack.c.l.b16 %v1161
      %v2603 = vpack.c.b16 %v2124, %v2123
      %v2604 = vpack.c.b16 %v2126, %v2125
      %v2605 = vpack.c.b16 %v2128, %v2127
      %v2606 = vpack.c.b16 %v2130, %v2129
      %v2607 = vpack.c.b16 %v2132, %v2131
      %v2608 = vpack.c.b16 %v2134, %v2133
      %v2609 = vpack.c.b16 %v2136, %v2135
      %v2610 = vpack.c.b16 %v2138, %v2137
      %v2611 = vpack.c.b16 %v2140, %v2139
      %v2612 = vpack.c.b16 %v2142, %v2141
      %v2613 = vpack.c.b16 %v2144, %v2143
      %v2614 = vpack.c.b16 %v2146, %v2145
      %v2615 = vpack.c.b16 %v2148, %v2147
      %v2616 = vpack.c.b16 %v2150, %v2149
      %v2617 = vpack.c.b16 %v2152, %v2151
      %v2618 = vpack.c.b16 %v2154, %v2153
      %v2619 = vpack.c.b16 %v2156, %v2155
      %v2620 = vpack.c.b16 %v2158, %v2157
      %v2621 = vpack.c.b16 %v2160, %v2159
      %v2622 = vpack.c.b16 %v2162, %v2161
      %v2623 = vpack.c.b16 %v2164, %v2163
      %v2624 = vpack.c.b16 %v2166, %v2165
      %v2625 = vpack.c.b16 %v2168, %v2167
      %v2626 = vpack.c.b16 %v2170, %v2169
      %v2627 = vpack.c.b16 %v2172, %v2171
      %v2628 = vpack.c.b16 %v2174, %v2173
      %v2629 = vpack.c.b16 %v2176, %v2175
      %v2630 = vpack.c.b16 %v2178, %v2177
      %v2631 = vpack.c.b16 %v2180, %v2179
      %v2632 = vpack.c.b16 %v2182, %v2181
      %v2633 = vpack.c.b16 %v2184, %v2183
      %v2634 = vpack.c.b16 %v2186, %v2185
      %v2635 = vpack.c.b16 %v2188, %v2187
      %v2636 = vpack.c.b16 %v2190, %v2189
      %v2637 = vpack.c.b16 %v2192, %v2191
      %v2638 = vpack.c.b16 %v2194, %v2193
      %v2639 = vpack.c.b16 %v2196, %v2195
      %v2640 = vpack.c.b16 %v2198, %v2197
      %v2641 = vpack.c.b16 %v2200, %v2199
      %v2642 = vpack.c.b16 %v2202, %v2201
      %v2643 = vpack.c.b16 %v2204, %v2203
      %v2644 = vpack.c.b16 %v2206, %v2205
      %v2645 = vpack.c.b16 %v2208, %v2207
      %v2646 = vpack.c.b16 %v2210, %v2209
      %v2647 = vpack.c.b16 %v2212, %v2211
      %v2648 = vpack.c.b16 %v2214, %v2213
      %v2649 = vpack.c.b16 %v2216, %v2215
      %v2650 = vpack.c.b16 %v2218, %v2217
      %v2651 = vpack.c.b16 %v2220, %v2219
      %v2652 = vpack.c.b16 %v2222, %v2221
      %v2653 = vpack.c.b16 %v2224, %v2223
      %v2654 = vpack.c.b16 %v2226, %v2225
      %v2655 = vpack.c.b16 %v2228, %v2227
      %v2656 = vpack.c.b16 %v2230, %v2229
      %v2657 = vpack.c.b16 %v2232, %v2231
      %v2658 = vpack.c.b16 %v2234, %v2233
      %v2659 = vpack.c.b16 %v2236, %v2235
      %v2660 = vpack.c.b16 %v2238, %v2237
      %v2661 = vpack.c.b16 %v2240, %v2239
      %v2662 = vpack.c.b16 %v2242, %v2241
      %v2663 = vpack.c.b16 %v2244, %v2243
      %v2664 = vpack.c.b16 %v2246, %v2245
      %v2665 = vpack.c.b16 %v2248, %v2247
      %v2666 = vpack.c.b16 %v2250, %v2249
      %v2667 = vpack.c.b16 %v2252, %v2251
      %v2668 = vpack.c.b16 %v2254, %v2253
      %v2669 = vpack.c.b16 %v2256, %v2255
      %v2670 = vpack.c.b16 %v2258, %v2257
      %v2671 = vpack.c.b16 %v2260, %v2259
      %v2672 = vpack.c.b16 %v2262, %v2261
      %v2673 = vpack.c.b16 %v2264, %v2263
      %v2674 = vpack.c.b16 %v2266, %v2265
      %v2675 = vpack.c.b16 %v2268, %v2267
      %v2676 = vpack.c.b16 %v2270, %v2269
      %v2677 = vpack.c.b16 %v2272, %v2271
      %v2678 = vpack.c.b16 %v2274, %v2273
      %v2679 = vpack.c.b16 %v2276, %v2275
      %v2680 = vpack.c.b16 %v2278, %v2277
      %v2681 = vpack.c.b16 %v2280, %v2279
      %v2682 = vpack.c.b16 %v2282, %v2281
      %v2683 = vpack.c.b16 %v2284, %v2283
      %v2684 = vpack.c.b16 %v2286, %v2285
      %v2685 = vpack.c.b16 %v2288, %v2287
      %v2686 = vpack.c.b16 %v2290, %v2289
      %v2687 = vpack.c.b16 %v2292, %v2291
      %v2688 = vpack.c.b16 %v2294, %v2293
      %v2689 = vpack.c.b16 %v2296, %v2295
      %v2690 = vpack.c.b16 %v2298, %v2297
      %v2691 = vpack.c.b16 %v2300, %v2299
      %v2692 = vpack.c.b16 %v2302, %v2301
      %v2693 = vpack.c.b16 %v2304, %v2303
      %v2694 = vpack.c.b16 %v2306, %v2305
      %v2695 = vpack.c.b16 %v2308, %v2307
      %v2696 = vpack.c.b16 %v2310, %v2309
      %v2697 = vpack.c.b16 %v2312, %v2311
      %v2698 = vpack.c.b16 %v2314, %v2313
      %v2699 = vpack.c.b16 %v2316, %v2315
      %v2700 = vpack.c.b16 %v2318, %v2317
      %v2701 = vpack.c.b16 %v2320, %v2319
      %v2702 = vpack.c.b16 %v2322, %v2321
      %v2703 = vpack.c.b16 %v2324, %v2323
      %v2704 = vpack.c.b16 %v2326, %v2325
      %v2705 = vpack.c.b16 %v2328, %v2327
      %v2706 = vpack.c.b16 %v2330, %v2329
      %v2707 = vpack.c.b16 %v2332, %v2331
      %v2708 = vpack.c.b16 %v2334, %v2333
      %v2709 = vpack.c.b16 %v2336, %v2335
      %v2710 = vpack.c.b16 %v2338, %v2337
      %v2711 = vpack.c.b16 %v2340, %v2339
      %v2712 = vpack.c.b16 %v2342, %v2341
      %v2713 = vpack.c.b16 %v2344, %v2343
      %v2714 = vpack.c.b16 %v2346, %v2345
      %v2715 = vpack.c.b16 %v2348, %v2347
      %v2716 = vpack.c.b16 %v2350, %v2349
      %v2717 = vpack.c.b16 %v2352, %v2351
      %v2718 = vpack.c.b16 %v2354, %v2353
      %v2719 = vpack.c.b16 %v2356, %v2355
      %v2720 = vpack.c.b16 %v2358, %v2357
      %v2721 = vpack.c.b16 %v2360, %v2359
      %v2722 = vpack.c.b16 %v2362, %v2361
      %v2723 = vpack.c.b16 %v2364, %v2363
      %v2724 = vpack.c.b16 %v2366, %v2365
      %v2725 = vpack.c.b16 %v2368, %v2367
      %v2726 = vpack.c.b16 %v2370, %v2369
      %v2727 = vpack.c.b16 %v2372, %v2371
      %v2728 = vpack.c.b16 %v2374, %v2373
      %v2729 = vpack.c.b16 %v2376, %v2375
      %v2730 = vpack.c.b16 %v2378, %v2377
      %v2731 = vpack.c.b16 %v2380, %v2379
      %v2732 = vpack.c.b16 %v2382, %v2381
      %v2733 = vpack.c.b16 %v2384, %v2383
      %v2734 = vpack.c.b16 %v2386, %v2385
      %v2735 = vpack.c.b16 %v2388, %v2387
      %v2736 = vpack.c.b16 %v2390, %v2389
      %v2737 = vpack.c.b16 %v2392, %v2391
      %v2738 = vpack.c.b16 %v2394, %v2393
      %v2739 = vpack.c.b16 %v2396, %v2395
      %v2740 = vpack.c.b16 %v2398, %v2397
      %v2741 = vpack.c.b16 %v2400, %v2399
      %v2742 = vpack.c.b16 %v2402, %v2401
      %v2743 = vpack.c.b16 %v2404, %v2403
      %v2744 = vpack.c.b16 %v2406, %v2405
      %v2745 = vpack.c.b16 %v2408, %v2407
      %v2746 = vpack.c.b16 %v2410, %v2409
      %v2747 = vpack.c.b16 %v2412, %v2411
      %v2748 = vpack.c.b16 %v2414, %v2413
      %v2749 = vpack.c.b16 %v2416, %v2415
      %v2750 = vpack.c.b16 %v2418, %v2417
      %v2751 = vpack.c.b16 %v2420, %v2419
      %v2752 = vpack.c.b16 %v2422, %v2421
      %v2753 = vpack.c.b16 %v2424, %v2423
      %v2754 = vpack.c.b16 %v2426, %v2425
      %v2755 = vpack.c.b16 %v2428, %v2427
      %v2756 = vpack.c.b16 %v2430, %v2429
      %v2757 = vpack.c.b16 %v2432, %v2431
      %v2758 = vpack.c.b16 %v2434, %v2433
      %v2759 = vpack.c.b16 %v2436, %v2435
      %v2760 = vpack.c.b16 %v2438, %v2437
      %v2761 = vpack.c.b16 %v2440, %v2439
      %v2762 = vpack.c.b16 %v2442, %v2441
      %v2763 = vpack.c.b16 %v2444, %v2443
      %v2764 = vpack.c.b16 %v2446, %v2445
      %v2765 = vpack.c.b16 %v2448, %v2447
      %v2766 = vpack.c.b16 %v2450, %v2449
      %v2767 = vpack.c.b16 %v2452, %v2451
      %v2768 = vpack.c.b16 %v2454, %v2453
      %v2769 = vpack.c.b16 %v2456, %v2455
      %v2770 = vpack.c.b16 %v2458, %v2457
      %v2771 = vpack.c.b16 %v2460, %v2459
      %v2772 = vpack.c.b16 %v2462, %v2461
      %v2773 = vpack.c.b16 %v2464, %v2463
      %v2774 = vpack.c.b16 %v2466, %v2465
      %v2775 = vpack.c.b16 %v2468, %v2467
      %v2776 = vpack.c.b16 %v2470, %v2469
      %v2777 = vpack.c.b16 %v2472, %v2471
      %v2778 = vpack.c.b16 %v2474, %v2473
      %v2779 = vpack.c.b16 %v2476, %v2475
      %v2780 = vpack.c.b16 %v2478, %v2477
      %v2781 = vpack.c.b16 %v2480, %v2479
      %v2782 = vpack.c.b16 %v2482, %v2481
      %v2783 = vpack.c.b16 %v2484, %v2483
      %v2784 = vpack.c.b16 %v2486, %v2485
      %v2785 = vpack.c.b16 %v2488, %v2487
      %v2786 = vpack.c.b16 %v2490, %v2489
      %v2787 = vpack.c.b16 %v2492, %v2491
      %v2788 = vpack.c.b16 %v2494, %v2493
      %v2789 = vpack.c.b16 %v2496, %v2495
      %v2790 = vpack.c.b16 %v2498, %v2497
      %v2791 = vpack.c.b16 %v2500, %v2499
      %v2792 = vpack.c.b16 %v2502, %v2501
      %v2793 = vpack.c.b16 %v2504, %v2503
      %v2794 = vpack.c.b16 %v2506, %v2505
      %v2795 = vpack.c.b16 %v2508, %v2507
      %v2796 = vpack.c.b16 %v2510, %v2509
      %v2797 = vpack.c.b16 %v2512, %v2511
      %v2798 = vpack.c.b16 %v2514, %v2513
      %v2799 = vpack.c.b16 %v2516, %v2515
      %v2800 = vpack.c.b16 %v2518, %v2517
      %v2801 = vpack.c.b16 %v2520, %v2519
      %v2802 = vpack.c.b16 %v2522, %v2521
      %v2803 = vpack.c.b16 %v2524, %v2523
      %v2804 = vpack.c.b16 %v2526, %v2525
      %v2805 = vpack.c.b16 %v2528, %v2527
      %v2806 = vpack.c.b16 %v2530, %v2529
      %v2807 = vpack.c.b16 %v2532, %v2531
      %v2808 = vpack.c.b16 %v2534, %v2533
      %v2809 = vpack.c.b16 %v2536, %v2535
      %v2810 = vpack.c.b16 %v2538, %v2537
      %v2811 = vpack.c.b16 %v2540, %v2539
      %v2812 = vpack.c.b16 %v2542, %v2541
      %v2813 = vpack.c.b16 %v2544, %v2543
      %v2814 = vpack.c.b16 %v2546, %v2545
      %v2815 = vpack.c.b16 %v2548, %v2547
      %v2816 = vpack.c.b16 %v2550, %v2549
      %v2817 = vpack.c.b16 %v2552, %v2551
      %v2818 = vpack.c.b16 %v2554, %v2553
      %v2819 = vpack.c.b16 %v2556, %v2555
      %v2820 = vpack.c.b16 %v2558, %v2557
      %v2821 = vpack.c.b16 %v2560, %v2559
      %v2822 = vpack.c.b16 %v2562, %v2561
      %v2823 = vpack.c.b16 %v2564, %v2563
      %v2824 = vpack.c.b16 %v2566, %v2565
      %v2825 = vpack.c.b16 %v2568, %v2567
      %v2826 = vpack.c.b16 %v2570, %v2569
      %v2827 = vpack.c.b16 %v2572, %v2571
      %v2828 = vpack.c.b16 %v2574, %v2573
      %v2829 = vpack.c.b16 %v2576, %v2575
      %v2830 = vpack.c.b16 %v2578, %v2577
      %v2831 = vpack.c.b16 %v2580, %v2579
      %v2832 = vpack.c.b16 %v2582, %v2581
      %v2833 = vpack.c.b16 %v2584, %v2583
      %v2834 = vpack.c.b16 %v2586, %v2585
      %v2835 = vpack.c.b16 %v2588, %v2587
      %v2836 = vpack.c.b16 %v2590, %v2589
      %v2837 = vpack.c.b16 %v2592, %v2591
      %v2838 = vpack.c.b16 %v2594, %v2593
      %v2839 = vpack.c.b16 %v2596, %v2595
      %v2840 = vpack.c.b16 %v2598, %v2597
      %v2841 = vpack.c.b16 %v2600, %v2599
      %v2842 = vpack.c.b16 %v2602, %v2601
      %vm2843 = vcmask 56320
      %v2845 = vsel %vm2843, %v2603, 0
      %v2848 = vsel %vm2843, %v2604, 0
      %v2851 = vsel %vm2843, %v2605, 0
      %v2854 = vsel %vm2843, %v2606, 0
      %v2857 = vsel %vm2843, %v2607, 0
      %v2860 = vsel %vm2843, %v2608, 0
      %v2863 = vsel %vm2843, %v2609, 0
      %v2866 = vsel %vm2843, %v2610, 0
      %v2869 = vsel %vm2843, %v2611, 0
      %v2872 = vsel %vm2843, %v2612, 0
      %v2875 = vsel %vm2843, %v2613, 0
      %v2878 = vsel %vm2843, %v2614, 0
      %v2881 = vsel %vm2843, %v2615, 0
      %v2884 = vsel %vm2843, %v2616, 0
      %v2887 = vsel %vm2843, %v2617, 0
      %v2890 = vsel %vm2843, %v2618, 0
      %v2893 = vsel %vm2843, %v2619, 0
      %v2896 = vsel %vm2843, %v2620, 0
      %v2899 = vsel %vm2843, %v2621, 0
      %v2902 = vsel %vm2843, %v2622, 0
      %v2905 = vsel %vm2843, %v2623, 0
      %v2908 = vsel %vm2843, %v2624, 0
      %v2911 = vsel %vm2843, %v2625, 0
      %v2914 = vsel %vm2843, %v2626, 0
      %v2917 = vsel %vm2843, %v2627, 0
      %v2920 = vsel %vm2843, %v2628, 0
      %v2923 = vsel %vm2843, %v2629, 0
      %v2926 = vsel %vm2843, %v2630, 0
      %v2929 = vsel %vm2843, %v2631, 0
      %v2932 = vsel %vm2843, %v2632, 0
      %v2935 = vsel %vm2843, %v2633, 0
      %v2938 = vsel %vm2843, %v2634, 0
      %v2941 = vsel %vm2843, %v2635, 0
      %v2944 = vsel %vm2843, %v2636, 0
      %v2947 = vsel %vm2843, %v2637, 0
      %v2950 = vsel %vm2843, %v2638, 0
      %v2953 = vsel %vm2843, %v2639, 0
      %v2956 = vsel %vm2843, %v2640, 0
      %v2959 = vsel %vm2843, %v2641, 0
      %v2962 = vsel %vm2843, %v2642, 0
      %v2965 = vsel %vm2843, %v2643, 0
      %v2968 = vsel %vm2843, %v2644, 0
      %v2971 = vsel %vm2843, %v2645, 0
      %v2974 = vsel %vm2843, %v2646, 0
      %v2977 = vsel %vm2843, %v2647, 0
      %v2980 = vsel %vm2843, %v2648, 0
      %v2983 = vsel %vm2843, %v2649, 0
      %v2986 = vsel %vm2843, %v2650, 0
      %v2989 = vsel %vm2843, %v2651, 0
      %v2992 = vsel %vm2843, %v2652, 0
      %v2995 = vsel %vm2843, %v2653, 0
      %v2998 = vsel %vm2843, %v2654, 0
      %v3001 = vsel %vm2843, %v2655, 0
      %v3004 = vsel %vm2843, %v2656, 0
      %v3007 = vsel %vm2843, %v2657, 0
      %v3010 = vsel %vm2843, %v2658, 0
      %v3013 = vsel %vm2843, %v2659, 0
      %v3016 = vsel %vm2843, %v2660, 0
      %v3019 = vsel %vm2843, %v2661, 0
      %v3022 = vsel %vm2843, %v2662, 0
      %v3025 = vsel %vm2843, %v2663, 0
      %v3028 = vsel %vm2843, %v2664, 0
      %v3031 = vsel %vm2843, %v2665, 0
      %v3034 = vsel %vm2843, %v2666, 0
      %v3037 = vsel %vm2843, %v2667, 0
      %v3040 = vsel %vm2843, %v2668, 0
      %v3043 = vsel %vm2843, %v2669, 0
      %v3046 = vsel %vm2843, %v2670, 0
      %v3049 = vsel %vm2843, %v2671, 0
      %v3052 = vsel %vm2843, %v2672, 0
      %v3055 = vsel %vm2843, %v2673, 0
      %v3058 = vsel %vm2843, %v2674, 0
      %v3061 = vsel %vm2843, %v2675, 0
      %v3064 = vsel %vm2843, %v2676, 0
      %v3067 = vsel %vm2843, %v2677, 0
      %v3070 = vsel %vm2843, %v2678, 0
      %v3073 = vsel %vm2843, %v2679, 0
      %v3076 = vsel %vm2843, %v2680, 0
      %v3079 = vsel %vm2843, %v2681, 0
      %v3082 = vsel %vm2843, %v2682, 0
      %v3085 = vsel %vm2843, %v2683, 0
      %v3088 = vsel %vm2843, %v2684, 0
      %v3091 = vsel %vm2843, %v2685, 0
      %v3094 = vsel %vm2843, %v2686, 0
      %v3097 = vsel %vm2843, %v2687, 0
      %v3100 = vsel %vm2843, %v2688, 0
      %v3103 = vsel %vm2843, %v2689, 0
      %v3106 = vsel %vm2843, %v2690, 0
      %v3109 = vsel %vm2843, %v2691, 0
      %v3112 = vsel %vm2843, %v2692, 0
      %v3115 = vsel %vm2843, %v2693, 0
      %v3118 = vsel %vm2843, %v2694, 0
      %v3121 = vsel %vm2843, %v2695, 0
      %v3124 = vsel %vm2843, %v2696, 0
      %v3127 = vsel %vm2843, %v2697, 0
      %v3130 = vsel %vm2843, %v2698, 0
      %v3133 = vsel %vm2843, %v2699, 0
      %v3136 = vsel %vm2843, %v2700, 0
      %v3139 = vsel %vm2843, %v2701, 0
      %v3142 = vsel %vm2843, %v2702, 0
      %v3145 = vsel %vm2843, %v2703, 0
      %v3148 = vsel %vm2843, %v2704, 0
      %v3151 = vsel %vm2843, %v2705, 0
      %v3154 = vsel %vm2843, %v2706, 0
      %v3157 = vsel %vm2843, %v2707, 0
      %v3160 = vsel %vm2843, %v2708, 0
      %v3163 = vsel %vm2843, %v2709, 0
      %v3166 = vsel %vm2843, %v2710, 0
      %v3169 = vsel %vm2843, %v2711, 0
      %v3172 = vsel %vm2843, %v2712, 0
      %v3175 = vsel %vm2843, %v2713, 0
      %v3178 = vsel %vm2843, %v2714, 0
      %v3181 = vsel %vm2843, %v2715, 0
      %v3184 = vsel %vm2843, %v2716, 0
      %v3187 = vsel %vm2843, %v2717, 0
      %v3190 = vsel %vm2843, %v2718, 0
      %v3193 = vsel %vm2843, %v2719, 0
      %v3196 = vsel %vm2843, %v2720, 0
      %v3199 = vsel %vm2843, %v2721, 0
      %v3202 = vsel %vm2843, %v2722, 0
      %v3205 = vsel %vm2843, %v2723, 0
      %v3208 = vsel %vm2843, %v2724, 0
      %v3211 = vsel %vm2843, %v2725, 0
      %v3214 = vsel %vm2843, %v2726, 0
      %v3217 = vsel %vm2843, %v2727, 0
      %v3220 = vsel %vm2843, %v2728, 0
      %v3223 = vsel %vm2843, %v2729, 0
      %v3226 = vsel %vm2843, %v2730, 0
      %v3229 = vsel %vm2843, %v2731, 0
      %v3232 = vsel %vm2843, %v2732, 0
      %v3235 = vsel %vm2843, %v2733, 0
      %v3238 = vsel %vm2843, %v2734, 0
      %v3241 = vsel %vm2843, %v2735, 0
      %v3244 = vsel %vm2843, %v2736, 0
      %v3247 = vsel %vm2843, %v2737, 0
      %v3250 = vsel %vm2843, %v2738, 0
      %v3253 = vsel %vm2843, %v2739, 0
      %v3256 = vsel %vm2843, %v2740, 0
      %v3259 = vsel %vm2843, %v2741, 0
      %v3262 = vsel %vm2843, %v2742, 0
      %v3265 = vsel %vm2843, %v2743, 0
      %v3268 = vsel %vm2843, %v2744, 0
      %v3271 = vsel %vm2843, %v2745, 0
      %v3274 = vsel %vm2843, %v2746, 0
      %v3277 = vsel %vm2843, %v2747, 0
      %v3280 = vsel %vm2843, %v2748, 0
      %v3283 = vsel %vm2843, %v2749, 0
      %v3286 = vsel %vm2843, %v2750, 0
      %v3289 = vsel %vm2843, %v2751, 0
      %v3292 = vsel %vm2843, %v2752, 0
      %v3295 = vsel %vm2843, %v2753, 0
      %v3298 = vsel %vm2843, %v2754, 0
      %v3301 = vsel %vm2843, %v2755, 0
      %v3304 = vsel %vm2843, %v2756, 0
      %v3307 = vsel %vm2843, %v2757, 0
      %v3310 = vsel %vm2843, %v2758, 0
      %v3313 = vsel %vm2843, %v2759, 0
      %v3316 = vsel %vm2843, %v2760, 0
      %v3319 = vsel %vm2843, %v2761, 0
      %v3322 = vsel %vm2843, %v2762, 0
      %v3325 = vsel %vm2843, %v2763, 0
      %v3328 = vsel %vm2843, %v2764, 0
      %v3331 = vsel %vm2843, %v2765, 0
      %v3334 = vsel %vm2843, %v2766, 0
      %v3337 = vsel %vm2843, %v2767, 0
      %v3340 = vsel %vm2843, %v2768, 0
      %v3343 = vsel %vm2843, %v2769, 0
      %v3346 = vsel %vm2843, %v2770, 0
      %v3349 = vsel %vm2843, %v2771, 0
      %v3352 = vsel %vm2843, %v2772, 0
      %v3355 = vsel %vm2843, %v2773, 0
      %v3358 = vsel %vm2843, %v2774, 0
      %v3361 = vsel %vm2843, %v2775, 0
      %v3364 = vsel %vm2843, %v2776, 0
      %v3367 = vsel %vm2843, %v2777, 0
      %v3370 = vsel %vm2843, %v2778, 0
      %v3373 = vsel %vm2843, %v2779, 0
      %v3376 = vsel %vm2843, %v2780, 0
      %v3379 = vsel %vm2843, %v2781, 0
      %v3382 = vsel %vm2843, %v2782, 0
      %v3385 = vsel %vm2843, %v2783, 0
      %v3388 = vsel %vm2843, %v2784, 0
      %v3391 = vsel %vm2843, %v2785, 0
      %v3394 = vsel %vm2843, %v2786, 0
      %v3397 = vsel %vm2843, %v2787, 0
      %v3400 = vsel %vm2843, %v2788, 0
      %v3403 = vsel %vm2843, %v2789, 0
      %v3406 = vsel %vm2843, %v2790, 0
      %v3409 = vsel %vm2843, %v2791, 0
      %v3412 = vsel %vm2843, %v2792, 0
      %v3415 = vsel %vm2843, %v2793, 0
      %v3418 = vsel %vm2843, %v2794, 0
      %v3421 = vsel %vm2843, %v2795, 0
      %v3424 = vsel %vm2843, %v2796, 0
      %v3427 = vsel %vm2843, %v2797, 0
      %v3430 = vsel %vm2843, %v2798, 0
      %v3433 = vsel %vm2843, %v2799, 0
      %v3436 = vsel %vm2843, %v2800, 0
      %v3439 = vsel %vm2843, %v2801, 0
      %v3442 = vsel %vm2843, %v2802, 0
      %v3445 = vsel %vm2843, %v2803, 0
      %v3448 = vsel %vm2843, %v2804, 0
      %v3451 = vsel %vm2843, %v2805, 0
      %v3454 = vsel %vm2843, %v2806, 0
      %v3457 = vsel %vm2843, %v2807, 0
      %v3460 = vsel %vm2843, %v2808, 0
      %v3463 = vsel %vm2843, %v2809, 0
      %v3466 = vsel %vm2843, %v2810, 0
      %v3469 = vsel %vm2843, %v2811, 0
      %v3472 = vsel %vm2843, %v2812, 0
      %v3475 = vsel %vm2843, %v2813, 0
      %v3478 = vsel %vm2843, %v2814, 0
      %v3481 = vsel %vm2843, %v2815, 0
      %v3484 = vsel %vm2843, %v2816, 0
      %v3487 = vsel %vm2843, %v2817, 0
      %v3490 = vsel %vm2843, %v2818, 0
      %v3493 = vsel %vm2843, %v2819, 0
      %v3496 = vsel %vm2843, %v2820, 0
      %v3499 = vsel %vm2843, %v2821, 0
      %v3502 = vsel %vm2843, %v2822, 0
      %v3505 = vsel %vm2843, %v2823, 0
      %v3508 = vsel %vm2843, %v2824, 0
      %v3511 = vsel %vm2843, %v2825, 0
      %v3514 = vsel %vm2843, %v2826, 0
      %v3517 = vsel %vm2843, %v2827, 0
      %v3520 = vsel %vm2843, %v2828, 0
      %v3523 = vsel %vm2843, %v2829, 0
      %v3526 = vsel %vm2843, %v2830, 0
      %v3529 = vsel %vm2843, %v2831, 0
      %v3532 = vsel %vm2843, %v2832, 0
      %v3535 = vsel %vm2843, %v2833, 0
      %v3538 = vsel %vm2843, %v2834, 0
      %v3541 = vsel %vm2843, %v2835, 0
      %v3544 = vsel %vm2843, %v2836, 0
      %v3547 = vsel %vm2843, %v2837, 0
      %v3550 = vsel %vm2843, %v2838, 0
      %v3553 = vsel %vm2843, %v2839, 0
      %v3556 = vsel %vm2843, %v2840, 0
      %v3559 = vsel %vm2843, %v2841, 0
      %v3562 = vsel %vm2843, %v2842, 0
      %vm3564 = vcmask 1042432
      %vm3565 = vcmask 1043456
      %v3566 = vsel %vm3564, 4294967295, 65535
      %v3567 = vsel %vm3565, %v3566, 0
      %v3569 = vand.u32 %v1642, %v3567
      %3571 = vmatpush.bf16.msra.mxu0 0
      %3572 = vmatpush.bf16.msra.mxu0 0
      %3573 = vmatpush.bf16.msra.mxu0 0
      %3574 = vmatpush.bf16.msra.mxu0 0
      %3575 = vmatpush.bf16.msra.mxu0 0
      %3576 = vmatpush.bf16.msra.mxu0 0
      %3577 = vmatpush.bf16.msra.mxu0 0
      %3578 = vmatpush.bf16.msra.mxu0 %v3569
      %3579 = vmatmul.bf16.gmra.mxu0 %v2845
      %v3580 = vpop.f32.mrf.mxu0
      %v3581 = vadd.f32 0.0, %v3580
      %v3582 = vpop.f32.mrf.mxu0
      %v3583 = vadd.f32 0.0, %v3582
      %3584 = vmatmul.bf16.gmra.mxu0 %v2848
      %v3585 = vpop.f32.mrf.mxu0
      %v3586 = vadd.f32 0.0, %v3585
      %v3587 = vpop.f32.mrf.mxu0
      %v3588 = vadd.f32 0.0, %v3587
      %3589 = vmatmul.bf16.gmra.mxu0 %v2851
      %v3590 = vpop.f32.mrf.mxu0
      %v3591 = vadd.f32 0.0, %v3590
      %v3592 = vpop.f32.mrf.mxu0
      %v3593 = vadd.f32 0.0, %v3592
      %3594 = vmatmul.bf16.gmra.mxu0 %v2854
      %v3595 = vpop.f32.mrf.mxu0
      %v3596 = vadd.f32 0.0, %v3595
      %v3597 = vpop.f32.mrf.mxu0
      %v3598 = vadd.f32 0.0, %v3597
      %3599 = vmatmul.bf16.gmra.mxu0 %v2857
      %v3600 = vpop.f32.mrf.mxu0
      %v3601 = vadd.f32 0.0, %v3600
      %v3602 = vpop.f32.mrf.mxu0
      %v3603 = vadd.f32 0.0, %v3602
      %3604 = vmatmul.bf16.gmra.mxu0 %v2860
      %v3605 = vpop.f32.mrf.mxu0
      %v3606 = vadd.f32 0.0, %v3605
      %v3607 = vpop.f32.mrf.mxu0
      %v3608 = vadd.f32 0.0, %v3607
      %3609 = vmatmul.bf16.gmra.mxu0 %v2863
      %v3610 = vpop.f32.mrf.mxu0
      %v3611 = vadd.f32 0.0, %v3610
      %v3612 = vpop.f32.mrf.mxu0
      %v3613 = vadd.f32 0.0, %v3612
      %3614 = vmatmul.bf16.gmra.mxu0 %v2866
      %v3615 = vpop.f32.mrf.mxu0
      %v3616 = vadd.f32 0.0, %v3615
      %v3617 = vpop.f32.mrf.mxu0
      %v3618 = vadd.f32 0.0, %v3617
      %3619 = vmatmul.bf16.gmra.mxu0 %v2869
      %v3620 = vpop.f32.mrf.mxu0
      %v3621 = vadd.f32 0.0, %v3620
      %v3622 = vpop.f32.mrf.mxu0
      %v3623 = vadd.f32 0.0, %v3622
      %3624 = vmatmul.bf16.gmra.mxu0 %v2872
      %v3625 = vpop.f32.mrf.mxu0
      %v3626 = vadd.f32 0.0, %v3625
      %v3627 = vpop.f32.mrf.mxu0
      %v3628 = vadd.f32 0.0, %v3627
      %3629 = vmatmul.bf16.gmra.mxu0 %v2875
      %v3630 = vpop.f32.mrf.mxu0
      %v3631 = vadd.f32 0.0, %v3630
      %v3632 = vpop.f32.mrf.mxu0
      %v3633 = vadd.f32 0.0, %v3632
      %3634 = vmatmul.bf16.gmra.mxu0 %v2878
      %v3635 = vpop.f32.mrf.mxu0
      %v3636 = vadd.f32 0.0, %v3635
      %v3637 = vpop.f32.mrf.mxu0
      %v3638 = vadd.f32 0.0, %v3637
      %3639 = vmatmul.bf16.gmra.mxu0 %v2881
      %v3640 = vpop.f32.mrf.mxu0
      %v3641 = vadd.f32 0.0, %v3640
      %v3642 = vpop.f32.mrf.mxu0
      %v3643 = vadd.f32 0.0, %v3642
      %3644 = vmatmul.bf16.gmra.mxu0 %v2884
      %v3645 = vpop.f32.mrf.mxu0
      %v3646 = vadd.f32 0.0, %v3645
      %v3647 = vpop.f32.mrf.mxu0
      %v3648 = vadd.f32 0.0, %v3647
      %3649 = vmatmul.bf16.gmra.mxu0 %v2887
      %v3650 = vpop.f32.mrf.mxu0
      %v3651 = vadd.f32 0.0, %v3650
      %v3652 = vpop.f32.mrf.mxu0
      %v3653 = vadd.f32 0.0, %v3652
      %3654 = vmatmul.bf16.gmra.mxu0 %v2890
      %v3655 = vpop.f32.mrf.mxu0
      %v3656 = vadd.f32 0.0, %v3655
      %v3657 = vpop.f32.mrf.mxu0
      %v3658 = vadd.f32 0.0, %v3657
      %3659 = vmatmul.bf16.gmra.mxu0 %v2893
      %v3660 = vpop.f32.mrf.mxu0
      %v3661 = vadd.f32 0.0, %v3660
      %v3662 = vpop.f32.mrf.mxu0
      %v3663 = vadd.f32 0.0, %v3662
      %3664 = vmatmul.bf16.gmra.mxu0 %v2896
      %v3665 = vpop.f32.mrf.mxu0
      %v3666 = vadd.f32 0.0, %v3665
      %v3667 = vpop.f32.mrf.mxu0
      %v3668 = vadd.f32 0.0, %v3667
      %3669 = vmatmul.bf16.gmra.mxu0 %v2899
      %v3670 = vpop.f32.mrf.mxu0
      %v3671 = vadd.f32 0.0, %v3670
      %v3672 = vpop.f32.mrf.mxu0
      %v3673 = vadd.f32 0.0, %v3672
      %3674 = vmatmul.bf16.gmra.mxu0 %v2902
      %v3675 = vpop.f32.mrf.mxu0
      %v3676 = vadd.f32 0.0, %v3675
      %v3677 = vpop.f32.mrf.mxu0
      %v3678 = vadd.f32 0.0, %v3677
      %3679 = vmatmul.bf16.gmra.mxu0 %v2905
      %v3680 = vpop.f32.mrf.mxu0
      %v3681 = vadd.f32 0.0, %v3680
      %v3682 = vpop.f32.mrf.mxu0
      %v3683 = vadd.f32 0.0, %v3682
      %3684 = vmatmul.bf16.gmra.mxu0 %v2908
      %v3685 = vpop.f32.mrf.mxu0
      %v3686 = vadd.f32 0.0, %v3685
      %v3687 = vpop.f32.mrf.mxu0
      %v3688 = vadd.f32 0.0, %v3687
      %3689 = vmatmul.bf16.gmra.mxu0 %v2911
      %v3690 = vpop.f32.mrf.mxu0
      %v3691 = vadd.f32 0.0, %v3690
      %v3692 = vpop.f32.mrf.mxu0
      %v3693 = vadd.f32 0.0, %v3692
      %3694 = vmatmul.bf16.gmra.mxu0 %v2914
      %v3695 = vpop.f32.mrf.mxu0
      %v3696 = vadd.f32 0.0, %v3695
      %v3697 = vpop.f32.mrf.mxu0
      %v3698 = vadd.f32 0.0, %v3697
      %3699 = vmatmul.bf16.gmra.mxu0 %v2917
      %v3700 = vpop.f32.mrf.mxu0
      %v3701 = vadd.f32 0.0, %v3700
      %v3702 = vpop.f32.mrf.mxu0
      %v3703 = vadd.f32 0.0, %v3702
      %3704 = vmatmul.bf16.gmra.mxu0 %v2920
      %v3705 = vpop.f32.mrf.mxu0
      %v3706 = vadd.f32 0.0, %v3705
      %v3707 = vpop.f32.mrf.mxu0
      %v3708 = vadd.f32 0.0, %v3707
      %3709 = vmatmul.bf16.gmra.mxu0 %v2923
      %v3710 = vpop.f32.mrf.mxu0
      %v3711 = vadd.f32 0.0, %v3710
      %v3712 = vpop.f32.mrf.mxu0
      %v3713 = vadd.f32 0.0, %v3712
      %3714 = vmatmul.bf16.gmra.mxu0 %v2926
      %v3715 = vpop.f32.mrf.mxu0
      %v3716 = vadd.f32 0.0, %v3715
      %v3717 = vpop.f32.mrf.mxu0
      %v3718 = vadd.f32 0.0, %v3717
      %3719 = vmatmul.bf16.gmra.mxu0 %v2929
      %v3720 = vpop.f32.mrf.mxu0
      %v3721 = vadd.f32 0.0, %v3720
      %v3722 = vpop.f32.mrf.mxu0
      %v3723 = vadd.f32 0.0, %v3722
      %3724 = vmatmul.bf16.gmra.mxu0 %v2932
      %v3725 = vpop.f32.mrf.mxu0
      %v3726 = vadd.f32 0.0, %v3725
      %v3727 = vpop.f32.mrf.mxu0
      %v3728 = vadd.f32 0.0, %v3727
      %3729 = vmatmul.bf16.gmra.mxu0 %v2935
      %v3730 = vpop.f32.mrf.mxu0
      %v3731 = vadd.f32 0.0, %v3730
      %v3732 = vpop.f32.mrf.mxu0
      %v3733 = vadd.f32 0.0, %v3732
      %3734 = vmatmul.bf16.gmra.mxu0 %v2938
      %v3735 = vpop.f32.mrf.mxu0
      %v3736 = vadd.f32 0.0, %v3735
      %v3737 = vpop.f32.mrf.mxu0
      %v3738 = vadd.f32 0.0, %v3737
      %3739 = vmatmul.bf16.gmra.mxu0 %v2941
      %v3740 = vpop.f32.mrf.mxu0
      %v3741 = vadd.f32 0.0, %v3740
      %v3742 = vpop.f32.mrf.mxu0
      %v3743 = vadd.f32 0.0, %v3742
      %3744 = vmatmul.bf16.gmra.mxu0 %v2944
      %v3745 = vpop.f32.mrf.mxu0
      %v3746 = vadd.f32 0.0, %v3745
      %v3747 = vpop.f32.mrf.mxu0
      %v3748 = vadd.f32 0.0, %v3747
      %3749 = vmatmul.bf16.gmra.mxu0 %v2947
      %v3750 = vpop.f32.mrf.mxu0
      %v3751 = vadd.f32 0.0, %v3750
      %v3752 = vpop.f32.mrf.mxu0
      %v3753 = vadd.f32 0.0, %v3752
      %3754 = vmatmul.bf16.gmra.mxu0 %v2950
      %v3755 = vpop.f32.mrf.mxu0
      %v3756 = vadd.f32 0.0, %v3755
      %v3757 = vpop.f32.mrf.mxu0
      %v3758 = vadd.f32 0.0, %v3757
      %3759 = vmatmul.bf16.gmra.mxu0 %v2953
      %v3760 = vpop.f32.mrf.mxu0
      %v3761 = vadd.f32 0.0, %v3760
      %v3762 = vpop.f32.mrf.mxu0
      %v3763 = vadd.f32 0.0, %v3762
      %3764 = vmatmul.bf16.gmra.mxu0 %v2956
      %v3765 = vpop.f32.mrf.mxu0
      %v3766 = vadd.f32 0.0, %v3765
      %v3767 = vpop.f32.mrf.mxu0
      %v3768 = vadd.f32 0.0, %v3767
      %3769 = vmatmul.bf16.gmra.mxu0 %v2959
      %v3770 = vpop.f32.mrf.mxu0
      %v3771 = vadd.f32 0.0, %v3770
      %v3772 = vpop.f32.mrf.mxu0
      %v3773 = vadd.f32 0.0, %v3772
      %3774 = vmatmul.bf16.gmra.mxu0 %v2962
      %v3775 = vpop.f32.mrf.mxu0
      %v3776 = vadd.f32 0.0, %v3775
      %v3777 = vpop.f32.mrf.mxu0
      %v3778 = vadd.f32 0.0, %v3777
      %3779 = vmatmul.bf16.gmra.mxu0 %v2965
      %v3780 = vpop.f32.mrf.mxu0
      %v3781 = vadd.f32 0.0, %v3780
      %v3782 = vpop.f32.mrf.mxu0
      %v3783 = vadd.f32 0.0, %v3782
      %3784 = vmatmul.bf16.gmra.mxu0 %v2968
      %v3785 = vpop.f32.mrf.mxu0
      %v3786 = vadd.f32 0.0, %v3785
      %v3787 = vpop.f32.mrf.mxu0
      %v3788 = vadd.f32 0.0, %v3787
      %3789 = vmatmul.bf16.gmra.mxu0 %v2971
      %v3790 = vpop.f32.mrf.mxu0
      %v3791 = vadd.f32 0.0, %v3790
      %v3792 = vpop.f32.mrf.mxu0
      %v3793 = vadd.f32 0.0, %v3792
      %3794 = vmatmul.bf16.gmra.mxu0 %v2974
      %v3795 = vpop.f32.mrf.mxu0
      %v3796 = vadd.f32 0.0, %v3795
      %v3797 = vpop.f32.mrf.mxu0
      %v3798 = vadd.f32 0.0, %v3797
      %3799 = vmatmul.bf16.gmra.mxu0 %v2977
      %v3800 = vpop.f32.mrf.mxu0
      %v3801 = vadd.f32 0.0, %v3800
      %v3802 = vpop.f32.mrf.mxu0
      %v3803 = vadd.f32 0.0, %v3802
      %3804 = vmatmul.bf16.gmra.mxu0 %v2980
      %v3805 = vpop.f32.mrf.mxu0
      %v3806 = vadd.f32 0.0, %v3805
      %v3807 = vpop.f32.mrf.mxu0
      %v3808 = vadd.f32 0.0, %v3807
      %3809 = vmatmul.bf16.gmra.mxu0 %v2983
      %v3810 = vpop.f32.mrf.mxu0
      %v3811 = vadd.f32 0.0, %v3810
      %v3812 = vpop.f32.mrf.mxu0
      %v3813 = vadd.f32 0.0, %v3812
      %3814 = vmatmul.bf16.gmra.mxu0 %v2986
      %v3815 = vpop.f32.mrf.mxu0
      %v3816 = vadd.f32 0.0, %v3815
      %v3817 = vpop.f32.mrf.mxu0
      %v3818 = vadd.f32 0.0, %v3817
      %3819 = vmatmul.bf16.gmra.mxu0 %v2989
      %v3820 = vpop.f32.mrf.mxu0
      %v3821 = vadd.f32 0.0, %v3820
      %v3822 = vpop.f32.mrf.mxu0
      %v3823 = vadd.f32 0.0, %v3822
      %3824 = vmatmul.bf16.gmra.mxu0 %v2992
      %v3825 = vpop.f32.mrf.mxu0
      %v3826 = vadd.f32 0.0, %v3825
      %v3827 = vpop.f32.mrf.mxu0
      %v3828 = vadd.f32 0.0, %v3827
      %3829 = vmatmul.bf16.gmra.mxu0 %v2995
      %v3830 = vpop.f32.mrf.mxu0
      %v3831 = vadd.f32 0.0, %v3830
      %v3832 = vpop.f32.mrf.mxu0
      %v3833 = vadd.f32 0.0, %v3832
      %3834 = vmatmul.bf16.gmra.mxu0 %v2998
      %v3835 = vpop.f32.mrf.mxu0
      %v3836 = vadd.f32 0.0, %v3835
      %v3837 = vpop.f32.mrf.mxu0
      %v3838 = vadd.f32 0.0, %v3837
      %3839 = vmatmul.bf16.gmra.mxu0 %v3001
      %v3840 = vpop.f32.mrf.mxu0
      %v3841 = vadd.f32 0.0, %v3840
      %v3842 = vpop.f32.mrf.mxu0
      %v3843 = vadd.f32 0.0, %v3842
      %3844 = vmatmul.bf16.gmra.mxu0 %v3004
      %v3845 = vpop.f32.mrf.mxu0
      %v3846 = vadd.f32 0.0, %v3845
      %v3847 = vpop.f32.mrf.mxu0
      %v3848 = vadd.f32 0.0, %v3847
      %3849 = vmatmul.bf16.gmra.mxu0 %v3007
      %v3850 = vpop.f32.mrf.mxu0
      %v3851 = vadd.f32 0.0, %v3850
      %v3852 = vpop.f32.mrf.mxu0
      %v3853 = vadd.f32 0.0, %v3852
      %3854 = vmatmul.bf16.gmra.mxu0 %v3010
      %v3855 = vpop.f32.mrf.mxu0
      %v3856 = vadd.f32 0.0, %v3855
      %v3857 = vpop.f32.mrf.mxu0
      %v3858 = vadd.f32 0.0, %v3857
      %3859 = vmatmul.bf16.gmra.mxu0 %v3013
      %v3860 = vpop.f32.mrf.mxu0
      %v3861 = vadd.f32 0.0, %v3860
      %v3862 = vpop.f32.mrf.mxu0
      %v3863 = vadd.f32 0.0, %v3862
      %3864 = vmatmul.bf16.gmra.mxu0 %v3016
      %v3865 = vpop.f32.mrf.mxu0
      %v3866 = vadd.f32 0.0, %v3865
      %v3867 = vpop.f32.mrf.mxu0
      %v3868 = vadd.f32 0.0, %v3867
      %3869 = vmatmul.bf16.gmra.mxu0 %v3019
      %v3870 = vpop.f32.mrf.mxu0
      %v3871 = vadd.f32 0.0, %v3870
      %v3872 = vpop.f32.mrf.mxu0
      %v3873 = vadd.f32 0.0, %v3872
      %3874 = vmatmul.bf16.gmra.mxu0 %v3022
      %v3875 = vpop.f32.mrf.mxu0
      %v3876 = vadd.f32 0.0, %v3875
      %v3877 = vpop.f32.mrf.mxu0
      %v3878 = vadd.f32 0.0, %v3877
      %3879 = vmatmul.bf16.gmra.mxu0 %v3025
      %v3880 = vpop.f32.mrf.mxu0
      %v3881 = vadd.f32 0.0, %v3880
      %v3882 = vpop.f32.mrf.mxu0
      %v3883 = vadd.f32 0.0, %v3882
      %3884 = vmatmul.bf16.gmra.mxu0 %v3028
      %v3885 = vpop.f32.mrf.mxu0
      %v3886 = vadd.f32 0.0, %v3885
      %v3887 = vpop.f32.mrf.mxu0
      %v3888 = vadd.f32 0.0, %v3887
      %3889 = vmatmul.bf16.gmra.mxu0 %v3031
      %v3890 = vpop.f32.mrf.mxu0
      %v3891 = vadd.f32 0.0, %v3890
      %v3892 = vpop.f32.mrf.mxu0
      %v3893 = vadd.f32 0.0, %v3892
      %3894 = vmatmul.bf16.gmra.mxu0 %v3034
      %v3895 = vpop.f32.mrf.mxu0
      %v3896 = vadd.f32 0.0, %v3895
      %v3897 = vpop.f32.mrf.mxu0
      %v3898 = vadd.f32 0.0, %v3897
      %3899 = vmatmul.bf16.gmra.mxu0 %v3037
      %v3900 = vpop.f32.mrf.mxu0
      %v3901 = vadd.f32 0.0, %v3900
      %v3902 = vpop.f32.mrf.mxu0
      %v3903 = vadd.f32 0.0, %v3902
      %3904 = vmatmul.bf16.gmra.mxu0 %v3040
      %v3905 = vpop.f32.mrf.mxu0
      %v3906 = vadd.f32 0.0, %v3905
      %v3907 = vpop.f32.mrf.mxu0
      %v3908 = vadd.f32 0.0, %v3907
      %3909 = vmatmul.bf16.gmra.mxu0 %v3043
      %v3910 = vpop.f32.mrf.mxu0
      %v3911 = vadd.f32 0.0, %v3910
      %v3912 = vpop.f32.mrf.mxu0
      %v3913 = vadd.f32 0.0, %v3912
      %3914 = vmatmul.bf16.gmra.mxu0 %v3046
      %v3915 = vpop.f32.mrf.mxu0
      %v3916 = vadd.f32 0.0, %v3915
      %v3917 = vpop.f32.mrf.mxu0
      %v3918 = vadd.f32 0.0, %v3917
      %3919 = vmatmul.bf16.gmra.mxu0 %v3049
      %v3920 = vpop.f32.mrf.mxu0
      %v3921 = vadd.f32 0.0, %v3920
      %v3922 = vpop.f32.mrf.mxu0
      %v3923 = vadd.f32 0.0, %v3922
      %3924 = vmatmul.bf16.gmra.mxu0 %v3052
      %v3925 = vpop.f32.mrf.mxu0
      %v3926 = vadd.f32 0.0, %v3925
      %v3927 = vpop.f32.mrf.mxu0
      %v3928 = vadd.f32 0.0, %v3927
      %3929 = vmatmul.bf16.gmra.mxu0 %v3055
      %v3930 = vpop.f32.mrf.mxu0
      %v3931 = vadd.f32 0.0, %v3930
      %v3932 = vpop.f32.mrf.mxu0
      %v3933 = vadd.f32 0.0, %v3932
      %3934 = vmatmul.bf16.gmra.mxu0 %v3058
      %v3935 = vpop.f32.mrf.mxu0
      %v3936 = vadd.f32 0.0, %v3935
      %v3937 = vpop.f32.mrf.mxu0
      %v3938 = vadd.f32 0.0, %v3937
      %3939 = vmatmul.bf16.gmra.mxu0 %v3061
      %v3940 = vpop.f32.mrf.mxu0
      %v3941 = vadd.f32 0.0, %v3940
      %v3942 = vpop.f32.mrf.mxu0
      %v3943 = vadd.f32 0.0, %v3942
      %3944 = vmatmul.bf16.gmra.mxu0 %v3064
      %v3945 = vpop.f32.mrf.mxu0
      %v3946 = vadd.f32 0.0, %v3945
      %v3947 = vpop.f32.mrf.mxu0
      %v3948 = vadd.f32 0.0, %v3947
      %3949 = vmatmul.bf16.gmra.mxu0 %v3067
      %v3950 = vpop.f32.mrf.mxu0
      %v3951 = vadd.f32 0.0, %v3950
      %v3952 = vpop.f32.mrf.mxu0
      %v3953 = vadd.f32 0.0, %v3952
      %3954 = vmatmul.bf16.gmra.mxu0 %v3070
      %v3955 = vpop.f32.mrf.mxu0
      %v3956 = vadd.f32 0.0, %v3955
      %v3957 = vpop.f32.mrf.mxu0
      %v3958 = vadd.f32 0.0, %v3957
      %3959 = vmatmul.bf16.gmra.mxu0 %v3073
      %v3960 = vpop.f32.mrf.mxu0
      %v3961 = vadd.f32 0.0, %v3960
      %v3962 = vpop.f32.mrf.mxu0
      %v3963 = vadd.f32 0.0, %v3962
      %3964 = vmatmul.bf16.gmra.mxu0 %v3076
      %v3965 = vpop.f32.mrf.mxu0
      %v3966 = vadd.f32 0.0, %v3965
      %v3967 = vpop.f32.mrf.mxu0
      %v3968 = vadd.f32 0.0, %v3967
      %3969 = vmatmul.bf16.gmra.mxu0 %v3079
      %v3970 = vpop.f32.mrf.mxu0
      %v3971 = vadd.f32 0.0, %v3970
      %v3972 = vpop.f32.mrf.mxu0
      %v3973 = vadd.f32 0.0, %v3972
      %3974 = vmatmul.bf16.gmra.mxu0 %v3082
      %v3975 = vpop.f32.mrf.mxu0
      %v3976 = vadd.f32 0.0, %v3975
      %v3977 = vpop.f32.mrf.mxu0
      %v3978 = vadd.f32 0.0, %v3977
      %3979 = vmatmul.bf16.gmra.mxu0 %v3085
      %v3980 = vpop.f32.mrf.mxu0
      %v3981 = vadd.f32 0.0, %v3980
      %v3982 = vpop.f32.mrf.mxu0
      %v3983 = vadd.f32 0.0, %v3982
      %3984 = vmatmul.bf16.gmra.mxu0 %v3088
      %v3985 = vpop.f32.mrf.mxu0
      %v3986 = vadd.f32 0.0, %v3985
      %v3987 = vpop.f32.mrf.mxu0
      %v3988 = vadd.f32 0.0, %v3987
      %3989 = vmatmul.bf16.gmra.mxu0 %v3091
      %v3990 = vpop.f32.mrf.mxu0
      %v3991 = vadd.f32 0.0, %v3990
      %v3992 = vpop.f32.mrf.mxu0
      %v3993 = vadd.f32 0.0, %v3992
      %3994 = vmatmul.bf16.gmra.mxu0 %v3094
      %v3995 = vpop.f32.mrf.mxu0
      %v3996 = vadd.f32 0.0, %v3995
      %v3997 = vpop.f32.mrf.mxu0
      %v3998 = vadd.f32 0.0, %v3997
      %3999 = vmatmul.bf16.gmra.mxu0 %v3097
      %v4000 = vpop.f32.mrf.mxu0
      %v4001 = vadd.f32 0.0, %v4000
      %v4002 = vpop.f32.mrf.mxu0
      %v4003 = vadd.f32 0.0, %v4002
      %4004 = vmatmul.bf16.gmra.mxu0 %v3100
      %v4005 = vpop.f32.mrf.mxu0
      %v4006 = vadd.f32 0.0, %v4005
      %v4007 = vpop.f32.mrf.mxu0
      %v4008 = vadd.f32 0.0, %v4007
      %4009 = vmatmul.bf16.gmra.mxu0 %v3103
      %v4010 = vpop.f32.mrf.mxu0
      %v4011 = vadd.f32 0.0, %v4010
      %v4012 = vpop.f32.mrf.mxu0
      %v4013 = vadd.f32 0.0, %v4012
      %4014 = vmatmul.bf16.gmra.mxu0 %v3106
      %v4015 = vpop.f32.mrf.mxu0
      %v4016 = vadd.f32 0.0, %v4015
      %v4017 = vpop.f32.mrf.mxu0
      %v4018 = vadd.f32 0.0, %v4017
      %4019 = vmatmul.bf16.gmra.mxu0 %v3109
      %v4020 = vpop.f32.mrf.mxu0
      %v4021 = vadd.f32 0.0, %v4020
      %v4022 = vpop.f32.mrf.mxu0
      %v4023 = vadd.f32 0.0, %v4022
      %4024 = vmatmul.bf16.gmra.mxu0 %v3112
      %v4025 = vpop.f32.mrf.mxu0
      %v4026 = vadd.f32 0.0, %v4025
      %v4027 = vpop.f32.mrf.mxu0
      %v4028 = vadd.f32 0.0, %v4027
      %4029 = vmatmul.bf16.gmra.mxu0 %v3115
      %v4030 = vpop.f32.mrf.mxu0
      %v4031 = vadd.f32 0.0, %v4030
      %v4032 = vpop.f32.mrf.mxu0
      %v4033 = vadd.f32 0.0, %v4032
      %4034 = vmatmul.bf16.gmra.mxu0 %v3118
      %v4035 = vpop.f32.mrf.mxu0
      %v4036 = vadd.f32 0.0, %v4035
      %v4037 = vpop.f32.mrf.mxu0
      %v4038 = vadd.f32 0.0, %v4037
      %4039 = vmatmul.bf16.gmra.mxu0 %v3121
      %v4040 = vpop.f32.mrf.mxu0
      %v4041 = vadd.f32 0.0, %v4040
      %v4042 = vpop.f32.mrf.mxu0
      %v4043 = vadd.f32 0.0, %v4042
      %4044 = vmatmul.bf16.gmra.mxu0 %v3124
      %v4045 = vpop.f32.mrf.mxu0
      %v4046 = vadd.f32 0.0, %v4045
      %v4047 = vpop.f32.mrf.mxu0
      %v4048 = vadd.f32 0.0, %v4047
      %4049 = vmatmul.bf16.gmra.mxu0 %v3127
      %v4050 = vpop.f32.mrf.mxu0
      %v4051 = vadd.f32 0.0, %v4050
      %v4052 = vpop.f32.mrf.mxu0
      %v4053 = vadd.f32 0.0, %v4052
      %4054 = vmatmul.bf16.gmra.mxu0 %v3130
      %v4055 = vpop.f32.mrf.mxu0
      %v4056 = vadd.f32 0.0, %v4055
      %v4057 = vpop.f32.mrf.mxu0
      %v4058 = vadd.f32 0.0, %v4057
      %4059 = vmatmul.bf16.gmra.mxu0 %v3133
      %v4060 = vpop.f32.mrf.mxu0
      %v4061 = vadd.f32 0.0, %v4060
      %v4062 = vpop.f32.mrf.mxu0
      %v4063 = vadd.f32 0.0, %v4062
      %4064 = vmatmul.bf16.gmra.mxu0 %v3136
      %v4065 = vpop.f32.mrf.mxu0
      %v4066 = vadd.f32 0.0, %v4065
      %v4067 = vpop.f32.mrf.mxu0
      %v4068 = vadd.f32 0.0, %v4067
      %4069 = vmatmul.bf16.gmra.mxu0 %v3139
      %v4070 = vpop.f32.mrf.mxu0
      %v4071 = vadd.f32 0.0, %v4070
      %v4072 = vpop.f32.mrf.mxu0
      %v4073 = vadd.f32 0.0, %v4072
      %4074 = vmatmul.bf16.gmra.mxu0 %v3142
      %v4075 = vpop.f32.mrf.mxu0
      %v4076 = vadd.f32 0.0, %v4075
      %v4077 = vpop.f32.mrf.mxu0
      %v4078 = vadd.f32 0.0, %v4077
      %4079 = vmatmul.bf16.gmra.mxu0 %v3145
      %v4080 = vpop.f32.mrf.mxu0
      %v4081 = vadd.f32 0.0, %v4080
      %v4082 = vpop.f32.mrf.mxu0
      %v4083 = vadd.f32 0.0, %v4082
      %4084 = vmatmul.bf16.gmra.mxu0 %v3148
      %v4085 = vpop.f32.mrf.mxu0
      %v4086 = vadd.f32 0.0, %v4085
      %v4087 = vpop.f32.mrf.mxu0
      %v4088 = vadd.f32 0.0, %v4087
      %4089 = vmatmul.bf16.gmra.mxu0 %v3151
      %v4090 = vpop.f32.mrf.mxu0
      %v4091 = vadd.f32 0.0, %v4090
      %v4092 = vpop.f32.mrf.mxu0
      %v4093 = vadd.f32 0.0, %v4092
      %4094 = vmatmul.bf16.gmra.mxu0 %v3154
      %v4095 = vpop.f32.mrf.mxu0
      %v4096 = vadd.f32 0.0, %v4095
      %v4097 = vpop.f32.mrf.mxu0
      %v4098 = vadd.f32 0.0, %v4097
      %4099 = vmatmul.bf16.gmra.mxu0 %v3157
      %v4100 = vpop.f32.mrf.mxu0
      %v4101 = vadd.f32 0.0, %v4100
      %v4102 = vpop.f32.mrf.mxu0
      %v4103 = vadd.f32 0.0, %v4102
      %4104 = vmatmul.bf16.gmra.mxu0 %v3160
      %v4105 = vpop.f32.mrf.mxu0
      %v4106 = vadd.f32 0.0, %v4105
      %v4107 = vpop.f32.mrf.mxu0
      %v4108 = vadd.f32 0.0, %v4107
      %4109 = vmatmul.bf16.gmra.mxu0 %v3163
      %v4110 = vpop.f32.mrf.mxu0
      %v4111 = vadd.f32 0.0, %v4110
      %v4112 = vpop.f32.mrf.mxu0
      %v4113 = vadd.f32 0.0, %v4112
      %4114 = vmatmul.bf16.gmra.mxu0 %v3166
      %v4115 = vpop.f32.mrf.mxu0
      %v4116 = vadd.f32 0.0, %v4115
      %v4117 = vpop.f32.mrf.mxu0
      %v4118 = vadd.f32 0.0, %v4117
      %4119 = vmatmul.bf16.gmra.mxu0 %v3169
      %v4120 = vpop.f32.mrf.mxu0
      %v4121 = vadd.f32 0.0, %v4120
      %v4122 = vpop.f32.mrf.mxu0
      %v4123 = vadd.f32 0.0, %v4122
      %4124 = vmatmul.bf16.gmra.mxu0 %v3172
      %v4125 = vpop.f32.mrf.mxu0
      %v4126 = vadd.f32 0.0, %v4125
      %v4127 = vpop.f32.mrf.mxu0
      %v4128 = vadd.f32 0.0, %v4127
      %4129 = vmatmul.bf16.gmra.mxu0 %v3175
      %v4130 = vpop.f32.mrf.mxu0
      %v4131 = vadd.f32 0.0, %v4130
      %v4132 = vpop.f32.mrf.mxu0
      %v4133 = vadd.f32 0.0, %v4132
      %4134 = vmatmul.bf16.gmra.mxu0 %v3178
      %v4135 = vpop.f32.mrf.mxu0
      %v4136 = vadd.f32 0.0, %v4135
      %v4137 = vpop.f32.mrf.mxu0
      %v4138 = vadd.f32 0.0, %v4137
      %4139 = vmatmul.bf16.gmra.mxu0 %v3181
      %v4140 = vpop.f32.mrf.mxu0
      %v4141 = vadd.f32 0.0, %v4140
      %v4142 = vpop.f32.mrf.mxu0
      %v4143 = vadd.f32 0.0, %v4142
      %4144 = vmatmul.bf16.gmra.mxu0 %v3184
      %v4145 = vpop.f32.mrf.mxu0
      %v4146 = vadd.f32 0.0, %v4145
      %v4147 = vpop.f32.mrf.mxu0
      %v4148 = vadd.f32 0.0, %v4147
      %4149 = vmatmul.bf16.gmra.mxu0 %v3187
      %v4150 = vpop.f32.mrf.mxu0
      %v4151 = vadd.f32 0.0, %v4150
      %v4152 = vpop.f32.mrf.mxu0
      %v4153 = vadd.f32 0.0, %v4152
      %4154 = vmatmul.bf16.gmra.mxu0 %v3190
      %v4155 = vpop.f32.mrf.mxu0
      %v4156 = vadd.f32 0.0, %v4155
      %v4157 = vpop.f32.mrf.mxu0
      %v4158 = vadd.f32 0.0, %v4157
      %4159 = vmatmul.bf16.gmra.mxu0 %v3193
      %v4160 = vpop.f32.mrf.mxu0
      %v4161 = vadd.f32 0.0, %v4160
      %v4162 = vpop.f32.mrf.mxu0
      %v4163 = vadd.f32 0.0, %v4162
      %4164 = vmatmul.bf16.gmra.mxu0 %v3196
      %v4165 = vpop.f32.mrf.mxu0
      %v4166 = vadd.f32 0.0, %v4165
      %v4167 = vpop.f32.mrf.mxu0
      %v4168 = vadd.f32 0.0, %v4167
      %4169 = vmatmul.bf16.gmra.mxu0 %v3199
      %v4170 = vpop.f32.mrf.mxu0
      %v4171 = vadd.f32 0.0, %v4170
      %v4172 = vpop.f32.mrf.mxu0
      %v4173 = vadd.f32 0.0, %v4172
      %4174 = vmatmul.bf16.gmra.mxu0 %v3202
      %v4175 = vpop.f32.mrf.mxu0
      %v4176 = vadd.f32 0.0, %v4175
      %v4177 = vpop.f32.mrf.mxu0
      %v4178 = vadd.f32 0.0, %v4177
      %4179 = vmatmul.bf16.gmra.mxu0 %v3205
      %v4180 = vpop.f32.mrf.mxu0
      %v4181 = vadd.f32 0.0, %v4180
      %v4182 = vpop.f32.mrf.mxu0
      %v4183 = vadd.f32 0.0, %v4182
      %4184 = vmatmul.bf16.gmra.mxu0 %v3208
      %v4185 = vpop.f32.mrf.mxu0
      %v4186 = vadd.f32 0.0, %v4185
      %v4187 = vpop.f32.mrf.mxu0
      %v4188 = vadd.f32 0.0, %v4187
      %4189 = vmatmul.bf16.gmra.mxu0 %v3211
      %v4190 = vpop.f32.mrf.mxu0
      %v4191 = vadd.f32 0.0, %v4190
      %v4192 = vpop.f32.mrf.mxu0
      %v4193 = vadd.f32 0.0, %v4192
      %4194 = vmatmul.bf16.gmra.mxu0 %v3214
      %v4195 = vpop.f32.mrf.mxu0
      %v4196 = vadd.f32 0.0, %v4195
      %v4197 = vpop.f32.mrf.mxu0
      %v4198 = vadd.f32 0.0, %v4197
      %4199 = vmatmul.bf16.gmra.mxu0 %v3217
      %v4200 = vpop.f32.mrf.mxu0
      %v4201 = vadd.f32 0.0, %v4200
      %v4202 = vpop.f32.mrf.mxu0
      %v4203 = vadd.f32 0.0, %v4202
      %4204 = vmatmul.bf16.gmra.mxu0 %v3220
      %v4205 = vpop.f32.mrf.mxu0
      %v4206 = vadd.f32 0.0, %v4205
      %v4207 = vpop.f32.mrf.mxu0
      %v4208 = vadd.f32 0.0, %v4207
      %4209 = vmatmul.bf16.gmra.mxu0 %v3223
      %v4210 = vpop.f32.mrf.mxu0
      %v4211 = vadd.f32 0.0, %v4210
      %v4212 = vpop.f32.mrf.mxu0
      %v4213 = vadd.f32 0.0, %v4212
      %4214 = vmatmul.bf16.gmra.mxu0 %v3226
      %v4215 = vpop.f32.mrf.mxu0
      %v4216 = vadd.f32 0.0, %v4215
      %v4217 = vpop.f32.mrf.mxu0
      %v4218 = vadd.f32 0.0, %v4217
      %4219 = vmatmul.bf16.gmra.mxu0 %v3229
      %v4220 = vpop.f32.mrf.mxu0
      %v4221 = vadd.f32 0.0, %v4220
      %v4222 = vpop.f32.mrf.mxu0
      %v4223 = vadd.f32 0.0, %v4222
      %4224 = vmatmul.bf16.gmra.mxu0 %v3232
      %v4225 = vpop.f32.mrf.mxu0
      %v4226 = vadd.f32 0.0, %v4225
      %v4227 = vpop.f32.mrf.mxu0
      %v4228 = vadd.f32 0.0, %v4227
      %4229 = vmatmul.bf16.gmra.mxu0 %v3235
      %v4230 = vpop.f32.mrf.mxu0
      %v4231 = vadd.f32 0.0, %v4230
      %v4232 = vpop.f32.mrf.mxu0
      %v4233 = vadd.f32 0.0, %v4232
      %4234 = vmatmul.bf16.gmra.mxu0 %v3238
      %v4235 = vpop.f32.mrf.mxu0
      %v4236 = vadd.f32 0.0, %v4235
      %v4237 = vpop.f32.mrf.mxu0
      %v4238 = vadd.f32 0.0, %v4237
      %4239 = vmatmul.bf16.gmra.mxu0 %v3241
      %v4240 = vpop.f32.mrf.mxu0
      %v4241 = vadd.f32 0.0, %v4240
      %v4242 = vpop.f32.mrf.mxu0
      %v4243 = vadd.f32 0.0, %v4242
      %4244 = vmatmul.bf16.gmra.mxu0 %v3244
      %v4245 = vpop.f32.mrf.mxu0
      %v4246 = vadd.f32 0.0, %v4245
      %v4247 = vpop.f32.mrf.mxu0
      %v4248 = vadd.f32 0.0, %v4247
      %4249 = vmatmul.bf16.gmra.mxu0 %v3247
      %v4250 = vpop.f32.mrf.mxu0
      %v4251 = vadd.f32 0.0, %v4250
      %v4252 = vpop.f32.mrf.mxu0
      %v4253 = vadd.f32 0.0, %v4252
      %4254 = vmatmul.bf16.gmra.mxu0 %v3250
      %v4255 = vpop.f32.mrf.mxu0
      %v4256 = vadd.f32 0.0, %v4255
      %v4257 = vpop.f32.mrf.mxu0
      %v4258 = vadd.f32 0.0, %v4257
      %4259 = vmatmul.bf16.gmra.mxu0 %v3253
      %v4260 = vpop.f32.mrf.mxu0
      %v4261 = vadd.f32 0.0, %v4260
      %v4262 = vpop.f32.mrf.mxu0
      %v4263 = vadd.f32 0.0, %v4262
      %4264 = vmatmul.bf16.gmra.mxu0 %v3256
      %v4265 = vpop.f32.mrf.mxu0
      %v4266 = vadd.f32 0.0, %v4265
      %v4267 = vpop.f32.mrf.mxu0
      %v4268 = vadd.f32 0.0, %v4267
      %4269 = vmatmul.bf16.gmra.mxu0 %v3259
      %v4270 = vpop.f32.mrf.mxu0
      %v4271 = vadd.f32 0.0, %v4270
      %v4272 = vpop.f32.mrf.mxu0
      %v4273 = vadd.f32 0.0, %v4272
      %4274 = vmatmul.bf16.gmra.mxu0 %v3262
      %v4275 = vpop.f32.mrf.mxu0
      %v4276 = vadd.f32 0.0, %v4275
      %v4277 = vpop.f32.mrf.mxu0
      %v4278 = vadd.f32 0.0, %v4277
      %4279 = vmatmul.bf16.gmra.mxu0 %v3265
      %v4280 = vpop.f32.mrf.mxu0
      %v4281 = vadd.f32 0.0, %v4280
      %v4282 = vpop.f32.mrf.mxu0
      %v4283 = vadd.f32 0.0, %v4282
      %4284 = vmatmul.bf16.gmra.mxu0 %v3268
      %v4285 = vpop.f32.mrf.mxu0
      %v4286 = vadd.f32 0.0, %v4285
      %v4287 = vpop.f32.mrf.mxu0
      %v4288 = vadd.f32 0.0, %v4287
      %4289 = vmatmul.bf16.gmra.mxu0 %v3271
      %v4290 = vpop.f32.mrf.mxu0
      %v4291 = vadd.f32 0.0, %v4290
      %v4292 = vpop.f32.mrf.mxu0
      %v4293 = vadd.f32 0.0, %v4292
      %4294 = vmatmul.bf16.gmra.mxu0 %v3274
      %v4295 = vpop.f32.mrf.mxu0
      %v4296 = vadd.f32 0.0, %v4295
      %v4297 = vpop.f32.mrf.mxu0
      %v4298 = vadd.f32 0.0, %v4297
      %4299 = vmatmul.bf16.gmra.mxu0 %v3277
      %v4300 = vpop.f32.mrf.mxu0
      %v4301 = vadd.f32 0.0, %v4300
      %v4302 = vpop.f32.mrf.mxu0
      %v4303 = vadd.f32 0.0, %v4302
      %4304 = vmatmul.bf16.gmra.mxu0 %v3280
      %v4305 = vpop.f32.mrf.mxu0
      %v4306 = vadd.f32 0.0, %v4305
      %v4307 = vpop.f32.mrf.mxu0
      %v4308 = vadd.f32 0.0, %v4307
      %4309 = vmatmul.bf16.gmra.mxu0 %v3283
      %v4310 = vpop.f32.mrf.mxu0
      %v4311 = vadd.f32 0.0, %v4310
      %v4312 = vpop.f32.mrf.mxu0
      %v4313 = vadd.f32 0.0, %v4312
      %4314 = vmatmul.bf16.gmra.mxu0 %v3286
      %v4315 = vpop.f32.mrf.mxu0
      %v4316 = vadd.f32 0.0, %v4315
      %v4317 = vpop.f32.mrf.mxu0
      %v4318 = vadd.f32 0.0, %v4317
      %4319 = vmatmul.bf16.gmra.mxu0 %v3289
      %v4320 = vpop.f32.mrf.mxu0
      %v4321 = vadd.f32 0.0, %v4320
      %v4322 = vpop.f32.mrf.mxu0
      %v4323 = vadd.f32 0.0, %v4322
      %4324 = vmatmul.bf16.gmra.mxu0 %v3292
      %v4325 = vpop.f32.mrf.mxu0
      %v4326 = vadd.f32 0.0, %v4325
      %v4327 = vpop.f32.mrf.mxu0
      %v4328 = vadd.f32 0.0, %v4327
      %4329 = vmatmul.bf16.gmra.mxu0 %v3295
      %v4330 = vpop.f32.mrf.mxu0
      %v4331 = vadd.f32 0.0, %v4330
      %v4332 = vpop.f32.mrf.mxu0
      %v4333 = vadd.f32 0.0, %v4332
      %4334 = vmatmul.bf16.gmra.mxu0 %v3298
      %v4335 = vpop.f32.mrf.mxu0
      %v4336 = vadd.f32 0.0, %v4335
      %v4337 = vpop.f32.mrf.mxu0
      %v4338 = vadd.f32 0.0, %v4337
      %4339 = vmatmul.bf16.gmra.mxu0 %v3301
      %v4340 = vpop.f32.mrf.mxu0
      %v4341 = vadd.f32 0.0, %v4340
      %v4342 = vpop.f32.mrf.mxu0
      %v4343 = vadd.f32 0.0, %v4342
      %4344 = vmatmul.bf16.gmra.mxu0 %v3304
      %v4345 = vpop.f32.mrf.mxu0
      %v4346 = vadd.f32 0.0, %v4345
      %v4347 = vpop.f32.mrf.mxu0
      %v4348 = vadd.f32 0.0, %v4347
      %4349 = vmatmul.bf16.gmra.mxu0 %v3307
      %v4350 = vpop.f32.mrf.mxu0
      %v4351 = vadd.f32 0.0, %v4350
      %v4352 = vpop.f32.mrf.mxu0
      %v4353 = vadd.f32 0.0, %v4352
      %4354 = vmatmul.bf16.gmra.mxu0 %v3310
      %v4355 = vpop.f32.mrf.mxu0
      %v4356 = vadd.f32 0.0, %v4355
      %v4357 = vpop.f32.mrf.mxu0
      %v4358 = vadd.f32 0.0, %v4357
      %4359 = vmatmul.bf16.gmra.mxu0 %v3313
      %v4360 = vpop.f32.mrf.mxu0
      %v4361 = vadd.f32 0.0, %v4360
      %v4362 = vpop.f32.mrf.mxu0
      %v4363 = vadd.f32 0.0, %v4362
      %4364 = vmatmul.bf16.gmra.mxu0 %v3316
      %v4365 = vpop.f32.mrf.mxu0
      %v4366 = vadd.f32 0.0, %v4365
      %v4367 = vpop.f32.mrf.mxu0
      %v4368 = vadd.f32 0.0, %v4367
      %4369 = vmatmul.bf16.gmra.mxu0 %v3319
      %v4370 = vpop.f32.mrf.mxu0
      %v4371 = vadd.f32 0.0, %v4370
      %v4372 = vpop.f32.mrf.mxu0
      %v4373 = vadd.f32 0.0, %v4372
      %4374 = vmatmul.bf16.gmra.mxu0 %v3322
      %v4375 = vpop.f32.mrf.mxu0
      %v4376 = vadd.f32 0.0, %v4375
      %v4377 = vpop.f32.mrf.mxu0
      %v4378 = vadd.f32 0.0, %v4377
      %4379 = vmatmul.bf16.gmra.mxu0 %v3325
      %v4380 = vpop.f32.mrf.mxu0
      %v4381 = vadd.f32 0.0, %v4380
      %v4382 = vpop.f32.mrf.mxu0
      %v4383 = vadd.f32 0.0, %v4382
      %4384 = vmatmul.bf16.gmra.mxu0 %v3328
      %v4385 = vpop.f32.mrf.mxu0
      %v4386 = vadd.f32 0.0, %v4385
      %v4387 = vpop.f32.mrf.mxu0
      %v4388 = vadd.f32 0.0, %v4387
      %4389 = vmatmul.bf16.gmra.mxu0 %v3331
      %v4390 = vpop.f32.mrf.mxu0
      %v4391 = vadd.f32 0.0, %v4390
      %v4392 = vpop.f32.mrf.mxu0
      %v4393 = vadd.f32 0.0, %v4392
      %4394 = vmatmul.bf16.gmra.mxu0 %v3334
      %v4395 = vpop.f32.mrf.mxu0
      %v4396 = vadd.f32 0.0, %v4395
      %v4397 = vpop.f32.mrf.mxu0
      %v4398 = vadd.f32 0.0, %v4397
      %4399 = vmatmul.bf16.gmra.mxu0 %v3337
      %v4400 = vpop.f32.mrf.mxu0
      %v4401 = vadd.f32 0.0, %v4400
      %v4402 = vpop.f32.mrf.mxu0
      %v4403 = vadd.f32 0.0, %v4402
      %4404 = vmatmul.bf16.gmra.mxu0 %v3340
      %v4405 = vpop.f32.mrf.mxu0
      %v4406 = vadd.f32 0.0, %v4405
      %v4407 = vpop.f32.mrf.mxu0
      %v4408 = vadd.f32 0.0, %v4407
      %4409 = vmatmul.bf16.gmra.mxu0 %v3343
      %v4410 = vpop.f32.mrf.mxu0
      %v4411 = vadd.f32 0.0, %v4410
      %v4412 = vpop.f32.mrf.mxu0
      %v4413 = vadd.f32 0.0, %v4412
      %4414 = vmatmul.bf16.gmra.mxu0 %v3346
      %v4415 = vpop.f32.mrf.mxu0
      %v4416 = vadd.f32 0.0, %v4415
      %v4417 = vpop.f32.mrf.mxu0
      %v4418 = vadd.f32 0.0, %v4417
      %4419 = vmatmul.bf16.gmra.mxu0 %v3349
      %v4420 = vpop.f32.mrf.mxu0
      %v4421 = vadd.f32 0.0, %v4420
      %v4422 = vpop.f32.mrf.mxu0
      %v4423 = vadd.f32 0.0, %v4422
      %4424 = vmatmul.bf16.gmra.mxu0 %v3352
      %v4425 = vpop.f32.mrf.mxu0
      %v4426 = vadd.f32 0.0, %v4425
      %v4427 = vpop.f32.mrf.mxu0
      %v4428 = vadd.f32 0.0, %v4427
      %4429 = vmatmul.bf16.gmra.mxu0 %v3355
      %v4430 = vpop.f32.mrf.mxu0
      %v4431 = vadd.f32 0.0, %v4430
      %v4432 = vpop.f32.mrf.mxu0
      %v4433 = vadd.f32 0.0, %v4432
      %4434 = vmatmul.bf16.gmra.mxu0 %v3358
      %v4435 = vpop.f32.mrf.mxu0
      %v4436 = vadd.f32 0.0, %v4435
      %v4437 = vpop.f32.mrf.mxu0
      %v4438 = vadd.f32 0.0, %v4437
      %4439 = vmatmul.bf16.gmra.mxu0 %v3361
      %v4440 = vpop.f32.mrf.mxu0
      %v4441 = vadd.f32 0.0, %v4440
      %v4442 = vpop.f32.mrf.mxu0
      %v4443 = vadd.f32 0.0, %v4442
      %4444 = vmatmul.bf16.gmra.mxu0 %v3364
      %v4445 = vpop.f32.mrf.mxu0
      %v4446 = vadd.f32 0.0, %v4445
      %v4447 = vpop.f32.mrf.mxu0
      %v4448 = vadd.f32 0.0, %v4447
      %4449 = vmatmul.bf16.gmra.mxu0 %v3367
      %v4450 = vpop.f32.mrf.mxu0
      %v4451 = vadd.f32 0.0, %v4450
      %v4452 = vpop.f32.mrf.mxu0
      %v4453 = vadd.f32 0.0, %v4452
      %4454 = vmatmul.bf16.gmra.mxu0 %v3370
      %v4455 = vpop.f32.mrf.mxu0
      %v4456 = vadd.f32 0.0, %v4455
      %v4457 = vpop.f32.mrf.mxu0
      %v4458 = vadd.f32 0.0, %v4457
      %4459 = vmatmul.bf16.gmra.mxu0 %v3373
      %v4460 = vpop.f32.mrf.mxu0
      %v4461 = vadd.f32 0.0, %v4460
      %v4462 = vpop.f32.mrf.mxu0
      %v4463 = vadd.f32 0.0, %v4462
      %4464 = vmatmul.bf16.gmra.mxu0 %v3376
      %v4465 = vpop.f32.mrf.mxu0
      %v4466 = vadd.f32 0.0, %v4465
      %v4467 = vpop.f32.mrf.mxu0
      %v4468 = vadd.f32 0.0, %v4467
      %4469 = vmatmul.bf16.gmra.mxu0 %v3379
      %v4470 = vpop.f32.mrf.mxu0
      %v4471 = vadd.f32 0.0, %v4470
      %v4472 = vpop.f32.mrf.mxu0
      %v4473 = vadd.f32 0.0, %v4472
      %4474 = vmatmul.bf16.gmra.mxu0 %v3382
      %v4475 = vpop.f32.mrf.mxu0
      %v4476 = vadd.f32 0.0, %v4475
      %v4477 = vpop.f32.mrf.mxu0
      %v4478 = vadd.f32 0.0, %v4477
      %4479 = vmatmul.bf16.gmra.mxu0 %v3385
      %v4480 = vpop.f32.mrf.mxu0
      %v4481 = vadd.f32 0.0, %v4480
      %v4482 = vpop.f32.mrf.mxu0
      %v4483 = vadd.f32 0.0, %v4482
      %4484 = vmatmul.bf16.gmra.mxu0 %v3388
      %v4485 = vpop.f32.mrf.mxu0
      %v4486 = vadd.f32 0.0, %v4485
      %v4487 = vpop.f32.mrf.mxu0
      %v4488 = vadd.f32 0.0, %v4487
      %4489 = vmatmul.bf16.gmra.mxu0 %v3391
      %v4490 = vpop.f32.mrf.mxu0
      %v4491 = vadd.f32 0.0, %v4490
      %v4492 = vpop.f32.mrf.mxu0
      %v4493 = vadd.f32 0.0, %v4492
      %4494 = vmatmul.bf16.gmra.mxu0 %v3394
      %v4495 = vpop.f32.mrf.mxu0
      %v4496 = vadd.f32 0.0, %v4495
      %v4497 = vpop.f32.mrf.mxu0
      %v4498 = vadd.f32 0.0, %v4497
      %4499 = vmatmul.bf16.gmra.mxu0 %v3397
      %v4500 = vpop.f32.mrf.mxu0
      %v4501 = vadd.f32 0.0, %v4500
      %v4502 = vpop.f32.mrf.mxu0
      %v4503 = vadd.f32 0.0, %v4502
      %4504 = vmatmul.bf16.gmra.mxu0 %v3400
      %v4505 = vpop.f32.mrf.mxu0
      %v4506 = vadd.f32 0.0, %v4505
      %v4507 = vpop.f32.mrf.mxu0
      %v4508 = vadd.f32 0.0, %v4507
      %4509 = vmatmul.bf16.gmra.mxu0 %v3403
      %v4510 = vpop.f32.mrf.mxu0
      %v4511 = vadd.f32 0.0, %v4510
      %v4512 = vpop.f32.mrf.mxu0
      %v4513 = vadd.f32 0.0, %v4512
      %4514 = vmatmul.bf16.gmra.mxu0 %v3406
      %v4515 = vpop.f32.mrf.mxu0
      %v4516 = vadd.f32 0.0, %v4515
      %v4517 = vpop.f32.mrf.mxu0
      %v4518 = vadd.f32 0.0, %v4517
      %4519 = vmatmul.bf16.gmra.mxu0 %v3409
      %v4520 = vpop.f32.mrf.mxu0
      %v4521 = vadd.f32 0.0, %v4520
      %v4522 = vpop.f32.mrf.mxu0
      %v4523 = vadd.f32 0.0, %v4522
      %4524 = vmatmul.bf16.gmra.mxu0 %v3412
      %v4525 = vpop.f32.mrf.mxu0
      %v4526 = vadd.f32 0.0, %v4525
      %v4527 = vpop.f32.mrf.mxu0
      %v4528 = vadd.f32 0.0, %v4527
      %4529 = vmatmul.bf16.gmra.mxu0 %v3415
      %v4530 = vpop.f32.mrf.mxu0
      %v4531 = vadd.f32 0.0, %v4530
      %v4532 = vpop.f32.mrf.mxu0
      %v4533 = vadd.f32 0.0, %v4532
      %4534 = vmatmul.bf16.gmra.mxu0 %v3418
      %v4535 = vpop.f32.mrf.mxu0
      %v4536 = vadd.f32 0.0, %v4535
      %v4537 = vpop.f32.mrf.mxu0
      %v4538 = vadd.f32 0.0, %v4537
      %4539 = vmatmul.bf16.gmra.mxu0 %v3421
      %v4540 = vpop.f32.mrf.mxu0
      %v4541 = vadd.f32 0.0, %v4540
      %v4542 = vpop.f32.mrf.mxu0
      %v4543 = vadd.f32 0.0, %v4542
      %4544 = vmatmul.bf16.gmra.mxu0 %v3424
      %v4545 = vpop.f32.mrf.mxu0
      %v4546 = vadd.f32 0.0, %v4545
      %v4547 = vpop.f32.mrf.mxu0
      %v4548 = vadd.f32 0.0, %v4547
      %4549 = vmatmul.bf16.gmra.mxu0 %v3427
      %v4550 = vpop.f32.mrf.mxu0
      %v4551 = vadd.f32 0.0, %v4550
      %v4552 = vpop.f32.mrf.mxu0
      %v4553 = vadd.f32 0.0, %v4552
      %4554 = vmatmul.bf16.gmra.mxu0 %v3430
      %v4555 = vpop.f32.mrf.mxu0
      %v4556 = vadd.f32 0.0, %v4555
      %v4557 = vpop.f32.mrf.mxu0
      %v4558 = vadd.f32 0.0, %v4557
      %4559 = vmatmul.bf16.gmra.mxu0 %v3433
      %v4560 = vpop.f32.mrf.mxu0
      %v4561 = vadd.f32 0.0, %v4560
      %v4562 = vpop.f32.mrf.mxu0
      %v4563 = vadd.f32 0.0, %v4562
      %4564 = vmatmul.bf16.gmra.mxu0 %v3436
      %v4565 = vpop.f32.mrf.mxu0
      %v4566 = vadd.f32 0.0, %v4565
      %v4567 = vpop.f32.mrf.mxu0
      %v4568 = vadd.f32 0.0, %v4567
      %4569 = vmatmul.bf16.gmra.mxu0 %v3439
      %v4570 = vpop.f32.mrf.mxu0
      %v4571 = vadd.f32 0.0, %v4570
      %v4572 = vpop.f32.mrf.mxu0
      %v4573 = vadd.f32 0.0, %v4572
      %4574 = vmatmul.bf16.gmra.mxu0 %v3442
      %v4575 = vpop.f32.mrf.mxu0
      %v4576 = vadd.f32 0.0, %v4575
      %v4577 = vpop.f32.mrf.mxu0
      %v4578 = vadd.f32 0.0, %v4577
      %4579 = vmatmul.bf16.gmra.mxu0 %v3445
      %v4580 = vpop.f32.mrf.mxu0
      %v4581 = vadd.f32 0.0, %v4580
      %v4582 = vpop.f32.mrf.mxu0
      %v4583 = vadd.f32 0.0, %v4582
      %4584 = vmatmul.bf16.gmra.mxu0 %v3448
      %v4585 = vpop.f32.mrf.mxu0
      %v4586 = vadd.f32 0.0, %v4585
      %v4587 = vpop.f32.mrf.mxu0
      %v4588 = vadd.f32 0.0, %v4587
      %4589 = vmatmul.bf16.gmra.mxu0 %v3451
      %v4590 = vpop.f32.mrf.mxu0
      %v4591 = vadd.f32 0.0, %v4590
      %v4592 = vpop.f32.mrf.mxu0
      %v4593 = vadd.f32 0.0, %v4592
      %4594 = vmatmul.bf16.gmra.mxu0 %v3454
      %v4595 = vpop.f32.mrf.mxu0
      %v4596 = vadd.f32 0.0, %v4595
      %v4597 = vpop.f32.mrf.mxu0
      %v4598 = vadd.f32 0.0, %v4597
      %4599 = vmatmul.bf16.gmra.mxu0 %v3457
      %v4600 = vpop.f32.mrf.mxu0
      %v4601 = vadd.f32 0.0, %v4600
      %v4602 = vpop.f32.mrf.mxu0
      %v4603 = vadd.f32 0.0, %v4602
      %4604 = vmatmul.bf16.gmra.mxu0 %v3460
      %v4605 = vpop.f32.mrf.mxu0
      %v4606 = vadd.f32 0.0, %v4605
      %v4607 = vpop.f32.mrf.mxu0
      %v4608 = vadd.f32 0.0, %v4607
      %4609 = vmatmul.bf16.gmra.mxu0 %v3463
      %v4610 = vpop.f32.mrf.mxu0
      %v4611 = vadd.f32 0.0, %v4610
      %v4612 = vpop.f32.mrf.mxu0
      %v4613 = vadd.f32 0.0, %v4612
      %4614 = vmatmul.bf16.gmra.mxu0 %v3466
      %v4615 = vpop.f32.mrf.mxu0
      %v4616 = vadd.f32 0.0, %v4615
      %v4617 = vpop.f32.mrf.mxu0
      %v4618 = vadd.f32 0.0, %v4617
      %4619 = vmatmul.bf16.gmra.mxu0 %v3469
      %v4620 = vpop.f32.mrf.mxu0
      %v4621 = vadd.f32 0.0, %v4620
      %v4622 = vpop.f32.mrf.mxu0
      %v4623 = vadd.f32 0.0, %v4622
      %4624 = vmatmul.bf16.gmra.mxu0 %v3472
      %v4625 = vpop.f32.mrf.mxu0
      %v4626 = vadd.f32 0.0, %v4625
      %v4627 = vpop.f32.mrf.mxu0
      %v4628 = vadd.f32 0.0, %v4627
      %4629 = vmatmul.bf16.gmra.mxu0 %v3475
      %v4630 = vpop.f32.mrf.mxu0
      %v4631 = vadd.f32 0.0, %v4630
      %v4632 = vpop.f32.mrf.mxu0
      %v4633 = vadd.f32 0.0, %v4632
      %4634 = vmatmul.bf16.gmra.mxu0 %v3478
      %v4635 = vpop.f32.mrf.mxu0
      %v4636 = vadd.f32 0.0, %v4635
      %v4637 = vpop.f32.mrf.mxu0
      %v4638 = vadd.f32 0.0, %v4637
      %4639 = vmatmul.bf16.gmra.mxu0 %v3481
      %v4640 = vpop.f32.mrf.mxu0
      %v4641 = vadd.f32 0.0, %v4640
      %v4642 = vpop.f32.mrf.mxu0
      %v4643 = vadd.f32 0.0, %v4642
      %4644 = vmatmul.bf16.gmra.mxu0 %v3484
      %v4645 = vpop.f32.mrf.mxu0
      %v4646 = vadd.f32 0.0, %v4645
      %v4647 = vpop.f32.mrf.mxu0
      %v4648 = vadd.f32 0.0, %v4647
      %4649 = vmatmul.bf16.gmra.mxu0 %v3487
      %v4650 = vpop.f32.mrf.mxu0
      %v4651 = vadd.f32 0.0, %v4650
      %v4652 = vpop.f32.mrf.mxu0
      %v4653 = vadd.f32 0.0, %v4652
      %4654 = vmatmul.bf16.gmra.mxu0 %v3490
      %v4655 = vpop.f32.mrf.mxu0
      %v4656 = vadd.f32 0.0, %v4655
      %v4657 = vpop.f32.mrf.mxu0
      %v4658 = vadd.f32 0.0, %v4657
      %4659 = vmatmul.bf16.gmra.mxu0 %v3493
      %v4660 = vpop.f32.mrf.mxu0
      %v4661 = vadd.f32 0.0, %v4660
      %v4662 = vpop.f32.mrf.mxu0
      %v4663 = vadd.f32 0.0, %v4662
      %4664 = vmatmul.bf16.gmra.mxu0 %v3496
      %v4665 = vpop.f32.mrf.mxu0
      %v4666 = vadd.f32 0.0, %v4665
      %v4667 = vpop.f32.mrf.mxu0
      %v4668 = vadd.f32 0.0, %v4667
      %4669 = vmatmul.bf16.gmra.mxu0 %v3499
      %v4670 = vpop.f32.mrf.mxu0
      %v4671 = vadd.f32 0.0, %v4670
      %v4672 = vpop.f32.mrf.mxu0
      %v4673 = vadd.f32 0.0, %v4672
      %4674 = vmatmul.bf16.gmra.mxu0 %v3502
      %v4675 = vpop.f32.mrf.mxu0
      %v4676 = vadd.f32 0.0, %v4675
      %v4677 = vpop.f32.mrf.mxu0
      %v4678 = vadd.f32 0.0, %v4677
      %4679 = vmatmul.bf16.gmra.mxu0 %v3505
      %v4680 = vpop.f32.mrf.mxu0
      %v4681 = vadd.f32 0.0, %v4680
      %v4682 = vpop.f32.mrf.mxu0
      %v4683 = vadd.f32 0.0, %v4682
      %4684 = vmatmul.bf16.gmra.mxu0 %v3508
      %v4685 = vpop.f32.mrf.mxu0
      %v4686 = vadd.f32 0.0, %v4685
      %v4687 = vpop.f32.mrf.mxu0
      %v4688 = vadd.f32 0.0, %v4687
      %4689 = vmatmul.bf16.gmra.mxu0 %v3511
      %v4690 = vpop.f32.mrf.mxu0
      %v4691 = vadd.f32 0.0, %v4690
      %v4692 = vpop.f32.mrf.mxu0
      %v4693 = vadd.f32 0.0, %v4692
      %4694 = vmatmul.bf16.gmra.mxu0 %v3514
      %v4695 = vpop.f32.mrf.mxu0
      %v4696 = vadd.f32 0.0, %v4695
      %v4697 = vpop.f32.mrf.mxu0
      %v4698 = vadd.f32 0.0, %v4697
      %4699 = vmatmul.bf16.gmra.mxu0 %v3517
      %v4700 = vpop.f32.mrf.mxu0
      %v4701 = vadd.f32 0.0, %v4700
      %v4702 = vpop.f32.mrf.mxu0
      %v4703 = vadd.f32 0.0, %v4702
      %4704 = vmatmul.bf16.gmra.mxu0 %v3520
      %v4705 = vpop.f32.mrf.mxu0
      %v4706 = vadd.f32 0.0, %v4705
      %v4707 = vpop.f32.mrf.mxu0
      %v4708 = vadd.f32 0.0, %v4707
      %4709 = vmatmul.bf16.gmra.mxu0 %v3523
      %v4710 = vpop.f32.mrf.mxu0
      %v4711 = vadd.f32 0.0, %v4710
      %v4712 = vpop.f32.mrf.mxu0
      %v4713 = vadd.f32 0.0, %v4712
      %4714 = vmatmul.bf16.gmra.mxu0 %v3526
      %v4715 = vpop.f32.mrf.mxu0
      %v4716 = vadd.f32 0.0, %v4715
      %v4717 = vpop.f32.mrf.mxu0
      %v4718 = vadd.f32 0.0, %v4717
      %4719 = vmatmul.bf16.gmra.mxu0 %v3529
      %v4720 = vpop.f32.mrf.mxu0
      %v4721 = vadd.f32 0.0, %v4720
      %v4722 = vpop.f32.mrf.mxu0
      %v4723 = vadd.f32 0.0, %v4722
      %4724 = vmatmul.bf16.gmra.mxu0 %v3532
      %v4725 = vpop.f32.mrf.mxu0
      %v4726 = vadd.f32 0.0, %v4725
      %v4727 = vpop.f32.mrf.mxu0
      %v4728 = vadd.f32 0.0, %v4727
      %4729 = vmatmul.bf16.gmra.mxu0 %v3535
      %v4730 = vpop.f32.mrf.mxu0
      %v4731 = vadd.f32 0.0, %v4730
      %v4732 = vpop.f32.mrf.mxu0
      %v4733 = vadd.f32 0.0, %v4732
      %4734 = vmatmul.bf16.gmra.mxu0 %v3538
      %v4735 = vpop.f32.mrf.mxu0
      %v4736 = vadd.f32 0.0, %v4735
      %v4737 = vpop.f32.mrf.mxu0
      %v4738 = vadd.f32 0.0, %v4737
      %4739 = vmatmul.bf16.gmra.mxu0 %v3541
      %v4740 = vpop.f32.mrf.mxu0
      %v4741 = vadd.f32 0.0, %v4740
      %v4742 = vpop.f32.mrf.mxu0
      %v4743 = vadd.f32 0.0, %v4742
      %4744 = vmatmul.bf16.gmra.mxu0 %v3544
      %v4745 = vpop.f32.mrf.mxu0
      %v4746 = vadd.f32 0.0, %v4745
      %v4747 = vpop.f32.mrf.mxu0
      %v4748 = vadd.f32 0.0, %v4747
      %4749 = vmatmul.bf16.gmra.mxu0 %v3547
      %v4750 = vpop.f32.mrf.mxu0
      %v4751 = vadd.f32 0.0, %v4750
      %v4752 = vpop.f32.mrf.mxu0
      %v4753 = vadd.f32 0.0, %v4752
      %4754 = vmatmul.bf16.gmra.mxu0 %v3550
      %v4755 = vpop.f32.mrf.mxu0
      %v4756 = vadd.f32 0.0, %v4755
      %v4757 = vpop.f32.mrf.mxu0
      %v4758 = vadd.f32 0.0, %v4757
      %4759 = vmatmul.bf16.gmra.mxu0 %v3553
      %v4760 = vpop.f32.mrf.mxu0
      %v4761 = vadd.f32 0.0, %v4760
      %v4762 = vpop.f32.mrf.mxu0
      %v4763 = vadd.f32 0.0, %v4762
      %4764 = vmatmul.bf16.gmra.mxu0 %v3556
      %v4765 = vpop.f32.mrf.mxu0
      %v4766 = vadd.f32 0.0, %v4765
      %v4767 = vpop.f32.mrf.mxu0
      %v4768 = vadd.f32 0.0, %v4767
      %4769 = vmatmul.bf16.gmra.mxu0 %v3559
      %v4770 = vpop.f32.mrf.mxu0
      %v4771 = vadd.f32 0.0, %v4770
      %v4772 = vpop.f32.mrf.mxu0
      %v4773 = vadd.f32 0.0, %v4772
      %4774 = vmatmul.bf16.gmra.mxu0 %v3562
      %v4775 = vpop.f32.mrf.mxu0
      %v4776 = vadd.f32 0.0, %v4775
      %v4777 = vpop.f32.mrf.mxu0
      %v4778 = vadd.f32 0.0, %v4777
      %4779 = vdwg.mxu0
      %v4780 = vadd.f32 %v1162, %v3581
      %v4781 = vadd.f32 %v1163, %v3583
      %v4782 = vadd.f32 %v1164, %v3586
      %v4783 = vadd.f32 %v1165, %v3588
      %v4784 = vadd.f32 %v1166, %v3591
      %v4785 = vadd.f32 %v1167, %v3593
      %v4786 = vadd.f32 %v1168, %v3596
      %v4787 = vadd.f32 %v1169, %v3598
      %v4788 = vadd.f32 %v1170, %v3601
      %v4789 = vadd.f32 %v1171, %v3603
      %v4790 = vadd.f32 %v1172, %v3606
      %v4791 = vadd.f32 %v1173, %v3608
      %v4792 = vadd.f32 %v1174, %v3611
      %v4793 = vadd.f32 %v1175, %v3613
      %v4794 = vadd.f32 %v1176, %v3616
      %v4795 = vadd.f32 %v1177, %v3618
      %v4796 = vadd.f32 %v1178, %v3621
      %v4797 = vadd.f32 %v1179, %v3623
      %v4798 = vadd.f32 %v1180, %v3626
      %v4799 = vadd.f32 %v1181, %v3628
      %v4800 = vadd.f32 %v1182, %v3631
      %v4801 = vadd.f32 %v1183, %v3633
      %v4802 = vadd.f32 %v1184, %v3636
      %v4803 = vadd.f32 %v1185, %v3638
      %v4804 = vadd.f32 %v1186, %v3641
      %v4805 = vadd.f32 %v1187, %v3643
      %v4806 = vadd.f32 %v1188, %v3646
      %v4807 = vadd.f32 %v1189, %v3648
      %v4808 = vadd.f32 %v1190, %v3651
      %v4809 = vadd.f32 %v1191, %v3653
      %v4810 = vadd.f32 %v1192, %v3656
      %v4811 = vadd.f32 %v1193, %v3658
      %v4812 = vadd.f32 %v1194, %v3661
      %v4813 = vadd.f32 %v1195, %v3663
      %v4814 = vadd.f32 %v1196, %v3666
      %v4815 = vadd.f32 %v1197, %v3668
      %v4816 = vadd.f32 %v1198, %v3671
      %v4817 = vadd.f32 %v1199, %v3673
      %v4818 = vadd.f32 %v1200, %v3676
      %v4819 = vadd.f32 %v1201, %v3678
      %v4820 = vadd.f32 %v1202, %v3681
      %v4821 = vadd.f32 %v1203, %v3683
      %v4822 = vadd.f32 %v1204, %v3686
      %v4823 = vadd.f32 %v1205, %v3688
      %v4824 = vadd.f32 %v1206, %v3691
      %v4825 = vadd.f32 %v1207, %v3693
      %v4826 = vadd.f32 %v1208, %v3696
      %v4827 = vadd.f32 %v1209, %v3698
      %v4828 = vadd.f32 %v1210, %v3701
      %v4829 = vadd.f32 %v1211, %v3703
      %v4830 = vadd.f32 %v1212, %v3706
      %v4831 = vadd.f32 %v1213, %v3708
      %v4832 = vadd.f32 %v1214, %v3711
      %v4833 = vadd.f32 %v1215, %v3713
      %v4834 = vadd.f32 %v1216, %v3716
      %v4835 = vadd.f32 %v1217, %v3718
      %v4836 = vadd.f32 %v1218, %v3721
      %v4837 = vadd.f32 %v1219, %v3723
      %v4838 = vadd.f32 %v1220, %v3726
      %v4839 = vadd.f32 %v1221, %v3728
      %v4840 = vadd.f32 %v1222, %v3731
      %v4841 = vadd.f32 %v1223, %v3733
      %v4842 = vadd.f32 %v1224, %v3736
      %v4843 = vadd.f32 %v1225, %v3738
      %v4844 = vadd.f32 %v1226, %v3741
      %v4845 = vadd.f32 %v1227, %v3743
      %v4846 = vadd.f32 %v1228, %v3746
      %v4847 = vadd.f32 %v1229, %v3748
      %v4848 = vadd.f32 %v1230, %v3751
      %v4849 = vadd.f32 %v1231, %v3753
      %v4850 = vadd.f32 %v1232, %v3756
      %v4851 = vadd.f32 %v1233, %v3758
      %v4852 = vadd.f32 %v1234, %v3761
      %v4853 = vadd.f32 %v1235, %v3763
      %v4854 = vadd.f32 %v1236, %v3766
      %v4855 = vadd.f32 %v1237, %v3768
      %v4856 = vadd.f32 %v1238, %v3771
      %v4857 = vadd.f32 %v1239, %v3773
      %v4858 = vadd.f32 %v1240, %v3776
      %v4859 = vadd.f32 %v1241, %v3778
      %v4860 = vadd.f32 %v1242, %v3781
      %v4861 = vadd.f32 %v1243, %v3783
      %v4862 = vadd.f32 %v1244, %v3786
      %v4863 = vadd.f32 %v1245, %v3788
      %v4864 = vadd.f32 %v1246, %v3791
      %v4865 = vadd.f32 %v1247, %v3793
      %v4866 = vadd.f32 %v1248, %v3796
      %v4867 = vadd.f32 %v1249, %v3798
      %v4868 = vadd.f32 %v1250, %v3801
      %v4869 = vadd.f32 %v1251, %v3803
      %v4870 = vadd.f32 %v1252, %v3806
      %v4871 = vadd.f32 %v1253, %v3808
      %v4872 = vadd.f32 %v1254, %v3811
      %v4873 = vadd.f32 %v1255, %v3813
      %v4874 = vadd.f32 %v1256, %v3816
      %v4875 = vadd.f32 %v1257, %v3818
      %v4876 = vadd.f32 %v1258, %v3821
      %v4877 = vadd.f32 %v1259, %v3823
      %v4878 = vadd.f32 %v1260, %v3826
      %v4879 = vadd.f32 %v1261, %v3828
      %v4880 = vadd.f32 %v1262, %v3831
      %v4881 = vadd.f32 %v1263, %v3833
      %v4882 = vadd.f32 %v1264, %v3836
      %v4883 = vadd.f32 %v1265, %v3838
      %v4884 = vadd.f32 %v1266, %v3841
      %v4885 = vadd.f32 %v1267, %v3843
      %v4886 = vadd.f32 %v1268, %v3846
      %v4887 = vadd.f32 %v1269, %v3848
      %v4888 = vadd.f32 %v1270, %v3851
      %v4889 = vadd.f32 %v1271, %v3853
      %v4890 = vadd.f32 %v1272, %v3856
      %v4891 = vadd.f32 %v1273, %v3858
      %v4892 = vadd.f32 %v1274, %v3861
      %v4893 = vadd.f32 %v1275, %v3863
      %v4894 = vadd.f32 %v1276, %v3866
      %v4895 = vadd.f32 %v1277, %v3868
      %v4896 = vadd.f32 %v1278, %v3871
      %v4897 = vadd.f32 %v1279, %v3873
      %v4898 = vadd.f32 %v1280, %v3876
      %v4899 = vadd.f32 %v1281, %v3878
      %v4900 = vadd.f32 %v1282, %v3881
      %v4901 = vadd.f32 %v1283, %v3883
      %v4902 = vadd.f32 %v1284, %v3886
      %v4903 = vadd.f32 %v1285, %v3888
      %v4904 = vadd.f32 %v1286, %v3891
      %v4905 = vadd.f32 %v1287, %v3893
      %v4906 = vadd.f32 %v1288, %v3896
      %v4907 = vadd.f32 %v1289, %v3898
      %v4908 = vadd.f32 %v1290, %v3901
      %v4909 = vadd.f32 %v1291, %v3903
      %v4910 = vadd.f32 %v1292, %v3906
      %v4911 = vadd.f32 %v1293, %v3908
      %v4912 = vadd.f32 %v1294, %v3911
      %v4913 = vadd.f32 %v1295, %v3913
      %v4914 = vadd.f32 %v1296, %v3916
      %v4915 = vadd.f32 %v1297, %v3918
      %v4916 = vadd.f32 %v1298, %v3921
      %v4917 = vadd.f32 %v1299, %v3923
      %v4918 = vadd.f32 %v1300, %v3926
      %v4919 = vadd.f32 %v1301, %v3928
      %v4920 = vadd.f32 %v1302, %v3931
      %v4921 = vadd.f32 %v1303, %v3933
      %v4922 = vadd.f32 %v1304, %v3936
      %v4923 = vadd.f32 %v1305, %v3938
      %v4924 = vadd.f32 %v1306, %v3941
      %v4925 = vadd.f32 %v1307, %v3943
      %v4926 = vadd.f32 %v1308, %v3946
      %v4927 = vadd.f32 %v1309, %v3948
      %v4928 = vadd.f32 %v1310, %v3951
      %v4929 = vadd.f32 %v1311, %v3953
      %v4930 = vadd.f32 %v1312, %v3956
      %v4931 = vadd.f32 %v1313, %v3958
      %v4932 = vadd.f32 %v1314, %v3961
      %v4933 = vadd.f32 %v1315, %v3963
      %v4934 = vadd.f32 %v1316, %v3966
      %v4935 = vadd.f32 %v1317, %v3968
      %v4936 = vadd.f32 %v1318, %v3971
      %v4937 = vadd.f32 %v1319, %v3973
      %v4938 = vadd.f32 %v1320, %v3976
      %v4939 = vadd.f32 %v1321, %v3978
      %v4940 = vadd.f32 %v1322, %v3981
      %v4941 = vadd.f32 %v1323, %v3983
      %v4942 = vadd.f32 %v1324, %v3986
      %v4943 = vadd.f32 %v1325, %v3988
      %v4944 = vadd.f32 %v1326, %v3991
      %v4945 = vadd.f32 %v1327, %v3993
      %v4946 = vadd.f32 %v1328, %v3996
      %v4947 = vadd.f32 %v1329, %v3998
      %v4948 = vadd.f32 %v1330, %v4001
      %v4949 = vadd.f32 %v1331, %v4003
      %v4950 = vadd.f32 %v1332, %v4006
      %v4951 = vadd.f32 %v1333, %v4008
      %v4952 = vadd.f32 %v1334, %v4011
      %v4953 = vadd.f32 %v1335, %v4013
      %v4954 = vadd.f32 %v1336, %v4016
      %v4955 = vadd.f32 %v1337, %v4018
      %v4956 = vadd.f32 %v1338, %v4021
      %v4957 = vadd.f32 %v1339, %v4023
      %v4958 = vadd.f32 %v1340, %v4026
      %v4959 = vadd.f32 %v1341, %v4028
      %v4960 = vadd.f32 %v1342, %v4031
      %v4961 = vadd.f32 %v1343, %v4033
      %v4962 = vadd.f32 %v1344, %v4036
      %v4963 = vadd.f32 %v1345, %v4038
      %v4964 = vadd.f32 %v1346, %v4041
      %v4965 = vadd.f32 %v1347, %v4043
      %v4966 = vadd.f32 %v1348, %v4046
      %v4967 = vadd.f32 %v1349, %v4048
      %v4968 = vadd.f32 %v1350, %v4051
      %v4969 = vadd.f32 %v1351, %v4053
      %v4970 = vadd.f32 %v1352, %v4056
      %v4971 = vadd.f32 %v1353, %v4058
      %v4972 = vadd.f32 %v1354, %v4061
      %v4973 = vadd.f32 %v1355, %v4063
      %v4974 = vadd.f32 %v1356, %v4066
      %v4975 = vadd.f32 %v1357, %v4068
      %v4976 = vadd.f32 %v1358, %v4071
      %v4977 = vadd.f32 %v1359, %v4073
      %v4978 = vadd.f32 %v1360, %v4076
      %v4979 = vadd.f32 %v1361, %v4078
      %v4980 = vadd.f32 %v1362, %v4081
      %v4981 = vadd.f32 %v1363, %v4083
      %v4982 = vadd.f32 %v1364, %v4086
      %v4983 = vadd.f32 %v1365, %v4088
      %v4984 = vadd.f32 %v1366, %v4091
      %v4985 = vadd.f32 %v1367, %v4093
      %v4986 = vadd.f32 %v1368, %v4096
      %v4987 = vadd.f32 %v1369, %v4098
      %v4988 = vadd.f32 %v1370, %v4101
      %v4989 = vadd.f32 %v1371, %v4103
      %v4990 = vadd.f32 %v1372, %v4106
      %v4991 = vadd.f32 %v1373, %v4108
      %v4992 = vadd.f32 %v1374, %v4111
      %v4993 = vadd.f32 %v1375, %v4113
      %v4994 = vadd.f32 %v1376, %v4116
      %v4995 = vadd.f32 %v1377, %v4118
      %v4996 = vadd.f32 %v1378, %v4121
      %v4997 = vadd.f32 %v1379, %v4123
      %v4998 = vadd.f32 %v1380, %v4126
      %v4999 = vadd.f32 %v1381, %v4128
      %v5000 = vadd.f32 %v1382, %v4131
      %v5001 = vadd.f32 %v1383, %v4133
      %v5002 = vadd.f32 %v1384, %v4136
      %v5003 = vadd.f32 %v1385, %v4138
      %v5004 = vadd.f32 %v1386, %v4141
      %v5005 = vadd.f32 %v1387, %v4143
      %v5006 = vadd.f32 %v1388, %v4146
      %v5007 = vadd.f32 %v1389, %v4148
      %v5008 = vadd.f32 %v1390, %v4151
      %v5009 = vadd.f32 %v1391, %v4153
      %v5010 = vadd.f32 %v1392, %v4156
      %v5011 = vadd.f32 %v1393, %v4158
      %v5012 = vadd.f32 %v1394, %v4161
      %v5013 = vadd.f32 %v1395, %v4163
      %v5014 = vadd.f32 %v1396, %v4166
      %v5015 = vadd.f32 %v1397, %v4168
      %v5016 = vadd.f32 %v1398, %v4171
      %v5017 = vadd.f32 %v1399, %v4173
      %v5018 = vadd.f32 %v1400, %v4176
      %v5019 = vadd.f32 %v1401, %v4178
      %v5020 = vadd.f32 %v1402, %v4181
      %v5021 = vadd.f32 %v1403, %v4183
      %v5022 = vadd.f32 %v1404, %v4186
      %v5023 = vadd.f32 %v1405, %v4188
      %v5024 = vadd.f32 %v1406, %v4191
      %v5025 = vadd.f32 %v1407, %v4193
      %v5026 = vadd.f32 %v1408, %v4196
      %v5027 = vadd.f32 %v1409, %v4198
      %v5028 = vadd.f32 %v1410, %v4201
      %v5029 = vadd.f32 %v1411, %v4203
      %v5030 = vadd.f32 %v1412, %v4206
      %v5031 = vadd.f32 %v1413, %v4208
      %v5032 = vadd.f32 %v1414, %v4211
      %v5033 = vadd.f32 %v1415, %v4213
      %v5034 = vadd.f32 %v1416, %v4216
      %v5035 = vadd.f32 %v1417, %v4218
      %v5036 = vadd.f32 %v1418, %v4221
      %v5037 = vadd.f32 %v1419, %v4223
      %v5038 = vadd.f32 %v1420, %v4226
      %v5039 = vadd.f32 %v1421, %v4228
      %v5040 = vadd.f32 %v1422, %v4231
      %v5041 = vadd.f32 %v1423, %v4233
      %v5042 = vadd.f32 %v1424, %v4236
      %v5043 = vadd.f32 %v1425, %v4238
      %v5044 = vadd.f32 %v1426, %v4241
      %v5045 = vadd.f32 %v1427, %v4243
      %v5046 = vadd.f32 %v1428, %v4246
      %v5047 = vadd.f32 %v1429, %v4248
      %v5048 = vadd.f32 %v1430, %v4251
      %v5049 = vadd.f32 %v1431, %v4253
      %v5050 = vadd.f32 %v1432, %v4256
      %v5051 = vadd.f32 %v1433, %v4258
      %v5052 = vadd.f32 %v1434, %v4261
      %v5053 = vadd.f32 %v1435, %v4263
      %v5054 = vadd.f32 %v1436, %v4266
      %v5055 = vadd.f32 %v1437, %v4268
      %v5056 = vadd.f32 %v1438, %v4271
      %v5057 = vadd.f32 %v1439, %v4273
      %v5058 = vadd.f32 %v1440, %v4276
      %v5059 = vadd.f32 %v1441, %v4278
      %v5060 = vadd.f32 %v1442, %v4281
      %v5061 = vadd.f32 %v1443, %v4283
      %v5062 = vadd.f32 %v1444, %v4286
      %v5063 = vadd.f32 %v1445, %v4288
      %v5064 = vadd.f32 %v1446, %v4291
      %v5065 = vadd.f32 %v1447, %v4293
      %v5066 = vadd.f32 %v1448, %v4296
      %v5067 = vadd.f32 %v1449, %v4298
      %v5068 = vadd.f32 %v1450, %v4301
      %v5069 = vadd.f32 %v1451, %v4303
      %v5070 = vadd.f32 %v1452, %v4306
      %v5071 = vadd.f32 %v1453, %v4308
      %v5072 = vadd.f32 %v1454, %v4311
      %v5073 = vadd.f32 %v1455, %v4313
      %v5074 = vadd.f32 %v1456, %v4316
      %v5075 = vadd.f32 %v1457, %v4318
      %v5076 = vadd.f32 %v1458, %v4321
      %v5077 = vadd.f32 %v1459, %v4323
      %v5078 = vadd.f32 %v1460, %v4326
      %v5079 = vadd.f32 %v1461, %v4328
      %v5080 = vadd.f32 %v1462, %v4331
      %v5081 = vadd.f32 %v1463, %v4333
      %v5082 = vadd.f32 %v1464, %v4336
      %v5083 = vadd.f32 %v1465, %v4338
      %v5084 = vadd.f32 %v1466, %v4341
      %v5085 = vadd.f32 %v1467, %v4343
      %v5086 = vadd.f32 %v1468, %v4346
      %v5087 = vadd.f32 %v1469, %v4348
      %v5088 = vadd.f32 %v1470, %v4351
      %v5089 = vadd.f32 %v1471, %v4353
      %v5090 = vadd.f32 %v1472, %v4356
      %v5091 = vadd.f32 %v1473, %v4358
      %v5092 = vadd.f32 %v1474, %v4361
      %v5093 = vadd.f32 %v1475, %v4363
      %v5094 = vadd.f32 %v1476, %v4366
      %v5095 = vadd.f32 %v1477, %v4368
      %v5096 = vadd.f32 %v1478, %v4371
      %v5097 = vadd.f32 %v1479, %v4373
      %v5098 = vadd.f32 %v1480, %v4376
      %v5099 = vadd.f32 %v1481, %v4378
      %v5100 = vadd.f32 %v1482, %v4381
      %v5101 = vadd.f32 %v1483, %v4383
      %v5102 = vadd.f32 %v1484, %v4386
      %v5103 = vadd.f32 %v1485, %v4388
      %v5104 = vadd.f32 %v1486, %v4391
      %v5105 = vadd.f32 %v1487, %v4393
      %v5106 = vadd.f32 %v1488, %v4396
      %v5107 = vadd.f32 %v1489, %v4398
      %v5108 = vadd.f32 %v1490, %v4401
      %v5109 = vadd.f32 %v1491, %v4403
      %v5110 = vadd.f32 %v1492, %v4406
      %v5111 = vadd.f32 %v1493, %v4408
      %v5112 = vadd.f32 %v1494, %v4411
      %v5113 = vadd.f32 %v1495, %v4413
      %v5114 = vadd.f32 %v1496, %v4416
      %v5115 = vadd.f32 %v1497, %v4418
      %v5116 = vadd.f32 %v1498, %v4421
      %v5117 = vadd.f32 %v1499, %v4423
      %v5118 = vadd.f32 %v1500, %v4426
      %v5119 = vadd.f32 %v1501, %v4428
      %v5120 = vadd.f32 %v1502, %v4431
      %v5121 = vadd.f32 %v1503, %v4433
      %v5122 = vadd.f32 %v1504, %v4436
      %v5123 = vadd.f32 %v1505, %v4438
      %v5124 = vadd.f32 %v1506, %v4441
      %v5125 = vadd.f32 %v1507, %v4443
      %v5126 = vadd.f32 %v1508, %v4446
      %v5127 = vadd.f32 %v1509, %v4448
      %v5128 = vadd.f32 %v1510, %v4451
      %v5129 = vadd.f32 %v1511, %v4453
      %v5130 = vadd.f32 %v1512, %v4456
      %v5131 = vadd.f32 %v1513, %v4458
      %v5132 = vadd.f32 %v1514, %v4461
      %v5133 = vadd.f32 %v1515, %v4463
      %v5134 = vadd.f32 %v1516, %v4466
      %v5135 = vadd.f32 %v1517, %v4468
      %v5136 = vadd.f32 %v1518, %v4471
      %v5137 = vadd.f32 %v1519, %v4473
      %v5138 = vadd.f32 %v1520, %v4476
      %v5139 = vadd.f32 %v1521, %v4478
      %v5140 = vadd.f32 %v1522, %v4481
      %v5141 = vadd.f32 %v1523, %v4483
      %v5142 = vadd.f32 %v1524, %v4486
      %v5143 = vadd.f32 %v1525, %v4488
      %v5144 = vadd.f32 %v1526, %v4491
      %v5145 = vadd.f32 %v1527, %v4493
      %v5146 = vadd.f32 %v1528, %v4496
      %v5147 = vadd.f32 %v1529, %v4498
      %v5148 = vadd.f32 %v1530, %v4501
      %v5149 = vadd.f32 %v1531, %v4503
      %v5150 = vadd.f32 %v1532, %v4506
      %v5151 = vadd.f32 %v1533, %v4508
      %v5152 = vadd.f32 %v1534, %v4511
      %v5153 = vadd.f32 %v1535, %v4513
      %v5154 = vadd.f32 %v1536, %v4516
      %v5155 = vadd.f32 %v1537, %v4518
      %v5156 = vadd.f32 %v1538, %v4521
      %v5157 = vadd.f32 %v1539, %v4523
      %v5158 = vadd.f32 %v1540, %v4526
      %v5159 = vadd.f32 %v1541, %v4528
      %v5160 = vadd.f32 %v1542, %v4531
      %v5161 = vadd.f32 %v1543, %v4533
      %v5162 = vadd.f32 %v1544, %v4536
      %v5163 = vadd.f32 %v1545, %v4538
      %v5164 = vadd.f32 %v1546, %v4541
      %v5165 = vadd.f32 %v1547, %v4543
      %v5166 = vadd.f32 %v1548, %v4546
      %v5167 = vadd.f32 %v1549, %v4548
      %v5168 = vadd.f32 %v1550, %v4551
      %v5169 = vadd.f32 %v1551, %v4553
      %v5170 = vadd.f32 %v1552, %v4556
      %v5171 = vadd.f32 %v1553, %v4558
      %v5172 = vadd.f32 %v1554, %v4561
      %v5173 = vadd.f32 %v1555, %v4563
      %v5174 = vadd.f32 %v1556, %v4566
      %v5175 = vadd.f32 %v1557, %v4568
      %v5176 = vadd.f32 %v1558, %v4571
      %v5177 = vadd.f32 %v1559, %v4573
      %v5178 = vadd.f32 %v1560, %v4576
      %v5179 = vadd.f32 %v1561, %v4578
      %v5180 = vadd.f32 %v1562, %v4581
      %v5181 = vadd.f32 %v1563, %v4583
      %v5182 = vadd.f32 %v1564, %v4586
      %v5183 = vadd.f32 %v1565, %v4588
      %v5184 = vadd.f32 %v1566, %v4591
      %v5185 = vadd.f32 %v1567, %v4593
      %v5186 = vadd.f32 %v1568, %v4596
      %v5187 = vadd.f32 %v1569, %v4598
      %v5188 = vadd.f32 %v1570, %v4601
      %v5189 = vadd.f32 %v1571, %v4603
      %v5190 = vadd.f32 %v1572, %v4606
      %v5191 = vadd.f32 %v1573, %v4608
      %v5192 = vadd.f32 %v1574, %v4611
      %v5193 = vadd.f32 %v1575, %v4613
      %v5194 = vadd.f32 %v1576, %v4616
      %v5195 = vadd.f32 %v1577, %v4618
      %v5196 = vadd.f32 %v1578, %v4621
      %v5197 = vadd.f32 %v1579, %v4623
      %v5198 = vadd.f32 %v1580, %v4626
      %v5199 = vadd.f32 %v1581, %v4628
      %v5200 = vadd.f32 %v1582, %v4631
      %v5201 = vadd.f32 %v1583, %v4633
      %v5202 = vadd.f32 %v1584, %v4636
      %v5203 = vadd.f32 %v1585, %v4638
      %v5204 = vadd.f32 %v1586, %v4641
      %v5205 = vadd.f32 %v1587, %v4643
      %v5206 = vadd.f32 %v1588, %v4646
      %v5207 = vadd.f32 %v1589, %v4648
      %v5208 = vadd.f32 %v1590, %v4651
      %v5209 = vadd.f32 %v1591, %v4653
      %v5210 = vadd.f32 %v1592, %v4656
      %v5211 = vadd.f32 %v1593, %v4658
      %v5212 = vadd.f32 %v1594, %v4661
      %v5213 = vadd.f32 %v1595, %v4663
      %v5214 = vadd.f32 %v1596, %v4666
      %v5215 = vadd.f32 %v1597, %v4668
      %v5216 = vadd.f32 %v1598, %v4671
      %v5217 = vadd.f32 %v1599, %v4673
      %v5218 = vadd.f32 %v1600, %v4676
      %v5219 = vadd.f32 %v1601, %v4678
      %v5220 = vadd.f32 %v1602, %v4681
      %v5221 = vadd.f32 %v1603, %v4683
      %v5222 = vadd.f32 %v1604, %v4686
      %v5223 = vadd.f32 %v1605, %v4688
      %v5224 = vadd.f32 %v1606, %v4691
      %v5225 = vadd.f32 %v1607, %v4693
      %v5226 = vadd.f32 %v1608, %v4696
      %v5227 = vadd.f32 %v1609, %v4698
      %v5228 = vadd.f32 %v1610, %v4701
      %v5229 = vadd.f32 %v1611, %v4703
      %v5230 = vadd.f32 %v1612, %v4706
      %v5231 = vadd.f32 %v1613, %v4708
      %v5232 = vadd.f32 %v1614, %v4711
      %v5233 = vadd.f32 %v1615, %v4713
      %v5234 = vadd.f32 %v1616, %v4716
      %v5235 = vadd.f32 %v1617, %v4718
      %v5236 = vadd.f32 %v1618, %v4721
      %v5237 = vadd.f32 %v1619, %v4723
      %v5238 = vadd.f32 %v1620, %v4726
      %v5239 = vadd.f32 %v1621, %v4728
      %v5240 = vadd.f32 %v1622, %v4731
      %v5241 = vadd.f32 %v1623, %v4733
      %v5242 = vadd.f32 %v1624, %v4736
      %v5243 = vadd.f32 %v1625, %v4738
      %v5244 = vadd.f32 %v1626, %v4741
      %v5245 = vadd.f32 %v1627, %v4743
      %v5246 = vadd.f32 %v1628, %v4746
      %v5247 = vadd.f32 %v1629, %v4748
      %v5248 = vadd.f32 %v1630, %v4751
      %v5249 = vadd.f32 %v1631, %v4753
      %v5250 = vadd.f32 %v1632, %v4756
      %v5251 = vadd.f32 %v1633, %v4758
      %v5252 = vadd.f32 %v1634, %v4761
      %v5253 = vadd.f32 %v1635, %v4763
      %v5254 = vadd.f32 %v1636, %v4766
      %v5255 = vadd.f32 %v1637, %v4768
      %v5256 = vadd.f32 %v1638, %v4771
      %v5257 = vadd.f32 %v1639, %v4773
      %v5258 = vadd.f32 %v1640, %v4776
      %v5259 = vadd.f32 %v1641, %v4778
      %5260 = vst.msk [vmem:[#allocation2] sm:$0xff] %vm198, %v4780
      %5261 = vst.msk [vmem:[#allocation2 + $0x8] sm:$0xff] %vm198, %v4781
      %5262 = vst.msk [vmem:[#allocation2 + $0x10] sm:$0xff] %vm198, %v4782
      %5263 = vst.msk [vmem:[#allocation2 + $0x18] sm:$0xff] %vm198, %v4783
      %5264 = vst.msk [vmem:[#allocation2 + $0x20] sm:$0xff] %vm198, %v4784
      %5265 = vst.msk [vmem:[#allocation2 + $0x28] sm:$0xff] %vm198, %v4785
      %5266 = vst.msk [vmem:[#allocation2 + $0x30] sm:$0xff] %vm198, %v4786
      %5267 = vst.msk [vmem:[#allocation2 + $0x38] sm:$0xff] %vm198, %v4787
      %5268 = vst.msk [vmem:[#allocation2 + $0x40] sm:$0xff] %vm198, %v4788
      %5269 = vst.msk [vmem:[#allocation2 + $0x48] sm:$0xff] %vm198, %v4789
      %5270 = vst.msk [vmem:[#allocation2 + $0x50] sm:$0xff] %vm198, %v4790
      %5271 = vst.msk [vmem:[#allocation2 + $0x58] sm:$0xff] %vm198, %v4791
      %5272 = vst.msk [vmem:[#allocation2 + $0x60] sm:$0xff] %vm198, %v4792
      %5273 = vst.msk [vmem:[#allocation2 + $0x68] sm:$0xff] %vm198, %v4793
      %5274 = vst.msk [vmem:[#allocation2 + $0x70] sm:$0xff] %vm198, %v4794
      %5275 = vst.msk [vmem:[#allocation2 + $0x78] sm:$0xff] %vm198, %v4795
      %5276 = vst.msk [vmem:[#allocation2 + $0x80] sm:$0xff] %vm198, %v4796
      %5277 = vst.msk [vmem:[#allocation2 + $0x88] sm:$0xff] %vm198, %v4797
      %5278 = vst.msk [vmem:[#allocation2 + $0x90] sm:$0xff] %vm198, %v4798
      %5279 = vst.msk [vmem:[#allocation2 + $0x98] sm:$0xff] %vm198, %v4799
      %5280 = vst.msk [vmem:[#allocation2 + $0xa0] sm:$0xff] %vm198, %v4800
      %5281 = vst.msk [vmem:[#allocation2 + $0xa8] sm:$0xff] %vm198, %v4801
      %5282 = vst.msk [vmem:[#allocation2 + $0xb0] sm:$0xff] %vm198, %v4802
      %5283 = vst.msk [vmem:[#allocation2 + $0xb8] sm:$0xff] %vm198, %v4803
      %5284 = vst.msk [vmem:[#allocation2 + $0xc0] sm:$0xff] %vm198, %v4804
      %5285 = vst.msk [vmem:[#allocation2 + $0xc8] sm:$0xff] %vm198, %v4805
      %5286 = vst.msk [vmem:[#allocation2 + $0xd0] sm:$0xff] %vm198, %v4806
      %5287 = vst.msk [vmem:[#allocation2 + $0xd8] sm:$0xff] %vm198, %v4807
      %5288 = vst.msk [vmem:[#allocation2 + $0xe0] sm:$0xff] %vm198, %v4808
      %5289 = vst.msk [vmem:[#allocation2 + $0xe8] sm:$0xff] %vm198, %v4809
      %5290 = vst.msk [vmem:[#allocation2 + $0xf0] sm:$0xff] %vm198, %v4810
      %5291 = vst.msk [vmem:[#allocation2 + $0xf8] sm:$0xff] %vm198, %v4811
      %5292 = vst.msk [vmem:[#allocation2 + $0x100] sm:$0xff] %vm198, %v4812
      %5293 = vst.msk [vmem:[#allocation2 + $0x108] sm:$0xff] %vm198, %v4813
      %5294 = vst.msk [vmem:[#allocation2 + $0x110] sm:$0xff] %vm198, %v4814
      %5295 = vst.msk [vmem:[#allocation2 + $0x118] sm:$0xff] %vm198, %v4815
      %5296 = vst.msk [vmem:[#allocation2 + $0x120] sm:$0xff] %vm198, %v4816
      %5297 = vst.msk [vmem:[#allocation2 + $0x128] sm:$0xff] %vm198, %v4817
      %5298 = vst.msk [vmem:[#allocation2 + $0x130] sm:$0xff] %vm198, %v4818
      %5299 = vst.msk [vmem:[#allocation2 + $0x138] sm:$0xff] %vm198, %v4819
      %5300 = vst.msk [vmem:[#allocation2 + $0x140] sm:$0xff] %vm198, %v4820
      %5301 = vst.msk [vmem:[#allocation2 + $0x148] sm:$0xff] %vm198, %v4821
      %5302 = vst.msk [vmem:[#allocation2 + $0x150] sm:$0xff] %vm198, %v4822
      %5303 = vst.msk [vmem:[#allocation2 + $0x158] sm:$0xff] %vm198, %v4823
      %5304 = vst.msk [vmem:[#allocation2 + $0x160] sm:$0xff] %vm198, %v4824
      %5305 = vst.msk [vmem:[#allocation2 + $0x168] sm:$0xff] %vm198, %v4825
      %5306 = vst.msk [vmem:[#allocation2 + $0x170] sm:$0xff] %vm198, %v4826
      %5307 = vst.msk [vmem:[#allocation2 + $0x178] sm:$0xff] %vm198, %v4827
      %5308 = vst.msk [vmem:[#allocation2 + $0x180] sm:$0xff] %vm198, %v4828
      %5309 = vst.msk [vmem:[#allocation2 + $0x188] sm:$0xff] %vm198, %v4829
      %5310 = vst.msk [vmem:[#allocation2 + $0x190] sm:$0xff] %vm198, %v4830
      %5311 = vst.msk [vmem:[#allocation2 + $0x198] sm:$0xff] %vm198, %v4831
      %5312 = vst.msk [vmem:[#allocation2 + $0x1a0] sm:$0xff] %vm198, %v4832
      %5313 = vst.msk [vmem:[#allocation2 + $0x1a8] sm:$0xff] %vm198, %v4833
      %5314 = vst.msk [vmem:[#allocation2 + $0x1b0] sm:$0xff] %vm198, %v4834
      %5315 = vst.msk [vmem:[#allocation2 + $0x1b8] sm:$0xff] %vm198, %v4835
      %5316 = vst.msk [vmem:[#allocation2 + $0x1c0] sm:$0xff] %vm198, %v4836
      %5317 = vst.msk [vmem:[#allocation2 + $0x1c8] sm:$0xff] %vm198, %v4837
      %5318 = vst.msk [vmem:[#allocation2 + $0x1d0] sm:$0xff] %vm198, %v4838
      %5319 = vst.msk [vmem:[#allocation2 + $0x1d8] sm:$0xff] %vm198, %v4839
      %5320 = vst.msk [vmem:[#allocation2 + $0x1e0] sm:$0xff] %vm198, %v4840
      %5321 = vst.msk [vmem:[#allocation2 + $0x1e8] sm:$0xff] %vm198, %v4841
      %5322 = vst.msk [vmem:[#allocation2 + $0x1f0] sm:$0xff] %vm198, %v4842
      %5323 = vst.msk [vmem:[#allocation2 + $0x1f8] sm:$0xff] %vm198, %v4843
      %5324 = vst.msk [vmem:[#allocation2 + $0x200] sm:$0xff] %vm198, %v4844
      %5325 = vst.msk [vmem:[#allocation2 + $0x208] sm:$0xff] %vm198, %v4845
      %5326 = vst.msk [vmem:[#allocation2 + $0x210] sm:$0xff] %vm198, %v4846
      %5327 = vst.msk [vmem:[#allocation2 + $0x218] sm:$0xff] %vm198, %v4847
      %5328 = vst.msk [vmem:[#allocation2 + $0x220] sm:$0xff] %vm198, %v4848
      %5329 = vst.msk [vmem:[#allocation2 + $0x228] sm:$0xff] %vm198, %v4849
      %5330 = vst.msk [vmem:[#allocation2 + $0x230] sm:$0xff] %vm198, %v4850
      %5331 = vst.msk [vmem:[#allocation2 + $0x238] sm:$0xff] %vm198, %v4851
      %5332 = vst.msk [vmem:[#allocation2 + $0x240] sm:$0xff] %vm198, %v4852
      %5333 = vst.msk [vmem:[#allocation2 + $0x248] sm:$0xff] %vm198, %v4853
      %5334 = vst.msk [vmem:[#allocation2 + $0x250] sm:$0xff] %vm198, %v4854
      %5335 = vst.msk [vmem:[#allocation2 + $0x258] sm:$0xff] %vm198, %v4855
      %5336 = vst.msk [vmem:[#allocation2 + $0x260] sm:$0xff] %vm198, %v4856
      %5337 = vst.msk [vmem:[#allocation2 + $0x268] sm:$0xff] %vm198, %v4857
      %5338 = vst.msk [vmem:[#allocation2 + $0x270] sm:$0xff] %vm198, %v4858
      %5339 = vst.msk [vmem:[#allocation2 + $0x278] sm:$0xff] %vm198, %v4859
      %5340 = vst.msk [vmem:[#allocation2 + $0x280] sm:$0xff] %vm198, %v4860
      %5341 = vst.msk [vmem:[#allocation2 + $0x288] sm:$0xff] %vm198, %v4861
      %5342 = vst.msk [vmem:[#allocation2 + $0x290] sm:$0xff] %vm198, %v4862
      %5343 = vst.msk [vmem:[#allocation2 + $0x298] sm:$0xff] %vm198, %v4863
      %5344 = vst.msk [vmem:[#allocation2 + $0x2a0] sm:$0xff] %vm198, %v4864
      %5345 = vst.msk [vmem:[#allocation2 + $0x2a8] sm:$0xff] %vm198, %v4865
      %5346 = vst.msk [vmem:[#allocation2 + $0x2b0] sm:$0xff] %vm198, %v4866
      %5347 = vst.msk [vmem:[#allocation2 + $0x2b8] sm:$0xff] %vm198, %v4867
      %5348 = vst.msk [vmem:[#allocation2 + $0x2c0] sm:$0xff] %vm198, %v4868
      %5349 = vst.msk [vmem:[#allocation2 + $0x2c8] sm:$0xff] %vm198, %v4869
      %5350 = vst.msk [vmem:[#allocation2 + $0x2d0] sm:$0xff] %vm198, %v4870
      %5351 = vst.msk [vmem:[#allocation2 + $0x2d8] sm:$0xff] %vm198, %v4871
      %5352 = vst.msk [vmem:[#allocation2 + $0x2e0] sm:$0xff] %vm198, %v4872
      %5353 = vst.msk [vmem:[#allocation2 + $0x2e8] sm:$0xff] %vm198, %v4873
      %5354 = vst.msk [vmem:[#allocation2 + $0x2f0] sm:$0xff] %vm198, %v4874
      %5355 = vst.msk [vmem:[#allocation2 + $0x2f8] sm:$0xff] %vm198, %v4875
      %5356 = vst.msk [vmem:[#allocation2 + $0x300] sm:$0xff] %vm198, %v4876
      %5357 = vst.msk [vmem:[#allocation2 + $0x308] sm:$0xff] %vm198, %v4877
      %5358 = vst.msk [vmem:[#allocation2 + $0x310] sm:$0xff] %vm198, %v4878
      %5359 = vst.msk [vmem:[#allocation2 + $0x318] sm:$0xff] %vm198, %v4879
      %5360 = vst.msk [vmem:[#allocation2 + $0x320] sm:$0xff] %vm198, %v4880
      %5361 = vst.msk [vmem:[#allocation2 + $0x328] sm:$0xff] %vm198, %v4881
      %5362 = vst.msk [vmem:[#allocation2 + $0x330] sm:$0xff] %vm198, %v4882
      %5363 = vst.msk [vmem:[#allocation2 + $0x338] sm:$0xff] %vm198, %v4883
      %5364 = vst.msk [vmem:[#allocation2 + $0x340] sm:$0xff] %vm198, %v4884
      %5365 = vst.msk [vmem:[#allocation2 + $0x348] sm:$0xff] %vm198, %v4885
      %5366 = vst.msk [vmem:[#allocation2 + $0x350] sm:$0xff] %vm198, %v4886
      %5367 = vst.msk [vmem:[#allocation2 + $0x358] sm:$0xff] %vm198, %v4887
      %5368 = vst.msk [vmem:[#allocation2 + $0x360] sm:$0xff] %vm198, %v4888
      %5369 = vst.msk [vmem:[#allocation2 + $0x368] sm:$0xff] %vm198, %v4889
      %5370 = vst.msk [vmem:[#allocation2 + $0x370] sm:$0xff] %vm198, %v4890
      %5371 = vst.msk [vmem:[#allocation2 + $0x378] sm:$0xff] %vm198, %v4891
      %5372 = vst.msk [vmem:[#allocation2 + $0x380] sm:$0xff] %vm198, %v4892
      %5373 = vst.msk [vmem:[#allocation2 + $0x388] sm:$0xff] %vm198, %v4893
      %5374 = vst.msk [vmem:[#allocation2 + $0x390] sm:$0xff] %vm198, %v4894
      %5375 = vst.msk [vmem:[#allocation2 + $0x398] sm:$0xff] %vm198, %v4895
      %5376 = vst.msk [vmem:[#allocation2 + $0x3a0] sm:$0xff] %vm198, %v4896
      %5377 = vst.msk [vmem:[#allocation2 + $0x3a8] sm:$0xff] %vm198, %v4897
      %5378 = vst.msk [vmem:[#allocation2 + $0x3b0] sm:$0xff] %vm198, %v4898
      %5379 = vst.msk [vmem:[#allocation2 + $0x3b8] sm:$0xff] %vm198, %v4899
      %5380 = vst.msk [vmem:[#allocation2 + $0x3c0] sm:$0xff] %vm198, %v4900
      %5381 = vst.msk [vmem:[#allocation2 + $0x3c8] sm:$0xff] %vm198, %v4901
      %5382 = vst.msk [vmem:[#allocation2 + $0x3d0] sm:$0xff] %vm198, %v4902
      %5383 = vst.msk [vmem:[#allocation2 + $0x3d8] sm:$0xff] %vm198, %v4903
      %5384 = vst.msk [vmem:[#allocation2 + $0x3e0] sm:$0xff] %vm198, %v4904
      %5385 = vst.msk [vmem:[#allocation2 + $0x3e8] sm:$0xff] %vm198, %v4905
      %5386 = vst.msk [vmem:[#allocation2 + $0x3f0] sm:$0xff] %vm198, %v4906
      %5387 = vst.msk [vmem:[#allocation2 + $0x3f8] sm:$0xff] %vm198, %v4907
      %5388 = vst.msk [vmem:[#allocation2 + $0x400] sm:$0xff] %vm198, %v4908
      %5389 = vst.msk [vmem:[#allocation2 + $0x408] sm:$0xff] %vm198, %v4909
      %5390 = vst.msk [vmem:[#allocation2 + $0x410] sm:$0xff] %vm198, %v4910
      %5391 = vst.msk [vmem:[#allocation2 + $0x418] sm:$0xff] %vm198, %v4911
      %5392 = vst.msk [vmem:[#allocation2 + $0x420] sm:$0xff] %vm198, %v4912
      %5393 = vst.msk [vmem:[#allocation2 + $0x428] sm:$0xff] %vm198, %v4913
      %5394 = vst.msk [vmem:[#allocation2 + $0x430] sm:$0xff] %vm198, %v4914
      %5395 = vst.msk [vmem:[#allocation2 + $0x438] sm:$0xff] %vm198, %v4915
      %5396 = vst.msk [vmem:[#allocation2 + $0x440] sm:$0xff] %vm198, %v4916
      %5397 = vst.msk [vmem:[#allocation2 + $0x448] sm:$0xff] %vm198, %v4917
      %5398 = vst.msk [vmem:[#allocation2 + $0x450] sm:$0xff] %vm198, %v4918
      %5399 = vst.msk [vmem:[#allocation2 + $0x458] sm:$0xff] %vm198, %v4919
      %5400 = vst.msk [vmem:[#allocation2 + $0x460] sm:$0xff] %vm198, %v4920
      %5401 = vst.msk [vmem:[#allocation2 + $0x468] sm:$0xff] %vm198, %v4921
      %5402 = vst.msk [vmem:[#allocation2 + $0x470] sm:$0xff] %vm198, %v4922
      %5403 = vst.msk [vmem:[#allocation2 + $0x478] sm:$0xff] %vm198, %v4923
      %5404 = vst.msk [vmem:[#allocation2 + $0x480] sm:$0xff] %vm198, %v4924
      %5405 = vst.msk [vmem:[#allocation2 + $0x488] sm:$0xff] %vm198, %v4925
      %5406 = vst.msk [vmem:[#allocation2 + $0x490] sm:$0xff] %vm198, %v4926
      %5407 = vst.msk [vmem:[#allocation2 + $0x498] sm:$0xff] %vm198, %v4927
      %5408 = vst.msk [vmem:[#allocation2 + $0x4a0] sm:$0xff] %vm198, %v4928
      %5409 = vst.msk [vmem:[#allocation2 + $0x4a8] sm:$0xff] %vm198, %v4929
      %5410 = vst.msk [vmem:[#allocation2 + $0x4b0] sm:$0xff] %vm198, %v4930
      %5411 = vst.msk [vmem:[#allocation2 + $0x4b8] sm:$0xff] %vm198, %v4931
      %5412 = vst.msk [vmem:[#allocation2 + $0x4c0] sm:$0xff] %vm198, %v4932
      %5413 = vst.msk [vmem:[#allocation2 + $0x4c8] sm:$0xff] %vm198, %v4933
      %5414 = vst.msk [vmem:[#allocation2 + $0x4d0] sm:$0xff] %vm198, %v4934
      %5415 = vst.msk [vmem:[#allocation2 + $0x4d8] sm:$0xff] %vm198, %v4935
      %5416 = vst.msk [vmem:[#allocation2 + $0x4e0] sm:$0xff] %vm198, %v4936
      %5417 = vst.msk [vmem:[#allocation2 + $0x4e8] sm:$0xff] %vm198, %v4937
      %5418 = vst.msk [vmem:[#allocation2 + $0x4f0] sm:$0xff] %vm198, %v4938
      %5419 = vst.msk [vmem:[#allocation2 + $0x4f8] sm:$0xff] %vm198, %v4939
      %5420 = vst.msk [vmem:[#allocation2 + $0x500] sm:$0xff] %vm198, %v4940
      %5421 = vst.msk [vmem:[#allocation2 + $0x508] sm:$0xff] %vm198, %v4941
      %5422 = vst.msk [vmem:[#allocation2 + $0x510] sm:$0xff] %vm198, %v4942
      %5423 = vst.msk [vmem:[#allocation2 + $0x518] sm:$0xff] %vm198, %v4943
      %5424 = vst.msk [vmem:[#allocation2 + $0x520] sm:$0xff] %vm198, %v4944
      %5425 = vst.msk [vmem:[#allocation2 + $0x528] sm:$0xff] %vm198, %v4945
      %5426 = vst.msk [vmem:[#allocation2 + $0x530] sm:$0xff] %vm198, %v4946
      %5427 = vst.msk [vmem:[#allocation2 + $0x538] sm:$0xff] %vm198, %v4947
      %5428 = vst.msk [vmem:[#allocation2 + $0x540] sm:$0xff] %vm198, %v4948
      %5429 = vst.msk [vmem:[#allocation2 + $0x548] sm:$0xff] %vm198, %v4949
      %5430 = vst.msk [vmem:[#allocation2 + $0x550] sm:$0xff] %vm198, %v4950
      %5431 = vst.msk [vmem:[#allocation2 + $0x558] sm:$0xff] %vm198, %v4951
      %5432 = vst.msk [vmem:[#allocation2 + $0x560] sm:$0xff] %vm198, %v4952
      %5433 = vst.msk [vmem:[#allocation2 + $0x568] sm:$0xff] %vm198, %v4953
      %5434 = vst.msk [vmem:[#allocation2 + $0x570] sm:$0xff] %vm198, %v4954
      %5435 = vst.msk [vmem:[#allocation2 + $0x578] sm:$0xff] %vm198, %v4955
      %5436 = vst.msk [vmem:[#allocation2 + $0x580] sm:$0xff] %vm198, %v4956
      %5437 = vst.msk [vmem:[#allocation2 + $0x588] sm:$0xff] %vm198, %v4957
      %5438 = vst.msk [vmem:[#allocation2 + $0x590] sm:$0xff] %vm198, %v4958
      %5439 = vst.msk [vmem:[#allocation2 + $0x598] sm:$0xff] %vm198, %v4959
      %5440 = vst.msk [vmem:[#allocation2 + $0x5a0] sm:$0xff] %vm198, %v4960
      %5441 = vst.msk [vmem:[#allocation2 + $0x5a8] sm:$0xff] %vm198, %v4961
      %5442 = vst.msk [vmem:[#allocation2 + $0x5b0] sm:$0xff] %vm198, %v4962
      %5443 = vst.msk [vmem:[#allocation2 + $0x5b8] sm:$0xff] %vm198, %v4963
      %5444 = vst.msk [vmem:[#allocation2 + $0x5c0] sm:$0xff] %vm198, %v4964
      %5445 = vst.msk [vmem:[#allocation2 + $0x5c8] sm:$0xff] %vm198, %v4965
      %5446 = vst.msk [vmem:[#allocation2 + $0x5d0] sm:$0xff] %vm198, %v4966
      %5447 = vst.msk [vmem:[#allocation2 + $0x5d8] sm:$0xff] %vm198, %v4967
      %5448 = vst.msk [vmem:[#allocation2 + $0x5e0] sm:$0xff] %vm198, %v4968
      %5449 = vst.msk [vmem:[#allocation2 + $0x5e8] sm:$0xff] %vm198, %v4969
      %5450 = vst.msk [vmem:[#allocation2 + $0x5f0] sm:$0xff] %vm198, %v4970
      %5451 = vst.msk [vmem:[#allocation2 + $0x5f8] sm:$0xff] %vm198, %v4971
      %5452 = vst.msk [vmem:[#allocation2 + $0x600] sm:$0xff] %vm198, %v4972
      %5453 = vst.msk [vmem:[#allocation2 + $0x608] sm:$0xff] %vm198, %v4973
      %5454 = vst.msk [vmem:[#allocation2 + $0x610] sm:$0xff] %vm198, %v4974
      %5455 = vst.msk [vmem:[#allocation2 + $0x618] sm:$0xff] %vm198, %v4975
      %5456 = vst.msk [vmem:[#allocation2 + $0x620] sm:$0xff] %vm198, %v4976
      %5457 = vst.msk [vmem:[#allocation2 + $0x628] sm:$0xff] %vm198, %v4977
      %5458 = vst.msk [vmem:[#allocation2 + $0x630] sm:$0xff] %vm198, %v4978
      %5459 = vst.msk [vmem:[#allocation2 + $0x638] sm:$0xff] %vm198, %v4979
      %5460 = vst.msk [vmem:[#allocation2 + $0x640] sm:$0xff] %vm198, %v4980
      %5461 = vst.msk [vmem:[#allocation2 + $0x648] sm:$0xff] %vm198, %v4981
      %5462 = vst.msk [vmem:[#allocation2 + $0x650] sm:$0xff] %vm198, %v4982
      %5463 = vst.msk [vmem:[#allocation2 + $0x658] sm:$0xff] %vm198, %v4983
      %5464 = vst.msk [vmem:[#allocation2 + $0x660] sm:$0xff] %vm198, %v4984
      %5465 = vst.msk [vmem:[#allocation2 + $0x668] sm:$0xff] %vm198, %v4985
      %5466 = vst.msk [vmem:[#allocation2 + $0x670] sm:$0xff] %vm198, %v4986
      %5467 = vst.msk [vmem:[#allocation2 + $0x678] sm:$0xff] %vm198, %v4987
      %5468 = vst.msk [vmem:[#allocation2 + $0x680] sm:$0xff] %vm198, %v4988
      %5469 = vst.msk [vmem:[#allocation2 + $0x688] sm:$0xff] %vm198, %v4989
      %5470 = vst.msk [vmem:[#allocation2 + $0x690] sm:$0xff] %vm198, %v4990
      %5471 = vst.msk [vmem:[#allocation2 + $0x698] sm:$0xff] %vm198, %v4991
      %5472 = vst.msk [vmem:[#allocation2 + $0x6a0] sm:$0xff] %vm198, %v4992
      %5473 = vst.msk [vmem:[#allocation2 + $0x6a8] sm:$0xff] %vm198, %v4993
      %5474 = vst.msk [vmem:[#allocation2 + $0x6b0] sm:$0xff] %vm198, %v4994
      %5475 = vst.msk [vmem:[#allocation2 + $0x6b8] sm:$0xff] %vm198, %v4995
      %5476 = vst.msk [vmem:[#allocation2 + $0x6c0] sm:$0xff] %vm198, %v4996
      %5477 = vst.msk [vmem:[#allocation2 + $0x6c8] sm:$0xff] %vm198, %v4997
      %5478 = vst.msk [vmem:[#allocation2 + $0x6d0] sm:$0xff] %vm198, %v4998
      %5479 = vst.msk [vmem:[#allocation2 + $0x6d8] sm:$0xff] %vm198, %v4999
      %5480 = vst.msk [vmem:[#allocation2 + $0x6e0] sm:$0xff] %vm198, %v5000
      %5481 = vst.msk [vmem:[#allocation2 + $0x6e8] sm:$0xff] %vm198, %v5001
      %5482 = vst.msk [vmem:[#allocation2 + $0x6f0] sm:$0xff] %vm198, %v5002
      %5483 = vst.msk [vmem:[#allocation2 + $0x6f8] sm:$0xff] %vm198, %v5003
      %5484 = vst.msk [vmem:[#allocation2 + $0x700] sm:$0xff] %vm198, %v5004
      %5485 = vst.msk [vmem:[#allocation2 + $0x708] sm:$0xff] %vm198, %v5005
      %5486 = vst.msk [vmem:[#allocation2 + $0x710] sm:$0xff] %vm198, %v5006
      %5487 = vst.msk [vmem:[#allocation2 + $0x718] sm:$0xff] %vm198, %v5007
      %5488 = vst.msk [vmem:[#allocation2 + $0x720] sm:$0xff] %vm198, %v5008
      %5489 = vst.msk [vmem:[#allocation2 + $0x728] sm:$0xff] %vm198, %v5009
      %5490 = vst.msk [vmem:[#allocation2 + $0x730] sm:$0xff] %vm198, %v5010
      %5491 = vst.msk [vmem:[#allocation2 + $0x738] sm:$0xff] %vm198, %v5011
      %5492 = vst.msk [vmem:[#allocation2 + $0x740] sm:$0xff] %vm198, %v5012
      %5493 = vst.msk [vmem:[#allocation2 + $0x748] sm:$0xff] %vm198, %v5013
      %5494 = vst.msk [vmem:[#allocation2 + $0x750] sm:$0xff] %vm198, %v5014
      %5495 = vst.msk [vmem:[#allocation2 + $0x758] sm:$0xff] %vm198, %v5015
      %5496 = vst.msk [vmem:[#allocation2 + $0x760] sm:$0xff] %vm198, %v5016
      %5497 = vst.msk [vmem:[#allocation2 + $0x768] sm:$0xff] %vm198, %v5017
      %5498 = vst.msk [vmem:[#allocation2 + $0x770] sm:$0xff] %vm198, %v5018
      %5499 = vst.msk [vmem:[#allocation2 + $0x778] sm:$0xff] %vm198, %v5019
      %5500 = vst.msk [vmem:[#allocation2 + $0x780] sm:$0xff] %vm198, %v5020
      %5501 = vst.msk [vmem:[#allocation2 + $0x788] sm:$0xff] %vm198, %v5021
      %5502 = vst.msk [vmem:[#allocation2 + $0x790] sm:$0xff] %vm198, %v5022
      %5503 = vst.msk [vmem:[#allocation2 + $0x798] sm:$0xff] %vm198, %v5023
      %5504 = vst.msk [vmem:[#allocation2 + $0x7a0] sm:$0xff] %vm198, %v5024
      %5505 = vst.msk [vmem:[#allocation2 + $0x7a8] sm:$0xff] %vm198, %v5025
      %5506 = vst.msk [vmem:[#allocation2 + $0x7b0] sm:$0xff] %vm198, %v5026
      %5507 = vst.msk [vmem:[#allocation2 + $0x7b8] sm:$0xff] %vm198, %v5027
      %5508 = vst.msk [vmem:[#allocation2 + $0x7c0] sm:$0xff] %vm198, %v5028
      %5509 = vst.msk [vmem:[#allocation2 + $0x7c8] sm:$0xff] %vm198, %v5029
      %5510 = vst.msk [vmem:[#allocation2 + $0x7d0] sm:$0xff] %vm198, %v5030
      %5511 = vst.msk [vmem:[#allocation2 + $0x7d8] sm:$0xff] %vm198, %v5031
      %5512 = vst.msk [vmem:[#allocation2 + $0x7e0] sm:$0xff] %vm198, %v5032
      %5513 = vst.msk [vmem:[#allocation2 + $0x7e8] sm:$0xff] %vm198, %v5033
      %5514 = vst.msk [vmem:[#allocation2 + $0x7f0] sm:$0xff] %vm198, %v5034
      %5515 = vst.msk [vmem:[#allocation2 + $0x7f8] sm:$0xff] %vm198, %v5035
      %5516 = vst.msk [vmem:[#allocation2 + $0x800] sm:$0xff] %vm198, %v5036
      %5517 = vst.msk [vmem:[#allocation2 + $0x808] sm:$0xff] %vm198, %v5037
      %5518 = vst.msk [vmem:[#allocation2 + $0x810] sm:$0xff] %vm198, %v5038
      %5519 = vst.msk [vmem:[#allocation2 + $0x818] sm:$0xff] %vm198, %v5039
      %5520 = vst.msk [vmem:[#allocation2 + $0x820] sm:$0xff] %vm198, %v5040
      %5521 = vst.msk [vmem:[#allocation2 + $0x828] sm:$0xff] %vm198, %v5041
      %5522 = vst.msk [vmem:[#allocation2 + $0x830] sm:$0xff] %vm198, %v5042
      %5523 = vst.msk [vmem:[#allocation2 + $0x838] sm:$0xff] %vm198, %v5043
      %5524 = vst.msk [vmem:[#allocation2 + $0x840] sm:$0xff] %vm198, %v5044
      %5525 = vst.msk [vmem:[#allocation2 + $0x848] sm:$0xff] %vm198, %v5045
      %5526 = vst.msk [vmem:[#allocation2 + $0x850] sm:$0xff] %vm198, %v5046
      %5527 = vst.msk [vmem:[#allocation2 + $0x858] sm:$0xff] %vm198, %v5047
      %5528 = vst.msk [vmem:[#allocation2 + $0x860] sm:$0xff] %vm198, %v5048
      %5529 = vst.msk [vmem:[#allocation2 + $0x868] sm:$0xff] %vm198, %v5049
      %5530 = vst.msk [vmem:[#allocation2 + $0x870] sm:$0xff] %vm198, %v5050
      %5531 = vst.msk [vmem:[#allocation2 + $0x878] sm:$0xff] %vm198, %v5051
      %5532 = vst.msk [vmem:[#allocation2 + $0x880] sm:$0xff] %vm198, %v5052
      %5533 = vst.msk [vmem:[#allocation2 + $0x888] sm:$0xff] %vm198, %v5053
      %5534 = vst.msk [vmem:[#allocation2 + $0x890] sm:$0xff] %vm198, %v5054
      %5535 = vst.msk [vmem:[#allocation2 + $0x898] sm:$0xff] %vm198, %v5055
      %5536 = vst.msk [vmem:[#allocation2 + $0x8a0] sm:$0xff] %vm198, %v5056
      %5537 = vst.msk [vmem:[#allocation2 + $0x8a8] sm:$0xff] %vm198, %v5057
      %5538 = vst.msk [vmem:[#allocation2 + $0x8b0] sm:$0xff] %vm198, %v5058
      %5539 = vst.msk [vmem:[#allocation2 + $0x8b8] sm:$0xff] %vm198, %v5059
      %5540 = vst.msk [vmem:[#allocation2 + $0x8c0] sm:$0xff] %vm198, %v5060
      %5541 = vst.msk [vmem:[#allocation2 + $0x8c8] sm:$0xff] %vm198, %v5061
      %5542 = vst.msk [vmem:[#allocation2 + $0x8d0] sm:$0xff] %vm198, %v5062
      %5543 = vst.msk [vmem:[#allocation2 + $0x8d8] sm:$0xff] %vm198, %v5063
      %5544 = vst.msk [vmem:[#allocation2 + $0x8e0] sm:$0xff] %vm198, %v5064
      %5545 = vst.msk [vmem:[#allocation2 + $0x8e8] sm:$0xff] %vm198, %v5065
      %5546 = vst.msk [vmem:[#allocation2 + $0x8f0] sm:$0xff] %vm198, %v5066
      %5547 = vst.msk [vmem:[#allocation2 + $0x8f8] sm:$0xff] %vm198, %v5067
      %5548 = vst.msk [vmem:[#allocation2 + $0x900] sm:$0xff] %vm198, %v5068
      %5549 = vst.msk [vmem:[#allocation2 + $0x908] sm:$0xff] %vm198, %v5069
      %5550 = vst.msk [vmem:[#allocation2 + $0x910] sm:$0xff] %vm198, %v5070
      %5551 = vst.msk [vmem:[#allocation2 + $0x918] sm:$0xff] %vm198, %v5071
      %5552 = vst.msk [vmem:[#allocation2 + $0x920] sm:$0xff] %vm198, %v5072
      %5553 = vst.msk [vmem:[#allocation2 + $0x928] sm:$0xff] %vm198, %v5073
      %5554 = vst.msk [vmem:[#allocation2 + $0x930] sm:$0xff] %vm198, %v5074
      %5555 = vst.msk [vmem:[#allocation2 + $0x938] sm:$0xff] %vm198, %v5075
      %5556 = vst.msk [vmem:[#allocation2 + $0x940] sm:$0xff] %vm198, %v5076
      %5557 = vst.msk [vmem:[#allocation2 + $0x948] sm:$0xff] %vm198, %v5077
      %5558 = vst.msk [vmem:[#allocation2 + $0x950] sm:$0xff] %vm198, %v5078
      %5559 = vst.msk [vmem:[#allocation2 + $0x958] sm:$0xff] %vm198, %v5079
      %5560 = vst.msk [vmem:[#allocation2 + $0x960] sm:$0xff] %vm198, %v5080
      %5561 = vst.msk [vmem:[#allocation2 + $0x968] sm:$0xff] %vm198, %v5081
      %5562 = vst.msk [vmem:[#allocation2 + $0x970] sm:$0xff] %vm198, %v5082
      %5563 = vst.msk [vmem:[#allocation2 + $0x978] sm:$0xff] %vm198, %v5083
      %5564 = vst.msk [vmem:[#allocation2 + $0x980] sm:$0xff] %vm198, %v5084
      %5565 = vst.msk [vmem:[#allocation2 + $0x988] sm:$0xff] %vm198, %v5085
      %5566 = vst.msk [vmem:[#allocation2 + $0x990] sm:$0xff] %vm198, %v5086
      %5567 = vst.msk [vmem:[#allocation2 + $0x998] sm:$0xff] %vm198, %v5087
      %5568 = vst.msk [vmem:[#allocation2 + $0x9a0] sm:$0xff] %vm198, %v5088
      %5569 = vst.msk [vmem:[#allocation2 + $0x9a8] sm:$0xff] %vm198, %v5089
      %5570 = vst.msk [vmem:[#allocation2 + $0x9b0] sm:$0xff] %vm198, %v5090
      %5571 = vst.msk [vmem:[#allocation2 + $0x9b8] sm:$0xff] %vm198, %v5091
      %5572 = vst.msk [vmem:[#allocation2 + $0x9c0] sm:$0xff] %vm198, %v5092
      %5573 = vst.msk [vmem:[#allocation2 + $0x9c8] sm:$0xff] %vm198, %v5093
      %5574 = vst.msk [vmem:[#allocation2 + $0x9d0] sm:$0xff] %vm198, %v5094
      %5575 = vst.msk [vmem:[#allocation2 + $0x9d8] sm:$0xff] %vm198, %v5095
      %5576 = vst.msk [vmem:[#allocation2 + $0x9e0] sm:$0xff] %vm198, %v5096
      %5577 = vst.msk [vmem:[#allocation2 + $0x9e8] sm:$0xff] %vm198, %v5097
      %5578 = vst.msk [vmem:[#allocation2 + $0x9f0] sm:$0xff] %vm198, %v5098
      %5579 = vst.msk [vmem:[#allocation2 + $0x9f8] sm:$0xff] %vm198, %v5099
      %5580 = vst.msk [vmem:[#allocation2 + $0xa00] sm:$0xff] %vm198, %v5100
      %5581 = vst.msk [vmem:[#allocation2 + $0xa08] sm:$0xff] %vm198, %v5101
      %5582 = vst.msk [vmem:[#allocation2 + $0xa10] sm:$0xff] %vm198, %v5102
      %5583 = vst.msk [vmem:[#allocation2 + $0xa18] sm:$0xff] %vm198, %v5103
      %5584 = vst.msk [vmem:[#allocation2 + $0xa20] sm:$0xff] %vm198, %v5104
      %5585 = vst.msk [vmem:[#allocation2 + $0xa28] sm:$0xff] %vm198, %v5105
      %5586 = vst.msk [vmem:[#allocation2 + $0xa30] sm:$0xff] %vm198, %v5106
      %5587 = vst.msk [vmem:[#allocation2 + $0xa38] sm:$0xff] %vm198, %v5107
      %5588 = vst.msk [vmem:[#allocation2 + $0xa40] sm:$0xff] %vm198, %v5108
      %5589 = vst.msk [vmem:[#allocation2 + $0xa48] sm:$0xff] %vm198, %v5109
      %5590 = vst.msk [vmem:[#allocation2 + $0xa50] sm:$0xff] %vm198, %v5110
      %5591 = vst.msk [vmem:[#allocation2 + $0xa58] sm:$0xff] %vm198, %v5111
      %5592 = vst.msk [vmem:[#allocation2 + $0xa60] sm:$0xff] %vm198, %v5112
      %5593 = vst.msk [vmem:[#allocation2 + $0xa68] sm:$0xff] %vm198, %v5113
      %5594 = vst.msk [vmem:[#allocation2 + $0xa70] sm:$0xff] %vm198, %v5114
      %5595 = vst.msk [vmem:[#allocation2 + $0xa78] sm:$0xff] %vm198, %v5115
      %5596 = vst.msk [vmem:[#allocation2 + $0xa80] sm:$0xff] %vm198, %v5116
      %5597 = vst.msk [vmem:[#allocation2 + $0xa88] sm:$0xff] %vm198, %v5117
      %5598 = vst.msk [vmem:[#allocation2 + $0xa90] sm:$0xff] %vm198, %v5118
      %5599 = vst.msk [vmem:[#allocation2 + $0xa98] sm:$0xff] %vm198, %v5119
      %5600 = vst.msk [vmem:[#allocation2 + $0xaa0] sm:$0xff] %vm198, %v5120
      %5601 = vst.msk [vmem:[#allocation2 + $0xaa8] sm:$0xff] %vm198, %v5121
      %5602 = vst.msk [vmem:[#allocation2 + $0xab0] sm:$0xff] %vm198, %v5122
      %5603 = vst.msk [vmem:[#allocation2 + $0xab8] sm:$0xff] %vm198, %v5123
      %5604 = vst.msk [vmem:[#allocation2 + $0xac0] sm:$0xff] %vm198, %v5124
      %5605 = vst.msk [vmem:[#allocation2 + $0xac8] sm:$0xff] %vm198, %v5125
      %5606 = vst.msk [vmem:[#allocation2 + $0xad0] sm:$0xff] %vm198, %v5126
      %5607 = vst.msk [vmem:[#allocation2 + $0xad8] sm:$0xff] %vm198, %v5127
      %5608 = vst.msk [vmem:[#allocation2 + $0xae0] sm:$0xff] %vm198, %v5128
      %5609 = vst.msk [vmem:[#allocation2 + $0xae8] sm:$0xff] %vm198, %v5129
      %5610 = vst.msk [vmem:[#allocation2 + $0xaf0] sm:$0xff] %vm198, %v5130
      %5611 = vst.msk [vmem:[#allocation2 + $0xaf8] sm:$0xff] %vm198, %v5131
      %5612 = vst.msk [vmem:[#allocation2 + $0xb00] sm:$0xff] %vm198, %v5132
      %5613 = vst.msk [vmem:[#allocation2 + $0xb08] sm:$0xff] %vm198, %v5133
      %5614 = vst.msk [vmem:[#allocation2 + $0xb10] sm:$0xff] %vm198, %v5134
      %5615 = vst.msk [vmem:[#allocation2 + $0xb18] sm:$0xff] %vm198, %v5135
      %5616 = vst.msk [vmem:[#allocation2 + $0xb20] sm:$0xff] %vm198, %v5136
      %5617 = vst.msk [vmem:[#allocation2 + $0xb28] sm:$0xff] %vm198, %v5137
      %5618 = vst.msk [vmem:[#allocation2 + $0xb30] sm:$0xff] %vm198, %v5138
      %5619 = vst.msk [vmem:[#allocation2 + $0xb38] sm:$0xff] %vm198, %v5139
      %5620 = vst.msk [vmem:[#allocation2 + $0xb40] sm:$0xff] %vm198, %v5140
      %5621 = vst.msk [vmem:[#allocation2 + $0xb48] sm:$0xff] %vm198, %v5141
      %5622 = vst.msk [vmem:[#allocation2 + $0xb50] sm:$0xff] %vm198, %v5142
      %5623 = vst.msk [vmem:[#allocation2 + $0xb58] sm:$0xff] %vm198, %v5143
      %5624 = vst.msk [vmem:[#allocation2 + $0xb60] sm:$0xff] %vm198, %v5144
      %5625 = vst.msk [vmem:[#allocation2 + $0xb68] sm:$0xff] %vm198, %v5145
      %5626 = vst.msk [vmem:[#allocation2 + $0xb70] sm:$0xff] %vm198, %v5146
      %5627 = vst.msk [vmem:[#allocation2 + $0xb78] sm:$0xff] %vm198, %v5147
      %5628 = vst.msk [vmem:[#allocation2 + $0xb80] sm:$0xff] %vm198, %v5148
      %5629 = vst.msk [vmem:[#allocation2 + $0xb88] sm:$0xff] %vm198, %v5149
      %5630 = vst.msk [vmem:[#allocation2 + $0xb90] sm:$0xff] %vm198, %v5150
      %5631 = vst.msk [vmem:[#allocation2 + $0xb98] sm:$0xff] %vm198, %v5151
      %5632 = vst.msk [vmem:[#allocation2 + $0xba0] sm:$0xff] %vm198, %v5152
      %5633 = vst.msk [vmem:[#allocation2 + $0xba8] sm:$0xff] %vm198, %v5153
      %5634 = vst.msk [vmem:[#allocation2 + $0xbb0] sm:$0xff] %vm198, %v5154
      %5635 = vst.msk [vmem:[#allocation2 + $0xbb8] sm:$0xff] %vm198, %v5155
      %5636 = vst.msk [vmem:[#allocation2 + $0xbc0] sm:$0xff] %vm198, %v5156
      %5637 = vst.msk [vmem:[#allocation2 + $0xbc8] sm:$0xff] %vm198, %v5157
      %5638 = vst.msk [vmem:[#allocation2 + $0xbd0] sm:$0xff] %vm198, %v5158
      %5639 = vst.msk [vmem:[#allocation2 + $0xbd8] sm:$0xff] %vm198, %v5159
      %5640 = vst.msk [vmem:[#allocation2 + $0xbe0] sm:$0xff] %vm198, %v5160
      %5641 = vst.msk [vmem:[#allocation2 + $0xbe8] sm:$0xff] %vm198, %v5161
      %5642 = vst.msk [vmem:[#allocation2 + $0xbf0] sm:$0xff] %vm198, %v5162
      %5643 = vst.msk [vmem:[#allocation2 + $0xbf8] sm:$0xff] %vm198, %v5163
      %5644 = vst.msk [vmem:[#allocation2 + $0xc00] sm:$0xff] %vm198, %v5164
      %5645 = vst.msk [vmem:[#allocation2 + $0xc08] sm:$0xff] %vm198, %v5165
      %5646 = vst.msk [vmem:[#allocation2 + $0xc10] sm:$0xff] %vm198, %v5166
      %5647 = vst.msk [vmem:[#allocation2 + $0xc18] sm:$0xff] %vm198, %v5167
      %5648 = vst.msk [vmem:[#allocation2 + $0xc20] sm:$0xff] %vm198, %v5168
      %5649 = vst.msk [vmem:[#allocation2 + $0xc28] sm:$0xff] %vm198, %v5169
      %5650 = vst.msk [vmem:[#allocation2 + $0xc30] sm:$0xff] %vm198, %v5170
      %5651 = vst.msk [vmem:[#allocation2 + $0xc38] sm:$0xff] %vm198, %v5171
      %5652 = vst.msk [vmem:[#allocation2 + $0xc40] sm:$0xff] %vm198, %v5172
      %5653 = vst.msk [vmem:[#allocation2 + $0xc48] sm:$0xff] %vm198, %v5173
      %5654 = vst.msk [vmem:[#allocation2 + $0xc50] sm:$0xff] %vm198, %v5174
      %5655 = vst.msk [vmem:[#allocation2 + $0xc58] sm:$0xff] %vm198, %v5175
      %5656 = vst.msk [vmem:[#allocation2 + $0xc60] sm:$0xff] %vm198, %v5176
      %5657 = vst.msk [vmem:[#allocation2 + $0xc68] sm:$0xff] %vm198, %v5177
      %5658 = vst.msk [vmem:[#allocation2 + $0xc70] sm:$0xff] %vm198, %v5178
      %5659 = vst.msk [vmem:[#allocation2 + $0xc78] sm:$0xff] %vm198, %v5179
      %5660 = vst.msk [vmem:[#allocation2 + $0xc80] sm:$0xff] %vm198, %v5180
      %5661 = vst.msk [vmem:[#allocation2 + $0xc88] sm:$0xff] %vm198, %v5181
      %5662 = vst.msk [vmem:[#allocation2 + $0xc90] sm:$0xff] %vm198, %v5182
      %5663 = vst.msk [vmem:[#allocation2 + $0xc98] sm:$0xff] %vm198, %v5183
      %5664 = vst.msk [vmem:[#allocation2 + $0xca0] sm:$0xff] %vm198, %v5184
      %5665 = vst.msk [vmem:[#allocation2 + $0xca8] sm:$0xff] %vm198, %v5185
      %5666 = vst.msk [vmem:[#allocation2 + $0xcb0] sm:$0xff] %vm198, %v5186
      %5667 = vst.msk [vmem:[#allocation2 + $0xcb8] sm:$0xff] %vm198, %v5187
      %5668 = vst.msk [vmem:[#allocation2 + $0xcc0] sm:$0xff] %vm198, %v5188
      %5669 = vst.msk [vmem:[#allocation2 + $0xcc8] sm:$0xff] %vm198, %v5189
      %5670 = vst.msk [vmem:[#allocation2 + $0xcd0] sm:$0xff] %vm198, %v5190
      %5671 = vst.msk [vmem:[#allocation2 + $0xcd8] sm:$0xff] %vm198, %v5191
      %5672 = vst.msk [vmem:[#allocation2 + $0xce0] sm:$0xff] %vm198, %v5192
      %5673 = vst.msk [vmem:[#allocation2 + $0xce8] sm:$0xff] %vm198, %v5193
      %5674 = vst.msk [vmem:[#allocation2 + $0xcf0] sm:$0xff] %vm198, %v5194
      %5675 = vst.msk [vmem:[#allocation2 + $0xcf8] sm:$0xff] %vm198, %v5195
      %5676 = vst.msk [vmem:[#allocation2 + $0xd00] sm:$0xff] %vm198, %v5196
      %5677 = vst.msk [vmem:[#allocation2 + $0xd08] sm:$0xff] %vm198, %v5197
      %5678 = vst.msk [vmem:[#allocation2 + $0xd10] sm:$0xff] %vm198, %v5198
      %5679 = vst.msk [vmem:[#allocation2 + $0xd18] sm:$0xff] %vm198, %v5199
      %5680 = vst.msk [vmem:[#allocation2 + $0xd20] sm:$0xff] %vm198, %v5200
      %5681 = vst.msk [vmem:[#allocation2 + $0xd28] sm:$0xff] %vm198, %v5201
      %5682 = vst.msk [vmem:[#allocation2 + $0xd30] sm:$0xff] %vm198, %v5202
      %5683 = vst.msk [vmem:[#allocation2 + $0xd38] sm:$0xff] %vm198, %v5203
      %5684 = vst.msk [vmem:[#allocation2 + $0xd40] sm:$0xff] %vm198, %v5204
      %5685 = vst.msk [vmem:[#allocation2 + $0xd48] sm:$0xff] %vm198, %v5205
      %5686 = vst.msk [vmem:[#allocation2 + $0xd50] sm:$0xff] %vm198, %v5206
      %5687 = vst.msk [vmem:[#allocation2 + $0xd58] sm:$0xff] %vm198, %v5207
      %5688 = vst.msk [vmem:[#allocation2 + $0xd60] sm:$0xff] %vm198, %v5208
      %5689 = vst.msk [vmem:[#allocation2 + $0xd68] sm:$0xff] %vm198, %v5209
      %5690 = vst.msk [vmem:[#allocation2 + $0xd70] sm:$0xff] %vm198, %v5210
      %5691 = vst.msk [vmem:[#allocation2 + $0xd78] sm:$0xff] %vm198, %v5211
      %5692 = vst.msk [vmem:[#allocation2 + $0xd80] sm:$0xff] %vm198, %v5212
      %5693 = vst.msk [vmem:[#allocation2 + $0xd88] sm:$0xff] %vm198, %v5213
      %5694 = vst.msk [vmem:[#allocation2 + $0xd90] sm:$0xff] %vm198, %v5214
      %5695 = vst.msk [vmem:[#allocation2 + $0xd98] sm:$0xff] %vm198, %v5215
      %5696 = vst.msk [vmem:[#allocation2 + $0xda0] sm:$0xff] %vm198, %v5216
      %5697 = vst.msk [vmem:[#allocation2 + $0xda8] sm:$0xff] %vm198, %v5217
      %5698 = vst.msk [vmem:[#allocation2 + $0xdb0] sm:$0xff] %vm198, %v5218
      %5699 = vst.msk [vmem:[#allocation2 + $0xdb8] sm:$0xff] %vm198, %v5219
      %5700 = vst.msk [vmem:[#allocation2 + $0xdc0] sm:$0xff] %vm198, %v5220
      %5701 = vst.msk [vmem:[#allocation2 + $0xdc8] sm:$0xff] %vm198, %v5221
      %5702 = vst.msk [vmem:[#allocation2 + $0xdd0] sm:$0xff] %vm198, %v5222
      %5703 = vst.msk [vmem:[#allocation2 + $0xdd8] sm:$0xff] %vm198, %v5223
      %5704 = vst.msk [vmem:[#allocation2 + $0xde0] sm:$0xff] %vm198, %v5224
      %5705 = vst.msk [vmem:[#allocation2 + $0xde8] sm:$0xff] %vm198, %v5225
      %5706 = vst.msk [vmem:[#allocation2 + $0xdf0] sm:$0xff] %vm198, %v5226
      %5707 = vst.msk [vmem:[#allocation2 + $0xdf8] sm:$0xff] %vm198, %v5227
      %5708 = vst.msk [vmem:[#allocation2 + $0xe00] sm:$0xff] %vm198, %v5228
      %5709 = vst.msk [vmem:[#allocation2 + $0xe08] sm:$0xff] %vm198, %v5229
      %5710 = vst.msk [vmem:[#allocation2 + $0xe10] sm:$0xff] %vm198, %v5230
      %5711 = vst.msk [vmem:[#allocation2 + $0xe18] sm:$0xff] %vm198, %v5231
      %5712 = vst.msk [vmem:[#allocation2 + $0xe20] sm:$0xff] %vm198, %v5232
      %5713 = vst.msk [vmem:[#allocation2 + $0xe28] sm:$0xff] %vm198, %v5233
      %5714 = vst.msk [vmem:[#allocation2 + $0xe30] sm:$0xff] %vm198, %v5234
      %5715 = vst.msk [vmem:[#allocation2 + $0xe38] sm:$0xff] %vm198, %v5235
      %5716 = vst.msk [vmem:[#allocation2 + $0xe40] sm:$0xff] %vm198, %v5236
      %5717 = vst.msk [vmem:[#allocation2 + $0xe48] sm:$0xff] %vm198, %v5237
      %5718 = vst.msk [vmem:[#allocation2 + $0xe50] sm:$0xff] %vm198, %v5238
      %5719 = vst.msk [vmem:[#allocation2 + $0xe58] sm:$0xff] %vm198, %v5239
      %5720 = vst.msk [vmem:[#allocation2 + $0xe60] sm:$0xff] %vm198, %v5240
      %5721 = vst.msk [vmem:[#allocation2 + $0xe68] sm:$0xff] %vm198, %v5241
      %5722 = vst.msk [vmem:[#allocation2 + $0xe70] sm:$0xff] %vm198, %v5242
      %5723 = vst.msk [vmem:[#allocation2 + $0xe78] sm:$0xff] %vm198, %v5243
      %5724 = vst.msk [vmem:[#allocation2 + $0xe80] sm:$0xff] %vm198, %v5244
      %5725 = vst.msk [vmem:[#allocation2 + $0xe88] sm:$0xff] %vm198, %v5245
      %5726 = vst.msk [vmem:[#allocation2 + $0xe90] sm:$0xff] %vm198, %v5246
      %5727 = vst.msk [vmem:[#allocation2 + $0xe98] sm:$0xff] %vm198, %v5247
      %5728 = vst.msk [vmem:[#allocation2 + $0xea0] sm:$0xff] %vm198, %v5248
      %5729 = vst.msk [vmem:[#allocation2 + $0xea8] sm:$0xff] %vm198, %v5249
      %5730 = vst.msk [vmem:[#allocation2 + $0xeb0] sm:$0xff] %vm198, %v5250
      %5731 = vst.msk [vmem:[#allocation2 + $0xeb8] sm:$0xff] %vm198, %v5251
      %5732 = vst.msk [vmem:[#allocation2 + $0xec0] sm:$0xff] %vm198, %v5252
      %5733 = vst.msk [vmem:[#allocation2 + $0xec8] sm:$0xff] %vm198, %v5253
      %5734 = vst.msk [vmem:[#allocation2 + $0xed0] sm:$0xff] %vm198, %v5254
      %5735 = vst.msk [vmem:[#allocation2 + $0xed8] sm:$0xff] %vm198, %v5255
      %5736 = vst.msk [vmem:[#allocation2 + $0xee0] sm:$0xff] %vm198, %v5256
      %5737 = vst.msk [vmem:[#allocation2 + $0xee8] sm:$0xff] %vm198, %v5257
      %5738 = vst.msk [vmem:[#allocation2 + $0xef0] sm:$0xff] %vm198, %v5258
      %5739 = vst.msk [vmem:[#allocation2 + $0xef8] sm:$0xff] %vm198, %v5259
      %v5740 = vld [vmem:[#allocation2] sm:$0xff]
      %v5741 = vld [vmem:[#allocation2 + $0x8] sm:$0xff]
      %v5742 = vld [vmem:[#allocation2 + $0x10] sm:$0xff]
      %v5743 = vld [vmem:[#allocation2 + $0x18] sm:$0xff]
      %v5744 = vld [vmem:[#allocation2 + $0x20] sm:$0xff]
      %v5745 = vld [vmem:[#allocation2 + $0x28] sm:$0xff]
      %v5746 = vld [vmem:[#allocation2 + $0x30] sm:$0xff]
      %v5747 = vld [vmem:[#allocation2 + $0x38] sm:$0xff]
      %v5748 = vld [vmem:[#allocation2 + $0x40] sm:$0xff]
      %v5749 = vld [vmem:[#allocation2 + $0x48] sm:$0xff]
      %v5750 = vld [vmem:[#allocation2 + $0x50] sm:$0xff]
      %v5751 = vld [vmem:[#allocation2 + $0x58] sm:$0xff]
      %v5752 = vld [vmem:[#allocation2 + $0x60] sm:$0xff]
      %v5753 = vld [vmem:[#allocation2 + $0x68] sm:$0xff]
      %v5754 = vld [vmem:[#allocation2 + $0x70] sm:$0xff]
      %v5755 = vld [vmem:[#allocation2 + $0x78] sm:$0xff]
      %v5756 = vld [vmem:[#allocation2 + $0x80] sm:$0xff]
      %v5757 = vld [vmem:[#allocation2 + $0x88] sm:$0xff]
      %v5758 = vld [vmem:[#allocation2 + $0x90] sm:$0xff]
      %v5759 = vld [vmem:[#allocation2 + $0x98] sm:$0xff]
      %v5760 = vld [vmem:[#allocation2 + $0xa0] sm:$0xff]
      %v5761 = vld [vmem:[#allocation2 + $0xa8] sm:$0xff]
      %v5762 = vld [vmem:[#allocation2 + $0xb0] sm:$0xff]
      %v5763 = vld [vmem:[#allocation2 + $0xb8] sm:$0xff]
      %v5764 = vld [vmem:[#allocation2 + $0xc0] sm:$0xff]
      %v5765 = vld [vmem:[#allocation2 + $0xc8] sm:$0xff]
      %v5766 = vld [vmem:[#allocation2 + $0xd0] sm:$0xff]
      %v5767 = vld [vmem:[#allocation2 + $0xd8] sm:$0xff]
      %v5768 = vld [vmem:[#allocation2 + $0xe0] sm:$0xff]
      %v5769 = vld [vmem:[#allocation2 + $0xe8] sm:$0xff]
      %v5770 = vld [vmem:[#allocation2 + $0xf0] sm:$0xff]
      %v5771 = vld [vmem:[#allocation2 + $0xf8] sm:$0xff]
      %v5772 = vld [vmem:[#allocation2 + $0x100] sm:$0xff]
      %v5773 = vld [vmem:[#allocation2 + $0x108] sm:$0xff]
      %v5774 = vld [vmem:[#allocation2 + $0x110] sm:$0xff]
      %v5775 = vld [vmem:[#allocation2 + $0x118] sm:$0xff]
      %v5776 = vld [vmem:[#allocation2 + $0x120] sm:$0xff]
      %v5777 = vld [vmem:[#allocation2 + $0x128] sm:$0xff]
      %v5778 = vld [vmem:[#allocation2 + $0x130] sm:$0xff]
      %v5779 = vld [vmem:[#allocation2 + $0x138] sm:$0xff]
      %v5780 = vld [vmem:[#allocation2 + $0x140] sm:$0xff]
      %v5781 = vld [vmem:[#allocation2 + $0x148] sm:$0xff]
      %v5782 = vld [vmem:[#allocation2 + $0x150] sm:$0xff]
      %v5783 = vld [vmem:[#allocation2 + $0x158] sm:$0xff]
      %v5784 = vld [vmem:[#allocation2 + $0x160] sm:$0xff]
      %v5785 = vld [vmem:[#allocation2 + $0x168] sm:$0xff]
      %v5786 = vld [vmem:[#allocation2 + $0x170] sm:$0xff]
      %v5787 = vld [vmem:[#allocation2 + $0x178] sm:$0xff]
      %v5788 = vld [vmem:[#allocation2 + $0x180] sm:$0xff]
      %v5789 = vld [vmem:[#allocation2 + $0x188] sm:$0xff]
      %v5790 = vld [vmem:[#allocation2 + $0x190] sm:$0xff]
      %v5791 = vld [vmem:[#allocation2 + $0x198] sm:$0xff]
      %v5792 = vld [vmem:[#allocation2 + $0x1a0] sm:$0xff]
      %v5793 = vld [vmem:[#allocation2 + $0x1a8] sm:$0xff]
      %v5794 = vld [vmem:[#allocation2 + $0x1b0] sm:$0xff]
      %v5795 = vld [vmem:[#allocation2 + $0x1b8] sm:$0xff]
      %v5796 = vld [vmem:[#allocation2 + $0x1c0] sm:$0xff]
      %v5797 = vld [vmem:[#allocation2 + $0x1c8] sm:$0xff]
      %v5798 = vld [vmem:[#allocation2 + $0x1d0] sm:$0xff]
      %v5799 = vld [vmem:[#allocation2 + $0x1d8] sm:$0xff]
      %v5800 = vld [vmem:[#allocation2 + $0x1e0] sm:$0xff]
      %v5801 = vld [vmem:[#allocation2 + $0x1e8] sm:$0xff]
      %v5802 = vld [vmem:[#allocation2 + $0x1f0] sm:$0xff]
      %v5803 = vld [vmem:[#allocation2 + $0x1f8] sm:$0xff]
      %v5804 = vld [vmem:[#allocation2 + $0x200] sm:$0xff]
      %v5805 = vld [vmem:[#allocation2 + $0x208] sm:$0xff]
      %v5806 = vld [vmem:[#allocation2 + $0x210] sm:$0xff]
      %v5807 = vld [vmem:[#allocation2 + $0x218] sm:$0xff]
      %v5808 = vld [vmem:[#allocation2 + $0x220] sm:$0xff]
      %v5809 = vld [vmem:[#allocation2 + $0x228] sm:$0xff]
      %v5810 = vld [vmem:[#allocation2 + $0x230] sm:$0xff]
      %v5811 = vld [vmem:[#allocation2 + $0x238] sm:$0xff]
      %v5812 = vld [vmem:[#allocation2 + $0x240] sm:$0xff]
      %v5813 = vld [vmem:[#allocation2 + $0x248] sm:$0xff]
      %v5814 = vld [vmem:[#allocation2 + $0x250] sm:$0xff]
      %v5815 = vld [vmem:[#allocation2 + $0x258] sm:$0xff]
      %v5816 = vld [vmem:[#allocation2 + $0x260] sm:$0xff]
      %v5817 = vld [vmem:[#allocation2 + $0x268] sm:$0xff]
      %v5818 = vld [vmem:[#allocation2 + $0x270] sm:$0xff]
      %v5819 = vld [vmem:[#allocation2 + $0x278] sm:$0xff]
      %v5820 = vld [vmem:[#allocation2 + $0x280] sm:$0xff]
      %v5821 = vld [vmem:[#allocation2 + $0x288] sm:$0xff]
      %v5822 = vld [vmem:[#allocation2 + $0x290] sm:$0xff]
      %v5823 = vld [vmem:[#allocation2 + $0x298] sm:$0xff]
      %v5824 = vld [vmem:[#allocation2 + $0x2a0] sm:$0xff]
      %v5825 = vld [vmem:[#allocation2 + $0x2a8] sm:$0xff]
      %v5826 = vld [vmem:[#allocation2 + $0x2b0] sm:$0xff]
      %v5827 = vld [vmem:[#allocation2 + $0x2b8] sm:$0xff]
      %v5828 = vld [vmem:[#allocation2 + $0x2c0] sm:$0xff]
      %v5829 = vld [vmem:[#allocation2 + $0x2c8] sm:$0xff]
      %v5830 = vld [vmem:[#allocation2 + $0x2d0] sm:$0xff]
      %v5831 = vld [vmem:[#allocation2 + $0x2d8] sm:$0xff]
      %v5832 = vld [vmem:[#allocation2 + $0x2e0] sm:$0xff]
      %v5833 = vld [vmem:[#allocation2 + $0x2e8] sm:$0xff]
      %v5834 = vld [vmem:[#allocation2 + $0x2f0] sm:$0xff]
      %v5835 = vld [vmem:[#allocation2 + $0x2f8] sm:$0xff]
      %v5836 = vld [vmem:[#allocation2 + $0x300] sm:$0xff]
      %v5837 = vld [vmem:[#allocation2 + $0x308] sm:$0xff]
      %v5838 = vld [vmem:[#allocation2 + $0x310] sm:$0xff]
      %v5839 = vld [vmem:[#allocation2 + $0x318] sm:$0xff]
      %v5840 = vld [vmem:[#allocation2 + $0x320] sm:$0xff]
      %v5841 = vld [vmem:[#allocation2 + $0x328] sm:$0xff]
      %v5842 = vld [vmem:[#allocation2 + $0x330] sm:$0xff]
      %v5843 = vld [vmem:[#allocation2 + $0x338] sm:$0xff]
      %v5844 = vld [vmem:[#allocation2 + $0x340] sm:$0xff]
      %v5845 = vld [vmem:[#allocation2 + $0x348] sm:$0xff]
      %v5846 = vld [vmem:[#allocation2 + $0x350] sm:$0xff]
      %v5847 = vld [vmem:[#allocation2 + $0x358] sm:$0xff]
      %v5848 = vld [vmem:[#allocation2 + $0x360] sm:$0xff]
      %v5849 = vld [vmem:[#allocation2 + $0x368] sm:$0xff]
      %v5850 = vld [vmem:[#allocation2 + $0x370] sm:$0xff]
      %v5851 = vld [vmem:[#allocation2 + $0x378] sm:$0xff]
      %v5852 = vld [vmem:[#allocation2 + $0x380] sm:$0xff]
      %v5853 = vld [vmem:[#allocation2 + $0x388] sm:$0xff]
      %v5854 = vld [vmem:[#allocation2 + $0x390] sm:$0xff]
      %v5855 = vld [vmem:[#allocation2 + $0x398] sm:$0xff]
      %v5856 = vld [vmem:[#allocation2 + $0x3a0] sm:$0xff]
      %v5857 = vld [vmem:[#allocation2 + $0x3a8] sm:$0xff]
      %v5858 = vld [vmem:[#allocation2 + $0x3b0] sm:$0xff]
      %v5859 = vld [vmem:[#allocation2 + $0x3b8] sm:$0xff]
      %v5860 = vld [vmem:[#allocation2 + $0x3c0] sm:$0xff]
      %v5861 = vld [vmem:[#allocation2 + $0x3c8] sm:$0xff]
      %v5862 = vld [vmem:[#allocation2 + $0x3d0] sm:$0xff]
      %v5863 = vld [vmem:[#allocation2 + $0x3d8] sm:$0xff]
      %v5864 = vld [vmem:[#allocation2 + $0x3e0] sm:$0xff]
      %v5865 = vld [vmem:[#allocation2 + $0x3e8] sm:$0xff]
      %v5866 = vld [vmem:[#allocation2 + $0x3f0] sm:$0xff]
      %v5867 = vld [vmem:[#allocation2 + $0x3f8] sm:$0xff]
      %v5868 = vld [vmem:[#allocation2 + $0x400] sm:$0xff]
      %v5869 = vld [vmem:[#allocation2 + $0x408] sm:$0xff]
      %v5870 = vld [vmem:[#allocation2 + $0x410] sm:$0xff]
      %v5871 = vld [vmem:[#allocation2 + $0x418] sm:$0xff]
      %v5872 = vld [vmem:[#allocation2 + $0x420] sm:$0xff]
      %v5873 = vld [vmem:[#allocation2 + $0x428] sm:$0xff]
      %v5874 = vld [vmem:[#allocation2 + $0x430] sm:$0xff]
      %v5875 = vld [vmem:[#allocation2 + $0x438] sm:$0xff]
      %v5876 = vld [vmem:[#allocation2 + $0x440] sm:$0xff]
      %v5877 = vld [vmem:[#allocation2 + $0x448] sm:$0xff]
      %v5878 = vld [vmem:[#allocation2 + $0x450] sm:$0xff]
      %v5879 = vld [vmem:[#allocation2 + $0x458] sm:$0xff]
      %v5880 = vld [vmem:[#allocation2 + $0x460] sm:$0xff]
      %v5881 = vld [vmem:[#allocation2 + $0x468] sm:$0xff]
      %v5882 = vld [vmem:[#allocation2 + $0x470] sm:$0xff]
      %v5883 = vld [vmem:[#allocation2 + $0x478] sm:$0xff]
      %v5884 = vld [vmem:[#allocation2 + $0x480] sm:$0xff]
      %v5885 = vld [vmem:[#allocation2 + $0x488] sm:$0xff]
      %v5886 = vld [vmem:[#allocation2 + $0x490] sm:$0xff]
      %v5887 = vld [vmem:[#allocation2 + $0x498] sm:$0xff]
      %v5888 = vld [vmem:[#allocation2 + $0x4a0] sm:$0xff]
      %v5889 = vld [vmem:[#allocation2 + $0x4a8] sm:$0xff]
      %v5890 = vld [vmem:[#allocation2 + $0x4b0] sm:$0xff]
      %v5891 = vld [vmem:[#allocation2 + $0x4b8] sm:$0xff]
      %v5892 = vld [vmem:[#allocation2 + $0x4c0] sm:$0xff]
      %v5893 = vld [vmem:[#allocation2 + $0x4c8] sm:$0xff]
      %v5894 = vld [vmem:[#allocation2 + $0x4d0] sm:$0xff]
      %v5895 = vld [vmem:[#allocation2 + $0x4d8] sm:$0xff]
      %v5896 = vld [vmem:[#allocation2 + $0x4e0] sm:$0xff]
      %v5897 = vld [vmem:[#allocation2 + $0x4e8] sm:$0xff]
      %v5898 = vld [vmem:[#allocation2 + $0x4f0] sm:$0xff]
      %v5899 = vld [vmem:[#allocation2 + $0x4f8] sm:$0xff]
      %v5900 = vld [vmem:[#allocation2 + $0x500] sm:$0xff]
      %v5901 = vld [vmem:[#allocation2 + $0x508] sm:$0xff]
      %v5902 = vld [vmem:[#allocation2 + $0x510] sm:$0xff]
      %v5903 = vld [vmem:[#allocation2 + $0x518] sm:$0xff]
      %v5904 = vld [vmem:[#allocation2 + $0x520] sm:$0xff]
      %v5905 = vld [vmem:[#allocation2 + $0x528] sm:$0xff]
      %v5906 = vld [vmem:[#allocation2 + $0x530] sm:$0xff]
      %v5907 = vld [vmem:[#allocation2 + $0x538] sm:$0xff]
      %v5908 = vld [vmem:[#allocation2 + $0x540] sm:$0xff]
      %v5909 = vld [vmem:[#allocation2 + $0x548] sm:$0xff]
      %v5910 = vld [vmem:[#allocation2 + $0x550] sm:$0xff]
      %v5911 = vld [vmem:[#allocation2 + $0x558] sm:$0xff]
      %v5912 = vld [vmem:[#allocation2 + $0x560] sm:$0xff]
      %v5913 = vld [vmem:[#allocation2 + $0x568] sm:$0xff]
      %v5914 = vld [vmem:[#allocation2 + $0x570] sm:$0xff]
      %v5915 = vld [vmem:[#allocation2 + $0x578] sm:$0xff]
      %v5916 = vld [vmem:[#allocation2 + $0x580] sm:$0xff]
      %v5917 = vld [vmem:[#allocation2 + $0x588] sm:$0xff]
      %v5918 = vld [vmem:[#allocation2 + $0x590] sm:$0xff]
      %v5919 = vld [vmem:[#allocation2 + $0x598] sm:$0xff]
      %v5920 = vld [vmem:[#allocation2 + $0x5a0] sm:$0xff]
      %v5921 = vld [vmem:[#allocation2 + $0x5a8] sm:$0xff]
      %v5922 = vld [vmem:[#allocation2 + $0x5b0] sm:$0xff]
      %v5923 = vld [vmem:[#allocation2 + $0x5b8] sm:$0xff]
      %v5924 = vld [vmem:[#allocation2 + $0x5c0] sm:$0xff]
      %v5925 = vld [vmem:[#allocation2 + $0x5c8] sm:$0xff]
      %v5926 = vld [vmem:[#allocation2 + $0x5d0] sm:$0xff]
      %v5927 = vld [vmem:[#allocation2 + $0x5d8] sm:$0xff]
      %v5928 = vld [vmem:[#allocation2 + $0x5e0] sm:$0xff]
      %v5929 = vld [vmem:[#allocation2 + $0x5e8] sm:$0xff]
      %v5930 = vld [vmem:[#allocation2 + $0x5f0] sm:$0xff]
      %v5931 = vld [vmem:[#allocation2 + $0x5f8] sm:$0xff]
      %v5932 = vld [vmem:[#allocation2 + $0x600] sm:$0xff]
      %v5933 = vld [vmem:[#allocation2 + $0x608] sm:$0xff]
      %v5934 = vld [vmem:[#allocation2 + $0x610] sm:$0xff]
      %v5935 = vld [vmem:[#allocation2 + $0x618] sm:$0xff]
      %v5936 = vld [vmem:[#allocation2 + $0x620] sm:$0xff]
      %v5937 = vld [vmem:[#allocation2 + $0x628] sm:$0xff]
      %v5938 = vld [vmem:[#allocation2 + $0x630] sm:$0xff]
      %v5939 = vld [vmem:[#allocation2 + $0x638] sm:$0xff]
      %v5940 = vld [vmem:[#allocation2 + $0x640] sm:$0xff]
      %v5941 = vld [vmem:[#allocation2 + $0x648] sm:$0xff]
      %v5942 = vld [vmem:[#allocation2 + $0x650] sm:$0xff]
      %v5943 = vld [vmem:[#allocation2 + $0x658] sm:$0xff]
      %v5944 = vld [vmem:[#allocation2 + $0x660] sm:$0xff]
      %v5945 = vld [vmem:[#allocation2 + $0x668] sm:$0xff]
      %v5946 = vld [vmem:[#allocation2 + $0x670] sm:$0xff]
      %v5947 = vld [vmem:[#allocation2 + $0x678] sm:$0xff]
      %v5948 = vld [vmem:[#allocation2 + $0x680] sm:$0xff]
      %v5949 = vld [vmem:[#allocation2 + $0x688] sm:$0xff]
      %v5950 = vld [vmem:[#allocation2 + $0x690] sm:$0xff]
      %v5951 = vld [vmem:[#allocation2 + $0x698] sm:$0xff]
      %v5952 = vld [vmem:[#allocation2 + $0x6a0] sm:$0xff]
      %v5953 = vld [vmem:[#allocation2 + $0x6a8] sm:$0xff]
      %v5954 = vld [vmem:[#allocation2 + $0x6b0] sm:$0xff]
      %v5955 = vld [vmem:[#allocation2 + $0x6b8] sm:$0xff]
      %v5956 = vld [vmem:[#allocation2 + $0x6c0] sm:$0xff]
      %v5957 = vld [vmem:[#allocation2 + $0x6c8] sm:$0xff]
      %v5958 = vld [vmem:[#allocation2 + $0x6d0] sm:$0xff]
      %v5959 = vld [vmem:[#allocation2 + $0x6d8] sm:$0xff]
      %v5960 = vld [vmem:[#allocation2 + $0x6e0] sm:$0xff]
      %v5961 = vld [vmem:[#allocation2 + $0x6e8] sm:$0xff]
      %v5962 = vld [vmem:[#allocation2 + $0x6f0] sm:$0xff]
      %v5963 = vld [vmem:[#allocation2 + $0x6f8] sm:$0xff]
      %v5964 = vld [vmem:[#allocation2 + $0x700] sm:$0xff]
      %v5965 = vld [vmem:[#allocation2 + $0x708] sm:$0xff]
      %v5966 = vld [vmem:[#allocation2 + $0x710] sm:$0xff]
      %v5967 = vld [vmem:[#allocation2 + $0x718] sm:$0xff]
      %v5968 = vld [vmem:[#allocation2 + $0x720] sm:$0xff]
      %v5969 = vld [vmem:[#allocation2 + $0x728] sm:$0xff]
      %v5970 = vld [vmem:[#allocation2 + $0x730] sm:$0xff]
      %v5971 = vld [vmem:[#allocation2 + $0x738] sm:$0xff]
      %v5972 = vld [vmem:[#allocation2 + $0x740] sm:$0xff]
      %v5973 = vld [vmem:[#allocation2 + $0x748] sm:$0xff]
      %v5974 = vld [vmem:[#allocation2 + $0x750] sm:$0xff]
      %v5975 = vld [vmem:[#allocation2 + $0x758] sm:$0xff]
      %v5976 = vld [vmem:[#allocation2 + $0x760] sm:$0xff]
      %v5977 = vld [vmem:[#allocation2 + $0x768] sm:$0xff]
      %v5978 = vld [vmem:[#allocation2 + $0x770] sm:$0xff]
      %v5979 = vld [vmem:[#allocation2 + $0x778] sm:$0xff]
      %v5980 = vld [vmem:[#allocation2 + $0x780] sm:$0xff]
      %v5981 = vld [vmem:[#allocation2 + $0x788] sm:$0xff]
      %v5982 = vld [vmem:[#allocation2 + $0x790] sm:$0xff]
      %v5983 = vld [vmem:[#allocation2 + $0x798] sm:$0xff]
      %v5984 = vld [vmem:[#allocation2 + $0x7a0] sm:$0xff]
      %v5985 = vld [vmem:[#allocation2 + $0x7a8] sm:$0xff]
      %v5986 = vld [vmem:[#allocation2 + $0x7b0] sm:$0xff]
      %v5987 = vld [vmem:[#allocation2 + $0x7b8] sm:$0xff]
      %v5988 = vld [vmem:[#allocation2 + $0x7c0] sm:$0xff]
      %v5989 = vld [vmem:[#allocation2 + $0x7c8] sm:$0xff]
      %v5990 = vld [vmem:[#allocation2 + $0x7d0] sm:$0xff]
      %v5991 = vld [vmem:[#allocation2 + $0x7d8] sm:$0xff]
      %v5992 = vld [vmem:[#allocation2 + $0x7e0] sm:$0xff]
      %v5993 = vld [vmem:[#allocation2 + $0x7e8] sm:$0xff]
      %v5994 = vld [vmem:[#allocation2 + $0x7f0] sm:$0xff]
      %v5995 = vld [vmem:[#allocation2 + $0x7f8] sm:$0xff]
      %v5996 = vld [vmem:[#allocation2 + $0x800] sm:$0xff]
      %v5997 = vld [vmem:[#allocation2 + $0x808] sm:$0xff]
      %v5998 = vld [vmem:[#allocation2 + $0x810] sm:$0xff]
      %v5999 = vld [vmem:[#allocation2 + $0x818] sm:$0xff]
      %v6000 = vld [vmem:[#allocation2 + $0x820] sm:$0xff]
      %v6001 = vld [vmem:[#allocation2 + $0x828] sm:$0xff]
      %v6002 = vld [vmem:[#allocation2 + $0x830] sm:$0xff]
      %v6003 = vld [vmem:[#allocation2 + $0x838] sm:$0xff]
      %v6004 = vld [vmem:[#allocation2 + $0x840] sm:$0xff]
      %v6005 = vld [vmem:[#allocation2 + $0x848] sm:$0xff]
      %v6006 = vld [vmem:[#allocation2 + $0x850] sm:$0xff]
      %v6007 = vld [vmem:[#allocation2 + $0x858] sm:$0xff]
      %v6008 = vld [vmem:[#allocation2 + $0x860] sm:$0xff]
      %v6009 = vld [vmem:[#allocation2 + $0x868] sm:$0xff]
      %v6010 = vld [vmem:[#allocation2 + $0x870] sm:$0xff]
      %v6011 = vld [vmem:[#allocation2 + $0x878] sm:$0xff]
      %v6012 = vld [vmem:[#allocation2 + $0x880] sm:$0xff]
      %v6013 = vld [vmem:[#allocation2 + $0x888] sm:$0xff]
      %v6014 = vld [vmem:[#allocation2 + $0x890] sm:$0xff]
      %v6015 = vld [vmem:[#allocation2 + $0x898] sm:$0xff]
      %v6016 = vld [vmem:[#allocation2 + $0x8a0] sm:$0xff]
      %v6017 = vld [vmem:[#allocation2 + $0x8a8] sm:$0xff]
      %v6018 = vld [vmem:[#allocation2 + $0x8b0] sm:$0xff]
      %v6019 = vld [vmem:[#allocation2 + $0x8b8] sm:$0xff]
      %v6020 = vld [vmem:[#allocation2 + $0x8c0] sm:$0xff]
      %v6021 = vld [vmem:[#allocation2 + $0x8c8] sm:$0xff]
      %v6022 = vld [vmem:[#allocation2 + $0x8d0] sm:$0xff]
      %v6023 = vld [vmem:[#allocation2 + $0x8d8] sm:$0xff]
      %v6024 = vld [vmem:[#allocation2 + $0x8e0] sm:$0xff]
      %v6025 = vld [vmem:[#allocation2 + $0x8e8] sm:$0xff]
      %v6026 = vld [vmem:[#allocation2 + $0x8f0] sm:$0xff]
      %v6027 = vld [vmem:[#allocation2 + $0x8f8] sm:$0xff]
      %v6028 = vld [vmem:[#allocation2 + $0x900] sm:$0xff]
      %v6029 = vld [vmem:[#allocation2 + $0x908] sm:$0xff]
      %v6030 = vld [vmem:[#allocation2 + $0x910] sm:$0xff]
      %v6031 = vld [vmem:[#allocation2 + $0x918] sm:$0xff]
      %v6032 = vld [vmem:[#allocation2 + $0x920] sm:$0xff]
      %v6033 = vld [vmem:[#allocation2 + $0x928] sm:$0xff]
      %v6034 = vld [vmem:[#allocation2 + $0x930] sm:$0xff]
      %v6035 = vld [vmem:[#allocation2 + $0x938] sm:$0xff]
      %v6036 = vld [vmem:[#allocation2 + $0x940] sm:$0xff]
      %v6037 = vld [vmem:[#allocation2 + $0x948] sm:$0xff]
      %v6038 = vld [vmem:[#allocation2 + $0x950] sm:$0xff]
      %v6039 = vld [vmem:[#allocation2 + $0x958] sm:$0xff]
      %v6040 = vld [vmem:[#allocation2 + $0x960] sm:$0xff]
      %v6041 = vld [vmem:[#allocation2 + $0x968] sm:$0xff]
      %v6042 = vld [vmem:[#allocation2 + $0x970] sm:$0xff]
      %v6043 = vld [vmem:[#allocation2 + $0x978] sm:$0xff]
      %v6044 = vld [vmem:[#allocation2 + $0x980] sm:$0xff]
      %v6045 = vld [vmem:[#allocation2 + $0x988] sm:$0xff]
      %v6046 = vld [vmem:[#allocation2 + $0x990] sm:$0xff]
      %v6047 = vld [vmem:[#allocation2 + $0x998] sm:$0xff]
      %v6048 = vld [vmem:[#allocation2 + $0x9a0] sm:$0xff]
      %v6049 = vld [vmem:[#allocation2 + $0x9a8] sm:$0xff]
      %v6050 = vld [vmem:[#allocation2 + $0x9b0] sm:$0xff]
      %v6051 = vld [vmem:[#allocation2 + $0x9b8] sm:$0xff]
      %v6052 = vld [vmem:[#allocation2 + $0x9c0] sm:$0xff]
      %v6053 = vld [vmem:[#allocation2 + $0x9c8] sm:$0xff]
      %v6054 = vld [vmem:[#allocation2 + $0x9d0] sm:$0xff]
      %v6055 = vld [vmem:[#allocation2 + $0x9d8] sm:$0xff]
      %v6056 = vld [vmem:[#allocation2 + $0x9e0] sm:$0xff]
      %v6057 = vld [vmem:[#allocation2 + $0x9e8] sm:$0xff]
      %v6058 = vld [vmem:[#allocation2 + $0x9f0] sm:$0xff]
      %v6059 = vld [vmem:[#allocation2 + $0x9f8] sm:$0xff]
      %v6060 = vld [vmem:[#allocation2 + $0xa00] sm:$0xff]
      %v6061 = vld [vmem:[#allocation2 + $0xa08] sm:$0xff]
      %v6062 = vld [vmem:[#allocation2 + $0xa10] sm:$0xff]
      %v6063 = vld [vmem:[#allocation2 + $0xa18] sm:$0xff]
      %v6064 = vld [vmem:[#allocation2 + $0xa20] sm:$0xff]
      %v6065 = vld [vmem:[#allocation2 + $0xa28] sm:$0xff]
      %v6066 = vld [vmem:[#allocation2 + $0xa30] sm:$0xff]
      %v6067 = vld [vmem:[#allocation2 + $0xa38] sm:$0xff]
      %v6068 = vld [vmem:[#allocation2 + $0xa40] sm:$0xff]
      %v6069 = vld [vmem:[#allocation2 + $0xa48] sm:$0xff]
      %v6070 = vld [vmem:[#allocation2 + $0xa50] sm:$0xff]
      %v6071 = vld [vmem:[#allocation2 + $0xa58] sm:$0xff]
      %v6072 = vld [vmem:[#allocation2 + $0xa60] sm:$0xff]
      %v6073 = vld [vmem:[#allocation2 + $0xa68] sm:$0xff]
      %v6074 = vld [vmem:[#allocation2 + $0xa70] sm:$0xff]
      %v6075 = vld [vmem:[#allocation2 + $0xa78] sm:$0xff]
      %v6076 = vld [vmem:[#allocation2 + $0xa80] sm:$0xff]
      %v6077 = vld [vmem:[#allocation2 + $0xa88] sm:$0xff]
      %v6078 = vld [vmem:[#allocation2 + $0xa90] sm:$0xff]
      %v6079 = vld [vmem:[#allocation2 + $0xa98] sm:$0xff]
      %v6080 = vld [vmem:[#allocation2 + $0xaa0] sm:$0xff]
      %v6081 = vld [vmem:[#allocation2 + $0xaa8] sm:$0xff]
      %v6082 = vld [vmem:[#allocation2 + $0xab0] sm:$0xff]
      %v6083 = vld [vmem:[#allocation2 + $0xab8] sm:$0xff]
      %v6084 = vld [vmem:[#allocation2 + $0xac0] sm:$0xff]
      %v6085 = vld [vmem:[#allocation2 + $0xac8] sm:$0xff]
      %v6086 = vld [vmem:[#allocation2 + $0xad0] sm:$0xff]
      %v6087 = vld [vmem:[#allocation2 + $0xad8] sm:$0xff]
      %v6088 = vld [vmem:[#allocation2 + $0xae0] sm:$0xff]
      %v6089 = vld [vmem:[#allocation2 + $0xae8] sm:$0xff]
      %v6090 = vld [vmem:[#allocation2 + $0xaf0] sm:$0xff]
      %v6091 = vld [vmem:[#allocation2 + $0xaf8] sm:$0xff]
      %v6092 = vld [vmem:[#allocation2 + $0xb00] sm:$0xff]
      %v6093 = vld [vmem:[#allocation2 + $0xb08] sm:$0xff]
      %v6094 = vld [vmem:[#allocation2 + $0xb10] sm:$0xff]
      %v6095 = vld [vmem:[#allocation2 + $0xb18] sm:$0xff]
      %v6096 = vld [vmem:[#allocation2 + $0xb20] sm:$0xff]
      %v6097 = vld [vmem:[#allocation2 + $0xb28] sm:$0xff]
      %v6098 = vld [vmem:[#allocation2 + $0xb30] sm:$0xff]
      %v6099 = vld [vmem:[#allocation2 + $0xb38] sm:$0xff]
      %v6100 = vld [vmem:[#allocation2 + $0xb40] sm:$0xff]
      %v6101 = vld [vmem:[#allocation2 + $0xb48] sm:$0xff]
      %v6102 = vld [vmem:[#allocation2 + $0xb50] sm:$0xff]
      %v6103 = vld [vmem:[#allocation2 + $0xb58] sm:$0xff]
      %v6104 = vld [vmem:[#allocation2 + $0xb60] sm:$0xff]
      %v6105 = vld [vmem:[#allocation2 + $0xb68] sm:$0xff]
      %v6106 = vld [vmem:[#allocation2 + $0xb70] sm:$0xff]
      %v6107 = vld [vmem:[#allocation2 + $0xb78] sm:$0xff]
      %v6108 = vld [vmem:[#allocation2 + $0xb80] sm:$0xff]
      %v6109 = vld [vmem:[#allocation2 + $0xb88] sm:$0xff]
      %v6110 = vld [vmem:[#allocation2 + $0xb90] sm:$0xff]
      %v6111 = vld [vmem:[#allocation2 + $0xb98] sm:$0xff]
      %v6112 = vld [vmem:[#allocation2 + $0xba0] sm:$0xff]
      %v6113 = vld [vmem:[#allocation2 + $0xba8] sm:$0xff]
      %v6114 = vld [vmem:[#allocation2 + $0xbb0] sm:$0xff]
      %v6115 = vld [vmem:[#allocation2 + $0xbb8] sm:$0xff]
      %v6116 = vld [vmem:[#allocation2 + $0xbc0] sm:$0xff]
      %v6117 = vld [vmem:[#allocation2 + $0xbc8] sm:$0xff]
      %v6118 = vld [vmem:[#allocation2 + $0xbd0] sm:$0xff]
      %v6119 = vld [vmem:[#allocation2 + $0xbd8] sm:$0xff]
      %v6120 = vld [vmem:[#allocation2 + $0xbe0] sm:$0xff]
      %v6121 = vld [vmem:[#allocation2 + $0xbe8] sm:$0xff]
      %v6122 = vld [vmem:[#allocation2 + $0xbf0] sm:$0xff]
      %v6123 = vld [vmem:[#allocation2 + $0xbf8] sm:$0xff]
      %v6124 = vld [vmem:[#allocation2 + $0xc00] sm:$0xff]
      %v6125 = vld [vmem:[#allocation2 + $0xc08] sm:$0xff]
      %v6126 = vld [vmem:[#allocation2 + $0xc10] sm:$0xff]
      %v6127 = vld [vmem:[#allocation2 + $0xc18] sm:$0xff]
      %v6128 = vld [vmem:[#allocation2 + $0xc20] sm:$0xff]
      %v6129 = vld [vmem:[#allocation2 + $0xc28] sm:$0xff]
      %v6130 = vld [vmem:[#allocation2 + $0xc30] sm:$0xff]
      %v6131 = vld [vmem:[#allocation2 + $0xc38] sm:$0xff]
      %v6132 = vld [vmem:[#allocation2 + $0xc40] sm:$0xff]
      %v6133 = vld [vmem:[#allocation2 + $0xc48] sm:$0xff]
      %v6134 = vld [vmem:[#allocation2 + $0xc50] sm:$0xff]
      %v6135 = vld [vmem:[#allocation2 + $0xc58] sm:$0xff]
      %v6136 = vld [vmem:[#allocation2 + $0xc60] sm:$0xff]
      %v6137 = vld [vmem:[#allocation2 + $0xc68] sm:$0xff]
      %v6138 = vld [vmem:[#allocation2 + $0xc70] sm:$0xff]
      %v6139 = vld [vmem:[#allocation2 + $0xc78] sm:$0xff]
      %v6140 = vld [vmem:[#allocation2 + $0xc80] sm:$0xff]
      %v6141 = vld [vmem:[#allocation2 + $0xc88] sm:$0xff]
      %v6142 = vld [vmem:[#allocation2 + $0xc90] sm:$0xff]
      %v6143 = vld [vmem:[#allocation2 + $0xc98] sm:$0xff]
      %v6144 = vld [vmem:[#allocation2 + $0xca0] sm:$0xff]
      %v6145 = vld [vmem:[#allocation2 + $0xca8] sm:$0xff]
      %v6146 = vld [vmem:[#allocation2 + $0xcb0] sm:$0xff]
      %v6147 = vld [vmem:[#allocation2 + $0xcb8] sm:$0xff]
      %v6148 = vld [vmem:[#allocation2 + $0xcc0] sm:$0xff]
      %v6149 = vld [vmem:[#allocation2 + $0xcc8] sm:$0xff]
      %v6150 = vld [vmem:[#allocation2 + $0xcd0] sm:$0xff]
      %v6151 = vld [vmem:[#allocation2 + $0xcd8] sm:$0xff]
      %v6152 = vld [vmem:[#allocation2 + $0xce0] sm:$0xff]
      %v6153 = vld [vmem:[#allocation2 + $0xce8] sm:$0xff]
      %v6154 = vld [vmem:[#allocation2 + $0xcf0] sm:$0xff]
      %v6155 = vld [vmem:[#allocation2 + $0xcf8] sm:$0xff]
      %v6156 = vld [vmem:[#allocation2 + $0xd00] sm:$0xff]
      %v6157 = vld [vmem:[#allocation2 + $0xd08] sm:$0xff]
      %v6158 = vld [vmem:[#allocation2 + $0xd10] sm:$0xff]
      %v6159 = vld [vmem:[#allocation2 + $0xd18] sm:$0xff]
      %v6160 = vld [vmem:[#allocation2 + $0xd20] sm:$0xff]
      %v6161 = vld [vmem:[#allocation2 + $0xd28] sm:$0xff]
      %v6162 = vld [vmem:[#allocation2 + $0xd30] sm:$0xff]
      %v6163 = vld [vmem:[#allocation2 + $0xd38] sm:$0xff]
      %v6164 = vld [vmem:[#allocation2 + $0xd40] sm:$0xff]
      %v6165 = vld [vmem:[#allocation2 + $0xd48] sm:$0xff]
      %v6166 = vld [vmem:[#allocation2 + $0xd50] sm:$0xff]
      %v6167 = vld [vmem:[#allocation2 + $0xd58] sm:$0xff]
      %v6168 = vld [vmem:[#allocation2 + $0xd60] sm:$0xff]
      %v6169 = vld [vmem:[#allocation2 + $0xd68] sm:$0xff]
      %v6170 = vld [vmem:[#allocation2 + $0xd70] sm:$0xff]
      %v6171 = vld [vmem:[#allocation2 + $0xd78] sm:$0xff]
      %v6172 = vld [vmem:[#allocation2 + $0xd80] sm:$0xff]
      %v6173 = vld [vmem:[#allocation2 + $0xd88] sm:$0xff]
      %v6174 = vld [vmem:[#allocation2 + $0xd90] sm:$0xff]
      %v6175 = vld [vmem:[#allocation2 + $0xd98] sm:$0xff]
      %v6176 = vld [vmem:[#allocation2 + $0xda0] sm:$0xff]
      %v6177 = vld [vmem:[#allocation2 + $0xda8] sm:$0xff]
      %v6178 = vld [vmem:[#allocation2 + $0xdb0] sm:$0xff]
      %v6179 = vld [vmem:[#allocation2 + $0xdb8] sm:$0xff]
      %v6180 = vld [vmem:[#allocation2 + $0xdc0] sm:$0xff]
      %v6181 = vld [vmem:[#allocation2 + $0xdc8] sm:$0xff]
      %v6182 = vld [vmem:[#allocation2 + $0xdd0] sm:$0xff]
      %v6183 = vld [vmem:[#allocation2 + $0xdd8] sm:$0xff]
      %v6184 = vld [vmem:[#allocation2 + $0xde0] sm:$0xff]
      %v6185 = vld [vmem:[#allocation2 + $0xde8] sm:$0xff]
      %v6186 = vld [vmem:[#allocation2 + $0xdf0] sm:$0xff]
      %v6187 = vld [vmem:[#allocation2 + $0xdf8] sm:$0xff]
      %v6188 = vld [vmem:[#allocation2 + $0xe00] sm:$0xff]
      %v6189 = vld [vmem:[#allocation2 + $0xe08] sm:$0xff]
      %v6190 = vld [vmem:[#allocation2 + $0xe10] sm:$0xff]
      %v6191 = vld [vmem:[#allocation2 + $0xe18] sm:$0xff]
      %v6192 = vld [vmem:[#allocation2 + $0xe20] sm:$0xff]
      %v6193 = vld [vmem:[#allocation2 + $0xe28] sm:$0xff]
      %v6194 = vld [vmem:[#allocation2 + $0xe30] sm:$0xff]
      %v6195 = vld [vmem:[#allocation2 + $0xe38] sm:$0xff]
      %v6196 = vld [vmem:[#allocation2 + $0xe40] sm:$0xff]
      %v6197 = vld [vmem:[#allocation2 + $0xe48] sm:$0xff]
      %v6198 = vld [vmem:[#allocation2 + $0xe50] sm:$0xff]
      %v6199 = vld [vmem:[#allocation2 + $0xe58] sm:$0xff]
      %v6200 = vld [vmem:[#allocation2 + $0xe60] sm:$0xff]
      %v6201 = vld [vmem:[#allocation2 + $0xe68] sm:$0xff]
      %v6202 = vld [vmem:[#allocation2 + $0xe70] sm:$0xff]
      %v6203 = vld [vmem:[#allocation2 + $0xe78] sm:$0xff]
      %v6204 = vld [vmem:[#allocation2 + $0xe80] sm:$0xff]
      %v6205 = vld [vmem:[#allocation2 + $0xe88] sm:$0xff]
      %v6206 = vld [vmem:[#allocation2 + $0xe90] sm:$0xff]
      %v6207 = vld [vmem:[#allocation2 + $0xe98] sm:$0xff]
      %v6208 = vld [vmem:[#allocation2 + $0xea0] sm:$0xff]
      %v6209 = vld [vmem:[#allocation2 + $0xea8] sm:$0xff]
      %v6210 = vld [vmem:[#allocation2 + $0xeb0] sm:$0xff]
      %v6211 = vld [vmem:[#allocation2 + $0xeb8] sm:$0xff]
      %v6212 = vld [vmem:[#allocation2 + $0xec0] sm:$0xff]
      %v6213 = vld [vmem:[#allocation2 + $0xec8] sm:$0xff]
      %v6214 = vld [vmem:[#allocation2 + $0xed0] sm:$0xff]
      %v6215 = vld [vmem:[#allocation2 + $0xed8] sm:$0xff]
      %v6216 = vld [vmem:[#allocation2 + $0xee0] sm:$0xff]
      %v6217 = vld [vmem:[#allocation2 + $0xee8] sm:$0xff]
      %v6218 = vld [vmem:[#allocation2 + $0xef0] sm:$0xff]
      %v6219 = vld [vmem:[#allocation2 + $0xef8] sm:$0xff]
      %v6220 = vld [vmem:[%s2] sm:$0x1]
      %v6222 = vperm.slane %v6220, 0
      %v6224 = vadd.f32 %v5740, %v6222
      %v6225 = vadd.f32 %v5741, %v6222
      %v6226 = vadd.f32 %v5742, %v6222
      %v6227 = vadd.f32 %v5743, %v6222
      %v6228 = vadd.f32 %v5744, %v6222
      %v6229 = vadd.f32 %v5745, %v6222
      %v6230 = vadd.f32 %v5746, %v6222
      %v6231 = vadd.f32 %v5747, %v6222
      %v6232 = vadd.f32 %v5748, %v6222
      %v6233 = vadd.f32 %v5749, %v6222
      %v6234 = vadd.f32 %v5750, %v6222
      %v6235 = vadd.f32 %v5751, %v6222
      %v6236 = vadd.f32 %v5752, %v6222
      %v6237 = vadd.f32 %v5753, %v6222
      %v6238 = vadd.f32 %v5754, %v6222
      %v6239 = vadd.f32 %v5755, %v6222
      %v6240 = vadd.f32 %v5756, %v6222
      %v6241 = vadd.f32 %v5757, %v6222
      %v6242 = vadd.f32 %v5758, %v6222
      %v6243 = vadd.f32 %v5759, %v6222
      %v6244 = vadd.f32 %v5760, %v6222
      %v6245 = vadd.f32 %v5761, %v6222
      %v6246 = vadd.f32 %v5762, %v6222
      %v6247 = vadd.f32 %v5763, %v6222
      %v6248 = vadd.f32 %v5764, %v6222
      %v6249 = vadd.f32 %v5765, %v6222
      %v6250 = vadd.f32 %v5766, %v6222
      %v6251 = vadd.f32 %v5767, %v6222
      %v6252 = vadd.f32 %v5768, %v6222
      %v6253 = vadd.f32 %v5769, %v6222
      %v6254 = vadd.f32 %v5770, %v6222
      %v6255 = vadd.f32 %v5771, %v6222
      %v6256 = vadd.f32 %v5772, %v6222
      %v6257 = vadd.f32 %v5773, %v6222
      %v6258 = vadd.f32 %v5774, %v6222
      %v6259 = vadd.f32 %v5775, %v6222
      %v6260 = vadd.f32 %v5776, %v6222
      %v6261 = vadd.f32 %v5777, %v6222
      %v6262 = vadd.f32 %v5778, %v6222
      %v6263 = vadd.f32 %v5779, %v6222
      %v6264 = vadd.f32 %v5780, %v6222
      %v6265 = vadd.f32 %v5781, %v6222
      %v6266 = vadd.f32 %v5782, %v6222
      %v6267 = vadd.f32 %v5783, %v6222
      %v6268 = vadd.f32 %v5784, %v6222
      %v6269 = vadd.f32 %v5785, %v6222
      %v6270 = vadd.f32 %v5786, %v6222
      %v6271 = vadd.f32 %v5787, %v6222
      %v6272 = vadd.f32 %v5788, %v6222
      %v6273 = vadd.f32 %v5789, %v6222
      %v6274 = vadd.f32 %v5790, %v6222
      %v6275 = vadd.f32 %v5791, %v6222
      %v6276 = vadd.f32 %v5792, %v6222
      %v6277 = vadd.f32 %v5793, %v6222
      %v6278 = vadd.f32 %v5794, %v6222
      %v6279 = vadd.f32 %v5795, %v6222
      %v6280 = vadd.f32 %v5796, %v6222
      %v6281 = vadd.f32 %v5797, %v6222
      %v6282 = vadd.f32 %v5798, %v6222
      %v6283 = vadd.f32 %v5799, %v6222
      %v6284 = vadd.f32 %v5800, %v6222
      %v6285 = vadd.f32 %v5801, %v6222
      %v6286 = vadd.f32 %v5802, %v6222
      %v6287 = vadd.f32 %v5803, %v6222
      %v6288 = vadd.f32 %v5804, %v6222
      %v6289 = vadd.f32 %v5805, %v6222
      %v6290 = vadd.f32 %v5806, %v6222
      %v6291 = vadd.f32 %v5807, %v6222
      %v6292 = vadd.f32 %v5808, %v6222
      %v6293 = vadd.f32 %v5809, %v6222
      %v6294 = vadd.f32 %v5810, %v6222
      %v6295 = vadd.f32 %v5811, %v6222
      %v6296 = vadd.f32 %v5812, %v6222
      %v6297 = vadd.f32 %v5813, %v6222
      %v6298 = vadd.f32 %v5814, %v6222
      %v6299 = vadd.f32 %v5815, %v6222
      %v6300 = vadd.f32 %v5816, %v6222
      %v6301 = vadd.f32 %v5817, %v6222
      %v6302 = vadd.f32 %v5818, %v6222
      %v6303 = vadd.f32 %v5819, %v6222
      %v6304 = vadd.f32 %v5820, %v6222
      %v6305 = vadd.f32 %v5821, %v6222
      %v6306 = vadd.f32 %v5822, %v6222
      %v6307 = vadd.f32 %v5823, %v6222
      %v6308 = vadd.f32 %v5824, %v6222
      %v6309 = vadd.f32 %v5825, %v6222
      %v6310 = vadd.f32 %v5826, %v6222
      %v6311 = vadd.f32 %v5827, %v6222
      %v6312 = vadd.f32 %v5828, %v6222
      %v6313 = vadd.f32 %v5829, %v6222
      %v6314 = vadd.f32 %v5830, %v6222
      %v6315 = vadd.f32 %v5831, %v6222
      %v6316 = vadd.f32 %v5832, %v6222
      %v6317 = vadd.f32 %v5833, %v6222
      %v6318 = vadd.f32 %v5834, %v6222
      %v6319 = vadd.f32 %v5835, %v6222
      %v6320 = vadd.f32 %v5836, %v6222
      %v6321 = vadd.f32 %v5837, %v6222
      %v6322 = vadd.f32 %v5838, %v6222
      %v6323 = vadd.f32 %v5839, %v6222
      %v6324 = vadd.f32 %v5840, %v6222
      %v6325 = vadd.f32 %v5841, %v6222
      %v6326 = vadd.f32 %v5842, %v6222
      %v6327 = vadd.f32 %v5843, %v6222
      %v6328 = vadd.f32 %v5844, %v6222
      %v6329 = vadd.f32 %v5845, %v6222
      %v6330 = vadd.f32 %v5846, %v6222
      %v6331 = vadd.f32 %v5847, %v6222
      %v6332 = vadd.f32 %v5848, %v6222
      %v6333 = vadd.f32 %v5849, %v6222
      %v6334 = vadd.f32 %v5850, %v6222
      %v6335 = vadd.f32 %v5851, %v6222
      %v6336 = vadd.f32 %v5852, %v6222
      %v6337 = vadd.f32 %v5853, %v6222
      %v6338 = vadd.f32 %v5854, %v6222
      %v6339 = vadd.f32 %v5855, %v6222
      %v6340 = vadd.f32 %v5856, %v6222
      %v6341 = vadd.f32 %v5857, %v6222
      %v6342 = vadd.f32 %v5858, %v6222
      %v6343 = vadd.f32 %v5859, %v6222
      %v6344 = vadd.f32 %v5860, %v6222
      %v6345 = vadd.f32 %v5861, %v6222
      %v6346 = vadd.f32 %v5862, %v6222
      %v6347 = vadd.f32 %v5863, %v6222
      %v6348 = vadd.f32 %v5864, %v6222
      %v6349 = vadd.f32 %v5865, %v6222
      %v6350 = vadd.f32 %v5866, %v6222
      %v6351 = vadd.f32 %v5867, %v6222
      %v6352 = vadd.f32 %v5868, %v6222
      %v6353 = vadd.f32 %v5869, %v6222
      %v6354 = vadd.f32 %v5870, %v6222
      %v6355 = vadd.f32 %v5871, %v6222
      %v6356 = vadd.f32 %v5872, %v6222
      %v6357 = vadd.f32 %v5873, %v6222
      %v6358 = vadd.f32 %v5874, %v6222
      %v6359 = vadd.f32 %v5875, %v6222
      %v6360 = vadd.f32 %v5876, %v6222
      %v6361 = vadd.f32 %v5877, %v6222
      %v6362 = vadd.f32 %v5878, %v6222
      %v6363 = vadd.f32 %v5879, %v6222
      %v6364 = vadd.f32 %v5880, %v6222
      %v6365 = vadd.f32 %v5881, %v6222
      %v6366 = vadd.f32 %v5882, %v6222
      %v6367 = vadd.f32 %v5883, %v6222
      %v6368 = vadd.f32 %v5884, %v6222
      %v6369 = vadd.f32 %v5885, %v6222
      %v6370 = vadd.f32 %v5886, %v6222
      %v6371 = vadd.f32 %v5887, %v6222
      %v6372 = vadd.f32 %v5888, %v6222
      %v6373 = vadd.f32 %v5889, %v6222
      %v6374 = vadd.f32 %v5890, %v6222
      %v6375 = vadd.f32 %v5891, %v6222
      %v6376 = vadd.f32 %v5892, %v6222
      %v6377 = vadd.f32 %v5893, %v6222
      %v6378 = vadd.f32 %v5894, %v6222
      %v6379 = vadd.f32 %v5895, %v6222
      %v6380 = vadd.f32 %v5896, %v6222
      %v6381 = vadd.f32 %v5897, %v6222
      %v6382 = vadd.f32 %v5898, %v6222
      %v6383 = vadd.f32 %v5899, %v6222
      %v6384 = vadd.f32 %v5900, %v6222
      %v6385 = vadd.f32 %v5901, %v6222
      %v6386 = vadd.f32 %v5902, %v6222
      %v6387 = vadd.f32 %v5903, %v6222
      %v6388 = vadd.f32 %v5904, %v6222
      %v6389 = vadd.f32 %v5905, %v6222
      %v6390 = vadd.f32 %v5906, %v6222
      %v6391 = vadd.f32 %v5907, %v6222
      %v6392 = vadd.f32 %v5908, %v6222
      %v6393 = vadd.f32 %v5909, %v6222
      %v6394 = vadd.f32 %v5910, %v6222
      %v6395 = vadd.f32 %v5911, %v6222
      %v6396 = vadd.f32 %v5912, %v6222
      %v6397 = vadd.f32 %v5913, %v6222
      %v6398 = vadd.f32 %v5914, %v6222
      %v6399 = vadd.f32 %v5915, %v6222
      %v6400 = vadd.f32 %v5916, %v6222
      %v6401 = vadd.f32 %v5917, %v6222
      %v6402 = vadd.f32 %v5918, %v6222
      %v6403 = vadd.f32 %v5919, %v6222
      %v6404 = vadd.f32 %v5920, %v6222
      %v6405 = vadd.f32 %v5921, %v6222
      %v6406 = vadd.f32 %v5922, %v6222
      %v6407 = vadd.f32 %v5923, %v6222
      %v6408 = vadd.f32 %v5924, %v6222
      %v6409 = vadd.f32 %v5925, %v6222
      %v6410 = vadd.f32 %v5926, %v6222
      %v6411 = vadd.f32 %v5927, %v6222
      %v6412 = vadd.f32 %v5928, %v6222
      %v6413 = vadd.f32 %v5929, %v6222
      %v6414 = vadd.f32 %v5930, %v6222
      %v6415 = vadd.f32 %v5931, %v6222
      %v6416 = vadd.f32 %v5932, %v6222
      %v6417 = vadd.f32 %v5933, %v6222
      %v6418 = vadd.f32 %v5934, %v6222
      %v6419 = vadd.f32 %v5935, %v6222
      %v6420 = vadd.f32 %v5936, %v6222
      %v6421 = vadd.f32 %v5937, %v6222
      %v6422 = vadd.f32 %v5938, %v6222
      %v6423 = vadd.f32 %v5939, %v6222
      %v6424 = vadd.f32 %v5940, %v6222
      %v6425 = vadd.f32 %v5941, %v6222
      %v6426 = vadd.f32 %v5942, %v6222
      %v6427 = vadd.f32 %v5943, %v6222
      %v6428 = vadd.f32 %v5944, %v6222
      %v6429 = vadd.f32 %v5945, %v6222
      %v6430 = vadd.f32 %v5946, %v6222
      %v6431 = vadd.f32 %v5947, %v6222
      %v6432 = vadd.f32 %v5948, %v6222
      %v6433 = vadd.f32 %v5949, %v6222
      %v6434 = vadd.f32 %v5950, %v6222
      %v6435 = vadd.f32 %v5951, %v6222
      %v6436 = vadd.f32 %v5952, %v6222
      %v6437 = vadd.f32 %v5953, %v6222
      %v6438 = vadd.f32 %v5954, %v6222
      %v6439 = vadd.f32 %v5955, %v6222
      %v6440 = vadd.f32 %v5956, %v6222
      %v6441 = vadd.f32 %v5957, %v6222
      %v6442 = vadd.f32 %v5958, %v6222
      %v6443 = vadd.f32 %v5959, %v6222
      %v6444 = vadd.f32 %v5960, %v6222
      %v6445 = vadd.f32 %v5961, %v6222
      %v6446 = vadd.f32 %v5962, %v6222
      %v6447 = vadd.f32 %v5963, %v6222
      %v6448 = vadd.f32 %v5964, %v6222
      %v6449 = vadd.f32 %v5965, %v6222
      %v6450 = vadd.f32 %v5966, %v6222
      %v6451 = vadd.f32 %v5967, %v6222
      %v6452 = vadd.f32 %v5968, %v6222
      %v6453 = vadd.f32 %v5969, %v6222
      %v6454 = vadd.f32 %v5970, %v6222
      %v6455 = vadd.f32 %v5971, %v6222
      %v6456 = vadd.f32 %v5972, %v6222
      %v6457 = vadd.f32 %v5973, %v6222
      %v6458 = vadd.f32 %v5974, %v6222
      %v6459 = vadd.f32 %v5975, %v6222
      %v6460 = vadd.f32 %v5976, %v6222
      %v6461 = vadd.f32 %v5977, %v6222
      %v6462 = vadd.f32 %v5978, %v6222
      %v6463 = vadd.f32 %v5979, %v6222
      %v6464 = vadd.f32 %v5980, %v6222
      %v6465 = vadd.f32 %v5981, %v6222
      %v6466 = vadd.f32 %v5982, %v6222
      %v6467 = vadd.f32 %v5983, %v6222
      %v6468 = vadd.f32 %v5984, %v6222
      %v6469 = vadd.f32 %v5985, %v6222
      %v6470 = vadd.f32 %v5986, %v6222
      %v6471 = vadd.f32 %v5987, %v6222
      %v6472 = vadd.f32 %v5988, %v6222
      %v6473 = vadd.f32 %v5989, %v6222
      %v6474 = vadd.f32 %v5990, %v6222
      %v6475 = vadd.f32 %v5991, %v6222
      %v6476 = vadd.f32 %v5992, %v6222
      %v6477 = vadd.f32 %v5993, %v6222
      %v6478 = vadd.f32 %v5994, %v6222
      %v6479 = vadd.f32 %v5995, %v6222
      %v6480 = vadd.f32 %v5996, %v6222
      %v6481 = vadd.f32 %v5997, %v6222
      %v6482 = vadd.f32 %v5998, %v6222
      %v6483 = vadd.f32 %v5999, %v6222
      %v6484 = vadd.f32 %v6000, %v6222
      %v6485 = vadd.f32 %v6001, %v6222
      %v6486 = vadd.f32 %v6002, %v6222
      %v6487 = vadd.f32 %v6003, %v6222
      %v6488 = vadd.f32 %v6004, %v6222
      %v6489 = vadd.f32 %v6005, %v6222
      %v6490 = vadd.f32 %v6006, %v6222
      %v6491 = vadd.f32 %v6007, %v6222
      %v6492 = vadd.f32 %v6008, %v6222
      %v6493 = vadd.f32 %v6009, %v6222
      %v6494 = vadd.f32 %v6010, %v6222
      %v6495 = vadd.f32 %v6011, %v6222
      %v6496 = vadd.f32 %v6012, %v6222
      %v6497 = vadd.f32 %v6013, %v6222
      %v6498 = vadd.f32 %v6014, %v6222
      %v6499 = vadd.f32 %v6015, %v6222
      %v6500 = vadd.f32 %v6016, %v6222
      %v6501 = vadd.f32 %v6017, %v6222
      %v6502 = vadd.f32 %v6018, %v6222
      %v6503 = vadd.f32 %v6019, %v6222
      %v6504 = vadd.f32 %v6020, %v6222
      %v6505 = vadd.f32 %v6021, %v6222
      %v6506 = vadd.f32 %v6022, %v6222
      %v6507 = vadd.f32 %v6023, %v6222
      %v6508 = vadd.f32 %v6024, %v6222
      %v6509 = vadd.f32 %v6025, %v6222
      %v6510 = vadd.f32 %v6026, %v6222
      %v6511 = vadd.f32 %v6027, %v6222
      %v6512 = vadd.f32 %v6028, %v6222
      %v6513 = vadd.f32 %v6029, %v6222
      %v6514 = vadd.f32 %v6030, %v6222
      %v6515 = vadd.f32 %v6031, %v6222
      %v6516 = vadd.f32 %v6032, %v6222
      %v6517 = vadd.f32 %v6033, %v6222
      %v6518 = vadd.f32 %v6034, %v6222
      %v6519 = vadd.f32 %v6035, %v6222
      %v6520 = vadd.f32 %v6036, %v6222
      %v6521 = vadd.f32 %v6037, %v6222
      %v6522 = vadd.f32 %v6038, %v6222
      %v6523 = vadd.f32 %v6039, %v6222
      %v6524 = vadd.f32 %v6040, %v6222
      %v6525 = vadd.f32 %v6041, %v6222
      %v6526 = vadd.f32 %v6042, %v6222
      %v6527 = vadd.f32 %v6043, %v6222
      %v6528 = vadd.f32 %v6044, %v6222
      %v6529 = vadd.f32 %v6045, %v6222
      %v6530 = vadd.f32 %v6046, %v6222
      %v6531 = vadd.f32 %v6047, %v6222
      %v6532 = vadd.f32 %v6048, %v6222
      %v6533 = vadd.f32 %v6049, %v6222
      %v6534 = vadd.f32 %v6050, %v6222
      %v6535 = vadd.f32 %v6051, %v6222
      %v6536 = vadd.f32 %v6052, %v6222
      %v6537 = vadd.f32 %v6053, %v6222
      %v6538 = vadd.f32 %v6054, %v6222
      %v6539 = vadd.f32 %v6055, %v6222
      %v6540 = vadd.f32 %v6056, %v6222
      %v6541 = vadd.f32 %v6057, %v6222
      %v6542 = vadd.f32 %v6058, %v6222
      %v6543 = vadd.f32 %v6059, %v6222
      %v6544 = vadd.f32 %v6060, %v6222
      %v6545 = vadd.f32 %v6061, %v6222
      %v6546 = vadd.f32 %v6062, %v6222
      %v6547 = vadd.f32 %v6063, %v6222
      %v6548 = vadd.f32 %v6064, %v6222
      %v6549 = vadd.f32 %v6065, %v6222
      %v6550 = vadd.f32 %v6066, %v6222
      %v6551 = vadd.f32 %v6067, %v6222
      %v6552 = vadd.f32 %v6068, %v6222
      %v6553 = vadd.f32 %v6069, %v6222
      %v6554 = vadd.f32 %v6070, %v6222
      %v6555 = vadd.f32 %v6071, %v6222
      %v6556 = vadd.f32 %v6072, %v6222
      %v6557 = vadd.f32 %v6073, %v6222
      %v6558 = vadd.f32 %v6074, %v6222
      %v6559 = vadd.f32 %v6075, %v6222
      %v6560 = vadd.f32 %v6076, %v6222
      %v6561 = vadd.f32 %v6077, %v6222
      %v6562 = vadd.f32 %v6078, %v6222
      %v6563 = vadd.f32 %v6079, %v6222
      %v6564 = vadd.f32 %v6080, %v6222
      %v6565 = vadd.f32 %v6081, %v6222
      %v6566 = vadd.f32 %v6082, %v6222
      %v6567 = vadd.f32 %v6083, %v6222
      %v6568 = vadd.f32 %v6084, %v6222
      %v6569 = vadd.f32 %v6085, %v6222
      %v6570 = vadd.f32 %v6086, %v6222
      %v6571 = vadd.f32 %v6087, %v6222
      %v6572 = vadd.f32 %v6088, %v6222
      %v6573 = vadd.f32 %v6089, %v6222
      %v6574 = vadd.f32 %v6090, %v6222
      %v6575 = vadd.f32 %v6091, %v6222
      %v6576 = vadd.f32 %v6092, %v6222
      %v6577 = vadd.f32 %v6093, %v6222
      %v6578 = vadd.f32 %v6094, %v6222
      %v6579 = vadd.f32 %v6095, %v6222
      %v6580 = vadd.f32 %v6096, %v6222
      %v6581 = vadd.f32 %v6097, %v6222
      %v6582 = vadd.f32 %v6098, %v6222
      %v6583 = vadd.f32 %v6099, %v6222
      %v6584 = vadd.f32 %v6100, %v6222
      %v6585 = vadd.f32 %v6101, %v6222
      %v6586 = vadd.f32 %v6102, %v6222
      %v6587 = vadd.f32 %v6103, %v6222
      %v6588 = vadd.f32 %v6104, %v6222
      %v6589 = vadd.f32 %v6105, %v6222
      %v6590 = vadd.f32 %v6106, %v6222
      %v6591 = vadd.f32 %v6107, %v6222
      %v6592 = vadd.f32 %v6108, %v6222
      %v6593 = vadd.f32 %v6109, %v6222
      %v6594 = vadd.f32 %v6110, %v6222
      %v6595 = vadd.f32 %v6111, %v6222
      %v6596 = vadd.f32 %v6112, %v6222
      %v6597 = vadd.f32 %v6113, %v6222
      %v6598 = vadd.f32 %v6114, %v6222
      %v6599 = vadd.f32 %v6115, %v6222
      %v6600 = vadd.f32 %v6116, %v6222
      %v6601 = vadd.f32 %v6117, %v6222
      %v6602 = vadd.f32 %v6118, %v6222
      %v6603 = vadd.f32 %v6119, %v6222
      %v6604 = vadd.f32 %v6120, %v6222
      %v6605 = vadd.f32 %v6121, %v6222
      %v6606 = vadd.f32 %v6122, %v6222
      %v6607 = vadd.f32 %v6123, %v6222
      %v6608 = vadd.f32 %v6124, %v6222
      %v6609 = vadd.f32 %v6125, %v6222
      %v6610 = vadd.f32 %v6126, %v6222
      %v6611 = vadd.f32 %v6127, %v6222
      %v6612 = vadd.f32 %v6128, %v6222
      %v6613 = vadd.f32 %v6129, %v6222
      %v6614 = vadd.f32 %v6130, %v6222
      %v6615 = vadd.f32 %v6131, %v6222
      %v6616 = vadd.f32 %v6132, %v6222
      %v6617 = vadd.f32 %v6133, %v6222
      %v6618 = vadd.f32 %v6134, %v6222
      %v6619 = vadd.f32 %v6135, %v6222
      %v6620 = vadd.f32 %v6136, %v6222
      %v6621 = vadd.f32 %v6137, %v6222
      %v6622 = vadd.f32 %v6138, %v6222
      %v6623 = vadd.f32 %v6139, %v6222
      %v6624 = vadd.f32 %v6140, %v6222
      %v6625 = vadd.f32 %v6141, %v6222
      %v6626 = vadd.f32 %v6142, %v6222
      %v6627 = vadd.f32 %v6143, %v6222
      %v6628 = vadd.f32 %v6144, %v6222
      %v6629 = vadd.f32 %v6145, %v6222
      %v6630 = vadd.f32 %v6146, %v6222
      %v6631 = vadd.f32 %v6147, %v6222
      %v6632 = vadd.f32 %v6148, %v6222
      %v6633 = vadd.f32 %v6149, %v6222
      %v6634 = vadd.f32 %v6150, %v6222
      %v6635 = vadd.f32 %v6151, %v6222
      %v6636 = vadd.f32 %v6152, %v6222
      %v6637 = vadd.f32 %v6153, %v6222
      %v6638 = vadd.f32 %v6154, %v6222
      %v6639 = vadd.f32 %v6155, %v6222
      %v6640 = vadd.f32 %v6156, %v6222
      %v6641 = vadd.f32 %v6157, %v6222
      %v6642 = vadd.f32 %v6158, %v6222
      %v6643 = vadd.f32 %v6159, %v6222
      %v6644 = vadd.f32 %v6160, %v6222
      %v6645 = vadd.f32 %v6161, %v6222
      %v6646 = vadd.f32 %v6162, %v6222
      %v6647 = vadd.f32 %v6163, %v6222
      %v6648 = vadd.f32 %v6164, %v6222
      %v6649 = vadd.f32 %v6165, %v6222
      %v6650 = vadd.f32 %v6166, %v6222
      %v6651 = vadd.f32 %v6167, %v6222
      %v6652 = vadd.f32 %v6168, %v6222
      %v6653 = vadd.f32 %v6169, %v6222
      %v6654 = vadd.f32 %v6170, %v6222
      %v6655 = vadd.f32 %v6171, %v6222
      %v6656 = vadd.f32 %v6172, %v6222
      %v6657 = vadd.f32 %v6173, %v6222
      %v6658 = vadd.f32 %v6174, %v6222
      %v6659 = vadd.f32 %v6175, %v6222
      %v6660 = vadd.f32 %v6176, %v6222
      %v6661 = vadd.f32 %v6177, %v6222
      %v6662 = vadd.f32 %v6178, %v6222
      %v6663 = vadd.f32 %v6179, %v6222
      %v6664 = vadd.f32 %v6180, %v6222
      %v6665 = vadd.f32 %v6181, %v6222
      %v6666 = vadd.f32 %v6182, %v6222
      %v6667 = vadd.f32 %v6183, %v6222
      %v6668 = vadd.f32 %v6184, %v6222
      %v6669 = vadd.f32 %v6185, %v6222
      %v6670 = vadd.f32 %v6186, %v6222
      %v6671 = vadd.f32 %v6187, %v6222
      %v6672 = vadd.f32 %v6188, %v6222
      %v6673 = vadd.f32 %v6189, %v6222
      %v6674 = vadd.f32 %v6190, %v6222
      %v6675 = vadd.f32 %v6191, %v6222
      %v6676 = vadd.f32 %v6192, %v6222
      %v6677 = vadd.f32 %v6193, %v6222
      %v6678 = vadd.f32 %v6194, %v6222
      %v6679 = vadd.f32 %v6195, %v6222
      %v6680 = vadd.f32 %v6196, %v6222
      %v6681 = vadd.f32 %v6197, %v6222
      %v6682 = vadd.f32 %v6198, %v6222
      %v6683 = vadd.f32 %v6199, %v6222
      %v6684 = vadd.f32 %v6200, %v6222
      %v6685 = vadd.f32 %v6201, %v6222
      %v6686 = vadd.f32 %v6202, %v6222
      %v6687 = vadd.f32 %v6203, %v6222
      %v6688 = vadd.f32 %v6204, %v6222
      %v6689 = vadd.f32 %v6205, %v6222
      %v6690 = vadd.f32 %v6206, %v6222
      %v6691 = vadd.f32 %v6207, %v6222
      %v6692 = vadd.f32 %v6208, %v6222
      %v6693 = vadd.f32 %v6209, %v6222
      %v6694 = vadd.f32 %v6210, %v6222
      %v6695 = vadd.f32 %v6211, %v6222
      %v6696 = vadd.f32 %v6212, %v6222
      %v6697 = vadd.f32 %v6213, %v6222
      %v6698 = vadd.f32 %v6214, %v6222
      %v6699 = vadd.f32 %v6215, %v6222
      %v6700 = vadd.f32 %v6216, %v6222
      %v6701 = vadd.f32 %v6217, %v6222
      %v6702 = vadd.f32 %v6218, %v6222
      %v6703 = vadd.f32 %v6219, %v6222
      %v6704 = vpack.c.bf16 %v6224, %v6224
      %v6705 = vpack.c.bf16 %v6225, %v6225
      %v6706 = vpack.c.bf16 %v6226, %v6226
      %v6707 = vpack.c.bf16 %v6227, %v6227
      %v6708 = vpack.c.bf16 %v6228, %v6228
      %v6709 = vpack.c.bf16 %v6229, %v6229
      %v6710 = vpack.c.bf16 %v6230, %v6230
      %v6711 = vpack.c.bf16 %v6231, %v6231
      %v6712 = vpack.c.bf16 %v6232, %v6232
      %v6713 = vpack.c.bf16 %v6233, %v6233
      %v6714 = vpack.c.bf16 %v6234, %v6234
      %v6715 = vpack.c.bf16 %v6235, %v6235
      %v6716 = vpack.c.bf16 %v6236, %v6236
      %v6717 = vpack.c.bf16 %v6237, %v6237
      %v6718 = vpack.c.bf16 %v6238, %v6238
      %v6719 = vpack.c.bf16 %v6239, %v6239
      %v6720 = vpack.c.bf16 %v6240, %v6240
      %v6721 = vpack.c.bf16 %v6241, %v6241
      %v6722 = vpack.c.bf16 %v6242, %v6242
      %v6723 = vpack.c.bf16 %v6243, %v6243
      %v6724 = vpack.c.bf16 %v6244, %v6244
      %v6725 = vpack.c.bf16 %v6245, %v6245
      %v6726 = vpack.c.bf16 %v6246, %v6246
      %v6727 = vpack.c.bf16 %v6247, %v6247
      %v6728 = vpack.c.bf16 %v6248, %v6248
      %v6729 = vpack.c.bf16 %v6249, %v6249
      %v6730 = vpack.c.bf16 %v6250, %v6250
      %v6731 = vpack.c.bf16 %v6251, %v6251
      %v6732 = vpack.c.bf16 %v6252, %v6252
      %v6733 = vpack.c.bf16 %v6253, %v6253
      %v6734 = vpack.c.bf16 %v6254, %v6254
      %v6735 = vpack.c.bf16 %v6255, %v6255
      %v6736 = vpack.c.bf16 %v6256, %v6256
      %v6737 = vpack.c.bf16 %v6257, %v6257
      %v6738 = vpack.c.bf16 %v6258, %v6258
      %v6739 = vpack.c.bf16 %v6259, %v6259
      %v6740 = vpack.c.bf16 %v6260, %v6260
      %v6741 = vpack.c.bf16 %v6261, %v6261
      %v6742 = vpack.c.bf16 %v6262, %v6262
      %v6743 = vpack.c.bf16 %v6263, %v6263
      %v6744 = vpack.c.bf16 %v6264, %v6264
      %v6745 = vpack.c.bf16 %v6265, %v6265
      %v6746 = vpack.c.bf16 %v6266, %v6266
      %v6747 = vpack.c.bf16 %v6267, %v6267
      %v6748 = vpack.c.bf16 %v6268, %v6268
      %v6749 = vpack.c.bf16 %v6269, %v6269
      %v6750 = vpack.c.bf16 %v6270, %v6270
      %v6751 = vpack.c.bf16 %v6271, %v6271
      %v6752 = vpack.c.bf16 %v6272, %v6272
      %v6753 = vpack.c.bf16 %v6273, %v6273
      %v6754 = vpack.c.bf16 %v6274, %v6274
      %v6755 = vpack.c.bf16 %v6275, %v6275
      %v6756 = vpack.c.bf16 %v6276, %v6276
      %v6757 = vpack.c.bf16 %v6277, %v6277
      %v6758 = vpack.c.bf16 %v6278, %v6278
      %v6759 = vpack.c.bf16 %v6279, %v6279
      %v6760 = vpack.c.bf16 %v6280, %v6280
      %v6761 = vpack.c.bf16 %v6281, %v6281
      %v6762 = vpack.c.bf16 %v6282, %v6282
      %v6763 = vpack.c.bf16 %v6283, %v6283
      %v6764 = vpack.c.bf16 %v6284, %v6284
      %v6765 = vpack.c.bf16 %v6285, %v6285
      %v6766 = vpack.c.bf16 %v6286, %v6286
      %v6767 = vpack.c.bf16 %v6287, %v6287
      %v6768 = vpack.c.bf16 %v6288, %v6288
      %v6769 = vpack.c.bf16 %v6289, %v6289
      %v6770 = vpack.c.bf16 %v6290, %v6290
      %v6771 = vpack.c.bf16 %v6291, %v6291
      %v6772 = vpack.c.bf16 %v6292, %v6292
      %v6773 = vpack.c.bf16 %v6293, %v6293
      %v6774 = vpack.c.bf16 %v6294, %v6294
      %v6775 = vpack.c.bf16 %v6295, %v6295
      %v6776 = vpack.c.bf16 %v6296, %v6296
      %v6777 = vpack.c.bf16 %v6297, %v6297
      %v6778 = vpack.c.bf16 %v6298, %v6298
      %v6779 = vpack.c.bf16 %v6299, %v6299
      %v6780 = vpack.c.bf16 %v6300, %v6300
      %v6781 = vpack.c.bf16 %v6301, %v6301
      %v6782 = vpack.c.bf16 %v6302, %v6302
      %v6783 = vpack.c.bf16 %v6303, %v6303
      %v6784 = vpack.c.bf16 %v6304, %v6304
      %v6785 = vpack.c.bf16 %v6305, %v6305
      %v6786 = vpack.c.bf16 %v6306, %v6306
      %v6787 = vpack.c.bf16 %v6307, %v6307
      %v6788 = vpack.c.bf16 %v6308, %v6308
      %v6789 = vpack.c.bf16 %v6309, %v6309
      %v6790 = vpack.c.bf16 %v6310, %v6310
      %v6791 = vpack.c.bf16 %v6311, %v6311
      %v6792 = vpack.c.bf16 %v6312, %v6312
      %v6793 = vpack.c.bf16 %v6313, %v6313
      %v6794 = vpack.c.bf16 %v6314, %v6314
      %v6795 = vpack.c.bf16 %v6315, %v6315
      %v6796 = vpack.c.bf16 %v6316, %v6316
      %v6797 = vpack.c.bf16 %v6317, %v6317
      %v6798 = vpack.c.bf16 %v6318, %v6318
      %v6799 = vpack.c.bf16 %v6319, %v6319
      %v6800 = vpack.c.bf16 %v6320, %v6320
      %v6801 = vpack.c.bf16 %v6321, %v6321
      %v6802 = vpack.c.bf16 %v6322, %v6322
      %v6803 = vpack.c.bf16 %v6323, %v6323
      %v6804 = vpack.c.bf16 %v6324, %v6324
      %v6805 = vpack.c.bf16 %v6325, %v6325
      %v6806 = vpack.c.bf16 %v6326, %v6326
      %v6807 = vpack.c.bf16 %v6327, %v6327
      %v6808 = vpack.c.bf16 %v6328, %v6328
      %v6809 = vpack.c.bf16 %v6329, %v6329
      %v6810 = vpack.c.bf16 %v6330, %v6330
      %v6811 = vpack.c.bf16 %v6331, %v6331
      %v6812 = vpack.c.bf16 %v6332, %v6332
      %v6813 = vpack.c.bf16 %v6333, %v6333
      %v6814 = vpack.c.bf16 %v6334, %v6334
      %v6815 = vpack.c.bf16 %v6335, %v6335
      %v6816 = vpack.c.bf16 %v6336, %v6336
      %v6817 = vpack.c.bf16 %v6337, %v6337
      %v6818 = vpack.c.bf16 %v6338, %v6338
      %v6819 = vpack.c.bf16 %v6339, %v6339
      %v6820 = vpack.c.bf16 %v6340, %v6340
      %v6821 = vpack.c.bf16 %v6341, %v6341
      %v6822 = vpack.c.bf16 %v6342, %v6342
      %v6823 = vpack.c.bf16 %v6343, %v6343
      %v6824 = vpack.c.bf16 %v6344, %v6344
      %v6825 = vpack.c.bf16 %v6345, %v6345
      %v6826 = vpack.c.bf16 %v6346, %v6346
      %v6827 = vpack.c.bf16 %v6347, %v6347
      %v6828 = vpack.c.bf16 %v6348, %v6348
      %v6829 = vpack.c.bf16 %v6349, %v6349
      %v6830 = vpack.c.bf16 %v6350, %v6350
      %v6831 = vpack.c.bf16 %v6351, %v6351
      %v6832 = vpack.c.bf16 %v6352, %v6352
      %v6833 = vpack.c.bf16 %v6353, %v6353
      %v6834 = vpack.c.bf16 %v6354, %v6354
      %v6835 = vpack.c.bf16 %v6355, %v6355
      %v6836 = vpack.c.bf16 %v6356, %v6356
      %v6837 = vpack.c.bf16 %v6357, %v6357
      %v6838 = vpack.c.bf16 %v6358, %v6358
      %v6839 = vpack.c.bf16 %v6359, %v6359
      %v6840 = vpack.c.bf16 %v6360, %v6360
      %v6841 = vpack.c.bf16 %v6361, %v6361
      %v6842 = vpack.c.bf16 %v6362, %v6362
      %v6843 = vpack.c.bf16 %v6363, %v6363
      %v6844 = vpack.c.bf16 %v6364, %v6364
      %v6845 = vpack.c.bf16 %v6365, %v6365
      %v6846 = vpack.c.bf16 %v6366, %v6366
      %v6847 = vpack.c.bf16 %v6367, %v6367
      %v6848 = vpack.c.bf16 %v6368, %v6368
      %v6849 = vpack.c.bf16 %v6369, %v6369
      %v6850 = vpack.c.bf16 %v6370, %v6370
      %v6851 = vpack.c.bf16 %v6371, %v6371
      %v6852 = vpack.c.bf16 %v6372, %v6372
      %v6853 = vpack.c.bf16 %v6373, %v6373
      %v6854 = vpack.c.bf16 %v6374, %v6374
      %v6855 = vpack.c.bf16 %v6375, %v6375
      %v6856 = vpack.c.bf16 %v6376, %v6376
      %v6857 = vpack.c.bf16 %v6377, %v6377
      %v6858 = vpack.c.bf16 %v6378, %v6378
      %v6859 = vpack.c.bf16 %v6379, %v6379
      %v6860 = vpack.c.bf16 %v6380, %v6380
      %v6861 = vpack.c.bf16 %v6381, %v6381
      %v6862 = vpack.c.bf16 %v6382, %v6382
      %v6863 = vpack.c.bf16 %v6383, %v6383
      %v6864 = vpack.c.bf16 %v6384, %v6384
      %v6865 = vpack.c.bf16 %v6385, %v6385
      %v6866 = vpack.c.bf16 %v6386, %v6386
      %v6867 = vpack.c.bf16 %v6387, %v6387
      %v6868 = vpack.c.bf16 %v6388, %v6388
      %v6869 = vpack.c.bf16 %v6389, %v6389
      %v6870 = vpack.c.bf16 %v6390, %v6390
      %v6871 = vpack.c.bf16 %v6391, %v6391
      %v6872 = vpack.c.bf16 %v6392, %v6392
      %v6873 = vpack.c.bf16 %v6393, %v6393
      %v6874 = vpack.c.bf16 %v6394, %v6394
      %v6875 = vpack.c.bf16 %v6395, %v6395
      %v6876 = vpack.c.bf16 %v6396, %v6396
      %v6877 = vpack.c.bf16 %v6397, %v6397
      %v6878 = vpack.c.bf16 %v6398, %v6398
      %v6879 = vpack.c.bf16 %v6399, %v6399
      %v6880 = vpack.c.bf16 %v6400, %v6400
      %v6881 = vpack.c.bf16 %v6401, %v6401
      %v6882 = vpack.c.bf16 %v6402, %v6402
      %v6883 = vpack.c.bf16 %v6403, %v6403
      %v6884 = vpack.c.bf16 %v6404, %v6404
      %v6885 = vpack.c.bf16 %v6405, %v6405
      %v6886 = vpack.c.bf16 %v6406, %v6406
      %v6887 = vpack.c.bf16 %v6407, %v6407
      %v6888 = vpack.c.bf16 %v6408, %v6408
      %v6889 = vpack.c.bf16 %v6409, %v6409
      %v6890 = vpack.c.bf16 %v6410, %v6410
      %v6891 = vpack.c.bf16 %v6411, %v6411
      %v6892 = vpack.c.bf16 %v6412, %v6412
      %v6893 = vpack.c.bf16 %v6413, %v6413
      %v6894 = vpack.c.bf16 %v6414, %v6414
      %v6895 = vpack.c.bf16 %v6415, %v6415
      %v6896 = vpack.c.bf16 %v6416, %v6416
      %v6897 = vpack.c.bf16 %v6417, %v6417
      %v6898 = vpack.c.bf16 %v6418, %v6418
      %v6899 = vpack.c.bf16 %v6419, %v6419
      %v6900 = vpack.c.bf16 %v6420, %v6420
      %v6901 = vpack.c.bf16 %v6421, %v6421
      %v6902 = vpack.c.bf16 %v6422, %v6422
      %v6903 = vpack.c.bf16 %v6423, %v6423
      %v6904 = vpack.c.bf16 %v6424, %v6424
      %v6905 = vpack.c.bf16 %v6425, %v6425
      %v6906 = vpack.c.bf16 %v6426, %v6426
      %v6907 = vpack.c.bf16 %v6427, %v6427
      %v6908 = vpack.c.bf16 %v6428, %v6428
      %v6909 = vpack.c.bf16 %v6429, %v6429
      %v6910 = vpack.c.bf16 %v6430, %v6430
      %v6911 = vpack.c.bf16 %v6431, %v6431
      %v6912 = vpack.c.bf16 %v6432, %v6432
      %v6913 = vpack.c.bf16 %v6433, %v6433
      %v6914 = vpack.c.bf16 %v6434, %v6434
      %v6915 = vpack.c.bf16 %v6435, %v6435
      %v6916 = vpack.c.bf16 %v6436, %v6436
      %v6917 = vpack.c.bf16 %v6437, %v6437
      %v6918 = vpack.c.bf16 %v6438, %v6438
      %v6919 = vpack.c.bf16 %v6439, %v6439
      %v6920 = vpack.c.bf16 %v6440, %v6440
      %v6921 = vpack.c.bf16 %v6441, %v6441
      %v6922 = vpack.c.bf16 %v6442, %v6442
      %v6923 = vpack.c.bf16 %v6443, %v6443
      %v6924 = vpack.c.bf16 %v6444, %v6444
      %v6925 = vpack.c.bf16 %v6445, %v6445
      %v6926 = vpack.c.bf16 %v6446, %v6446
      %v6927 = vpack.c.bf16 %v6447, %v6447
      %v6928 = vpack.c.bf16 %v6448, %v6448
      %v6929 = vpack.c.bf16 %v6449, %v6449
      %v6930 = vpack.c.bf16 %v6450, %v6450
      %v6931 = vpack.c.bf16 %v6451, %v6451
      %v6932 = vpack.c.bf16 %v6452, %v6452
      %v6933 = vpack.c.bf16 %v6453, %v6453
      %v6934 = vpack.c.bf16 %v6454, %v6454
      %v6935 = vpack.c.bf16 %v6455, %v6455
      %v6936 = vpack.c.bf16 %v6456, %v6456
      %v6937 = vpack.c.bf16 %v6457, %v6457
      %v6938 = vpack.c.bf16 %v6458, %v6458
      %v6939 = vpack.c.bf16 %v6459, %v6459
      %v6940 = vpack.c.bf16 %v6460, %v6460
      %v6941 = vpack.c.bf16 %v6461, %v6461
      %v6942 = vpack.c.bf16 %v6462, %v6462
      %v6943 = vpack.c.bf16 %v6463, %v6463
      %v6944 = vpack.c.bf16 %v6464, %v6464
      %v6945 = vpack.c.bf16 %v6465, %v6465
      %v6946 = vpack.c.bf16 %v6466, %v6466
      %v6947 = vpack.c.bf16 %v6467, %v6467
      %v6948 = vpack.c.bf16 %v6468, %v6468
      %v6949 = vpack.c.bf16 %v6469, %v6469
      %v6950 = vpack.c.bf16 %v6470, %v6470
      %v6951 = vpack.c.bf16 %v6471, %v6471
      %v6952 = vpack.c.bf16 %v6472, %v6472
      %v6953 = vpack.c.bf16 %v6473, %v6473
      %v6954 = vpack.c.bf16 %v6474, %v6474
      %v6955 = vpack.c.bf16 %v6475, %v6475
      %v6956 = vpack.c.bf16 %v6476, %v6476
      %v6957 = vpack.c.bf16 %v6477, %v6477
      %v6958 = vpack.c.bf16 %v6478, %v6478
      %v6959 = vpack.c.bf16 %v6479, %v6479
      %v6960 = vpack.c.bf16 %v6480, %v6480
      %v6961 = vpack.c.bf16 %v6481, %v6481
      %v6962 = vpack.c.bf16 %v6482, %v6482
      %v6963 = vpack.c.bf16 %v6483, %v6483
      %v6964 = vpack.c.bf16 %v6484, %v6484
      %v6965 = vpack.c.bf16 %v6485, %v6485
      %v6966 = vpack.c.bf16 %v6486, %v6486
      %v6967 = vpack.c.bf16 %v6487, %v6487
      %v6968 = vpack.c.bf16 %v6488, %v6488
      %v6969 = vpack.c.bf16 %v6489, %v6489
      %v6970 = vpack.c.bf16 %v6490, %v6490
      %v6971 = vpack.c.bf16 %v6491, %v6491
      %v6972 = vpack.c.bf16 %v6492, %v6492
      %v6973 = vpack.c.bf16 %v6493, %v6493
      %v6974 = vpack.c.bf16 %v6494, %v6494
      %v6975 = vpack.c.bf16 %v6495, %v6495
      %v6976 = vpack.c.bf16 %v6496, %v6496
      %v6977 = vpack.c.bf16 %v6497, %v6497
      %v6978 = vpack.c.bf16 %v6498, %v6498
      %v6979 = vpack.c.bf16 %v6499, %v6499
      %v6980 = vpack.c.bf16 %v6500, %v6500
      %v6981 = vpack.c.bf16 %v6501, %v6501
      %v6982 = vpack.c.bf16 %v6502, %v6502
      %v6983 = vpack.c.bf16 %v6503, %v6503
      %v6984 = vpack.c.bf16 %v6504, %v6504
      %v6985 = vpack.c.bf16 %v6505, %v6505
      %v6986 = vpack.c.bf16 %v6506, %v6506
      %v6987 = vpack.c.bf16 %v6507, %v6507
      %v6988 = vpack.c.bf16 %v6508, %v6508
      %v6989 = vpack.c.bf16 %v6509, %v6509
      %v6990 = vpack.c.bf16 %v6510, %v6510
      %v6991 = vpack.c.bf16 %v6511, %v6511
      %v6992 = vpack.c.bf16 %v6512, %v6512
      %v6993 = vpack.c.bf16 %v6513, %v6513
      %v6994 = vpack.c.bf16 %v6514, %v6514
      %v6995 = vpack.c.bf16 %v6515, %v6515
      %v6996 = vpack.c.bf16 %v6516, %v6516
      %v6997 = vpack.c.bf16 %v6517, %v6517
      %v6998 = vpack.c.bf16 %v6518, %v6518
      %v6999 = vpack.c.bf16 %v6519, %v6519
      %v7000 = vpack.c.bf16 %v6520, %v6520
      %v7001 = vpack.c.bf16 %v6521, %v6521
      %v7002 = vpack.c.bf16 %v6522, %v6522
      %v7003 = vpack.c.bf16 %v6523, %v6523
      %v7004 = vpack.c.bf16 %v6524, %v6524
      %v7005 = vpack.c.bf16 %v6525, %v6525
      %v7006 = vpack.c.bf16 %v6526, %v6526
      %v7007 = vpack.c.bf16 %v6527, %v6527
      %v7008 = vpack.c.bf16 %v6528, %v6528
      %v7009 = vpack.c.bf16 %v6529, %v6529
      %v7010 = vpack.c.bf16 %v6530, %v6530
      %v7011 = vpack.c.bf16 %v6531, %v6531
      %v7012 = vpack.c.bf16 %v6532, %v6532
      %v7013 = vpack.c.bf16 %v6533, %v6533
      %v7014 = vpack.c.bf16 %v6534, %v6534
      %v7015 = vpack.c.bf16 %v6535, %v6535
      %v7016 = vpack.c.bf16 %v6536, %v6536
      %v7017 = vpack.c.bf16 %v6537, %v6537
      %v7018 = vpack.c.bf16 %v6538, %v6538
      %v7019 = vpack.c.bf16 %v6539, %v6539
      %v7020 = vpack.c.bf16 %v6540, %v6540
      %v7021 = vpack.c.bf16 %v6541, %v6541
      %v7022 = vpack.c.bf16 %v6542, %v6542
      %v7023 = vpack.c.bf16 %v6543, %v6543
      %v7024 = vpack.c.bf16 %v6544, %v6544
      %v7025 = vpack.c.bf16 %v6545, %v6545
      %v7026 = vpack.c.bf16 %v6546, %v6546
      %v7027 = vpack.c.bf16 %v6547, %v6547
      %v7028 = vpack.c.bf16 %v6548, %v6548
      %v7029 = vpack.c.bf16 %v6549, %v6549
      %v7030 = vpack.c.bf16 %v6550, %v6550
      %v7031 = vpack.c.bf16 %v6551, %v6551
      %v7032 = vpack.c.bf16 %v6552, %v6552
      %v7033 = vpack.c.bf16 %v6553, %v6553
      %v7034 = vpack.c.bf16 %v6554, %v6554
      %v7035 = vpack.c.bf16 %v6555, %v6555
      %v7036 = vpack.c.bf16 %v6556, %v6556
      %v7037 = vpack.c.bf16 %v6557, %v6557
      %v7038 = vpack.c.bf16 %v6558, %v6558
      %v7039 = vpack.c.bf16 %v6559, %v6559
      %v7040 = vpack.c.bf16 %v6560, %v6560
      %v7041 = vpack.c.bf16 %v6561, %v6561
      %v7042 = vpack.c.bf16 %v6562, %v6562
      %v7043 = vpack.c.bf16 %v6563, %v6563
      %v7044 = vpack.c.bf16 %v6564, %v6564
      %v7045 = vpack.c.bf16 %v6565, %v6565
      %v7046 = vpack.c.bf16 %v6566, %v6566
      %v7047 = vpack.c.bf16 %v6567, %v6567
      %v7048 = vpack.c.bf16 %v6568, %v6568
      %v7049 = vpack.c.bf16 %v6569, %v6569
      %v7050 = vpack.c.bf16 %v6570, %v6570
      %v7051 = vpack.c.bf16 %v6571, %v6571
      %v7052 = vpack.c.bf16 %v6572, %v6572
      %v7053 = vpack.c.bf16 %v6573, %v6573
      %v7054 = vpack.c.bf16 %v6574, %v6574
      %v7055 = vpack.c.bf16 %v6575, %v6575
      %v7056 = vpack.c.bf16 %v6576, %v6576
      %v7057 = vpack.c.bf16 %v6577, %v6577
      %v7058 = vpack.c.bf16 %v6578, %v6578
      %v7059 = vpack.c.bf16 %v6579, %v6579
      %v7060 = vpack.c.bf16 %v6580, %v6580
      %v7061 = vpack.c.bf16 %v6581, %v6581
      %v7062 = vpack.c.bf16 %v6582, %v6582
      %v7063 = vpack.c.bf16 %v6583, %v6583
      %v7064 = vpack.c.bf16 %v6584, %v6584
      %v7065 = vpack.c.bf16 %v6585, %v6585
      %v7066 = vpack.c.bf16 %v6586, %v6586
      %v7067 = vpack.c.bf16 %v6587, %v6587
      %v7068 = vpack.c.bf16 %v6588, %v6588
      %v7069 = vpack.c.bf16 %v6589, %v6589
      %v7070 = vpack.c.bf16 %v6590, %v6590
      %v7071 = vpack.c.bf16 %v6591, %v6591
      %v7072 = vpack.c.bf16 %v6592, %v6592
      %v7073 = vpack.c.bf16 %v6593, %v6593
      %v7074 = vpack.c.bf16 %v6594, %v6594
      %v7075 = vpack.c.bf16 %v6595, %v6595
      %v7076 = vpack.c.bf16 %v6596, %v6596
      %v7077 = vpack.c.bf16 %v6597, %v6597
      %v7078 = vpack.c.bf16 %v6598, %v6598
      %v7079 = vpack.c.bf16 %v6599, %v6599
      %v7080 = vpack.c.bf16 %v6600, %v6600
      %v7081 = vpack.c.bf16 %v6601, %v6601
      %v7082 = vpack.c.bf16 %v6602, %v6602
      %v7083 = vpack.c.bf16 %v6603, %v6603
      %v7084 = vpack.c.bf16 %v6604, %v6604
      %v7085 = vpack.c.bf16 %v6605, %v6605
      %v7086 = vpack.c.bf16 %v6606, %v6606
      %v7087 = vpack.c.bf16 %v6607, %v6607
      %v7088 = vpack.c.bf16 %v6608, %v6608
      %v7089 = vpack.c.bf16 %v6609, %v6609
      %v7090 = vpack.c.bf16 %v6610, %v6610
      %v7091 = vpack.c.bf16 %v6611, %v6611
      %v7092 = vpack.c.bf16 %v6612, %v6612
      %v7093 = vpack.c.bf16 %v6613, %v6613
      %v7094 = vpack.c.bf16 %v6614, %v6614
      %v7095 = vpack.c.bf16 %v6615, %v6615
      %v7096 = vpack.c.bf16 %v6616, %v6616
      %v7097 = vpack.c.bf16 %v6617, %v6617
      %v7098 = vpack.c.bf16 %v6618, %v6618
      %v7099 = vpack.c.bf16 %v6619, %v6619
      %v7100 = vpack.c.bf16 %v6620, %v6620
      %v7101 = vpack.c.bf16 %v6621, %v6621
      %v7102 = vpack.c.bf16 %v6622, %v6622
      %v7103 = vpack.c.bf16 %v6623, %v6623
      %v7104 = vpack.c.bf16 %v6624, %v6624
      %v7105 = vpack.c.bf16 %v6625, %v6625
      %v7106 = vpack.c.bf16 %v6626, %v6626
      %v7107 = vpack.c.bf16 %v6627, %v6627
      %v7108 = vpack.c.bf16 %v6628, %v6628
      %v7109 = vpack.c.bf16 %v6629, %v6629
      %v7110 = vpack.c.bf16 %v6630, %v6630
      %v7111 = vpack.c.bf16 %v6631, %v6631
      %v7112 = vpack.c.bf16 %v6632, %v6632
      %v7113 = vpack.c.bf16 %v6633, %v6633
      %v7114 = vpack.c.bf16 %v6634, %v6634
      %v7115 = vpack.c.bf16 %v6635, %v6635
      %v7116 = vpack.c.bf16 %v6636, %v6636
      %v7117 = vpack.c.bf16 %v6637, %v6637
      %v7118 = vpack.c.bf16 %v6638, %v6638
      %v7119 = vpack.c.bf16 %v6639, %v6639
      %v7120 = vpack.c.bf16 %v6640, %v6640
      %v7121 = vpack.c.bf16 %v6641, %v6641
      %v7122 = vpack.c.bf16 %v6642, %v6642
      %v7123 = vpack.c.bf16 %v6643, %v6643
      %v7124 = vpack.c.bf16 %v6644, %v6644
      %v7125 = vpack.c.bf16 %v6645, %v6645
      %v7126 = vpack.c.bf16 %v6646, %v6646
      %v7127 = vpack.c.bf16 %v6647, %v6647
      %v7128 = vpack.c.bf16 %v6648, %v6648
      %v7129 = vpack.c.bf16 %v6649, %v6649
      %v7130 = vpack.c.bf16 %v6650, %v6650
      %v7131 = vpack.c.bf16 %v6651, %v6651
      %v7132 = vpack.c.bf16 %v6652, %v6652
      %v7133 = vpack.c.bf16 %v6653, %v6653
      %v7134 = vpack.c.bf16 %v6654, %v6654
      %v7135 = vpack.c.bf16 %v6655, %v6655
      %v7136 = vpack.c.bf16 %v6656, %v6656
      %v7137 = vpack.c.bf16 %v6657, %v6657
      %v7138 = vpack.c.bf16 %v6658, %v6658
      %v7139 = vpack.c.bf16 %v6659, %v6659
      %v7140 = vpack.c.bf16 %v6660, %v6660
      %v7141 = vpack.c.bf16 %v6661, %v6661
      %v7142 = vpack.c.bf16 %v6662, %v6662
      %v7143 = vpack.c.bf16 %v6663, %v6663
      %v7144 = vpack.c.bf16 %v6664, %v6664
      %v7145 = vpack.c.bf16 %v6665, %v6665
      %v7146 = vpack.c.bf16 %v6666, %v6666
      %v7147 = vpack.c.bf16 %v6667, %v6667
      %v7148 = vpack.c.bf16 %v6668, %v6668
      %v7149 = vpack.c.bf16 %v6669, %v6669
      %v7150 = vpack.c.bf16 %v6670, %v6670
      %v7151 = vpack.c.bf16 %v6671, %v6671
      %v7152 = vpack.c.bf16 %v6672, %v6672
      %v7153 = vpack.c.bf16 %v6673, %v6673
      %v7154 = vpack.c.bf16 %v6674, %v6674
      %v7155 = vpack.c.bf16 %v6675, %v6675
      %v7156 = vpack.c.bf16 %v6676, %v6676
      %v7157 = vpack.c.bf16 %v6677, %v6677
      %v7158 = vpack.c.bf16 %v6678, %v6678
      %v7159 = vpack.c.bf16 %v6679, %v6679
      %v7160 = vpack.c.bf16 %v6680, %v6680
      %v7161 = vpack.c.bf16 %v6681, %v6681
      %v7162 = vpack.c.bf16 %v6682, %v6682
      %v7163 = vpack.c.bf16 %v6683, %v6683
      %v7164 = vpack.c.bf16 %v6684, %v6684
      %v7165 = vpack.c.bf16 %v6685, %v6685
      %v7166 = vpack.c.bf16 %v6686, %v6686
      %v7167 = vpack.c.bf16 %v6687, %v6687
      %v7168 = vpack.c.bf16 %v6688, %v6688
      %v7169 = vpack.c.bf16 %v6689, %v6689
      %v7170 = vpack.c.bf16 %v6690, %v6690
      %v7171 = vpack.c.bf16 %v6691, %v6691
      %v7172 = vpack.c.bf16 %v6692, %v6692
      %v7173 = vpack.c.bf16 %v6693, %v6693
      %v7174 = vpack.c.bf16 %v6694, %v6694
      %v7175 = vpack.c.bf16 %v6695, %v6695
      %v7176 = vpack.c.bf16 %v6696, %v6696
      %v7177 = vpack.c.bf16 %v6697, %v6697
      %v7178 = vpack.c.bf16 %v6698, %v6698
      %v7179 = vpack.c.bf16 %v6699, %v6699
      %v7180 = vpack.c.bf16 %v6700, %v6700
      %v7181 = vpack.c.bf16 %v6701, %v6701
      %v7182 = vpack.c.bf16 %v6702, %v6702
      %v7183 = vpack.c.bf16 %v6703, %v6703
      %vm7184 = vcmask 11264
      %7185 = vst.msk [vmem:[%s194] sm:$0xf] %vm7184, %v6704
      %7186 = vst.msk [vmem:[%s194 + $0x4] sm:$0xf] %vm7184, %v6705
      %7187 = vst.msk [vmem:[%s194 + $0x8] sm:$0xf] %vm7184, %v6706
      %7188 = vst.msk [vmem:[%s194 + $0xc] sm:$0xf] %vm7184, %v6707
      %7189 = vst.msk [vmem:[%s194 + $0x10] sm:$0xf] %vm7184, %v6708
      %7190 = vst.msk [vmem:[%s194 + $0x14] sm:$0xf] %vm7184, %v6709
      %7191 = vst.msk [vmem:[%s194 + $0x18] sm:$0xf] %vm7184, %v6710
      %7192 = vst.msk [vmem:[%s194 + $0x1c] sm:$0xf] %vm7184, %v6711
      %7193 = vst.msk [vmem:[%s194 + $0x20] sm:$0xf] %vm7184, %v6712
      %7194 = vst.msk [vmem:[%s194 + $0x24] sm:$0xf] %vm7184, %v6713
      %7195 = vst.msk [vmem:[%s194 + $0x28] sm:$0xf] %vm7184, %v6714
      %7196 = vst.msk [vmem:[%s194 + $0x2c] sm:$0xf] %vm7184, %v6715
      %7197 = vst.msk [vmem:[%s194 + $0x30] sm:$0xf] %vm7184, %v6716
      %7198 = vst.msk [vmem:[%s194 + $0x34] sm:$0xf] %vm7184, %v6717
      %7199 = vst.msk [vmem:[%s194 + $0x38] sm:$0xf] %vm7184, %v6718
      %7200 = vst.msk [vmem:[%s194 + $0x3c] sm:$0xf] %vm7184, %v6719
      %7201 = vst.msk [vmem:[%s194 + $0x40] sm:$0xf] %vm7184, %v6720
      %7202 = vst.msk [vmem:[%s194 + $0x44] sm:$0xf] %vm7184, %v6721
      %7203 = vst.msk [vmem:[%s194 + $0x48] sm:$0xf] %vm7184, %v6722
      %7204 = vst.msk [vmem:[%s194 + $0x4c] sm:$0xf] %vm7184, %v6723
      %7205 = vst.msk [vmem:[%s194 + $0x50] sm:$0xf] %vm7184, %v6724
      %7206 = vst.msk [vmem:[%s194 + $0x54] sm:$0xf] %vm7184, %v6725
      %7207 = vst.msk [vmem:[%s194 + $0x58] sm:$0xf] %vm7184, %v6726
      %7208 = vst.msk [vmem:[%s194 + $0x5c] sm:$0xf] %vm7184, %v6727
      %7209 = vst.msk [vmem:[%s194 + $0x60] sm:$0xf] %vm7184, %v6728
      %7210 = vst.msk [vmem:[%s194 + $0x64] sm:$0xf] %vm7184, %v6729
      %7211 = vst.msk [vmem:[%s194 + $0x68] sm:$0xf] %vm7184, %v6730
      %7212 = vst.msk [vmem:[%s194 + $0x6c] sm:$0xf] %vm7184, %v6731
      %7213 = vst.msk [vmem:[%s194 + $0x70] sm:$0xf] %vm7184, %v6732
      %7214 = vst.msk [vmem:[%s194 + $0x74] sm:$0xf] %vm7184, %v6733
      %7215 = vst.msk [vmem:[%s194 + $0x78] sm:$0xf] %vm7184, %v6734
      %7216 = vst.msk [vmem:[%s194 + $0x7c] sm:$0xf] %vm7184, %v6735
      %7217 = vst.msk [vmem:[%s194 + $0x80] sm:$0xf] %vm7184, %v6736
      %7218 = vst.msk [vmem:[%s194 + $0x84] sm:$0xf] %vm7184, %v6737
      %7219 = vst.msk [vmem:[%s194 + $0x88] sm:$0xf] %vm7184, %v6738
      %7220 = vst.msk [vmem:[%s194 + $0x8c] sm:$0xf] %vm7184, %v6739
      %7221 = vst.msk [vmem:[%s194 + $0x90] sm:$0xf] %vm7184, %v6740
      %7222 = vst.msk [vmem:[%s194 + $0x94] sm:$0xf] %vm7184, %v6741
      %7223 = vst.msk [vmem:[%s194 + $0x98] sm:$0xf] %vm7184, %v6742
      %7224 = vst.msk [vmem:[%s194 + $0x9c] sm:$0xf] %vm7184, %v6743
      %7225 = vst.msk [vmem:[%s194 + $0xa0] sm:$0xf] %vm7184, %v6744
      %7226 = vst.msk [vmem:[%s194 + $0xa4] sm:$0xf] %vm7184, %v6745
      %7227 = vst.msk [vmem:[%s194 + $0xa8] sm:$0xf] %vm7184, %v6746
      %7228 = vst.msk [vmem:[%s194 + $0xac] sm:$0xf] %vm7184, %v6747
      %7229 = vst.msk [vmem:[%s194 + $0xb0] sm:$0xf] %vm7184, %v6748
      %7230 = vst.msk [vmem:[%s194 + $0xb4] sm:$0xf] %vm7184, %v6749
      %7231 = vst.msk [vmem:[%s194 + $0xb8] sm:$0xf] %vm7184, %v6750
      %7232 = vst.msk [vmem:[%s194 + $0xbc] sm:$0xf] %vm7184, %v6751
      %7233 = vst.msk [vmem:[%s194 + $0xc0] sm:$0xf] %vm7184, %v6752
      %7234 = vst.msk [vmem:[%s194 + $0xc4] sm:$0xf] %vm7184, %v6753
      %7235 = vst.msk [vmem:[%s194 + $0xc8] sm:$0xf] %vm7184, %v6754
      %7236 = vst.msk [vmem:[%s194 + $0xcc] sm:$0xf] %vm7184, %v6755
      %7237 = vst.msk [vmem:[%s194 + $0xd0] sm:$0xf] %vm7184, %v6756
      %7238 = vst.msk [vmem:[%s194 + $0xd4] sm:$0xf] %vm7184, %v6757
      %7239 = vst.msk [vmem:[%s194 + $0xd8] sm:$0xf] %vm7184, %v6758
      %7240 = vst.msk [vmem:[%s194 + $0xdc] sm:$0xf] %vm7184, %v6759
      %7241 = vst.msk [vmem:[%s194 + $0xe0] sm:$0xf] %vm7184, %v6760
      %7242 = vst.msk [vmem:[%s194 + $0xe4] sm:$0xf] %vm7184, %v6761
      %7243 = vst.msk [vmem:[%s194 + $0xe8] sm:$0xf] %vm7184, %v6762
      %7244 = vst.msk [vmem:[%s194 + $0xec] sm:$0xf] %vm7184, %v6763
      %7245 = vst.msk [vmem:[%s194 + $0xf0] sm:$0xf] %vm7184, %v6764
      %7246 = vst.msk [vmem:[%s194 + $0xf4] sm:$0xf] %vm7184, %v6765
      %7247 = vst.msk [vmem:[%s194 + $0xf8] sm:$0xf] %vm7184, %v6766
      %7248 = vst.msk [vmem:[%s194 + $0xfc] sm:$0xf] %vm7184, %v6767
      %7249 = vst.msk [vmem:[%s194 + $0x100] sm:$0xf] %vm7184, %v6768
      %7250 = vst.msk [vmem:[%s194 + $0x104] sm:$0xf] %vm7184, %v6769
      %7251 = vst.msk [vmem:[%s194 + $0x108] sm:$0xf] %vm7184, %v6770
      %7252 = vst.msk [vmem:[%s194 + $0x10c] sm:$0xf] %vm7184, %v6771
      %7253 = vst.msk [vmem:[%s194 + $0x110] sm:$0xf] %vm7184, %v6772
      %7254 = vst.msk [vmem:[%s194 + $0x114] sm:$0xf] %vm7184, %v6773
      %7255 = vst.msk [vmem:[%s194 + $0x118] sm:$0xf] %vm7184, %v6774
      %7256 = vst.msk [vmem:[%s194 + $0x11c] sm:$0xf] %vm7184, %v6775
      %7257 = vst.msk [vmem:[%s194 + $0x120] sm:$0xf] %vm7184, %v6776
      %7258 = vst.msk [vmem:[%s194 + $0x124] sm:$0xf] %vm7184, %v6777
      %7259 = vst.msk [vmem:[%s194 + $0x128] sm:$0xf] %vm7184, %v6778
      %7260 = vst.msk [vmem:[%s194 + $0x12c] sm:$0xf] %vm7184, %v6779
      %7261 = vst.msk [vmem:[%s194 + $0x130] sm:$0xf] %vm7184, %v6780
      %7262 = vst.msk [vmem:[%s194 + $0x134] sm:$0xf] %vm7184, %v6781
      %7263 = vst.msk [vmem:[%s194 + $0x138] sm:$0xf] %vm7184, %v6782
      %7264 = vst.msk [vmem:[%s194 + $0x13c] sm:$0xf] %vm7184, %v6783
      %7265 = vst.msk [vmem:[%s194 + $0x140] sm:$0xf] %vm7184, %v6784
      %7266 = vst.msk [vmem:[%s194 + $0x144] sm:$0xf] %vm7184, %v6785
      %7267 = vst.msk [vmem:[%s194 + $0x148] sm:$0xf] %vm7184, %v6786
      %7268 = vst.msk [vmem:[%s194 + $0x14c] sm:$0xf] %vm7184, %v6787
      %7269 = vst.msk [vmem:[%s194 + $0x150] sm:$0xf] %vm7184, %v6788
      %7270 = vst.msk [vmem:[%s194 + $0x154] sm:$0xf] %vm7184, %v6789
      %7271 = vst.msk [vmem:[%s194 + $0x158] sm:$0xf] %vm7184, %v6790
      %7272 = vst.msk [vmem:[%s194 + $0x15c] sm:$0xf] %vm7184, %v6791
      %7273 = vst.msk [vmem:[%s194 + $0x160] sm:$0xf] %vm7184, %v6792
      %7274 = vst.msk [vmem:[%s194 + $0x164] sm:$0xf] %vm7184, %v6793
      %7275 = vst.msk [vmem:[%s194 + $0x168] sm:$0xf] %vm7184, %v6794
      %7276 = vst.msk [vmem:[%s194 + $0x16c] sm:$0xf] %vm7184, %v6795
      %7277 = vst.msk [vmem:[%s194 + $0x170] sm:$0xf] %vm7184, %v6796
      %7278 = vst.msk [vmem:[%s194 + $0x174] sm:$0xf] %vm7184, %v6797
      %7279 = vst.msk [vmem:[%s194 + $0x178] sm:$0xf] %vm7184, %v6798
      %7280 = vst.msk [vmem:[%s194 + $0x17c] sm:$0xf] %vm7184, %v6799
      %7281 = vst.msk [vmem:[%s194 + $0x180] sm:$0xf] %vm7184, %v6800
      %7282 = vst.msk [vmem:[%s194 + $0x184] sm:$0xf] %vm7184, %v6801
      %7283 = vst.msk [vmem:[%s194 + $0x188] sm:$0xf] %vm7184, %v6802
      %7284 = vst.msk [vmem:[%s194 + $0x18c] sm:$0xf] %vm7184, %v6803
      %7285 = vst.msk [vmem:[%s194 + $0x190] sm:$0xf] %vm7184, %v6804
      %7286 = vst.msk [vmem:[%s194 + $0x194] sm:$0xf] %vm7184, %v6805
      %7287 = vst.msk [vmem:[%s194 + $0x198] sm:$0xf] %vm7184, %v6806
      %7288 = vst.msk [vmem:[%s194 + $0x19c] sm:$0xf] %vm7184, %v6807
      %7289 = vst.msk [vmem:[%s194 + $0x1a0] sm:$0xf] %vm7184, %v6808
      %7290 = vst.msk [vmem:[%s194 + $0x1a4] sm:$0xf] %vm7184, %v6809
      %7291 = vst.msk [vmem:[%s194 + $0x1a8] sm:$0xf] %vm7184, %v6810
      %7292 = vst.msk [vmem:[%s194 + $0x1ac] sm:$0xf] %vm7184, %v6811
      %7293 = vst.msk [vmem:[%s194 + $0x1b0] sm:$0xf] %vm7184, %v6812
      %7294 = vst.msk [vmem:[%s194 + $0x1b4] sm:$0xf] %vm7184, %v6813
      %7295 = vst.msk [vmem:[%s194 + $0x1b8] sm:$0xf] %vm7184, %v6814
      %7296 = vst.msk [vmem:[%s194 + $0x1bc] sm:$0xf] %vm7184, %v6815
      %7297 = vst.msk [vmem:[%s194 + $0x1c0] sm:$0xf] %vm7184, %v6816
      %7298 = vst.msk [vmem:[%s194 + $0x1c4] sm:$0xf] %vm7184, %v6817
      %7299 = vst.msk [vmem:[%s194 + $0x1c8] sm:$0xf] %vm7184, %v6818
      %7300 = vst.msk [vmem:[%s194 + $0x1cc] sm:$0xf] %vm7184, %v6819
      %7301 = vst.msk [vmem:[%s194 + $0x1d0] sm:$0xf] %vm7184, %v6820
      %7302 = vst.msk [vmem:[%s194 + $0x1d4] sm:$0xf] %vm7184, %v6821
      %7303 = vst.msk [vmem:[%s194 + $0x1d8] sm:$0xf] %vm7184, %v6822
      %7304 = vst.msk [vmem:[%s194 + $0x1dc] sm:$0xf] %vm7184, %v6823
      %7305 = vst.msk [vmem:[%s194 + $0x1e0] sm:$0xf] %vm7184, %v6824
      %7306 = vst.msk [vmem:[%s194 + $0x1e4] sm:$0xf] %vm7184, %v6825
      %7307 = vst.msk [vmem:[%s194 + $0x1e8] sm:$0xf] %vm7184, %v6826
      %7308 = vst.msk [vmem:[%s194 + $0x1ec] sm:$0xf] %vm7184, %v6827
      %7309 = vst.msk [vmem:[%s194 + $0x1f0] sm:$0xf] %vm7184, %v6828
      %7310 = vst.msk [vmem:[%s194 + $0x1f4] sm:$0xf] %vm7184, %v6829
      %7311 = vst.msk [vmem:[%s194 + $0x1f8] sm:$0xf] %vm7184, %v6830
      %7312 = vst.msk [vmem:[%s194 + $0x1fc] sm:$0xf] %vm7184, %v6831
      %7313 = vst.msk [vmem:[%s194 + $0x200] sm:$0xf] %vm7184, %v6832
      %7314 = vst.msk [vmem:[%s194 + $0x204] sm:$0xf] %vm7184, %v6833
      %7315 = vst.msk [vmem:[%s194 + $0x208] sm:$0xf] %vm7184, %v6834
      %7316 = vst.msk [vmem:[%s194 + $0x20c] sm:$0xf] %vm7184, %v6835
      %7317 = vst.msk [vmem:[%s194 + $0x210] sm:$0xf] %vm7184, %v6836
      %7318 = vst.msk [vmem:[%s194 + $0x214] sm:$0xf] %vm7184, %v6837
      %7319 = vst.msk [vmem:[%s194 + $0x218] sm:$0xf] %vm7184, %v6838
      %7320 = vst.msk [vmem:[%s194 + $0x21c] sm:$0xf] %vm7184, %v6839
      %7321 = vst.msk [vmem:[%s194 + $0x220] sm:$0xf] %vm7184, %v6840
      %7322 = vst.msk [vmem:[%s194 + $0x224] sm:$0xf] %vm7184, %v6841
      %7323 = vst.msk [vmem:[%s194 + $0x228] sm:$0xf] %vm7184, %v6842
      %7324 = vst.msk [vmem:[%s194 + $0x22c] sm:$0xf] %vm7184, %v6843
      %7325 = vst.msk [vmem:[%s194 + $0x230] sm:$0xf] %vm7184, %v6844
      %7326 = vst.msk [vmem:[%s194 + $0x234] sm:$0xf] %vm7184, %v6845
      %7327 = vst.msk [vmem:[%s194 + $0x238] sm:$0xf] %vm7184, %v6846
      %7328 = vst.msk [vmem:[%s194 + $0x23c] sm:$0xf] %vm7184, %v6847
      %7329 = vst.msk [vmem:[%s194 + $0x240] sm:$0xf] %vm7184, %v6848
      %7330 = vst.msk [vmem:[%s194 + $0x244] sm:$0xf] %vm7184, %v6849
      %7331 = vst.msk [vmem:[%s194 + $0x248] sm:$0xf] %vm7184, %v6850
      %7332 = vst.msk [vmem:[%s194 + $0x24c] sm:$0xf] %vm7184, %v6851
      %7333 = vst.msk [vmem:[%s194 + $0x250] sm:$0xf] %vm7184, %v6852
      %7334 = vst.msk [vmem:[%s194 + $0x254] sm:$0xf] %vm7184, %v6853
      %7335 = vst.msk [vmem:[%s194 + $0x258] sm:$0xf] %vm7184, %v6854
      %7336 = vst.msk [vmem:[%s194 + $0x25c] sm:$0xf] %vm7184, %v6855
      %7337 = vst.msk [vmem:[%s194 + $0x260] sm:$0xf] %vm7184, %v6856
      %7338 = vst.msk [vmem:[%s194 + $0x264] sm:$0xf] %vm7184, %v6857
      %7339 = vst.msk [vmem:[%s194 + $0x268] sm:$0xf] %vm7184, %v6858
      %7340 = vst.msk [vmem:[%s194 + $0x26c] sm:$0xf] %vm7184, %v6859
      %7341 = vst.msk [vmem:[%s194 + $0x270] sm:$0xf] %vm7184, %v6860
      %7342 = vst.msk [vmem:[%s194 + $0x274] sm:$0xf] %vm7184, %v6861
      %7343 = vst.msk [vmem:[%s194 + $0x278] sm:$0xf] %vm7184, %v6862
      %7344 = vst.msk [vmem:[%s194 + $0x27c] sm:$0xf] %vm7184, %v6863
      %7345 = vst.msk [vmem:[%s194 + $0x280] sm:$0xf] %vm7184, %v6864
      %7346 = vst.msk [vmem:[%s194 + $0x284] sm:$0xf] %vm7184, %v6865
      %7347 = vst.msk [vmem:[%s194 + $0x288] sm:$0xf] %vm7184, %v6866
      %7348 = vst.msk [vmem:[%s194 + $0x28c] sm:$0xf] %vm7184, %v6867
      %7349 = vst.msk [vmem:[%s194 + $0x290] sm:$0xf] %vm7184, %v6868
      %7350 = vst.msk [vmem:[%s194 + $0x294] sm:$0xf] %vm7184, %v6869
      %7351 = vst.msk [vmem:[%s194 + $0x298] sm:$0xf] %vm7184, %v6870
      %7352 = vst.msk [vmem:[%s194 + $0x29c] sm:$0xf] %vm7184, %v6871
      %7353 = vst.msk [vmem:[%s194 + $0x2a0] sm:$0xf] %vm7184, %v6872
      %7354 = vst.msk [vmem:[%s194 + $0x2a4] sm:$0xf] %vm7184, %v6873
      %7355 = vst.msk [vmem:[%s194 + $0x2a8] sm:$0xf] %vm7184, %v6874
      %7356 = vst.msk [vmem:[%s194 + $0x2ac] sm:$0xf] %vm7184, %v6875
      %7357 = vst.msk [vmem:[%s194 + $0x2b0] sm:$0xf] %vm7184, %v6876
      %7358 = vst.msk [vmem:[%s194 + $0x2b4] sm:$0xf] %vm7184, %v6877
      %7359 = vst.msk [vmem:[%s194 + $0x2b8] sm:$0xf] %vm7184, %v6878
      %7360 = vst.msk [vmem:[%s194 + $0x2bc] sm:$0xf] %vm7184, %v6879
      %7361 = vst.msk [vmem:[%s194 + $0x2c0] sm:$0xf] %vm7184, %v6880
      %7362 = vst.msk [vmem:[%s194 + $0x2c4] sm:$0xf] %vm7184, %v6881
      %7363 = vst.msk [vmem:[%s194 + $0x2c8] sm:$0xf] %vm7184, %v6882
      %7364 = vst.msk [vmem:[%s194 + $0x2cc] sm:$0xf] %vm7184, %v6883
      %7365 = vst.msk [vmem:[%s194 + $0x2d0] sm:$0xf] %vm7184, %v6884
      %7366 = vst.msk [vmem:[%s194 + $0x2d4] sm:$0xf] %vm7184, %v6885
      %7367 = vst.msk [vmem:[%s194 + $0x2d8] sm:$0xf] %vm7184, %v6886
      %7368 = vst.msk [vmem:[%s194 + $0x2dc] sm:$0xf] %vm7184, %v6887
      %7369 = vst.msk [vmem:[%s194 + $0x2e0] sm:$0xf] %vm7184, %v6888
      %7370 = vst.msk [vmem:[%s194 + $0x2e4] sm:$0xf] %vm7184, %v6889
      %7371 = vst.msk [vmem:[%s194 + $0x2e8] sm:$0xf] %vm7184, %v6890
      %7372 = vst.msk [vmem:[%s194 + $0x2ec] sm:$0xf] %vm7184, %v6891
      %7373 = vst.msk [vmem:[%s194 + $0x2f0] sm:$0xf] %vm7184, %v6892
      %7374 = vst.msk [vmem:[%s194 + $0x2f4] sm:$0xf] %vm7184, %v6893
      %7375 = vst.msk [vmem:[%s194 + $0x2f8] sm:$0xf] %vm7184, %v6894
      %7376 = vst.msk [vmem:[%s194 + $0x2fc] sm:$0xf] %vm7184, %v6895
      %7377 = vst.msk [vmem:[%s194 + $0x300] sm:$0xf] %vm7184, %v6896
      %7378 = vst.msk [vmem:[%s194 + $0x304] sm:$0xf] %vm7184, %v6897
      %7379 = vst.msk [vmem:[%s194 + $0x308] sm:$0xf] %vm7184, %v6898
      %7380 = vst.msk [vmem:[%s194 + $0x30c] sm:$0xf] %vm7184, %v6899
      %7381 = vst.msk [vmem:[%s194 + $0x310] sm:$0xf] %vm7184, %v6900
      %7382 = vst.msk [vmem:[%s194 + $0x314] sm:$0xf] %vm7184, %v6901
      %7383 = vst.msk [vmem:[%s194 + $0x318] sm:$0xf] %vm7184, %v6902
      %7384 = vst.msk [vmem:[%s194 + $0x31c] sm:$0xf] %vm7184, %v6903
      %7385 = vst.msk [vmem:[%s194 + $0x320] sm:$0xf] %vm7184, %v6904
      %7386 = vst.msk [vmem:[%s194 + $0x324] sm:$0xf] %vm7184, %v6905
      %7387 = vst.msk [vmem:[%s194 + $0x328] sm:$0xf] %vm7184, %v6906
      %7388 = vst.msk [vmem:[%s194 + $0x32c] sm:$0xf] %vm7184, %v6907
      %7389 = vst.msk [vmem:[%s194 + $0x330] sm:$0xf] %vm7184, %v6908
      %7390 = vst.msk [vmem:[%s194 + $0x334] sm:$0xf] %vm7184, %v6909
      %7391 = vst.msk [vmem:[%s194 + $0x338] sm:$0xf] %vm7184, %v6910
      %7392 = vst.msk [vmem:[%s194 + $0x33c] sm:$0xf] %vm7184, %v6911
      %7393 = vst.msk [vmem:[%s194 + $0x340] sm:$0xf] %vm7184, %v6912
      %7394 = vst.msk [vmem:[%s194 + $0x344] sm:$0xf] %vm7184, %v6913
      %7395 = vst.msk [vmem:[%s194 + $0x348] sm:$0xf] %vm7184, %v6914
      %7396 = vst.msk [vmem:[%s194 + $0x34c] sm:$0xf] %vm7184, %v6915
      %7397 = vst.msk [vmem:[%s194 + $0x350] sm:$0xf] %vm7184, %v6916
      %7398 = vst.msk [vmem:[%s194 + $0x354] sm:$0xf] %vm7184, %v6917
      %7399 = vst.msk [vmem:[%s194 + $0x358] sm:$0xf] %vm7184, %v6918
      %7400 = vst.msk [vmem:[%s194 + $0x35c] sm:$0xf] %vm7184, %v6919
      %7401 = vst.msk [vmem:[%s194 + $0x360] sm:$0xf] %vm7184, %v6920
      %7402 = vst.msk [vmem:[%s194 + $0x364] sm:$0xf] %vm7184, %v6921
      %7403 = vst.msk [vmem:[%s194 + $0x368] sm:$0xf] %vm7184, %v6922
      %7404 = vst.msk [vmem:[%s194 + $0x36c] sm:$0xf] %vm7184, %v6923
      %7405 = vst.msk [vmem:[%s194 + $0x370] sm:$0xf] %vm7184, %v6924
      %7406 = vst.msk [vmem:[%s194 + $0x374] sm:$0xf] %vm7184, %v6925
      %7407 = vst.msk [vmem:[%s194 + $0x378] sm:$0xf] %vm7184, %v6926
      %7408 = vst.msk [vmem:[%s194 + $0x37c] sm:$0xf] %vm7184, %v6927
      %7409 = vst.msk [vmem:[%s194 + $0x380] sm:$0xf] %vm7184, %v6928
      %7410 = vst.msk [vmem:[%s194 + $0x384] sm:$0xf] %vm7184, %v6929
      %7411 = vst.msk [vmem:[%s194 + $0x388] sm:$0xf] %vm7184, %v6930
      %7412 = vst.msk [vmem:[%s194 + $0x38c] sm:$0xf] %vm7184, %v6931
      %7413 = vst.msk [vmem:[%s194 + $0x390] sm:$0xf] %vm7184, %v6932
      %7414 = vst.msk [vmem:[%s194 + $0x394] sm:$0xf] %vm7184, %v6933
      %7415 = vst.msk [vmem:[%s194 + $0x398] sm:$0xf] %vm7184, %v6934
      %7416 = vst.msk [vmem:[%s194 + $0x39c] sm:$0xf] %vm7184, %v6935
      %7417 = vst.msk [vmem:[%s194 + $0x3a0] sm:$0xf] %vm7184, %v6936
      %7418 = vst.msk [vmem:[%s194 + $0x3a4] sm:$0xf] %vm7184, %v6937
      %7419 = vst.msk [vmem:[%s194 + $0x3a8] sm:$0xf] %vm7184, %v6938
      %7420 = vst.msk [vmem:[%s194 + $0x3ac] sm:$0xf] %vm7184, %v6939
      %7421 = vst.msk [vmem:[%s194 + $0x3b0] sm:$0xf] %vm7184, %v6940
      %7422 = vst.msk [vmem:[%s194 + $0x3b4] sm:$0xf] %vm7184, %v6941
      %7423 = vst.msk [vmem:[%s194 + $0x3b8] sm:$0xf] %vm7184, %v6942
      %7424 = vst.msk [vmem:[%s194 + $0x3bc] sm:$0xf] %vm7184, %v6943
      %7425 = vst.msk [vmem:[%s194 + $0x3c0] sm:$0xf] %vm7184, %v6944
      %7426 = vst.msk [vmem:[%s194 + $0x3c4] sm:$0xf] %vm7184, %v6945
      %7427 = vst.msk [vmem:[%s194 + $0x3c8] sm:$0xf] %vm7184, %v6946
      %7428 = vst.msk [vmem:[%s194 + $0x3cc] sm:$0xf] %vm7184, %v6947
      %7429 = vst.msk [vmem:[%s194 + $0x3d0] sm:$0xf] %vm7184, %v6948
      %7430 = vst.msk [vmem:[%s194 + $0x3d4] sm:$0xf] %vm7184, %v6949
      %7431 = vst.msk [vmem:[%s194 + $0x3d8] sm:$0xf] %vm7184, %v6950
      %7432 = vst.msk [vmem:[%s194 + $0x3dc] sm:$0xf] %vm7184, %v6951
      %7433 = vst.msk [vmem:[%s194 + $0x3e0] sm:$0xf] %vm7184, %v6952
      %7434 = vst.msk [vmem:[%s194 + $0x3e4] sm:$0xf] %vm7184, %v6953
      %7435 = vst.msk [vmem:[%s194 + $0x3e8] sm:$0xf] %vm7184, %v6954
      %7436 = vst.msk [vmem:[%s194 + $0x3ec] sm:$0xf] %vm7184, %v6955
      %7437 = vst.msk [vmem:[%s194 + $0x3f0] sm:$0xf] %vm7184, %v6956
      %7438 = vst.msk [vmem:[%s194 + $0x3f4] sm:$0xf] %vm7184, %v6957
      %7439 = vst.msk [vmem:[%s194 + $0x3f8] sm:$0xf] %vm7184, %v6958
      %7440 = vst.msk [vmem:[%s194 + $0x3fc] sm:$0xf] %vm7184, %v6959
      %7441 = vst.msk [vmem:[%s194 + $0x400] sm:$0xf] %vm7184, %v6960
      %7442 = vst.msk [vmem:[%s194 + $0x404] sm:$0xf] %vm7184, %v6961
      %7443 = vst.msk [vmem:[%s194 + $0x408] sm:$0xf] %vm7184, %v6962
      %7444 = vst.msk [vmem:[%s194 + $0x40c] sm:$0xf] %vm7184, %v6963
      %7445 = vst.msk [vmem:[%s194 + $0x410] sm:$0xf] %vm7184, %v6964
      %7446 = vst.msk [vmem:[%s194 + $0x414] sm:$0xf] %vm7184, %v6965
      %7447 = vst.msk [vmem:[%s194 + $0x418] sm:$0xf] %vm7184, %v6966
      %7448 = vst.msk [vmem:[%s194 + $0x41c] sm:$0xf] %vm7184, %v6967
      %7449 = vst.msk [vmem:[%s194 + $0x420] sm:$0xf] %vm7184, %v6968
      %7450 = vst.msk [vmem:[%s194 + $0x424] sm:$0xf] %vm7184, %v6969
      %7451 = vst.msk [vmem:[%s194 + $0x428] sm:$0xf] %vm7184, %v6970
      %7452 = vst.msk [vmem:[%s194 + $0x42c] sm:$0xf] %vm7184, %v6971
      %7453 = vst.msk [vmem:[%s194 + $0x430] sm:$0xf] %vm7184, %v6972
      %7454 = vst.msk [vmem:[%s194 + $0x434] sm:$0xf] %vm7184, %v6973
      %7455 = vst.msk [vmem:[%s194 + $0x438] sm:$0xf] %vm7184, %v6974
      %7456 = vst.msk [vmem:[%s194 + $0x43c] sm:$0xf] %vm7184, %v6975
      %7457 = vst.msk [vmem:[%s194 + $0x440] sm:$0xf] %vm7184, %v6976
      %7458 = vst.msk [vmem:[%s194 + $0x444] sm:$0xf] %vm7184, %v6977
      %7459 = vst.msk [vmem:[%s194 + $0x448] sm:$0xf] %vm7184, %v6978
      %7460 = vst.msk [vmem:[%s194 + $0x44c] sm:$0xf] %vm7184, %v6979
      %7461 = vst.msk [vmem:[%s194 + $0x450] sm:$0xf] %vm7184, %v6980
      %7462 = vst.msk [vmem:[%s194 + $0x454] sm:$0xf] %vm7184, %v6981
      %7463 = vst.msk [vmem:[%s194 + $0x458] sm:$0xf] %vm7184, %v6982
      %7464 = vst.msk [vmem:[%s194 + $0x45c] sm:$0xf] %vm7184, %v6983
      %7465 = vst.msk [vmem:[%s194 + $0x460] sm:$0xf] %vm7184, %v6984
      %7466 = vst.msk [vmem:[%s194 + $0x464] sm:$0xf] %vm7184, %v6985
      %7467 = vst.msk [vmem:[%s194 + $0x468] sm:$0xf] %vm7184, %v6986
      %7468 = vst.msk [vmem:[%s194 + $0x46c] sm:$0xf] %vm7184, %v6987
      %7469 = vst.msk [vmem:[%s194 + $0x470] sm:$0xf] %vm7184, %v6988
      %7470 = vst.msk [vmem:[%s194 + $0x474] sm:$0xf] %vm7184, %v6989
      %7471 = vst.msk [vmem:[%s194 + $0x478] sm:$0xf] %vm7184, %v6990
      %7472 = vst.msk [vmem:[%s194 + $0x47c] sm:$0xf] %vm7184, %v6991
      %7473 = vst.msk [vmem:[%s194 + $0x480] sm:$0xf] %vm7184, %v6992
      %7474 = vst.msk [vmem:[%s194 + $0x484] sm:$0xf] %vm7184, %v6993
      %7475 = vst.msk [vmem:[%s194 + $0x488] sm:$0xf] %vm7184, %v6994
      %7476 = vst.msk [vmem:[%s194 + $0x48c] sm:$0xf] %vm7184, %v6995
      %7477 = vst.msk [vmem:[%s194 + $0x490] sm:$0xf] %vm7184, %v6996
      %7478 = vst.msk [vmem:[%s194 + $0x494] sm:$0xf] %vm7184, %v6997
      %7479 = vst.msk [vmem:[%s194 + $0x498] sm:$0xf] %vm7184, %v6998
      %7480 = vst.msk [vmem:[%s194 + $0x49c] sm:$0xf] %vm7184, %v6999
      %7481 = vst.msk [vmem:[%s194 + $0x4a0] sm:$0xf] %vm7184, %v7000
      %7482 = vst.msk [vmem:[%s194 + $0x4a4] sm:$0xf] %vm7184, %v7001
      %7483 = vst.msk [vmem:[%s194 + $0x4a8] sm:$0xf] %vm7184, %v7002
      %7484 = vst.msk [vmem:[%s194 + $0x4ac] sm:$0xf] %vm7184, %v7003
      %7485 = vst.msk [vmem:[%s194 + $0x4b0] sm:$0xf] %vm7184, %v7004
      %7486 = vst.msk [vmem:[%s194 + $0x4b4] sm:$0xf] %vm7184, %v7005
      %7487 = vst.msk [vmem:[%s194 + $0x4b8] sm:$0xf] %vm7184, %v7006
      %7488 = vst.msk [vmem:[%s194 + $0x4bc] sm:$0xf] %vm7184, %v7007
      %7489 = vst.msk [vmem:[%s194 + $0x4c0] sm:$0xf] %vm7184, %v7008
      %7490 = vst.msk [vmem:[%s194 + $0x4c4] sm:$0xf] %vm7184, %v7009
      %7491 = vst.msk [vmem:[%s194 + $0x4c8] sm:$0xf] %vm7184, %v7010
      %7492 = vst.msk [vmem:[%s194 + $0x4cc] sm:$0xf] %vm7184, %v7011
      %7493 = vst.msk [vmem:[%s194 + $0x4d0] sm:$0xf] %vm7184, %v7012
      %7494 = vst.msk [vmem:[%s194 + $0x4d4] sm:$0xf] %vm7184, %v7013
      %7495 = vst.msk [vmem:[%s194 + $0x4d8] sm:$0xf] %vm7184, %v7014
      %7496 = vst.msk [vmem:[%s194 + $0x4dc] sm:$0xf] %vm7184, %v7015
      %7497 = vst.msk [vmem:[%s194 + $0x4e0] sm:$0xf] %vm7184, %v7016
      %7498 = vst.msk [vmem:[%s194 + $0x4e4] sm:$0xf] %vm7184, %v7017
      %7499 = vst.msk [vmem:[%s194 + $0x4e8] sm:$0xf] %vm7184, %v7018
      %7500 = vst.msk [vmem:[%s194 + $0x4ec] sm:$0xf] %vm7184, %v7019
      %7501 = vst.msk [vmem:[%s194 + $0x4f0] sm:$0xf] %vm7184, %v7020
      %7502 = vst.msk [vmem:[%s194 + $0x4f4] sm:$0xf] %vm7184, %v7021
      %7503 = vst.msk [vmem:[%s194 + $0x4f8] sm:$0xf] %vm7184, %v7022
      %7504 = vst.msk [vmem:[%s194 + $0x4fc] sm:$0xf] %vm7184, %v7023
      %7505 = vst.msk [vmem:[%s194 + $0x500] sm:$0xf] %vm7184, %v7024
      %7506 = vst.msk [vmem:[%s194 + $0x504] sm:$0xf] %vm7184, %v7025
      %7507 = vst.msk [vmem:[%s194 + $0x508] sm:$0xf] %vm7184, %v7026
      %7508 = vst.msk [vmem:[%s194 + $0x50c] sm:$0xf] %vm7184, %v7027
      %7509 = vst.msk [vmem:[%s194 + $0x510] sm:$0xf] %vm7184, %v7028
      %7510 = vst.msk [vmem:[%s194 + $0x514] sm:$0xf] %vm7184, %v7029
      %7511 = vst.msk [vmem:[%s194 + $0x518] sm:$0xf] %vm7184, %v7030
      %7512 = vst.msk [vmem:[%s194 + $0x51c] sm:$0xf] %vm7184, %v7031
      %7513 = vst.msk [vmem:[%s194 + $0x520] sm:$0xf] %vm7184, %v7032
      %7514 = vst.msk [vmem:[%s194 + $0x524] sm:$0xf] %vm7184, %v7033
      %7515 = vst.msk [vmem:[%s194 + $0x528] sm:$0xf] %vm7184, %v7034
      %7516 = vst.msk [vmem:[%s194 + $0x52c] sm:$0xf] %vm7184, %v7035
      %7517 = vst.msk [vmem:[%s194 + $0x530] sm:$0xf] %vm7184, %v7036
      %7518 = vst.msk [vmem:[%s194 + $0x534] sm:$0xf] %vm7184, %v7037
      %7519 = vst.msk [vmem:[%s194 + $0x538] sm:$0xf] %vm7184, %v7038
      %7520 = vst.msk [vmem:[%s194 + $0x53c] sm:$0xf] %vm7184, %v7039
      %7521 = vst.msk [vmem:[%s194 + $0x540] sm:$0xf] %vm7184, %v7040
      %7522 = vst.msk [vmem:[%s194 + $0x544] sm:$0xf] %vm7184, %v7041
      %7523 = vst.msk [vmem:[%s194 + $0x548] sm:$0xf] %vm7184, %v7042
      %7524 = vst.msk [vmem:[%s194 + $0x54c] sm:$0xf] %vm7184, %v7043
      %7525 = vst.msk [vmem:[%s194 + $0x550] sm:$0xf] %vm7184, %v7044
      %7526 = vst.msk [vmem:[%s194 + $0x554] sm:$0xf] %vm7184, %v7045
      %7527 = vst.msk [vmem:[%s194 + $0x558] sm:$0xf] %vm7184, %v7046
      %7528 = vst.msk [vmem:[%s194 + $0x55c] sm:$0xf] %vm7184, %v7047
      %7529 = vst.msk [vmem:[%s194 + $0x560] sm:$0xf] %vm7184, %v7048
      %7530 = vst.msk [vmem:[%s194 + $0x564] sm:$0xf] %vm7184, %v7049
      %7531 = vst.msk [vmem:[%s194 + $0x568] sm:$0xf] %vm7184, %v7050
      %7532 = vst.msk [vmem:[%s194 + $0x56c] sm:$0xf] %vm7184, %v7051
      %7533 = vst.msk [vmem:[%s194 + $0x570] sm:$0xf] %vm7184, %v7052
      %7534 = vst.msk [vmem:[%s194 + $0x574] sm:$0xf] %vm7184, %v7053
      %7535 = vst.msk [vmem:[%s194 + $0x578] sm:$0xf] %vm7184, %v7054
      %7536 = vst.msk [vmem:[%s194 + $0x57c] sm:$0xf] %vm7184, %v7055
      %7537 = vst.msk [vmem:[%s194 + $0x580] sm:$0xf] %vm7184, %v7056
      %7538 = vst.msk [vmem:[%s194 + $0x584] sm:$0xf] %vm7184, %v7057
      %7539 = vst.msk [vmem:[%s194 + $0x588] sm:$0xf] %vm7184, %v7058
      %7540 = vst.msk [vmem:[%s194 + $0x58c] sm:$0xf] %vm7184, %v7059
      %7541 = vst.msk [vmem:[%s194 + $0x590] sm:$0xf] %vm7184, %v7060
      %7542 = vst.msk [vmem:[%s194 + $0x594] sm:$0xf] %vm7184, %v7061
      %7543 = vst.msk [vmem:[%s194 + $0x598] sm:$0xf] %vm7184, %v7062
      %7544 = vst.msk [vmem:[%s194 + $0x59c] sm:$0xf] %vm7184, %v7063
      %7545 = vst.msk [vmem:[%s194 + $0x5a0] sm:$0xf] %vm7184, %v7064
      %7546 = vst.msk [vmem:[%s194 + $0x5a4] sm:$0xf] %vm7184, %v7065
      %7547 = vst.msk [vmem:[%s194 + $0x5a8] sm:$0xf] %vm7184, %v7066
      %7548 = vst.msk [vmem:[%s194 + $0x5ac] sm:$0xf] %vm7184, %v7067
      %7549 = vst.msk [vmem:[%s194 + $0x5b0] sm:$0xf] %vm7184, %v7068
      %7550 = vst.msk [vmem:[%s194 + $0x5b4] sm:$0xf] %vm7184, %v7069
      %7551 = vst.msk [vmem:[%s194 + $0x5b8] sm:$0xf] %vm7184, %v7070
      %7552 = vst.msk [vmem:[%s194 + $0x5bc] sm:$0xf] %vm7184, %v7071
      %7553 = vst.msk [vmem:[%s194 + $0x5c0] sm:$0xf] %vm7184, %v7072
      %7554 = vst.msk [vmem:[%s194 + $0x5c4] sm:$0xf] %vm7184, %v7073
      %7555 = vst.msk [vmem:[%s194 + $0x5c8] sm:$0xf] %vm7184, %v7074
      %7556 = vst.msk [vmem:[%s194 + $0x5cc] sm:$0xf] %vm7184, %v7075
      %7557 = vst.msk [vmem:[%s194 + $0x5d0] sm:$0xf] %vm7184, %v7076
      %7558 = vst.msk [vmem:[%s194 + $0x5d4] sm:$0xf] %vm7184, %v7077
      %7559 = vst.msk [vmem:[%s194 + $0x5d8] sm:$0xf] %vm7184, %v7078
      %7560 = vst.msk [vmem:[%s194 + $0x5dc] sm:$0xf] %vm7184, %v7079
      %7561 = vst.msk [vmem:[%s194 + $0x5e0] sm:$0xf] %vm7184, %v7080
      %7562 = vst.msk [vmem:[%s194 + $0x5e4] sm:$0xf] %vm7184, %v7081
      %7563 = vst.msk [vmem:[%s194 + $0x5e8] sm:$0xf] %vm7184, %v7082
      %7564 = vst.msk [vmem:[%s194 + $0x5ec] sm:$0xf] %vm7184, %v7083
      %7565 = vst.msk [vmem:[%s194 + $0x5f0] sm:$0xf] %vm7184, %v7084
      %7566 = vst.msk [vmem:[%s194 + $0x5f4] sm:$0xf] %vm7184, %v7085
      %7567 = vst.msk [vmem:[%s194 + $0x5f8] sm:$0xf] %vm7184, %v7086
      %7568 = vst.msk [vmem:[%s194 + $0x5fc] sm:$0xf] %vm7184, %v7087
      %7569 = vst.msk [vmem:[%s194 + $0x600] sm:$0xf] %vm7184, %v7088
      %7570 = vst.msk [vmem:[%s194 + $0x604] sm:$0xf] %vm7184, %v7089
      %7571 = vst.msk [vmem:[%s194 + $0x608] sm:$0xf] %vm7184, %v7090
      %7572 = vst.msk [vmem:[%s194 + $0x60c] sm:$0xf] %vm7184, %v7091
      %7573 = vst.msk [vmem:[%s194 + $0x610] sm:$0xf] %vm7184, %v7092
      %7574 = vst.msk [vmem:[%s194 + $0x614] sm:$0xf] %vm7184, %v7093
      %7575 = vst.msk [vmem:[%s194 + $0x618] sm:$0xf] %vm7184, %v7094
      %7576 = vst.msk [vmem:[%s194 + $0x61c] sm:$0xf] %vm7184, %v7095
      %7577 = vst.msk [vmem:[%s194 + $0x620] sm:$0xf] %vm7184, %v7096
      %7578 = vst.msk [vmem:[%s194 + $0x624] sm:$0xf] %vm7184, %v7097
      %7579 = vst.msk [vmem:[%s194 + $0x628] sm:$0xf] %vm7184, %v7098
      %7580 = vst.msk [vmem:[%s194 + $0x62c] sm:$0xf] %vm7184, %v7099
      %7581 = vst.msk [vmem:[%s194 + $0x630] sm:$0xf] %vm7184, %v7100
      %7582 = vst.msk [vmem:[%s194 + $0x634] sm:$0xf] %vm7184, %v7101
      %7583 = vst.msk [vmem:[%s194 + $0x638] sm:$0xf] %vm7184, %v7102
      %7584 = vst.msk [vmem:[%s194 + $0x63c] sm:$0xf] %vm7184, %v7103
      %7585 = vst.msk [vmem:[%s194 + $0x640] sm:$0xf] %vm7184, %v7104
      %7586 = vst.msk [vmem:[%s194 + $0x644] sm:$0xf] %vm7184, %v7105
      %7587 = vst.msk [vmem:[%s194 + $0x648] sm:$0xf] %vm7184, %v7106
      %7588 = vst.msk [vmem:[%s194 + $0x64c] sm:$0xf] %vm7184, %v7107
      %7589 = vst.msk [vmem:[%s194 + $0x650] sm:$0xf] %vm7184, %v7108
      %7590 = vst.msk [vmem:[%s194 + $0x654] sm:$0xf] %vm7184, %v7109
      %7591 = vst.msk [vmem:[%s194 + $0x658] sm:$0xf] %vm7184, %v7110
      %7592 = vst.msk [vmem:[%s194 + $0x65c] sm:$0xf] %vm7184, %v7111
      %7593 = vst.msk [vmem:[%s194 + $0x660] sm:$0xf] %vm7184, %v7112
      %7594 = vst.msk [vmem:[%s194 + $0x664] sm:$0xf] %vm7184, %v7113
      %7595 = vst.msk [vmem:[%s194 + $0x668] sm:$0xf] %vm7184, %v7114
      %7596 = vst.msk [vmem:[%s194 + $0x66c] sm:$0xf] %vm7184, %v7115
      %7597 = vst.msk [vmem:[%s194 + $0x670] sm:$0xf] %vm7184, %v7116
      %7598 = vst.msk [vmem:[%s194 + $0x674] sm:$0xf] %vm7184, %v7117
      %7599 = vst.msk [vmem:[%s194 + $0x678] sm:$0xf] %vm7184, %v7118
      %7600 = vst.msk [vmem:[%s194 + $0x67c] sm:$0xf] %vm7184, %v7119
      %7601 = vst.msk [vmem:[%s194 + $0x680] sm:$0xf] %vm7184, %v7120
      %7602 = vst.msk [vmem:[%s194 + $0x684] sm:$0xf] %vm7184, %v7121
      %7603 = vst.msk [vmem:[%s194 + $0x688] sm:$0xf] %vm7184, %v7122
      %7604 = vst.msk [vmem:[%s194 + $0x68c] sm:$0xf] %vm7184, %v7123
      %7605 = vst.msk [vmem:[%s194 + $0x690] sm:$0xf] %vm7184, %v7124
      %7606 = vst.msk [vmem:[%s194 + $0x694] sm:$0xf] %vm7184, %v7125
      %7607 = vst.msk [vmem:[%s194 + $0x698] sm:$0xf] %vm7184, %v7126
      %7608 = vst.msk [vmem:[%s194 + $0x69c] sm:$0xf] %vm7184, %v7127
      %7609 = vst.msk [vmem:[%s194 + $0x6a0] sm:$0xf] %vm7184, %v7128
      %7610 = vst.msk [vmem:[%s194 + $0x6a4] sm:$0xf] %vm7184, %v7129
      %7611 = vst.msk [vmem:[%s194 + $0x6a8] sm:$0xf] %vm7184, %v7130
      %7612 = vst.msk [vmem:[%s194 + $0x6ac] sm:$0xf] %vm7184, %v7131
      %7613 = vst.msk [vmem:[%s194 + $0x6b0] sm:$0xf] %vm7184, %v7132
      %7614 = vst.msk [vmem:[%s194 + $0x6b4] sm:$0xf] %vm7184, %v7133
      %7615 = vst.msk [vmem:[%s194 + $0x6b8] sm:$0xf] %vm7184, %v7134
      %7616 = vst.msk [vmem:[%s194 + $0x6bc] sm:$0xf] %vm7184, %v7135
      %7617 = vst.msk [vmem:[%s194 + $0x6c0] sm:$0xf] %vm7184, %v7136
      %7618 = vst.msk [vmem:[%s194 + $0x6c4] sm:$0xf] %vm7184, %v7137
      %7619 = vst.msk [vmem:[%s194 + $0x6c8] sm:$0xf] %vm7184, %v7138
      %7620 = vst.msk [vmem:[%s194 + $0x6cc] sm:$0xf] %vm7184, %v7139
      %7621 = vst.msk [vmem:[%s194 + $0x6d0] sm:$0xf] %vm7184, %v7140
      %7622 = vst.msk [vmem:[%s194 + $0x6d4] sm:$0xf] %vm7184, %v7141
      %7623 = vst.msk [vmem:[%s194 + $0x6d8] sm:$0xf] %vm7184, %v7142
      %7624 = vst.msk [vmem:[%s194 + $0x6dc] sm:$0xf] %vm7184, %v7143
      %7625 = vst.msk [vmem:[%s194 + $0x6e0] sm:$0xf] %vm7184, %v7144
      %7626 = vst.msk [vmem:[%s194 + $0x6e4] sm:$0xf] %vm7184, %v7145
      %7627 = vst.msk [vmem:[%s194 + $0x6e8] sm:$0xf] %vm7184, %v7146
      %7628 = vst.msk [vmem:[%s194 + $0x6ec] sm:$0xf] %vm7184, %v7147
      %7629 = vst.msk [vmem:[%s194 + $0x6f0] sm:$0xf] %vm7184, %v7148
      %7630 = vst.msk [vmem:[%s194 + $0x6f4] sm:$0xf] %vm7184, %v7149
      %7631 = vst.msk [vmem:[%s194 + $0x6f8] sm:$0xf] %vm7184, %v7150
      %7632 = vst.msk [vmem:[%s194 + $0x6fc] sm:$0xf] %vm7184, %v7151
      %7633 = vst.msk [vmem:[%s194 + $0x700] sm:$0xf] %vm7184, %v7152
      %7634 = vst.msk [vmem:[%s194 + $0x704] sm:$0xf] %vm7184, %v7153
      %7635 = vst.msk [vmem:[%s194 + $0x708] sm:$0xf] %vm7184, %v7154
      %7636 = vst.msk [vmem:[%s194 + $0x70c] sm:$0xf] %vm7184, %v7155
      %7637 = vst.msk [vmem:[%s194 + $0x710] sm:$0xf] %vm7184, %v7156
      %7638 = vst.msk [vmem:[%s194 + $0x714] sm:$0xf] %vm7184, %v7157
      %7639 = vst.msk [vmem:[%s194 + $0x718] sm:$0xf] %vm7184, %v7158
      %7640 = vst.msk [vmem:[%s194 + $0x71c] sm:$0xf] %vm7184, %v7159
      %7641 = vst.msk [vmem:[%s194 + $0x720] sm:$0xf] %vm7184, %v7160
      %7642 = vst.msk [vmem:[%s194 + $0x724] sm:$0xf] %vm7184, %v7161
      %7643 = vst.msk [vmem:[%s194 + $0x728] sm:$0xf] %vm7184, %v7162
      %7644 = vst.msk [vmem:[%s194 + $0x72c] sm:$0xf] %vm7184, %v7163
      %7645 = vst.msk [vmem:[%s194 + $0x730] sm:$0xf] %vm7184, %v7164
      %7646 = vst.msk [vmem:[%s194 + $0x734] sm:$0xf] %vm7184, %v7165
      %7647 = vst.msk [vmem:[%s194 + $0x738] sm:$0xf] %vm7184, %v7166
      %7648 = vst.msk [vmem:[%s194 + $0x73c] sm:$0xf] %vm7184, %v7167
      %7649 = vst.msk [vmem:[%s194 + $0x740] sm:$0xf] %vm7184, %v7168
      %7650 = vst.msk [vmem:[%s194 + $0x744] sm:$0xf] %vm7184, %v7169
      %7651 = vst.msk [vmem:[%s194 + $0x748] sm:$0xf] %vm7184, %v7170
      %7652 = vst.msk [vmem:[%s194 + $0x74c] sm:$0xf] %vm7184, %v7171
      %7653 = vst.msk [vmem:[%s194 + $0x750] sm:$0xf] %vm7184, %v7172
      %7654 = vst.msk [vmem:[%s194 + $0x754] sm:$0xf] %vm7184, %v7173
      %7655 = vst.msk [vmem:[%s194 + $0x758] sm:$0xf] %vm7184, %v7174
      %7656 = vst.msk [vmem:[%s194 + $0x75c] sm:$0xf] %vm7184, %v7175
      %7657 = vst.msk [vmem:[%s194 + $0x760] sm:$0xf] %vm7184, %v7176
      %7658 = vst.msk [vmem:[%s194 + $0x764] sm:$0xf] %vm7184, %v7177
      %7659 = vst.msk [vmem:[%s194 + $0x768] sm:$0xf] %vm7184, %v7178
      %7660 = vst.msk [vmem:[%s194 + $0x76c] sm:$0xf] %vm7184, %v7179
      %7661 = vst.msk [vmem:[%s194 + $0x770] sm:$0xf] %vm7184, %v7180
      %7662 = vst.msk [vmem:[%s194 + $0x774] sm:$0xf] %vm7184, %v7181
      %7663 = vst.msk [vmem:[%s194 + $0x778] sm:$0xf] %vm7184, %v7182
      %7664 = vst.msk [vmem:[%s194 + $0x77c] sm:$0xf] %vm7184, %v7183
      %s7665 = smul.u32 20, %s19
      %p7666 = scmp.lt.s32.totalorder %s18, 1
      %s7667 = scalar_select %p7666, %s18, 1
      %p7668 = scmp.lt.s32.totalorder %s7665, 79
      %s7669 = scalar_select %p7668, %s7665, 79
      %s7670 = smul.addr %s7669, 24
      %s7671 = smul.addr %s7667, 1920
      %s7672 = sadd.s32 %s7670, %s7671
      %s7673 = smul.addr %s7672, 4
      %s7674 = scalar_lea.vmem %s3, %s7673
      // Predicated region
      $region33: #{conv_block.1} parent=31 // pred_check
        %p7675 = pneg %p114
      $region34: #{conv_block.1} parent=31 // pred_check_branch
        %7677 = sbr.rel (%p7675) target = $region36
      $region35: #{conv_block.1} parent=31 // pred_region
        %s7678 = smul.u32 20, %s19
      $region36: #{conv_block.1} parent=31 // pred_fallthru
        _
    $region32: #{conv_block.1} parent=5 // pred_fallthru
      _
    %p7679 = scmp.le.s32.totalorder 2, %s9
    // Predicated region
    $region37: #{conv_block.1} parent=5 // pred_check
      %p7680 = pneg %p7679
    $region38: #{conv_block.1} parent=5 // pred_check_branch
      %7682 = sbr.rel (%p7680) target = $region40
    $region39: #{conv_block.1} parent=5 // pred_region
      %s7683 = ssub.s32 %s9, 2
      // Predicated region
      $region41: #{conv_block.1} parent=39 // pred_check
        %p7684 = pneg %p120
      $region42: #{conv_block.1} parent=39 // pred_check_branch
        %7686 = sbr.rel (%p7684) target = $region44
      $region43: #{conv_block.1} parent=39 // pred_region
        %s7687 = smul.u32 20, %s21
        %p7688 = scmp.lt.s32.totalorder %s20, 1
        %s7689 = scalar_select %p7688, %s20, 1
        %p7690 = scmp.lt.s32.totalorder %s7687, 79
        %s7691 = scalar_select %p7690, %s7687, 79
        %s7692 = smul.addr %s7691, 24
        %s7693 = smul.addr %s7689, 1920
        %s7694 = sadd.s32 %s7692, %s7693
        %s7695 = smul.addr %s7694, 4
        %s7696 = scalar_lea.vmem %s3, %s7695
      $region44: #{conv_block.1} parent=39 // pred_fallthru
        _
    $region40: #{conv_block.1} parent=5 // pred_fallthru
      _
  $region6: #{conv_block.1} parent=0 // loop_footer
    %s13 = sadd.s32 1, %s9
  $region7: #{conv_block.1} parent=0 // loop_footer_branch
    %8 = sbr.rel target = $region3
  $region8: #{conv_block.1} parent=0 // loop_exit
    _

</llo_original>
